<compile_context>
chip_gen: v7x
topology: tpu7x:2x2x1
jax: 0.10.0
libtpu: 0.0.40
codegen_flags: <defaults>
</compile_context>

<pallas_src>
import functools

import numpy as np
import jax
import jax.numpy as jnp
from jax import lax
from jax.experimental import pallas as pl
from jax.experimental.pallas import tpu as pltpu


def _tap_geometry(H, W):
    """Per-tap roll shifts and validity masks for a 3x3 'same' conv on a
    row-major flattened (H, W) grid.  Taps are in (ky, kx) row-major order."""
    n = H * W
    yy, xx = np.meshgrid(np.arange(H), np.arange(W), indexing="ij")
    shifts, masks = [], []
    for dy in (-1, 0, 1):
        for dx in (-1, 0, 1):
            # shifted[p] must equal h[p + dy*W + dx]; roll(h, s)[p] = h[p - s]
            #   =>  s = -(dy*W + dx)  (taken mod n).
            shifts.append((-(dy * W + dx)) % n)
            valid = ((yy + dy >= 0) & (yy + dy < H) &
                     (xx + dx >= 0) & (xx + dx < W))
            masks.append(valid.reshape(-1).astype(np.float32))
    return tuple(shifts), jnp.asarray(np.stack(masks))          # (9, H*W)


def _conv_weight_taps(w, dtype):
    """(Cout, Cin, 3, 3) PyTorch conv weight -> (9, Cout, Cin) per-tap matrices,
    taps in (ky, kx) row-major order (matches _tap_geometry)."""
    co, ci = w.shape[0], w.shape[1]
    return jnp.transpose(w, (2, 3, 0, 1)).reshape(9, co, ci).astype(dtype)


def _pick_batch_tile(B, cin, cmid, cout):
    """Small-channel configs use a tiny fraction of the MXU rows per sample;
    amortize per-grid-step overhead / weight residency over a few samples."""
    if max(cin, cmid, cout) > 32:
        return 1
    for bt in range(min(B, 8), 0, -1):
        if B % bt == 0:
            return bt
    return 1


# ----------------------------- fused kernel ---------------------------------
def _adain_res_blk_kernel(
        x_ref, masks_ref, g1_ref, t1_ref, w1_ref, b1_ref,
        g2_ref, t2_ref, w2_ref, b2_ref, o_ref,
        *, eps, bt, shifts):
    # x_ref:     (bt, Cin, N)   N = H*W on the 128-lane axis, channels on sublanes
    # masks_ref: (9, N) f32     tap validity masks (1.0 where the read is in-grid)
    # g*_ref:    (bt, C, 1)     1 + gamma (style modulation, hoisted to XLA)
    # t*_ref:    (C, 1)         tau
    # w*_ref:    (9, Cout, Cin) per-tap conv weight matrices (compute dtype)
    # b*_ref:    (Cout, 1)
    # o_ref:     (bt, Cout, N)

    def adafrn(h, g, tau_ref):
        # FRN over the spatial (lane) axis + style-modulated TLU; all f32.
        ms = jnp.mean(h * h, axis=-1, keepdims=True)             # (C, 1)
        return jnp.maximum(g * (h * lax.rsqrt(ms + eps)), tau_ref[...])

    def conv3x3(h, w_ref, b_ref):
        # 3x3 'same' conv = 9 accumulating (Cout, Cin) @ (Cin, N) MXU dots.
        # Out-of-grid taps are zeroed by the precomputed masks, which is exactly
        # equivalent to zero padding (no padded buffer, no crop).
        acc = None
        for t, sh in enumerate(shifts):
            shifted = h if sh == 0 else pltpu.roll(h, sh, axis=1)   # XLU lane rot
            masked = (shifted * masks_ref[t:t + 1, :]).astype(w_ref.dtype)
            part = jnp.dot(w_ref[t], masked,
                           preferred_element_type=jnp.float32)
            acc = part if acc is None else acc + part
        return acc + b_ref[...]

    for i in range(bt):   # static unroll: per-sample FRN means stay exact
        h = adafrn(x_ref[i], g1_ref[i], t1_ref)       # (Cin,  N)
        h = conv3x3(h, w1_ref, b1_ref)                # (Cmid, N)
        h = adafrn(h, g2_ref[i], t2_ref)              # (Cmid, N)
        h = conv3x3(h, w2_ref, b2_ref)                # (Cout, N)
        o_ref[i] = h.astype(o_ref.dtype)


# ------------------------------ full forward --------------------------------
def adain_res_blk_forward(x_nchw, s, params, eps=1e-5,
                          compute_dtype=jnp.float32, batch_tile=None):
    B, cin, H, W = x_nchw.shape
    cmid = params["conv1_w"].shape[0]
    cout = params["conv2_w"].shape[0]
    n = H * W
    shifts, masks = _tap_geometry(H, W)
    bt = batch_tile or _pick_batch_tile(B, cin, cmid, cout)
    assert B % bt == 0, (B, bt)

    # Hoisted per-sample style modulation: 1 + gamma (the beta half of fc is
    # unused by AdaFRN.forward).
    hp = lax.Precision.HIGHEST
    g1 = 1.0 + jnp.dot(s, params["fc1_w"][:cin].T, precision=hp) + params["fc1_b"][:cin]
    g2 = 1.0 + jnp.dot(s, params["fc2_w"][:cmid].T, precision=hp) + params["fc2_b"][:cmid]

    w1 = _conv_weight_taps(params["conv1_w"], compute_dtype)    # (9, cmid, cin)
    w2 = _conv_weight_taps(params["conv2_w"], compute_dtype)    # (9, cout, cmid)

    args = (
        x_nchw.reshape(B, cin, n).astype(jnp.float32),          # free NCHW reshape
        masks,
        g1[:, :, None].astype(jnp.float32),
        params["tau1"].reshape(cin, 1).astype(jnp.float32),
        w1,
        params["conv1_b"].reshape(cmid, 1).astype(jnp.float32),
        g2[:, :, None].astype(jnp.float32),
        params["tau2"].reshape(cmid, 1).astype(jnp.float32),
        w2,
        params["conv2_b"].reshape(cout, 1).astype(jnp.float32),
    )

    kernel = functools.partial(_adain_res_blk_kernel, eps=eps, bt=bt,
                               shifts=shifts)

    # Explicit VMEM budget: ~3x the per-step block footprint (covers the
    # double-buffered batch-varying blocks plus in-kernel temporaries/acc)
    # + headroom, capped well under v7x's 64 MiB physical VMEM.
    cs = jnp.dtype(compute_dtype).itemsize
    blk_bytes = (bt * cin * n * 4 + bt * cout * n * 4 + 9 * n * 4
                 + 9 * cmid * cin * cs + 9 * cout * cmid * cs
                 + (bt * (cin + cmid) + 2 * cin + 3 * cmid + 2 * cout) * 4
                 + 2 * max(cin, cmid, cout) * n * 4)            # h / acc temps
    vmem_limit = int(min(max(3 * blk_bytes + (8 << 20), 16 << 20), 56 << 20))

    def build(single_buffer_invariants):
        # Grid-invariant operands never change block -> single-buffer them.
        inv = ({"pipeline_mode": pl.Buffered(1)}
               if single_buffer_invariants else {})
        in_specs = [
            pl.BlockSpec((bt, cin, n), lambda b: (b, 0, 0)),
            pl.BlockSpec((9, n), lambda b: (0, 0), **inv),
            pl.BlockSpec((bt, cin, 1), lambda b: (b, 0, 0)),
            pl.BlockSpec((cin, 1), lambda b: (0, 0), **inv),
            pl.BlockSpec((9, cmid, cin), lambda b: (0, 0, 0), **inv),
            pl.BlockSpec((cmid, 1), lambda b: (0, 0), **inv),
            pl.BlockSpec((bt, cmid, 1), lambda b: (b, 0, 0)),
            pl.BlockSpec((cmid, 1), lambda b: (0, 0), **inv),
            pl.BlockSpec((9, cout, cmid), lambda b: (0, 0, 0), **inv),
            pl.BlockSpec((cout, 1), lambda b: (0, 0), **inv),
        ]
        return pl.pallas_call(
            kernel,
            out_shape=jax.ShapeDtypeStruct((B, cout, n), jnp.float32),
            grid=(B // bt,),
            in_specs=in_specs,
            out_specs=pl.BlockSpec((bt, cout, n), lambda b: (b, 0, 0)),
            compiler_params=pltpu.CompilerParams(
                dimension_semantics=("parallel",),
                vmem_limit_bytes=vmem_limit),
        )

    try:
        out = build(True)(*args)
    except Exception:
        # pipeline_mode hint not supported by this jax build -> identical
        # semantics with the default (double-buffered) pipeline.
        out = build(False)(*args)
    return out.reshape(B, cout, H, W)


# --------------------------- pure-JAX reference ------------------------------
def _adafrn_ref(x, s, fc_w, fc_b, tau, eps=1e-5):
    c = x.shape[1]
    xn = x * lax.rsqrt(jnp.mean(x * x, axis=(2, 3), keepdims=True) + eps)
    h = jnp.dot(s, fc_w.T, precision=lax.Precision.HIGHEST) + fc_b
    gamma = h[:, :c][:, :, None, None]
    return jnp.maximum((1.0 + gamma) * xn, tau)


def _conv3x3_ref(x, w, b):
    y = lax.conv_general_dilated(x, w, (1, 1), ((1, 1), (1, 1)),
                                 dimension_numbers=("NCHW", "OIHW", "NCHW"),
                                 precision=lax.Precision.HIGHEST)
    return y + b.reshape(1, -1, 1, 1)


def _forward_ref(x, s, p, eps=1e-5):
    h = _adafrn_ref(x, s, p["fc1_w"], p["fc1_b"], p["tau1"], eps)
    h = _conv3x3_ref(h, p["conv1_w"], p["conv1_b"])
    h = _adafrn_ref(h, s, p["fc2_w"], p["fc2_b"], p["tau2"], eps)
    h = _conv3x3_ref(h, p["conv2_w"], p["conv2_b"])
    return h


# ---------------------------------- main -------------------------------------
if __name__ == "__main__":
    B, dim_in, dim_out, style_dim, H, W = 2, 4, 8, 16, 16, 16

    key = jax.random.PRNGKey(0)
    ks = jax.random.split(key, 12)
    x = jax.random.normal(ks[0], (B, dim_in, H, W), jnp.float32)   # NCHW, like PyTorch
    s = jax.random.normal(ks[1], (B, style_dim), jnp.float32)

    params = {
        # AdaFRN fc layers (full 2*C outputs; the beta half is unused in forward).
        "fc1_w": jax.random.normal(ks[2], (2 * dim_in, style_dim), jnp.float32) * 0.1,
        "fc1_b": jax.random.normal(ks[3], (2 * dim_in,), jnp.float32) * 0.1,
        "fc2_w": jax.random.normal(ks[4], (2 * dim_out, style_dim), jnp.float32) * 0.1,
        "fc2_b": jax.random.normal(ks[5], (2 * dim_out,), jnp.float32) * 0.1,
        "tau1": jax.random.normal(ks[6], (1, dim_in, 1, 1), jnp.float32) * 0.1,
        "tau2": jax.random.normal(ks[7], (1, dim_out, 1, 1), jnp.float32) * 0.1,
        # Conv weights in PyTorch OIHW layout.
        "conv1_w": jax.random.normal(ks[8], (dim_out, dim_in, 3, 3), jnp.float32) * 0.1,
        "conv1_b": jax.random.normal(ks[9], (dim_out,), jnp.float32) * 0.1,
        "conv2_w": jax.random.normal(ks[10], (dim_out, dim_out, 3, 3), jnp.float32) * 0.1,
        "conv2_b": jax.random.normal(ks[11], (dim_out,), jnp.float32) * 0.1,
    }

    # f32 path (exact semantics of the PyTorch module).
    out = jax.block_until_ready(adain_res_blk_forward(x, s, params))
    assert out.shape == (B, dim_out, H, W), out.shape

    ref = jax.block_until_ready(_forward_ref(x, s, params))
    err = float(jnp.max(jnp.abs(out - ref)))
    assert jnp.allclose(out, ref, rtol=2e-4, atol=2e-4), f"f32 max abs err = {err}"

    # bf16 MXU-operand path (f32 accumulation), as recommended for v6e/v7x.
    out_bf16 = jax.block_until_ready(
        adain_res_blk_forward(x, s, params, compute_dtype=jnp.bfloat16))
    err_b = float(jnp.max(jnp.abs(out_bf16 - ref)))
    assert jnp.allclose(out_bf16, ref, rtol=5e-2, atol=5e-2), f"bf16 max abs err = {err_b}"

    print("KERNEL_OK")
</pallas_src>

<mosaic_0001>
module attributes {stable_mosaic.version = 11 : i64} {
  func.func @_adain_res_blk_kernel(%arg0: i32, %arg1: memref<2x4x256xf32, #tpu.memory_space<vmem>>, %arg2: memref<9x256xf32, #tpu.memory_space<vmem>>, %arg3: memref<2x4x1xf32, #tpu.memory_space<vmem>>, %arg4: memref<4x1xf32, #tpu.memory_space<vmem>>, %arg5: memref<9x8x4xf32, #tpu.memory_space<vmem>>, %arg6: memref<8x1xf32, #tpu.memory_space<vmem>>, %arg7: memref<2x8x1xf32, #tpu.memory_space<vmem>>, %arg8: memref<8x1xf32, #tpu.memory_space<vmem>>, %arg9: memref<9x8x8xf32, #tpu.memory_space<vmem>>, %arg10: memref<8x1xf32, #tpu.memory_space<vmem>>, %arg11: memref<2x8x256xf32, #tpu.memory_space<vmem>>) attributes {dimension_semantics = [#tpu.dimension_semantics<parallel>], iteration_bounds = array<i64: 1>, scalar_prefetch = 0 : i64, scratch_operands = 0 : i64, tpu.core_type = #tpu.core_type<tc>, window_params = [{transform_indices = @transform_0, window_bounds = array<i64: 2, 4, 256>}, {pipeline_mode = #tpu.pipeline_mode<synchronous>, transform_indices = @transform_1, window_bounds = array<i64: 9, 256>}, {transform_indices = @transform_2, window_bounds = array<i64: 2, 4, 1>}, {pipeline_mode = #tpu.pipeline_mode<synchronous>, transform_indices = @transform_3, window_bounds = array<i64: 4, 1>}, {pipeline_mode = #tpu.pipeline_mode<synchronous>, transform_indices = @transform_4, window_bounds = array<i64: 9, 8, 4>}, {pipeline_mode = #tpu.pipeline_mode<synchronous>, transform_indices = @transform_5, window_bounds = array<i64: 8, 1>}, {transform_indices = @transform_6, window_bounds = array<i64: 2, 8, 1>}, {pipeline_mode = #tpu.pipeline_mode<synchronous>, transform_indices = @transform_7, window_bounds = array<i64: 8, 1>}, {pipeline_mode = #tpu.pipeline_mode<synchronous>, transform_indices = @transform_8, window_bounds = array<i64: 9, 8, 8>}, {pipeline_mode = #tpu.pipeline_mode<synchronous>, transform_indices = @transform_9, window_bounds = array<i64: 8, 1>}, {transform_indices = @transform_10, window_bounds = array<i64: 2, 8, 256>}]} {
    %c0 = arith.constant 0 : index
    %c0_0 = arith.constant 0 : index
    %c0_1 = arith.constant 0 : index
    %0 = vector.load %arg1[%c0, %c0_0, %c0_1] : memref<2x4x256xf32, #tpu.memory_space<vmem>>, vector<1x4x256xf32>
    %1 = vector.shape_cast %0 : vector<1x4x256xf32> to vector<4x256xf32>
    %c0_2 = arith.constant 0 : index
    %c0_3 = arith.constant 0 : index
    %c0_4 = arith.constant 0 : index
    %2 = vector.load %arg3[%c0_2, %c0_3, %c0_4] : memref<2x4x1xf32, #tpu.memory_space<vmem>>, vector<1x4x1xf32>
    %3 = vector.shape_cast %2 : vector<1x4x1xf32> to vector<4x1xf32>
    %4 = arith.mulf %1, %1 : vector<4x256xf32>
    %cst = arith.constant dense<0.000000e+00> : vector<4xf32>
    %5 = vector.multi_reduction <add>, %4, %cst [1] : vector<4x256xf32> to vector<4xf32>
    %6 = vector.shape_cast %5 : vector<4xf32> to vector<4x1xf32>
    %cst_5 = arith.constant 2.560000e+02 : f32
    %7 = vector.broadcast %cst_5 : f32 to vector<4x1xf32>
    %8 = arith.divf %6, %7 : vector<4x1xf32>
    %cst_6 = arith.constant 9.99999974E-6 : f32
    %9 = vector.broadcast %cst_6 : f32 to vector<4x1xf32>
    %10 = arith.addf %8, %9 : vector<4x1xf32>
    %11 = math.rsqrt %10 : vector<4x1xf32>
    %12 = vector.broadcast %11 : vector<4x1xf32> to vector<4x256xf32>
    %13 = arith.mulf %1, %12 : vector<4x256xf32>
    %14 = vector.broadcast %3 : vector<4x1xf32> to vector<4x256xf32>
    %15 = arith.mulf %14, %13 : vector<4x256xf32>
    %c0_7 = arith.constant 0 : index
    %c0_8 = arith.constant 0 : index
    %16 = vector.load %arg4[%c0_7, %c0_8] : memref<4x1xf32, #tpu.memory_space<vmem>>, vector<4x1xf32>
    %17 = vector.broadcast %16 : vector<4x1xf32> to vector<4x256xf32>
    %18 = arith.maximumf %15, %17 : vector<4x256xf32>
    %c17_i32 = arith.constant 17 : i32
    %19 = tpu.dynamic_rotate %18 by %c17_i32 dim 1 : vector<4x256xf32>, i32 -> vector<4x256xf32>
    %c0_9 = arith.constant 0 : index
    %c0_10 = arith.constant 0 : index
    %20 = vector.load %arg2[%c0_9, %c0_10] : memref<9x256xf32, #tpu.memory_space<vmem>>, vector<1x256xf32>
    %21 = vector.broadcast %20 : vector<1x256xf32> to vector<4x256xf32>
    %22 = arith.mulf %19, %21 : vector<4x256xf32>
    %c0_11 = arith.constant 0 : index
    %c0_12 = arith.constant 0 : index
    %c0_13 = arith.constant 0 : index
    %23 = vector.load %arg5[%c0_11, %c0_12, %c0_13] : memref<9x8x4xf32, #tpu.memory_space<vmem>>, vector<1x8x4xf32>
    %24 = vector.shape_cast %23 : vector<1x8x4xf32> to vector<8x4xf32>
    %cst_14 = arith.constant dense<0.000000e+00> : vector<8x256xf32>
    %25 = tpu.matmul %24, %22, %cst_14 {dimension_numbers = #tpu.dot_dimension_numbers<[1], [0], [0], [1], [0, 0, 1, 1], [], []>} : vector<8x4xf32>, vector<4x256xf32>, vector<8x256xf32> -> vector<8x256xf32>
    %c16_i32 = arith.constant 16 : i32
    %26 = tpu.dynamic_rotate %18 by %c16_i32 dim 1 : vector<4x256xf32>, i32 -> vector<4x256xf32>
    %c1 = arith.constant 1 : index
    %c0_15 = arith.constant 0 : index
    %27 = vector.load %arg2[%c1, %c0_15] : memref<9x256xf32, #tpu.memory_space<vmem>>, vector<1x256xf32>
    %28 = vector.broadcast %27 : vector<1x256xf32> to vector<4x256xf32>
    %29 = arith.mulf %26, %28 : vector<4x256xf32>
    %c1_16 = arith.constant 1 : index
    %c0_17 = arith.constant 0 : index
    %c0_18 = arith.constant 0 : index
    %30 = vector.load %arg5[%c1_16, %c0_17, %c0_18] : memref<9x8x4xf32, #tpu.memory_space<vmem>>, vector<1x8x4xf32>
    %31 = vector.shape_cast %30 : vector<1x8x4xf32> to vector<8x4xf32>
    %cst_19 = arith.constant dense<0.000000e+00> : vector<8x256xf32>
    %32 = tpu.matmul %31, %29, %cst_19 {dimension_numbers = #tpu.dot_dimension_numbers<[1], [0], [0], [1], [0, 0, 1, 1], [], []>} : vector<8x4xf32>, vector<4x256xf32>, vector<8x256xf32> -> vector<8x256xf32>
    %33 = arith.addf %25, %32 : vector<8x256xf32>
    %c15_i32 = arith.constant 15 : i32
    %34 = tpu.dynamic_rotate %18 by %c15_i32 dim 1 : vector<4x256xf32>, i32 -> vector<4x256xf32>
    %c2 = arith.constant 2 : index
    %c0_20 = arith.constant 0 : index
    %35 = vector.load %arg2[%c2, %c0_20] : memref<9x256xf32, #tpu.memory_space<vmem>>, vector<1x256xf32>
    %36 = vector.broadcast %35 : vector<1x256xf32> to vector<4x256xf32>
    %37 = arith.mulf %34, %36 : vector<4x256xf32>
    %c2_21 = arith.constant 2 : index
    %c0_22 = arith.constant 0 : index
    %c0_23 = arith.constant 0 : index
    %38 = vector.load %arg5[%c2_21, %c0_22, %c0_23] : memref<9x8x4xf32, #tpu.memory_space<vmem>>, vector<1x8x4xf32>
    %39 = vector.shape_cast %38 : vector<1x8x4xf32> to vector<8x4xf32>
    %cst_24 = arith.constant dense<0.000000e+00> : vector<8x256xf32>
    %40 = tpu.matmul %39, %37, %cst_24 {dimension_numbers = #tpu.dot_dimension_numbers<[1], [0], [0], [1], [0, 0, 1, 1], [], []>} : vector<8x4xf32>, vector<4x256xf32>, vector<8x256xf32> -> vector<8x256xf32>
    %41 = arith.addf %33, %40 : vector<8x256xf32>
    %c1_i32 = arith.constant 1 : i32
    %42 = tpu.dynamic_rotate %18 by %c1_i32 dim 1 : vector<4x256xf32>, i32 -> vector<4x256xf32>
    %c3 = arith.constant 3 : index
    %c0_25 = arith.constant 0 : index
    %43 = vector.load %arg2[%c3, %c0_25] : memref<9x256xf32, #tpu.memory_space<vmem>>, vector<1x256xf32>
    %44 = vector.broadcast %43 : vector<1x256xf32> to vector<4x256xf32>
    %45 = arith.mulf %42, %44 : vector<4x256xf32>
    %c3_26 = arith.constant 3 : index
    %c0_27 = arith.constant 0 : index
    %c0_28 = arith.constant 0 : index
    %46 = vector.load %arg5[%c3_26, %c0_27, %c0_28] : memref<9x8x4xf32, #tpu.memory_space<vmem>>, vector<1x8x4xf32>
    %47 = vector.shape_cast %46 : vector<1x8x4xf32> to vector<8x4xf32>
    %cst_29 = arith.constant dense<0.000000e+00> : vector<8x256xf32>
    %48 = tpu.matmul %47, %45, %cst_29 {dimension_numbers = #tpu.dot_dimension_numbers<[1], [0], [0], [1], [0, 0, 1, 1], [], []>} : vector<8x4xf32>, vector<4x256xf32>, vector<8x256xf32> -> vector<8x256xf32>
    %49 = arith.addf %41, %48 : vector<8x256xf32>
    %c4 = arith.constant 4 : index
    %c0_30 = arith.constant 0 : index
    %50 = vector.load %arg2[%c4, %c0_30] : memref<9x256xf32, #tpu.memory_space<vmem>>, vector<1x256xf32>
    %51 = vector.broadcast %50 : vector<1x256xf32> to vector<4x256xf32>
    %52 = arith.mulf %18, %51 : vector<4x256xf32>
    %c4_31 = arith.constant 4 : index
    %c0_32 = arith.constant 0 : index
    %c0_33 = arith.constant 0 : index
    %53 = vector.load %arg5[%c4_31, %c0_32, %c0_33] : memref<9x8x4xf32, #tpu.memory_space<vmem>>, vector<1x8x4xf32>
    %54 = vector.shape_cast %53 : vector<1x8x4xf32> to vector<8x4xf32>
    %cst_34 = arith.constant dense<0.000000e+00> : vector<8x256xf32>
    %55 = tpu.matmul %54, %52, %cst_34 {dimension_numbers = #tpu.dot_dimension_numbers<[1], [0], [0], [1], [0, 0, 1, 1], [], []>} : vector<8x4xf32>, vector<4x256xf32>, vector<8x256xf32> -> vector<8x256xf32>
    %56 = arith.addf %49, %55 : vector<8x256xf32>
    %c255_i32 = arith.constant 255 : i32
    %57 = tpu.dynamic_rotate %18 by %c255_i32 dim 1 : vector<4x256xf32>, i32 -> vector<4x256xf32>
    %c5 = arith.constant 5 : index
    %c0_35 = arith.constant 0 : index
    %58 = vector.load %arg2[%c5, %c0_35] : memref<9x256xf32, #tpu.memory_space<vmem>>, vector<1x256xf32>
    %59 = vector.broadcast %58 : vector<1x256xf32> to vector<4x256xf32>
    %60 = arith.mulf %57, %59 : vector<4x256xf32>
    %c5_36 = arith.constant 5 : index
    %c0_37 = arith.constant 0 : index
    %c0_38 = arith.constant 0 : index
    %61 = vector.load %arg5[%c5_36, %c0_37, %c0_38] : memref<9x8x4xf32, #tpu.memory_space<vmem>>, vector<1x8x4xf32>
    %62 = vector.shape_cast %61 : vector<1x8x4xf32> to vector<8x4xf32>
    %cst_39 = arith.constant dense<0.000000e+00> : vector<8x256xf32>
    %63 = tpu.matmul %62, %60, %cst_39 {dimension_numbers = #tpu.dot_dimension_numbers<[1], [0], [0], [1], [0, 0, 1, 1], [], []>} : vector<8x4xf32>, vector<4x256xf32>, vector<8x256xf32> -> vector<8x256xf32>
    %64 = arith.addf %56, %63 : vector<8x256xf32>
    %c241_i32 = arith.constant 241 : i32
    %65 = tpu.dynamic_rotate %18 by %c241_i32 dim 1 : vector<4x256xf32>, i32 -> vector<4x256xf32>
    %c6 = arith.constant 6 : index
    %c0_40 = arith.constant 0 : index
    %66 = vector.load %arg2[%c6, %c0_40] : memref<9x256xf32, #tpu.memory_space<vmem>>, vector<1x256xf32>
    %67 = vector.broadcast %66 : vector<1x256xf32> to vector<4x256xf32>
    %68 = arith.mulf %65, %67 : vector<4x256xf32>
    %c6_41 = arith.constant 6 : index
    %c0_42 = arith.constant 0 : index
    %c0_43 = arith.constant 0 : index
    %69 = vector.load %arg5[%c6_41, %c0_42, %c0_43] : memref<9x8x4xf32, #tpu.memory_space<vmem>>, vector<1x8x4xf32>
    %70 = vector.shape_cast %69 : vector<1x8x4xf32> to vector<8x4xf32>
    %cst_44 = arith.constant dense<0.000000e+00> : vector<8x256xf32>
    %71 = tpu.matmul %70, %68, %cst_44 {dimension_numbers = #tpu.dot_dimension_numbers<[1], [0], [0], [1], [0, 0, 1, 1], [], []>} : vector<8x4xf32>, vector<4x256xf32>, vector<8x256xf32> -> vector<8x256xf32>
    %72 = arith.addf %64, %71 : vector<8x256xf32>
    %c240_i32 = arith.constant 240 : i32
    %73 = tpu.dynamic_rotate %18 by %c240_i32 dim 1 : vector<4x256xf32>, i32 -> vector<4x256xf32>
    %c7 = arith.constant 7 : index
    %c0_45 = arith.constant 0 : index
    %74 = vector.load %arg2[%c7, %c0_45] : memref<9x256xf32, #tpu.memory_space<vmem>>, vector<1x256xf32>
    %75 = vector.broadcast %74 : vector<1x256xf32> to vector<4x256xf32>
    %76 = arith.mulf %73, %75 : vector<4x256xf32>
    %c7_46 = arith.constant 7 : index
    %c0_47 = arith.constant 0 : index
    %c0_48 = arith.constant 0 : index
    %77 = vector.load %arg5[%c7_46, %c0_47, %c0_48] : memref<9x8x4xf32, #tpu.memory_space<vmem>>, vector<1x8x4xf32>
    %78 = vector.shape_cast %77 : vector<1x8x4xf32> to vector<8x4xf32>
    %cst_49 = arith.constant dense<0.000000e+00> : vector<8x256xf32>
    %79 = tpu.matmul %78, %76, %cst_49 {dimension_numbers = #tpu.dot_dimension_numbers<[1], [0], [0], [1], [0, 0, 1, 1], [], []>} : vector<8x4xf32>, vector<4x256xf32>, vector<8x256xf32> -> vector<8x256xf32>
    %80 = arith.addf %72, %79 : vector<8x256xf32>
    %c239_i32 = arith.constant 239 : i32
    %81 = tpu.dynamic_rotate %18 by %c239_i32 dim 1 : vector<4x256xf32>, i32 -> vector<4x256xf32>
    %c8 = arith.constant 8 : index
    %c0_50 = arith.constant 0 : index
    %82 = vector.load %arg2[%c8, %c0_50] : memref<9x256xf32, #tpu.memory_space<vmem>>, vector<1x256xf32>
    %83 = vector.broadcast %82 : vector<1x256xf32> to vector<4x256xf32>
    %84 = arith.mulf %81, %83 : vector<4x256xf32>
    %c8_51 = arith.constant 8 : index
    %c0_52 = arith.constant 0 : index
    %c0_53 = arith.constant 0 : index
    %85 = vector.load %arg5[%c8_51, %c0_52, %c0_53] : memref<9x8x4xf32, #tpu.memory_space<vmem>>, vector<1x8x4xf32>
    %86 = vector.shape_cast %85 : vector<1x8x4xf32> to vector<8x4xf32>
    %cst_54 = arith.constant dense<0.000000e+00> : vector<8x256xf32>
    %87 = tpu.matmul %86, %84, %cst_54 {dimension_numbers = #tpu.dot_dimension_numbers<[1], [0], [0], [1], [0, 0, 1, 1], [], []>} : vector<8x4xf32>, vector<4x256xf32>, vector<8x256xf32> -> vector<8x256xf32>
    %88 = arith.addf %80, %87 : vector<8x256xf32>
    %c0_55 = arith.constant 0 : index
    %c0_56 = arith.constant 0 : index
    %89 = vector.load %arg6[%c0_55, %c0_56] : memref<8x1xf32, #tpu.memory_space<vmem>>, vector<8x1xf32>
    %90 = vector.broadcast %89 : vector<8x1xf32> to vector<8x256xf32>
    %91 = arith.addf %88, %90 : vector<8x256xf32>
    %c0_57 = arith.constant 0 : index
    %c0_58 = arith.constant 0 : index
    %c0_59 = arith.constant 0 : index
    %92 = vector.load %arg7[%c0_57, %c0_58, %c0_59] : memref<2x8x1xf32, #tpu.memory_space<vmem>>, vector<1x8x1xf32>
    %93 = vector.shape_cast %92 : vector<1x8x1xf32> to vector<8x1xf32>
    %94 = arith.mulf %91, %91 : vector<8x256xf32>
    %cst_60 = arith.constant dense<0.000000e+00> : vector<8xf32>
    %95 = vector.multi_reduction <add>, %94, %cst_60 [1] : vector<8x256xf32> to vector<8xf32>
    %96 = vector.shape_cast %95 : vector<8xf32> to vector<8x1xf32>
    %cst_61 = arith.constant 2.560000e+02 : f32
    %97 = vector.broadcast %cst_61 : f32 to vector<8x1xf32>
    %98 = arith.divf %96, %97 : vector<8x1xf32>
    %cst_62 = arith.constant 9.99999974E-6 : f32
    %99 = vector.broadcast %cst_62 : f32 to vector<8x1xf32>
    %100 = arith.addf %98, %99 : vector<8x1xf32>
    %101 = math.rsqrt %100 : vector<8x1xf32>
    %102 = vector.broadcast %101 : vector<8x1xf32> to vector<8x256xf32>
    %103 = arith.mulf %91, %102 : vector<8x256xf32>
    %104 = vector.broadcast %93 : vector<8x1xf32> to vector<8x256xf32>
    %105 = arith.mulf %104, %103 : vector<8x256xf32>
    %c0_63 = arith.constant 0 : index
    %c0_64 = arith.constant 0 : index
    %106 = vector.load %arg8[%c0_63, %c0_64] : memref<8x1xf32, #tpu.memory_space<vmem>>, vector<8x1xf32>
    %107 = vector.broadcast %106 : vector<8x1xf32> to vector<8x256xf32>
    %108 = arith.maximumf %105, %107 : vector<8x256xf32>
    %c17_i32_65 = arith.constant 17 : i32
    %109 = tpu.dynamic_rotate %108 by %c17_i32_65 dim 1 : vector<8x256xf32>, i32 -> vector<8x256xf32>
    %c0_66 = arith.constant 0 : index
    %c0_67 = arith.constant 0 : index
    %110 = vector.load %arg2[%c0_66, %c0_67] : memref<9x256xf32, #tpu.memory_space<vmem>>, vector<1x256xf32>
    %111 = vector.broadcast %110 : vector<1x256xf32> to vector<8x256xf32>
    %112 = arith.mulf %109, %111 : vector<8x256xf32>
    %c0_68 = arith.constant 0 : index
    %c0_69 = arith.constant 0 : index
    %c0_70 = arith.constant 0 : index
    %113 = vector.load %arg9[%c0_68, %c0_69, %c0_70] : memref<9x8x8xf32, #tpu.memory_space<vmem>>, vector<1x8x8xf32>
    %114 = vector.shape_cast %113 : vector<1x8x8xf32> to vector<8x8xf32>
    %cst_71 = arith.constant dense<0.000000e+00> : vector<8x256xf32>
    %115 = tpu.matmul %114, %112, %cst_71 {dimension_numbers = #tpu.dot_dimension_numbers<[1], [0], [0], [1], [0, 0, 1, 1], [], []>} : vector<8x8xf32>, vector<8x256xf32>, vector<8x256xf32> -> vector<8x256xf32>
    %c16_i32_72 = arith.constant 16 : i32
    %116 = tpu.dynamic_rotate %108 by %c16_i32_72 dim 1 : vector<8x256xf32>, i32 -> vector<8x256xf32>
    %c1_73 = arith.constant 1 : index
    %c0_74 = arith.constant 0 : index
    %117 = vector.load %arg2[%c1_73, %c0_74] : memref<9x256xf32, #tpu.memory_space<vmem>>, vector<1x256xf32>
    %118 = vector.broadcast %117 : vector<1x256xf32> to vector<8x256xf32>
    %119 = arith.mulf %116, %118 : vector<8x256xf32>
    %c1_75 = arith.constant 1 : index
    %c0_76 = arith.constant 0 : index
    %c0_77 = arith.constant 0 : index
    %120 = vector.load %arg9[%c1_75, %c0_76, %c0_77] : memref<9x8x8xf32, #tpu.memory_space<vmem>>, vector<1x8x8xf32>
    %121 = vector.shape_cast %120 : vector<1x8x8xf32> to vector<8x8xf32>
    %cst_78 = arith.constant dense<0.000000e+00> : vector<8x256xf32>
    %122 = tpu.matmul %121, %119, %cst_78 {dimension_numbers = #tpu.dot_dimension_numbers<[1], [0], [0], [1], [0, 0, 1, 1], [], []>} : vector<8x8xf32>, vector<8x256xf32>, vector<8x256xf32> -> vector<8x256xf32>
    %123 = arith.addf %115, %122 : vector<8x256xf32>
    %c15_i32_79 = arith.constant 15 : i32
    %124 = tpu.dynamic_rotate %108 by %c15_i32_79 dim 1 : vector<8x256xf32>, i32 -> vector<8x256xf32>
    %c2_80 = arith.constant 2 : index
    %c0_81 = arith.constant 0 : index
    %125 = vector.load %arg2[%c2_80, %c0_81] : memref<9x256xf32, #tpu.memory_space<vmem>>, vector<1x256xf32>
    %126 = vector.broadcast %125 : vector<1x256xf32> to vector<8x256xf32>
    %127 = arith.mulf %124, %126 : vector<8x256xf32>
    %c2_82 = arith.constant 2 : index
    %c0_83 = arith.constant 0 : index
    %c0_84 = arith.constant 0 : index
    %128 = vector.load %arg9[%c2_82, %c0_83, %c0_84] : memref<9x8x8xf32, #tpu.memory_space<vmem>>, vector<1x8x8xf32>
    %129 = vector.shape_cast %128 : vector<1x8x8xf32> to vector<8x8xf32>
    %cst_85 = arith.constant dense<0.000000e+00> : vector<8x256xf32>
    %130 = tpu.matmul %129, %127, %cst_85 {dimension_numbers = #tpu.dot_dimension_numbers<[1], [0], [0], [1], [0, 0, 1, 1], [], []>} : vector<8x8xf32>, vector<8x256xf32>, vector<8x256xf32> -> vector<8x256xf32>
    %131 = arith.addf %123, %130 : vector<8x256xf32>
    %c1_i32_86 = arith.constant 1 : i32
    %132 = tpu.dynamic_rotate %108 by %c1_i32_86 dim 1 : vector<8x256xf32>, i32 -> vector<8x256xf32>
    %c3_87 = arith.constant 3 : index
    %c0_88 = arith.constant 0 : index
    %133 = vector.load %arg2[%c3_87, %c0_88] : memref<9x256xf32, #tpu.memory_space<vmem>>, vector<1x256xf32>
    %134 = vector.broadcast %133 : vector<1x256xf32> to vector<8x256xf32>
    %135 = arith.mulf %132, %134 : vector<8x256xf32>
    %c3_89 = arith.constant 3 : index
    %c0_90 = arith.constant 0 : index
    %c0_91 = arith.constant 0 : index
    %136 = vector.load %arg9[%c3_89, %c0_90, %c0_91] : memref<9x8x8xf32, #tpu.memory_space<vmem>>, vector<1x8x8xf32>
    %137 = vector.shape_cast %136 : vector<1x8x8xf32> to vector<8x8xf32>
    %cst_92 = arith.constant dense<0.000000e+00> : vector<8x256xf32>
    %138 = tpu.matmul %137, %135, %cst_92 {dimension_numbers = #tpu.dot_dimension_numbers<[1], [0], [0], [1], [0, 0, 1, 1], [], []>} : vector<8x8xf32>, vector<8x256xf32>, vector<8x256xf32> -> vector<8x256xf32>
    %139 = arith.addf %131, %138 : vector<8x256xf32>
    %c4_93 = arith.constant 4 : index
    %c0_94 = arith.constant 0 : index
    %140 = vector.load %arg2[%c4_93, %c0_94] : memref<9x256xf32, #tpu.memory_space<vmem>>, vector<1x256xf32>
    %141 = vector.broadcast %140 : vector<1x256xf32> to vector<8x256xf32>
    %142 = arith.mulf %108, %141 : vector<8x256xf32>
    %c4_95 = arith.constant 4 : index
    %c0_96 = arith.constant 0 : index
    %c0_97 = arith.constant 0 : index
    %143 = vector.load %arg9[%c4_95, %c0_96, %c0_97] : memref<9x8x8xf32, #tpu.memory_space<vmem>>, vector<1x8x8xf32>
    %144 = vector.shape_cast %143 : vector<1x8x8xf32> to vector<8x8xf32>
    %cst_98 = arith.constant dense<0.000000e+00> : vector<8x256xf32>
    %145 = tpu.matmul %144, %142, %cst_98 {dimension_numbers = #tpu.dot_dimension_numbers<[1], [0], [0], [1], [0, 0, 1, 1], [], []>} : vector<8x8xf32>, vector<8x256xf32>, vector<8x256xf32> -> vector<8x256xf32>
    %146 = arith.addf %139, %145 : vector<8x256xf32>
    %c255_i32_99 = arith.constant 255 : i32
    %147 = tpu.dynamic_rotate %108 by %c255_i32_99 dim 1 : vector<8x256xf32>, i32 -> vector<8x256xf32>
    %c5_100 = arith.constant 5 : index
    %c0_101 = arith.constant 0 : index
    %148 = vector.load %arg2[%c5_100, %c0_101] : memref<9x256xf32, #tpu.memory_space<vmem>>, vector<1x256xf32>
    %149 = vector.broadcast %148 : vector<1x256xf32> to vector<8x256xf32>
    %150 = arith.mulf %147, %149 : vector<8x256xf32>
    %c5_102 = arith.constant 5 : index
    %c0_103 = arith.constant 0 : index
    %c0_104 = arith.constant 0 : index
    %151 = vector.load %arg9[%c5_102, %c0_103, %c0_104] : memref<9x8x8xf32, #tpu.memory_space<vmem>>, vector<1x8x8xf32>
    %152 = vector.shape_cast %151 : vector<1x8x8xf32> to vector<8x8xf32>
    %cst_105 = arith.constant dense<0.000000e+00> : vector<8x256xf32>
    %153 = tpu.matmul %152, %150, %cst_105 {dimension_numbers = #tpu.dot_dimension_numbers<[1], [0], [0], [1], [0, 0, 1, 1], [], []>} : vector<8x8xf32>, vector<8x256xf32>, vector<8x256xf32> -> vector<8x256xf32>
    %154 = arith.addf %146, %153 : vector<8x256xf32>
    %c241_i32_106 = arith.constant 241 : i32
    %155 = tpu.dynamic_rotate %108 by %c241_i32_106 dim 1 : vector<8x256xf32>, i32 -> vector<8x256xf32>
    %c6_107 = arith.constant 6 : index
    %c0_108 = arith.constant 0 : index
    %156 = vector.load %arg2[%c6_107, %c0_108] : memref<9x256xf32, #tpu.memory_space<vmem>>, vector<1x256xf32>
    %157 = vector.broadcast %156 : vector<1x256xf32> to vector<8x256xf32>
    %158 = arith.mulf %155, %157 : vector<8x256xf32>
    %c6_109 = arith.constant 6 : index
    %c0_110 = arith.constant 0 : index
    %c0_111 = arith.constant 0 : index
    %159 = vector.load %arg9[%c6_109, %c0_110, %c0_111] : memref<9x8x8xf32, #tpu.memory_space<vmem>>, vector<1x8x8xf32>
    %160 = vector.shape_cast %159 : vector<1x8x8xf32> to vector<8x8xf32>
    %cst_112 = arith.constant dense<0.000000e+00> : vector<8x256xf32>
    %161 = tpu.matmul %160, %158, %cst_112 {dimension_numbers = #tpu.dot_dimension_numbers<[1], [0], [0], [1], [0, 0, 1, 1], [], []>} : vector<8x8xf32>, vector<8x256xf32>, vector<8x256xf32> -> vector<8x256xf32>
    %162 = arith.addf %154, %161 : vector<8x256xf32>
    %c240_i32_113 = arith.constant 240 : i32
    %163 = tpu.dynamic_rotate %108 by %c240_i32_113 dim 1 : vector<8x256xf32>, i32 -> vector<8x256xf32>
    %c7_114 = arith.constant 7 : index
    %c0_115 = arith.constant 0 : index
    %164 = vector.load %arg2[%c7_114, %c0_115] : memref<9x256xf32, #tpu.memory_space<vmem>>, vector<1x256xf32>
    %165 = vector.broadcast %164 : vector<1x256xf32> to vector<8x256xf32>
    %166 = arith.mulf %163, %165 : vector<8x256xf32>
    %c7_116 = arith.constant 7 : index
    %c0_117 = arith.constant 0 : index
    %c0_118 = arith.constant 0 : index
    %167 = vector.load %arg9[%c7_116, %c0_117, %c0_118] : memref<9x8x8xf32, #tpu.memory_space<vmem>>, vector<1x8x8xf32>
    %168 = vector.shape_cast %167 : vector<1x8x8xf32> to vector<8x8xf32>
    %cst_119 = arith.constant dense<0.000000e+00> : vector<8x256xf32>
    %169 = tpu.matmul %168, %166, %cst_119 {dimension_numbers = #tpu.dot_dimension_numbers<[1], [0], [0], [1], [0, 0, 1, 1], [], []>} : vector<8x8xf32>, vector<8x256xf32>, vector<8x256xf32> -> vector<8x256xf32>
    %170 = arith.addf %162, %169 : vector<8x256xf32>
    %c239_i32_120 = arith.constant 239 : i32
    %171 = tpu.dynamic_rotate %108 by %c239_i32_120 dim 1 : vector<8x256xf32>, i32 -> vector<8x256xf32>
    %c8_121 = arith.constant 8 : index
    %c0_122 = arith.constant 0 : index
    %172 = vector.load %arg2[%c8_121, %c0_122] : memref<9x256xf32, #tpu.memory_space<vmem>>, vector<1x256xf32>
    %173 = vector.broadcast %172 : vector<1x256xf32> to vector<8x256xf32>
    %174 = arith.mulf %171, %173 : vector<8x256xf32>
    %c8_123 = arith.constant 8 : index
    %c0_124 = arith.constant 0 : index
    %c0_125 = arith.constant 0 : index
    %175 = vector.load %arg9[%c8_123, %c0_124, %c0_125] : memref<9x8x8xf32, #tpu.memory_space<vmem>>, vector<1x8x8xf32>
    %176 = vector.shape_cast %175 : vector<1x8x8xf32> to vector<8x8xf32>
    %cst_126 = arith.constant dense<0.000000e+00> : vector<8x256xf32>
    %177 = tpu.matmul %176, %174, %cst_126 {dimension_numbers = #tpu.dot_dimension_numbers<[1], [0], [0], [1], [0, 0, 1, 1], [], []>} : vector<8x8xf32>, vector<8x256xf32>, vector<8x256xf32> -> vector<8x256xf32>
    %178 = arith.addf %170, %177 : vector<8x256xf32>
    %c0_127 = arith.constant 0 : index
    %c0_128 = arith.constant 0 : index
    %179 = vector.load %arg10[%c0_127, %c0_128] : memref<8x1xf32, #tpu.memory_space<vmem>>, vector<8x1xf32>
    %180 = vector.broadcast %179 : vector<8x1xf32> to vector<8x256xf32>
    %181 = arith.addf %178, %180 : vector<8x256xf32>
    %c0_129 = arith.constant 0 : index
    %c0_130 = arith.constant 0 : index
    %c0_131 = arith.constant 0 : index
    %182 = vector.load %arg11[%c0_129, %c0_130, %c0_131] : memref<2x8x256xf32, #tpu.memory_space<vmem>>, vector<1x8x256xf32>
    %183 = vector.shape_cast %182 : vector<1x8x256xf32> to vector<8x256xf32>
    %184 = vector.shape_cast %181 : vector<8x256xf32> to vector<1x8x256xf32>
    tpu.vector_store %arg11[%c0_129, %c0_130, %c0_131], %184 {strides = array<i32>} : memref<2x8x256xf32, #tpu.memory_space<vmem>>, vector<1x8x256xf32>,
    %c1_132 = arith.constant 1 : index
    %c0_133 = arith.constant 0 : index
    %c0_134 = arith.constant 0 : index
    %185 = vector.load %arg1[%c1_132, %c0_133, %c0_134] : memref<2x4x256xf32, #tpu.memory_space<vmem>>, vector<1x4x256xf32>
    %186 = vector.shape_cast %185 : vector<1x4x256xf32> to vector<4x256xf32>
    %c1_135 = arith.constant 1 : index
    %c0_136 = arith.constant 0 : index
    %c0_137 = arith.constant 0 : index
    %187 = vector.load %arg3[%c1_135, %c0_136, %c0_137] : memref<2x4x1xf32, #tpu.memory_space<vmem>>, vector<1x4x1xf32>
    %188 = vector.shape_cast %187 : vector<1x4x1xf32> to vector<4x1xf32>
    %189 = arith.mulf %186, %186 : vector<4x256xf32>
    %cst_138 = arith.constant dense<0.000000e+00> : vector<4xf32>
    %190 = vector.multi_reduction <add>, %189, %cst_138 [1] : vector<4x256xf32> to vector<4xf32>
    %191 = vector.shape_cast %190 : vector<4xf32> to vector<4x1xf32>
    %cst_139 = arith.constant 2.560000e+02 : f32
    %192 = vector.broadcast %cst_139 : f32 to vector<4x1xf32>
    %193 = arith.divf %191, %192 : vector<4x1xf32>
    %cst_140 = arith.constant 9.99999974E-6 : f32
    %194 = vector.broadcast %cst_140 : f32 to vector<4x1xf32>
    %195 = arith.addf %193, %194 : vector<4x1xf32>
    %196 = math.rsqrt %195 : vector<4x1xf32>
    %197 = vector.broadcast %196 : vector<4x1xf32> to vector<4x256xf32>
    %198 = arith.mulf %186, %197 : vector<4x256xf32>
    %199 = vector.broadcast %188 : vector<4x1xf32> to vector<4x256xf32>
    %200 = arith.mulf %199, %198 : vector<4x256xf32>
    %c0_141 = arith.constant 0 : index
    %c0_142 = arith.constant 0 : index
    %201 = vector.load %arg4[%c0_141, %c0_142] : memref<4x1xf32, #tpu.memory_space<vmem>>, vector<4x1xf32>
    %202 = vector.broadcast %201 : vector<4x1xf32> to vector<4x256xf32>
    %203 = arith.maximumf %200, %202 : vector<4x256xf32>
    %c17_i32_143 = arith.constant 17 : i32
    %204 = tpu.dynamic_rotate %203 by %c17_i32_143 dim 1 : vector<4x256xf32>, i32 -> vector<4x256xf32>
    %c0_144 = arith.constant 0 : index
    %c0_145 = arith.constant 0 : index
    %205 = vector.load %arg2[%c0_144, %c0_145] : memref<9x256xf32, #tpu.memory_space<vmem>>, vector<1x256xf32>
    %206 = vector.broadcast %205 : vector<1x256xf32> to vector<4x256xf32>
    %207 = arith.mulf %204, %206 : vector<4x256xf32>
    %c0_146 = arith.constant 0 : index
    %c0_147 = arith.constant 0 : index
    %c0_148 = arith.constant 0 : index
    %208 = vector.load %arg5[%c0_146, %c0_147, %c0_148] : memref<9x8x4xf32, #tpu.memory_space<vmem>>, vector<1x8x4xf32>
    %209 = vector.shape_cast %208 : vector<1x8x4xf32> to vector<8x4xf32>
    %cst_149 = arith.constant dense<0.000000e+00> : vector<8x256xf32>
    %210 = tpu.matmul %209, %207, %cst_149 {dimension_numbers = #tpu.dot_dimension_numbers<[1], [0], [0], [1], [0, 0, 1, 1], [], []>} : vector<8x4xf32>, vector<4x256xf32>, vector<8x256xf32> -> vector<8x256xf32>
    %c16_i32_150 = arith.constant 16 : i32
    %211 = tpu.dynamic_rotate %203 by %c16_i32_150 dim 1 : vector<4x256xf32>, i32 -> vector<4x256xf32>
    %c1_151 = arith.constant 1 : index
    %c0_152 = arith.constant 0 : index
    %212 = vector.load %arg2[%c1_151, %c0_152] : memref<9x256xf32, #tpu.memory_space<vmem>>, vector<1x256xf32>
    %213 = vector.broadcast %212 : vector<1x256xf32> to vector<4x256xf32>
    %214 = arith.mulf %211, %213 : vector<4x256xf32>
    %c1_153 = arith.constant 1 : index
    %c0_154 = arith.constant 0 : index
    %c0_155 = arith.constant 0 : index
    %215 = vector.load %arg5[%c1_153, %c0_154, %c0_155] : memref<9x8x4xf32, #tpu.memory_space<vmem>>, vector<1x8x4xf32>
    %216 = vector.shape_cast %215 : vector<1x8x4xf32> to vector<8x4xf32>
    %cst_156 = arith.constant dense<0.000000e+00> : vector<8x256xf32>
    %217 = tpu.matmul %216, %214, %cst_156 {dimension_numbers = #tpu.dot_dimension_numbers<[1], [0], [0], [1], [0, 0, 1, 1], [], []>} : vector<8x4xf32>, vector<4x256xf32>, vector<8x256xf32> -> vector<8x256xf32>
    %218 = arith.addf %210, %217 : vector<8x256xf32>
    %c15_i32_157 = arith.constant 15 : i32
    %219 = tpu.dynamic_rotate %203 by %c15_i32_157 dim 1 : vector<4x256xf32>, i32 -> vector<4x256xf32>
    %c2_158 = arith.constant 2 : index
    %c0_159 = arith.constant 0 : index
    %220 = vector.load %arg2[%c2_158, %c0_159] : memref<9x256xf32, #tpu.memory_space<vmem>>, vector<1x256xf32>
    %221 = vector.broadcast %220 : vector<1x256xf32> to vector<4x256xf32>
    %222 = arith.mulf %219, %221 : vector<4x256xf32>
    %c2_160 = arith.constant 2 : index
    %c0_161 = arith.constant 0 : index
    %c0_162 = arith.constant 0 : index
    %223 = vector.load %arg5[%c2_160, %c0_161, %c0_162] : memref<9x8x4xf32, #tpu.memory_space<vmem>>, vector<1x8x4xf32>
    %224 = vector.shape_cast %223 : vector<1x8x4xf32> to vector<8x4xf32>
    %cst_163 = arith.constant dense<0.000000e+00> : vector<8x256xf32>
    %225 = tpu.matmul %224, %222, %cst_163 {dimension_numbers = #tpu.dot_dimension_numbers<[1], [0], [0], [1], [0, 0, 1, 1], [], []>} : vector<8x4xf32>, vector<4x256xf32>, vector<8x256xf32> -> vector<8x256xf32>
    %226 = arith.addf %218, %225 : vector<8x256xf32>
    %c1_i32_164 = arith.constant 1 : i32
    %227 = tpu.dynamic_rotate %203 by %c1_i32_164 dim 1 : vector<4x256xf32>, i32 -> vector<4x256xf32>
    %c3_165 = arith.constant 3 : index
    %c0_166 = arith.constant 0 : index
    %228 = vector.load %arg2[%c3_165, %c0_166] : memref<9x256xf32, #tpu.memory_space<vmem>>, vector<1x256xf32>
    %229 = vector.broadcast %228 : vector<1x256xf32> to vector<4x256xf32>
    %230 = arith.mulf %227, %229 : vector<4x256xf32>
    %c3_167 = arith.constant 3 : index
    %c0_168 = arith.constant 0 : index
    %c0_169 = arith.constant 0 : index
    %231 = vector.load %arg5[%c3_167, %c0_168, %c0_169] : memref<9x8x4xf32, #tpu.memory_space<vmem>>, vector<1x8x4xf32>
    %232 = vector.shape_cast %231 : vector<1x8x4xf32> to vector<8x4xf32>
    %cst_170 = arith.constant dense<0.000000e+00> : vector<8x256xf32>
    %233 = tpu.matmul %232, %230, %cst_170 {dimension_numbers = #tpu.dot_dimension_numbers<[1], [0], [0], [1], [0, 0, 1, 1], [], []>} : vector<8x4xf32>, vector<4x256xf32>, vector<8x256xf32> -> vector<8x256xf32>
    %234 = arith.addf %226, %233 : vector<8x256xf32>
    %c4_171 = arith.constant 4 : index
    %c0_172 = arith.constant 0 : index
    %235 = vector.load %arg2[%c4_171, %c0_172] : memref<9x256xf32, #tpu.memory_space<vmem>>, vector<1x256xf32>
    %236 = vector.broadcast %235 : vector<1x256xf32> to vector<4x256xf32>
    %237 = arith.mulf %203, %236 : vector<4x256xf32>
    %c4_173 = arith.constant 4 : index
    %c0_174 = arith.constant 0 : index
    %c0_175 = arith.constant 0 : index
    %238 = vector.load %arg5[%c4_173, %c0_174, %c0_175] : memref<9x8x4xf32, #tpu.memory_space<vmem>>, vector<1x8x4xf32>
    %239 = vector.shape_cast %238 : vector<1x8x4xf32> to vector<8x4xf32>
    %cst_176 = arith.constant dense<0.000000e+00> : vector<8x256xf32>
    %240 = tpu.matmul %239, %237, %cst_176 {dimension_numbers = #tpu.dot_dimension_numbers<[1], [0], [0], [1], [0, 0, 1, 1], [], []>} : vector<8x4xf32>, vector<4x256xf32>, vector<8x256xf32> -> vector<8x256xf32>
    %241 = arith.addf %234, %240 : vector<8x256xf32>
    %c255_i32_177 = arith.constant 255 : i32
    %242 = tpu.dynamic_rotate %203 by %c255_i32_177 dim 1 : vector<4x256xf32>, i32 -> vector<4x256xf32>
    %c5_178 = arith.constant 5 : index
    %c0_179 = arith.constant 0 : index
    %243 = vector.load %arg2[%c5_178, %c0_179] : memref<9x256xf32, #tpu.memory_space<vmem>>, vector<1x256xf32>
    %244 = vector.broadcast %243 : vector<1x256xf32> to vector<4x256xf32>
    %245 = arith.mulf %242, %244 : vector<4x256xf32>
    %c5_180 = arith.constant 5 : index
    %c0_181 = arith.constant 0 : index
    %c0_182 = arith.constant 0 : index
    %246 = vector.load %arg5[%c5_180, %c0_181, %c0_182] : memref<9x8x4xf32, #tpu.memory_space<vmem>>, vector<1x8x4xf32>
    %247 = vector.shape_cast %246 : vector<1x8x4xf32> to vector<8x4xf32>
    %cst_183 = arith.constant dense<0.000000e+00> : vector<8x256xf32>
    %248 = tpu.matmul %247, %245, %cst_183 {dimension_numbers = #tpu.dot_dimension_numbers<[1], [0], [0], [1], [0, 0, 1, 1], [], []>} : vector<8x4xf32>, vector<4x256xf32>, vector<8x256xf32> -> vector<8x256xf32>
    %249 = arith.addf %241, %248 : vector<8x256xf32>
    %c241_i32_184 = arith.constant 241 : i32
    %250 = tpu.dynamic_rotate %203 by %c241_i32_184 dim 1 : vector<4x256xf32>, i32 -> vector<4x256xf32>
    %c6_185 = arith.constant 6 : index
    %c0_186 = arith.constant 0 : index
    %251 = vector.load %arg2[%c6_185, %c0_186] : memref<9x256xf32, #tpu.memory_space<vmem>>, vector<1x256xf32>
    %252 = vector.broadcast %251 : vector<1x256xf32> to vector<4x256xf32>
    %253 = arith.mulf %250, %252 : vector<4x256xf32>
    %c6_187 = arith.constant 6 : index
    %c0_188 = arith.constant 0 : index
    %c0_189 = arith.constant 0 : index
    %254 = vector.load %arg5[%c6_187, %c0_188, %c0_189] : memref<9x8x4xf32, #tpu.memory_space<vmem>>, vector<1x8x4xf32>
    %255 = vector.shape_cast %254 : vector<1x8x4xf32> to vector<8x4xf32>
    %cst_190 = arith.constant dense<0.000000e+00> : vector<8x256xf32>
    %256 = tpu.matmul %255, %253, %cst_190 {dimension_numbers = #tpu.dot_dimension_numbers<[1], [0], [0], [1], [0, 0, 1, 1], [], []>} : vector<8x4xf32>, vector<4x256xf32>, vector<8x256xf32> -> vector<8x256xf32>
    %257 = arith.addf %249, %256 : vector<8x256xf32>
    %c240_i32_191 = arith.constant 240 : i32
    %258 = tpu.dynamic_rotate %203 by %c240_i32_191 dim 1 : vector<4x256xf32>, i32 -> vector<4x256xf32>
    %c7_192 = arith.constant 7 : index
    %c0_193 = arith.constant 0 : index
    %259 = vector.load %arg2[%c7_192, %c0_193] : memref<9x256xf32, #tpu.memory_space<vmem>>, vector<1x256xf32>
    %260 = vector.broadcast %259 : vector<1x256xf32> to vector<4x256xf32>
    %261 = arith.mulf %258, %260 : vector<4x256xf32>
    %c7_194 = arith.constant 7 : index
    %c0_195 = arith.constant 0 : index
    %c0_196 = arith.constant 0 : index
    %262 = vector.load %arg5[%c7_194, %c0_195, %c0_196] : memref<9x8x4xf32, #tpu.memory_space<vmem>>, vector<1x8x4xf32>
    %263 = vector.shape_cast %262 : vector<1x8x4xf32> to vector<8x4xf32>
    %cst_197 = arith.constant dense<0.000000e+00> : vector<8x256xf32>
    %264 = tpu.matmul %263, %261, %cst_197 {dimension_numbers = #tpu.dot_dimension_numbers<[1], [0], [0], [1], [0, 0, 1, 1], [], []>} : vector<8x4xf32>, vector<4x256xf32>, vector<8x256xf32> -> vector<8x256xf32>
    %265 = arith.addf %257, %264 : vector<8x256xf32>
    %c239_i32_198 = arith.constant 239 : i32
    %266 = tpu.dynamic_rotate %203 by %c239_i32_198 dim 1 : vector<4x256xf32>, i32 -> vector<4x256xf32>
    %c8_199 = arith.constant 8 : index
    %c0_200 = arith.constant 0 : index
    %267 = vector.load %arg2[%c8_199, %c0_200] : memref<9x256xf32, #tpu.memory_space<vmem>>, vector<1x256xf32>
    %268 = vector.broadcast %267 : vector<1x256xf32> to vector<4x256xf32>
    %269 = arith.mulf %266, %268 : vector<4x256xf32>
    %c8_201 = arith.constant 8 : index
    %c0_202 = arith.constant 0 : index
    %c0_203 = arith.constant 0 : index
    %270 = vector.load %arg5[%c8_201, %c0_202, %c0_203] : memref<9x8x4xf32, #tpu.memory_space<vmem>>, vector<1x8x4xf32>
    %271 = vector.shape_cast %270 : vector<1x8x4xf32> to vector<8x4xf32>
    %cst_204 = arith.constant dense<0.000000e+00> : vector<8x256xf32>
    %272 = tpu.matmul %271, %269, %cst_204 {dimension_numbers = #tpu.dot_dimension_numbers<[1], [0], [0], [1], [0, 0, 1, 1], [], []>} : vector<8x4xf32>, vector<4x256xf32>, vector<8x256xf32> -> vector<8x256xf32>
    %273 = arith.addf %265, %272 : vector<8x256xf32>
    %c0_205 = arith.constant 0 : index
    %c0_206 = arith.constant 0 : index
    %274 = vector.load %arg6[%c0_205, %c0_206] : memref<8x1xf32, #tpu.memory_space<vmem>>, vector<8x1xf32>
    %275 = vector.broadcast %274 : vector<8x1xf32> to vector<8x256xf32>
    %276 = arith.addf %273, %275 : vector<8x256xf32>
    %c1_207 = arith.constant 1 : index
    %c0_208 = arith.constant 0 : index
    %c0_209 = arith.constant 0 : index
    %277 = vector.load %arg7[%c1_207, %c0_208, %c0_209] : memref<2x8x1xf32, #tpu.memory_space<vmem>>, vector<1x8x1xf32>
    %278 = vector.shape_cast %277 : vector<1x8x1xf32> to vector<8x1xf32>
    %279 = arith.mulf %276, %276 : vector<8x256xf32>
    %cst_210 = arith.constant dense<0.000000e+00> : vector<8xf32>
    %280 = vector.multi_reduction <add>, %279, %cst_210 [1] : vector<8x256xf32> to vector<8xf32>
    %281 = vector.shape_cast %280 : vector<8xf32> to vector<8x1xf32>
    %cst_211 = arith.constant 2.560000e+02 : f32
    %282 = vector.broadcast %cst_211 : f32 to vector<8x1xf32>
    %283 = arith.divf %281, %282 : vector<8x1xf32>
    %cst_212 = arith.constant 9.99999974E-6 : f32
    %284 = vector.broadcast %cst_212 : f32 to vector<8x1xf32>
    %285 = arith.addf %283, %284 : vector<8x1xf32>
    %286 = math.rsqrt %285 : vector<8x1xf32>
    %287 = vector.broadcast %286 : vector<8x1xf32> to vector<8x256xf32>
    %288 = arith.mulf %276, %287 : vector<8x256xf32>
    %289 = vector.broadcast %278 : vector<8x1xf32> to vector<8x256xf32>
    %290 = arith.mulf %289, %288 : vector<8x256xf32>
    %c0_213 = arith.constant 0 : index
    %c0_214 = arith.constant 0 : index
    %291 = vector.load %arg8[%c0_213, %c0_214] : memref<8x1xf32, #tpu.memory_space<vmem>>, vector<8x1xf32>
    %292 = vector.broadcast %291 : vector<8x1xf32> to vector<8x256xf32>
    %293 = arith.maximumf %290, %292 : vector<8x256xf32>
    %c17_i32_215 = arith.constant 17 : i32
    %294 = tpu.dynamic_rotate %293 by %c17_i32_215 dim 1 : vector<8x256xf32>, i32 -> vector<8x256xf32>
    %c0_216 = arith.constant 0 : index
    %c0_217 = arith.constant 0 : index
    %295 = vector.load %arg2[%c0_216, %c0_217] : memref<9x256xf32, #tpu.memory_space<vmem>>, vector<1x256xf32>
    %296 = vector.broadcast %295 : vector<1x256xf32> to vector<8x256xf32>
    %297 = arith.mulf %294, %296 : vector<8x256xf32>
    %c0_218 = arith.constant 0 : index
    %c0_219 = arith.constant 0 : index
    %c0_220 = arith.constant 0 : index
    %298 = vector.load %arg9[%c0_218, %c0_219, %c0_220] : memref<9x8x8xf32, #tpu.memory_space<vmem>>, vector<1x8x8xf32>
    %299 = vector.shape_cast %298 : vector<1x8x8xf32> to vector<8x8xf32>
    %cst_221 = arith.constant dense<0.000000e+00> : vector<8x256xf32>
    %300 = tpu.matmul %299, %297, %cst_221 {dimension_numbers = #tpu.dot_dimension_numbers<[1], [0], [0], [1], [0, 0, 1, 1], [], []>} : vector<8x8xf32>, vector<8x256xf32>, vector<8x256xf32> -> vector<8x256xf32>
    %c16_i32_222 = arith.constant 16 : i32
    %301 = tpu.dynamic_rotate %293 by %c16_i32_222 dim 1 : vector<8x256xf32>, i32 -> vector<8x256xf32>
    %c1_223 = arith.constant 1 : index
    %c0_224 = arith.constant 0 : index
    %302 = vector.load %arg2[%c1_223, %c0_224] : memref<9x256xf32, #tpu.memory_space<vmem>>, vector<1x256xf32>
    %303 = vector.broadcast %302 : vector<1x256xf32> to vector<8x256xf32>
    %304 = arith.mulf %301, %303 : vector<8x256xf32>
    %c1_225 = arith.constant 1 : index
    %c0_226 = arith.constant 0 : index
    %c0_227 = arith.constant 0 : index
    %305 = vector.load %arg9[%c1_225, %c0_226, %c0_227] : memref<9x8x8xf32, #tpu.memory_space<vmem>>, vector<1x8x8xf32>
    %306 = vector.shape_cast %305 : vector<1x8x8xf32> to vector<8x8xf32>
    %cst_228 = arith.constant dense<0.000000e+00> : vector<8x256xf32>
    %307 = tpu.matmul %306, %304, %cst_228 {dimension_numbers = #tpu.dot_dimension_numbers<[1], [0], [0], [1], [0, 0, 1, 1], [], []>} : vector<8x8xf32>, vector<8x256xf32>, vector<8x256xf32> -> vector<8x256xf32>
    %308 = arith.addf %300, %307 : vector<8x256xf32>
    %c15_i32_229 = arith.constant 15 : i32
    %309 = tpu.dynamic_rotate %293 by %c15_i32_229 dim 1 : vector<8x256xf32>, i32 -> vector<8x256xf32>
    %c2_230 = arith.constant 2 : index
    %c0_231 = arith.constant 0 : index
    %310 = vector.load %arg2[%c2_230, %c0_231] : memref<9x256xf32, #tpu.memory_space<vmem>>, vector<1x256xf32>
    %311 = vector.broadcast %310 : vector<1x256xf32> to vector<8x256xf32>
    %312 = arith.mulf %309, %311 : vector<8x256xf32>
    %c2_232 = arith.constant 2 : index
    %c0_233 = arith.constant 0 : index
    %c0_234 = arith.constant 0 : index
    %313 = vector.load %arg9[%c2_232, %c0_233, %c0_234] : memref<9x8x8xf32, #tpu.memory_space<vmem>>, vector<1x8x8xf32>
    %314 = vector.shape_cast %313 : vector<1x8x8xf32> to vector<8x8xf32>
    %cst_235 = arith.constant dense<0.000000e+00> : vector<8x256xf32>
    %315 = tpu.matmul %314, %312, %cst_235 {dimension_numbers = #tpu.dot_dimension_numbers<[1], [0], [0], [1], [0, 0, 1, 1], [], []>} : vector<8x8xf32>, vector<8x256xf32>, vector<8x256xf32> -> vector<8x256xf32>
    %316 = arith.addf %308, %315 : vector<8x256xf32>
    %c1_i32_236 = arith.constant 1 : i32
    %317 = tpu.dynamic_rotate %293 by %c1_i32_236 dim 1 : vector<8x256xf32>, i32 -> vector<8x256xf32>
    %c3_237 = arith.constant 3 : index
    %c0_238 = arith.constant 0 : index
    %318 = vector.load %arg2[%c3_237, %c0_238] : memref<9x256xf32, #tpu.memory_space<vmem>>, vector<1x256xf32>
    %319 = vector.broadcast %318 : vector<1x256xf32> to vector<8x256xf32>
    %320 = arith.mulf %317, %319 : vector<8x256xf32>
    %c3_239 = arith.constant 3 : index
    %c0_240 = arith.constant 0 : index
    %c0_241 = arith.constant 0 : index
    %321 = vector.load %arg9[%c3_239, %c0_240, %c0_241] : memref<9x8x8xf32, #tpu.memory_space<vmem>>, vector<1x8x8xf32>
    %322 = vector.shape_cast %321 : vector<1x8x8xf32> to vector<8x8xf32>
    %cst_242 = arith.constant dense<0.000000e+00> : vector<8x256xf32>
    %323 = tpu.matmul %322, %320, %cst_242 {dimension_numbers = #tpu.dot_dimension_numbers<[1], [0], [0], [1], [0, 0, 1, 1], [], []>} : vector<8x8xf32>, vector<8x256xf32>, vector<8x256xf32> -> vector<8x256xf32>
    %324 = arith.addf %316, %323 : vector<8x256xf32>
    %c4_243 = arith.constant 4 : index
    %c0_244 = arith.constant 0 : index
    %325 = vector.load %arg2[%c4_243, %c0_244] : memref<9x256xf32, #tpu.memory_space<vmem>>, vector<1x256xf32>
    %326 = vector.broadcast %325 : vector<1x256xf32> to vector<8x256xf32>
    %327 = arith.mulf %293, %326 : vector<8x256xf32>
    %c4_245 = arith.constant 4 : index
    %c0_246 = arith.constant 0 : index
    %c0_247 = arith.constant 0 : index
    %328 = vector.load %arg9[%c4_245, %c0_246, %c0_247] : memref<9x8x8xf32, #tpu.memory_space<vmem>>, vector<1x8x8xf32>
    %329 = vector.shape_cast %328 : vector<1x8x8xf32> to vector<8x8xf32>
    %cst_248 = arith.constant dense<0.000000e+00> : vector<8x256xf32>
    %330 = tpu.matmul %329, %327, %cst_248 {dimension_numbers = #tpu.dot_dimension_numbers<[1], [0], [0], [1], [0, 0, 1, 1], [], []>} : vector<8x8xf32>, vector<8x256xf32>, vector<8x256xf32> -> vector<8x256xf32>
    %331 = arith.addf %324, %330 : vector<8x256xf32>
    %c255_i32_249 = arith.constant 255 : i32
    %332 = tpu.dynamic_rotate %293 by %c255_i32_249 dim 1 : vector<8x256xf32>, i32 -> vector<8x256xf32>
    %c5_250 = arith.constant 5 : index
    %c0_251 = arith.constant 0 : index
    %333 = vector.load %arg2[%c5_250, %c0_251] : memref<9x256xf32, #tpu.memory_space<vmem>>, vector<1x256xf32>
    %334 = vector.broadcast %333 : vector<1x256xf32> to vector<8x256xf32>
    %335 = arith.mulf %332, %334 : vector<8x256xf32>
    %c5_252 = arith.constant 5 : index
    %c0_253 = arith.constant 0 : index
    %c0_254 = arith.constant 0 : index
    %336 = vector.load %arg9[%c5_252, %c0_253, %c0_254] : memref<9x8x8xf32, #tpu.memory_space<vmem>>, vector<1x8x8xf32>
    %337 = vector.shape_cast %336 : vector<1x8x8xf32> to vector<8x8xf32>
    %cst_255 = arith.constant dense<0.000000e+00> : vector<8x256xf32>
    %338 = tpu.matmul %337, %335, %cst_255 {dimension_numbers = #tpu.dot_dimension_numbers<[1], [0], [0], [1], [0, 0, 1, 1], [], []>} : vector<8x8xf32>, vector<8x256xf32>, vector<8x256xf32> -> vector<8x256xf32>
    %339 = arith.addf %331, %338 : vector<8x256xf32>
    %c241_i32_256 = arith.constant 241 : i32
    %340 = tpu.dynamic_rotate %293 by %c241_i32_256 dim 1 : vector<8x256xf32>, i32 -> vector<8x256xf32>
    %c6_257 = arith.constant 6 : index
    %c0_258 = arith.constant 0 : index
    %341 = vector.load %arg2[%c6_257, %c0_258] : memref<9x256xf32, #tpu.memory_space<vmem>>, vector<1x256xf32>
    %342 = vector.broadcast %341 : vector<1x256xf32> to vector<8x256xf32>
    %343 = arith.mulf %340, %342 : vector<8x256xf32>
    %c6_259 = arith.constant 6 : index
    %c0_260 = arith.constant 0 : index
    %c0_261 = arith.constant 0 : index
    %344 = vector.load %arg9[%c6_259, %c0_260, %c0_261] : memref<9x8x8xf32, #tpu.memory_space<vmem>>, vector<1x8x8xf32>
    %345 = vector.shape_cast %344 : vector<1x8x8xf32> to vector<8x8xf32>
    %cst_262 = arith.constant dense<0.000000e+00> : vector<8x256xf32>
    %346 = tpu.matmul %345, %343, %cst_262 {dimension_numbers = #tpu.dot_dimension_numbers<[1], [0], [0], [1], [0, 0, 1, 1], [], []>} : vector<8x8xf32>, vector<8x256xf32>, vector<8x256xf32> -> vector<8x256xf32>
    %347 = arith.addf %339, %346 : vector<8x256xf32>
    %c240_i32_263 = arith.constant 240 : i32
    %348 = tpu.dynamic_rotate %293 by %c240_i32_263 dim 1 : vector<8x256xf32>, i32 -> vector<8x256xf32>
    %c7_264 = arith.constant 7 : index
    %c0_265 = arith.constant 0 : index
    %349 = vector.load %arg2[%c7_264, %c0_265] : memref<9x256xf32, #tpu.memory_space<vmem>>, vector<1x256xf32>
    %350 = vector.broadcast %349 : vector<1x256xf32> to vector<8x256xf32>
    %351 = arith.mulf %348, %350 : vector<8x256xf32>
    %c7_266 = arith.constant 7 : index
    %c0_267 = arith.constant 0 : index
    %c0_268 = arith.constant 0 : index
    %352 = vector.load %arg9[%c7_266, %c0_267, %c0_268] : memref<9x8x8xf32, #tpu.memory_space<vmem>>, vector<1x8x8xf32>
    %353 = vector.shape_cast %352 : vector<1x8x8xf32> to vector<8x8xf32>
    %cst_269 = arith.constant dense<0.000000e+00> : vector<8x256xf32>
    %354 = tpu.matmul %353, %351, %cst_269 {dimension_numbers = #tpu.dot_dimension_numbers<[1], [0], [0], [1], [0, 0, 1, 1], [], []>} : vector<8x8xf32>, vector<8x256xf32>, vector<8x256xf32> -> vector<8x256xf32>
    %355 = arith.addf %347, %354 : vector<8x256xf32>
    %c239_i32_270 = arith.constant 239 : i32
    %356 = tpu.dynamic_rotate %293 by %c239_i32_270 dim 1 : vector<8x256xf32>, i32 -> vector<8x256xf32>
    %c8_271 = arith.constant 8 : index
    %c0_272 = arith.constant 0 : index
    %357 = vector.load %arg2[%c8_271, %c0_272] : memref<9x256xf32, #tpu.memory_space<vmem>>, vector<1x256xf32>
    %358 = vector.broadcast %357 : vector<1x256xf32> to vector<8x256xf32>
    %359 = arith.mulf %356, %358 : vector<8x256xf32>
    %c8_273 = arith.constant 8 : index
    %c0_274 = arith.constant 0 : index
    %c0_275 = arith.constant 0 : index
    %360 = vector.load %arg9[%c8_273, %c0_274, %c0_275] : memref<9x8x8xf32, #tpu.memory_space<vmem>>, vector<1x8x8xf32>
    %361 = vector.shape_cast %360 : vector<1x8x8xf32> to vector<8x8xf32>
    %cst_276 = arith.constant dense<0.000000e+00> : vector<8x256xf32>
    %362 = tpu.matmul %361, %359, %cst_276 {dimension_numbers = #tpu.dot_dimension_numbers<[1], [0], [0], [1], [0, 0, 1, 1], [], []>} : vector<8x8xf32>, vector<8x256xf32>, vector<8x256xf32> -> vector<8x256xf32>
    %363 = arith.addf %355, %362 : vector<8x256xf32>
    %c0_277 = arith.constant 0 : index
    %c0_278 = arith.constant 0 : index
    %364 = vector.load %arg10[%c0_277, %c0_278] : memref<8x1xf32, #tpu.memory_space<vmem>>, vector<8x1xf32>
    %365 = vector.broadcast %364 : vector<8x1xf32> to vector<8x256xf32>
    %366 = arith.addf %363, %365 : vector<8x256xf32>
    %c1_279 = arith.constant 1 : index
    %c0_280 = arith.constant 0 : index
    %c0_281 = arith.constant 0 : index
    %367 = vector.load %arg11[%c1_279, %c0_280, %c0_281] : memref<2x8x256xf32, #tpu.memory_space<vmem>>, vector<1x8x256xf32>
    %368 = vector.shape_cast %367 : vector<1x8x256xf32> to vector<8x256xf32>
    %369 = vector.shape_cast %366 : vector<8x256xf32> to vector<1x8x256xf32>
    tpu.vector_store %arg11[%c1_279, %c0_280, %c0_281], %369 {strides = array<i32>} : memref<2x8x256xf32, #tpu.memory_space<vmem>>, vector<1x8x256xf32>,
    return
  }
  func.func @transform_0(%arg0: i32) -> (i32, i32, i32) {
    %c0_i32 = arith.constant 0 : i32
    %c0_i32_0 = arith.constant 0 : i32
    %c0_i32_1 = arith.constant 0 : i32
    return %arg0, %c0_i32, %c0_i32_0 : i32, i32, i32
  }
  func.func @transform_1(%arg0: i32) -> (i32, i32) {
    %c0_i32 = arith.constant 0 : i32
    %c0_i32_0 = arith.constant 0 : i32
    %c0_i32_1 = arith.constant 0 : i32
    return %c0_i32, %c0_i32_0 : i32, i32
  }
  func.func @transform_2(%arg0: i32) -> (i32, i32, i32) {
    %c0_i32 = arith.constant 0 : i32
    %c0_i32_0 = arith.constant 0 : i32
    %c0_i32_1 = arith.constant 0 : i32
    return %arg0, %c0_i32, %c0_i32_0 : i32, i32, i32
  }
  func.func @transform_3(%arg0: i32) -> (i32, i32) {
    %c0_i32 = arith.constant 0 : i32
    %c0_i32_0 = arith.constant 0 : i32
    %c0_i32_1 = arith.constant 0 : i32
    return %c0_i32, %c0_i32_0 : i32, i32
  }
  func.func @transform_4(%arg0: i32) -> (i32, i32, i32) {
    %c0_i32 = arith.constant 0 : i32
    %c0_i32_0 = arith.constant 0 : i32
    %c0_i32_1 = arith.constant 0 : i32
    %c0_i32_2 = arith.constant 0 : i32
    return %c0_i32, %c0_i32_0, %c0_i32_1 : i32, i32, i32
  }
  func.func @transform_5(%arg0: i32) -> (i32, i32) {
    %c0_i32 = arith.constant 0 : i32
    %c0_i32_0 = arith.constant 0 : i32
    %c0_i32_1 = arith.constant 0 : i32
    return %c0_i32, %c0_i32_0 : i32, i32
  }
  func.func @transform_6(%arg0: i32) -> (i32, i32, i32) {
    %c0_i32 = arith.constant 0 : i32
    %c0_i32_0 = arith.constant 0 : i32
    %c0_i32_1 = arith.constant 0 : i32
    return %arg0, %c0_i32, %c0_i32_0 : i32, i32, i32
  }
  func.func @transform_7(%arg0: i32) -> (i32, i32) {
    %c0_i32 = arith.constant 0 : i32
    %c0_i32_0 = arith.constant 0 : i32
    %c0_i32_1 = arith.constant 0 : i32
    return %c0_i32, %c0_i32_0 : i32, i32
  }
  func.func @transform_8(%arg0: i32) -> (i32, i32, i32) {
    %c0_i32 = arith.constant 0 : i32
    %c0_i32_0 = arith.constant 0 : i32
    %c0_i32_1 = arith.constant 0 : i32
    %c0_i32_2 = arith.constant 0 : i32
    return %c0_i32, %c0_i32_0, %c0_i32_1 : i32, i32, i32
  }
  func.func @transform_9(%arg0: i32) -> (i32, i32) {
    %c0_i32 = arith.constant 0 : i32
    %c0_i32_0 = arith.constant 0 : i32
    %c0_i32_1 = arith.constant 0 : i32
    return %c0_i32, %c0_i32_0 : i32, i32
  }
  func.func @transform_10(%arg0: i32) -> (i32, i32, i32) {
    %c0_i32 = arith.constant 0 : i32
    %c0_i32_0 = arith.constant 0 : i32
    %c0_i32_1 = arith.constant 0 : i32
    return %arg0, %c0_i32, %c0_i32_0 : i32, i32, i32
  }
}

module attributes {stable_mosaic.version = 11 : i64} {
  func.func @_adain_res_blk_kernel(%arg0: i32, %arg1: memref<2x4x256xf32, #tpu.memory_space<vmem>>, %arg2: memref<9x256xf32, #tpu.memory_space<vmem>>, %arg3: memref<2x4x1xf32, #tpu.memory_space<vmem>>, %arg4: memref<4x1xf32, #tpu.memory_space<vmem>>, %arg5: memref<9x8x4xf32, #tpu.memory_space<vmem>>, %arg6: memref<8x1xf32, #tpu.memory_space<vmem>>, %arg7: memref<2x8x1xf32, #tpu.memory_space<vmem>>, %arg8: memref<8x1xf32, #tpu.memory_space<vmem>>, %arg9: memref<9x8x8xf32, #tpu.memory_space<vmem>>, %arg10: memref<8x1xf32, #tpu.memory_space<vmem>>, %arg11: memref<2x8x256xf32, #tpu.memory_space<vmem>>) attributes {dimension_semantics = [#tpu.dimension_semantics<parallel>], iteration_bounds = array<i64: 1>, scalar_prefetch = 0 : i64, scratch_operands = 0 : i64, tpu.core_type = #tpu.core_type<tc>, window_params = [{transform_indices = @transform_0, window_bounds = array<i64: 2, 4, 256>}, {pipeline_mode = #tpu.pipeline_mode<synchronous>, transform_indices = @transform_1, window_bounds = array<i64: 9, 256>}, {transform_indices = @transform_2, window_bounds = array<i64: 2, 4, 1>}, {pipeline_mode = #tpu.pipeline_mode<synchronous>, transform_indices = @transform_3, window_bounds = array<i64: 4, 1>}, {pipeline_mode = #tpu.pipeline_mode<synchronous>, transform_indices = @transform_4, window_bounds = array<i64: 9, 8, 4>}, {pipeline_mode = #tpu.pipeline_mode<synchronous>, transform_indices = @transform_5, window_bounds = array<i64: 8, 1>}, {transform_indices = @transform_6, window_bounds = array<i64: 2, 8, 1>}, {pipeline_mode = #tpu.pipeline_mode<synchronous>, transform_indices = @transform_7, window_bounds = array<i64: 8, 1>}, {pipeline_mode = #tpu.pipeline_mode<synchronous>, transform_indices = @transform_8, window_bounds = array<i64: 9, 8, 8>}, {pipeline_mode = #tpu.pipeline_mode<synchronous>, transform_indices = @transform_9, window_bounds = array<i64: 8, 1>}, {transform_indices = @transform_10, window_bounds = array<i64: 2, 8, 256>}]} {
    %c0 = arith.constant 0 : index
    %c0_0 = arith.constant 0 : index
    %c0_1 = arith.constant 0 : index
    %0 = vector.load %arg1[%c0, %c0_0, %c0_1] : memref<2x4x256xf32, #tpu.memory_space<vmem>>, vector<1x4x256xf32>
    %1 = vector.shape_cast %0 : vector<1x4x256xf32> to vector<4x256xf32>
    %c0_2 = arith.constant 0 : index
    %c0_3 = arith.constant 0 : index
    %c0_4 = arith.constant 0 : index
    %2 = vector.load %arg3[%c0_2, %c0_3, %c0_4] : memref<2x4x1xf32, #tpu.memory_space<vmem>>, vector<1x4x1xf32>
    %3 = vector.shape_cast %2 : vector<1x4x1xf32> to vector<4x1xf32>
    %4 = arith.mulf %1, %1 : vector<4x256xf32>
    %cst = arith.constant dense<0.000000e+00> : vector<4xf32>
    %5 = vector.multi_reduction <add>, %4, %cst [1] : vector<4x256xf32> to vector<4xf32>
    %6 = vector.shape_cast %5 : vector<4xf32> to vector<4x1xf32>
    %cst_5 = arith.constant 2.560000e+02 : f32
    %7 = vector.broadcast %cst_5 : f32 to vector<4x1xf32>
    %8 = arith.divf %6, %7 : vector<4x1xf32>
    %cst_6 = arith.constant 9.99999974E-6 : f32
    %9 = vector.broadcast %cst_6 : f32 to vector<4x1xf32>
    %10 = arith.addf %8, %9 : vector<4x1xf32>
    %11 = math.rsqrt %10 : vector<4x1xf32>
    %12 = vector.broadcast %11 : vector<4x1xf32> to vector<4x256xf32>
    %13 = arith.mulf %1, %12 : vector<4x256xf32>
    %14 = vector.broadcast %3 : vector<4x1xf32> to vector<4x256xf32>
    %15 = arith.mulf %14, %13 : vector<4x256xf32>
    %c0_7 = arith.constant 0 : index
    %c0_8 = arith.constant 0 : index
    %16 = vector.load %arg4[%c0_7, %c0_8] : memref<4x1xf32, #tpu.memory_space<vmem>>, vector<4x1xf32>
    %17 = vector.broadcast %16 : vector<4x1xf32> to vector<4x256xf32>
    %18 = arith.maximumf %15, %17 : vector<4x256xf32>
    %c17_i32 = arith.constant 17 : i32
    %19 = tpu.dynamic_rotate %18 by %c17_i32 dim 1 : vector<4x256xf32>, i32 -> vector<4x256xf32>
    %c0_9 = arith.constant 0 : index
    %c0_10 = arith.constant 0 : index
    %20 = vector.load %arg2[%c0_9, %c0_10] : memref<9x256xf32, #tpu.memory_space<vmem>>, vector<1x256xf32>
    %21 = vector.broadcast %20 : vector<1x256xf32> to vector<4x256xf32>
    %22 = arith.mulf %19, %21 : vector<4x256xf32>
    %c0_11 = arith.constant 0 : index
    %c0_12 = arith.constant 0 : index
    %c0_13 = arith.constant 0 : index
    %23 = vector.load %arg5[%c0_11, %c0_12, %c0_13] : memref<9x8x4xf32, #tpu.memory_space<vmem>>, vector<1x8x4xf32>
    %24 = vector.shape_cast %23 : vector<1x8x4xf32> to vector<8x4xf32>
    %cst_14 = arith.constant dense<0.000000e+00> : vector<8x256xf32>
    %25 = tpu.matmul %24, %22, %cst_14 {dimension_numbers = #tpu.dot_dimension_numbers<[1], [0], [0], [1], [0, 0, 1, 1], [], []>} : vector<8x4xf32>, vector<4x256xf32>, vector<8x256xf32> -> vector<8x256xf32>
    %c16_i32 = arith.constant 16 : i32
    %26 = tpu.dynamic_rotate %18 by %c16_i32 dim 1 : vector<4x256xf32>, i32 -> vector<4x256xf32>
    %c1 = arith.constant 1 : index
    %c0_15 = arith.constant 0 : index
    %27 = vector.load %arg2[%c1, %c0_15] : memref<9x256xf32, #tpu.memory_space<vmem>>, vector<1x256xf32>
    %28 = vector.broadcast %27 : vector<1x256xf32> to vector<4x256xf32>
    %29 = arith.mulf %26, %28 : vector<4x256xf32>
    %c1_16 = arith.constant 1 : index
    %c0_17 = arith.constant 0 : index
    %c0_18 = arith.constant 0 : index
    %30 = vector.load %arg5[%c1_16, %c0_17, %c0_18] : memref<9x8x4xf32, #tpu.memory_space<vmem>>, vector<1x8x4xf32>
    %31 = vector.shape_cast %30 : vector<1x8x4xf32> to vector<8x4xf32>
    %cst_19 = arith.constant dense<0.000000e+00> : vector<8x256xf32>
    %32 = tpu.matmul %31, %29, %cst_19 {dimension_numbers = #tpu.dot_dimension_numbers<[1], [0], [0], [1], [0, 0, 1, 1], [], []>} : vector<8x4xf32>, vector<4x256xf32>, vector<8x256xf32> -> vector<8x256xf32>
    %33 = arith.addf %25, %32 : vector<8x256xf32>
    %c15_i32 = arith.constant 15 : i32
    %34 = tpu.dynamic_rotate %18 by %c15_i32 dim 1 : vector<4x256xf32>, i32 -> vector<4x256xf32>
    %c2 = arith.constant 2 : index
    %c0_20 = arith.constant 0 : index
    %35 = vector.load %arg2[%c2, %c0_20] : memref<9x256xf32, #tpu.memory_space<vmem>>, vector<1x256xf32>
    %36 = vector.broadcast %35 : vector<1x256xf32> to vector<4x256xf32>
    %37 = arith.mulf %34, %36 : vector<4x256xf32>
    %c2_21 = arith.constant 2 : index
    %c0_22 = arith.constant 0 : index
    %c0_23 = arith.constant 0 : index
    %38 = vector.load %arg5[%c2_21, %c0_22, %c0_23] : memref<9x8x4xf32, #tpu.memory_space<vmem>>, vector<1x8x4xf32>
    %39 = vector.shape_cast %38 : vector<1x8x4xf32> to vector<8x4xf32>
    %cst_24 = arith.constant dense<0.000000e+00> : vector<8x256xf32>
    %40 = tpu.matmul %39, %37, %cst_24 {dimension_numbers = #tpu.dot_dimension_numbers<[1], [0], [0], [1], [0, 0, 1, 1], [], []>} : vector<8x4xf32>, vector<4x256xf32>, vector<8x256xf32> -> vector<8x256xf32>
    %41 = arith.addf %33, %40 : vector<8x256xf32>
    %c1_i32 = arith.constant 1 : i32
    %42 = tpu.dynamic_rotate %18 by %c1_i32 dim 1 : vector<4x256xf32>, i32 -> vector<4x256xf32>
    %c3 = arith.constant 3 : index
    %c0_25 = arith.constant 0 : index
    %43 = vector.load %arg2[%c3, %c0_25] : memref<9x256xf32, #tpu.memory_space<vmem>>, vector<1x256xf32>
    %44 = vector.broadcast %43 : vector<1x256xf32> to vector<4x256xf32>
    %45 = arith.mulf %42, %44 : vector<4x256xf32>
    %c3_26 = arith.constant 3 : index
    %c0_27 = arith.constant 0 : index
    %c0_28 = arith.constant 0 : index
    %46 = vector.load %arg5[%c3_26, %c0_27, %c0_28] : memref<9x8x4xf32, #tpu.memory_space<vmem>>, vector<1x8x4xf32>
    %47 = vector.shape_cast %46 : vector<1x8x4xf32> to vector<8x4xf32>
    %cst_29 = arith.constant dense<0.000000e+00> : vector<8x256xf32>
    %48 = tpu.matmul %47, %45, %cst_29 {dimension_numbers = #tpu.dot_dimension_numbers<[1], [0], [0], [1], [0, 0, 1, 1], [], []>} : vector<8x4xf32>, vector<4x256xf32>, vector<8x256xf32> -> vector<8x256xf32>
    %49 = arith.addf %41, %48 : vector<8x256xf32>
    %c4 = arith.constant 4 : index
    %c0_30 = arith.constant 0 : index
    %50 = vector.load %arg2[%c4, %c0_30] : memref<9x256xf32, #tpu.memory_space<vmem>>, vector<1x256xf32>
    %51 = vector.broadcast %50 : vector<1x256xf32> to vector<4x256xf32>
    %52 = arith.mulf %18, %51 : vector<4x256xf32>
    %c4_31 = arith.constant 4 : index
    %c0_32 = arith.constant 0 : index
    %c0_33 = arith.constant 0 : index
    %53 = vector.load %arg5[%c4_31, %c0_32, %c0_33] : memref<9x8x4xf32, #tpu.memory_space<vmem>>, vector<1x8x4xf32>
    %54 = vector.shape_cast %53 : vector<1x8x4xf32> to vector<8x4xf32>
    %cst_34 = arith.constant dense<0.000000e+00> : vector<8x256xf32>
    %55 = tpu.matmul %54, %52, %cst_34 {dimension_numbers = #tpu.dot_dimension_numbers<[1], [0], [0], [1], [0, 0, 1, 1], [], []>} : vector<8x4xf32>, vector<4x256xf32>, vector<8x256xf32> -> vector<8x256xf32>
    %56 = arith.addf %49, %55 : vector<8x256xf32>
    %c255_i32 = arith.constant 255 : i32
    %57 = tpu.dynamic_rotate %18 by %c255_i32 dim 1 : vector<4x256xf32>, i32 -> vector<4x256xf32>
    %c5 = arith.constant 5 : index
    %c0_35 = arith.constant 0 : index
    %58 = vector.load %arg2[%c5, %c0_35] : memref<9x256xf32, #tpu.memory_space<vmem>>, vector<1x256xf32>
    %59 = vector.broadcast %58 : vector<1x256xf32> to vector<4x256xf32>
    %60 = arith.mulf %57, %59 : vector<4x256xf32>
    %c5_36 = arith.constant 5 : index
    %c0_37 = arith.constant 0 : index
    %c0_38 = arith.constant 0 : index
    %61 = vector.load %arg5[%c5_36, %c0_37, %c0_38] : memref<9x8x4xf32, #tpu.memory_space<vmem>>, vector<1x8x4xf32>
    %62 = vector.shape_cast %61 : vector<1x8x4xf32> to vector<8x4xf32>
    %cst_39 = arith.constant dense<0.000000e+00> : vector<8x256xf32>
    %63 = tpu.matmul %62, %60, %cst_39 {dimension_numbers = #tpu.dot_dimension_numbers<[1], [0], [0], [1], [0, 0, 1, 1], [], []>} : vector<8x4xf32>, vector<4x256xf32>, vector<8x256xf32> -> vector<8x256xf32>
    %64 = arith.addf %56, %63 : vector<8x256xf32>
    %c241_i32 = arith.constant 241 : i32
    %65 = tpu.dynamic_rotate %18 by %c241_i32 dim 1 : vector<4x256xf32>, i32 -> vector<4x256xf32>
    %c6 = arith.constant 6 : index
    %c0_40 = arith.constant 0 : index
    %66 = vector.load %arg2[%c6, %c0_40] : memref<9x256xf32, #tpu.memory_space<vmem>>, vector<1x256xf32>
    %67 = vector.broadcast %66 : vector<1x256xf32> to vector<4x256xf32>
    %68 = arith.mulf %65, %67 : vector<4x256xf32>
    %c6_41 = arith.constant 6 : index
    %c0_42 = arith.constant 0 : index
    %c0_43 = arith.constant 0 : index
    %69 = vector.load %arg5[%c6_41, %c0_42, %c0_43] : memref<9x8x4xf32, #tpu.memory_space<vmem>>, vector<1x8x4xf32>
    %70 = vector.shape_cast %69 : vector<1x8x4xf32> to vector<8x4xf32>
    %cst_44 = arith.constant dense<0.000000e+00> : vector<8x256xf32>
    %71 = tpu.matmul %70, %68, %cst_44 {dimension_numbers = #tpu.dot_dimension_numbers<[1], [0], [0], [1], [0, 0, 1, 1], [], []>} : vector<8x4xf32>, vector<4x256xf32>, vector<8x256xf32> -> vector<8x256xf32>
    %72 = arith.addf %64, %71 : vector<8x256xf32>
    %c240_i32 = arith.constant 240 : i32
    %73 = tpu.dynamic_rotate %18 by %c240_i32 dim 1 : vector<4x256xf32>, i32 -> vector<4x256xf32>
    %c7 = arith.constant 7 : index
    %c0_45 = arith.constant 0 : index
    %74 = vector.load %arg2[%c7, %c0_45] : memref<9x256xf32, #tpu.memory_space<vmem>>, vector<1x256xf32>
    %75 = vector.broadcast %74 : vector<1x256xf32> to vector<4x256xf32>
    %76 = arith.mulf %73, %75 : vector<4x256xf32>
    %c7_46 = arith.constant 7 : index
    %c0_47 = arith.constant 0 : index
    %c0_48 = arith.constant 0 : index
    %77 = vector.load %arg5[%c7_46, %c0_47, %c0_48] : memref<9x8x4xf32, #tpu.memory_space<vmem>>, vector<1x8x4xf32>
    %78 = vector.shape_cast %77 : vector<1x8x4xf32> to vector<8x4xf32>
    %cst_49 = arith.constant dense<0.000000e+00> : vector<8x256xf32>
    %79 = tpu.matmul %78, %76, %cst_49 {dimension_numbers = #tpu.dot_dimension_numbers<[1], [0], [0], [1], [0, 0, 1, 1], [], []>} : vector<8x4xf32>, vector<4x256xf32>, vector<8x256xf32> -> vector<8x256xf32>
    %80 = arith.addf %72, %79 : vector<8x256xf32>
    %c239_i32 = arith.constant 239 : i32
    %81 = tpu.dynamic_rotate %18 by %c239_i32 dim 1 : vector<4x256xf32>, i32 -> vector<4x256xf32>
    %c8 = arith.constant 8 : index
    %c0_50 = arith.constant 0 : index
    %82 = vector.load %arg2[%c8, %c0_50] : memref<9x256xf32, #tpu.memory_space<vmem>>, vector<1x256xf32>
    %83 = vector.broadcast %82 : vector<1x256xf32> to vector<4x256xf32>
    %84 = arith.mulf %81, %83 : vector<4x256xf32>
    %c8_51 = arith.constant 8 : index
    %c0_52 = arith.constant 0 : index
    %c0_53 = arith.constant 0 : index
    %85 = vector.load %arg5[%c8_51, %c0_52, %c0_53] : memref<9x8x4xf32, #tpu.memory_space<vmem>>, vector<1x8x4xf32>
    %86 = vector.shape_cast %85 : vector<1x8x4xf32> to vector<8x4xf32>
    %cst_54 = arith.constant dense<0.000000e+00> : vector<8x256xf32>
    %87 = tpu.matmul %86, %84, %cst_54 {dimension_numbers = #tpu.dot_dimension_numbers<[1], [0], [0], [1], [0, 0, 1, 1], [], []>} : vector<8x4xf32>, vector<4x256xf32>, vector<8x256xf32> -> vector<8x256xf32>
    %88 = arith.addf %80, %87 : vector<8x256xf32>
    %c0_55 = arith.constant 0 : index
    %c0_56 = arith.constant 0 : index
    %89 = vector.load %arg6[%c0_55, %c0_56] : memref<8x1xf32, #tpu.memory_space<vmem>>, vector<8x1xf32>
    %90 = vector.broadcast %89 : vector<8x1xf32> to vector<8x256xf32>
    %91 = arith.addf %88, %90 : vector<8x256xf32>
    %c0_57 = arith.constant 0 : index
    %c0_58 = arith.constant 0 : index
    %c0_59 = arith.constant 0 : index
    %92 = vector.load %arg7[%c0_57, %c0_58, %c0_59] : memref<2x8x1xf32, #tpu.memory_space<vmem>>, vector<1x8x1xf32>
    %93 = vector.shape_cast %92 : vector<1x8x1xf32> to vector<8x1xf32>
    %94 = arith.mulf %91, %91 : vector<8x256xf32>
    %cst_60 = arith.constant dense<0.000000e+00> : vector<8xf32>
    %95 = vector.multi_reduction <add>, %94, %cst_60 [1] : vector<8x256xf32> to vector<8xf32>
    %96 = vector.shape_cast %95 : vector<8xf32> to vector<8x1xf32>
    %cst_61 = arith.constant 2.560000e+02 : f32
    %97 = vector.broadcast %cst_61 : f32 to vector<8x1xf32>
    %98 = arith.divf %96, %97 : vector<8x1xf32>
    %cst_62 = arith.constant 9.99999974E-6 : f32
    %99 = vector.broadcast %cst_62 : f32 to vector<8x1xf32>
    %100 = arith.addf %98, %99 : vector<8x1xf32>
    %101 = math.rsqrt %100 : vector<8x1xf32>
    %102 = vector.broadcast %101 : vector<8x1xf32> to vector<8x256xf32>
    %103 = arith.mulf %91, %102 : vector<8x256xf32>
    %104 = vector.broadcast %93 : vector<8x1xf32> to vector<8x256xf32>
    %105 = arith.mulf %104, %103 : vector<8x256xf32>
    %c0_63 = arith.constant 0 : index
    %c0_64 = arith.constant 0 : index
    %106 = vector.load %arg8[%c0_63, %c0_64] : memref<8x1xf32, #tpu.memory_space<vmem>>, vector<8x1xf32>
    %107 = vector.broadcast %106 : vector<8x1xf32> to vector<8x256xf32>
    %108 = arith.maximumf %105, %107 : vector<8x256xf32>
    %c17_i32_65 = arith.constant 17 : i32
    %109 = tpu.dynamic_rotate %108 by %c17_i32_65 dim 1 : vector<8x256xf32>, i32 -> vector<8x256xf32>
    %c0_66 = arith.constant 0 : index
    %c0_67 = arith.constant 0 : index
    %110 = vector.load %arg2[%c0_66, %c0_67] : memref<9x256xf32, #tpu.memory_space<vmem>>, vector<1x256xf32>
    %111 = vector.broadcast %110 : vector<1x256xf32> to vector<8x256xf32>
    %112 = arith.mulf %109, %111 : vector<8x256xf32>
    %c0_68 = arith.constant 0 : index
    %c0_69 = arith.constant 0 : index
    %c0_70 = arith.constant 0 : index
    %113 = vector.load %arg9[%c0_68, %c0_69, %c0_70] : memref<9x8x8xf32, #tpu.memory_space<vmem>>, vector<1x8x8xf32>
    %114 = vector.shape_cast %113 : vector<1x8x8xf32> to vector<8x8xf32>
    %cst_71 = arith.constant dense<0.000000e+00> : vector<8x256xf32>
    %115 = tpu.matmul %114, %112, %cst_71 {dimension_numbers = #tpu.dot_dimension_numbers<[1], [0], [0], [1], [0, 0, 1, 1], [], []>} : vector<8x8xf32>, vector<8x256xf32>, vector<8x256xf32> -> vector<8x256xf32>
    %c16_i32_72 = arith.constant 16 : i32
    %116 = tpu.dynamic_rotate %108 by %c16_i32_72 dim 1 : vector<8x256xf32>, i32 -> vector<8x256xf32>
    %c1_73 = arith.constant 1 : index
    %c0_74 = arith.constant 0 : index
    %117 = vector.load %arg2[%c1_73, %c0_74] : memref<9x256xf32, #tpu.memory_space<vmem>>, vector<1x256xf32>
    %118 = vector.broadcast %117 : vector<1x256xf32> to vector<8x256xf32>
    %119 = arith.mulf %116, %118 : vector<8x256xf32>
    %c1_75 = arith.constant 1 : index
    %c0_76 = arith.constant 0 : index
    %c0_77 = arith.constant 0 : index
    %120 = vector.load %arg9[%c1_75, %c0_76, %c0_77] : memref<9x8x8xf32, #tpu.memory_space<vmem>>, vector<1x8x8xf32>
    %121 = vector.shape_cast %120 : vector<1x8x8xf32> to vector<8x8xf32>
    %cst_78 = arith.constant dense<0.000000e+00> : vector<8x256xf32>
    %122 = tpu.matmul %121, %119, %cst_78 {dimension_numbers = #tpu.dot_dimension_numbers<[1], [0], [0], [1], [0, 0, 1, 1], [], []>} : vector<8x8xf32>, vector<8x256xf32>, vector<8x256xf32> -> vector<8x256xf32>
    %123 = arith.addf %115, %122 : vector<8x256xf32>
    %c15_i32_79 = arith.constant 15 : i32
    %124 = tpu.dynamic_rotate %108 by %c15_i32_79 dim 1 : vector<8x256xf32>, i32 -> vector<8x256xf32>
    %c2_80 = arith.constant 2 : index
    %c0_81 = arith.constant 0 : index
    %125 = vector.load %arg2[%c2_80, %c0_81] : memref<9x256xf32, #tpu.memory_space<vmem>>, vector<1x256xf32>
    %126 = vector.broadcast %125 : vector<1x256xf32> to vector<8x256xf32>
    %127 = arith.mulf %124, %126 : vector<8x256xf32>
    %c2_82 = arith.constant 2 : index
    %c0_83 = arith.constant 0 : index
    %c0_84 = arith.constant 0 : index
    %128 = vector.load %arg9[%c2_82, %c0_83, %c0_84] : memref<9x8x8xf32, #tpu.memory_space<vmem>>, vector<1x8x8xf32>
    %129 = vector.shape_cast %128 : vector<1x8x8xf32> to vector<8x8xf32>
    %cst_85 = arith.constant dense<0.000000e+00> : vector<8x256xf32>
    %130 = tpu.matmul %129, %127, %cst_85 {dimension_numbers = #tpu.dot_dimension_numbers<[1], [0], [0], [1], [0, 0, 1, 1], [], []>} : vector<8x8xf32>, vector<8x256xf32>, vector<8x256xf32> -> vector<8x256xf32>
    %131 = arith.addf %123, %130 : vector<8x256xf32>
    %c1_i32_86 = arith.constant 1 : i32
    %132 = tpu.dynamic_rotate %108 by %c1_i32_86 dim 1 : vector<8x256xf32>, i32 -> vector<8x256xf32>
    %c3_87 = arith.constant 3 : index
    %c0_88 = arith.constant 0 : index
    %133 = vector.load %arg2[%c3_87, %c0_88] : memref<9x256xf32, #tpu.memory_space<vmem>>, vector<1x256xf32>
    %134 = vector.broadcast %133 : vector<1x256xf32> to vector<8x256xf32>
    %135 = arith.mulf %132, %134 : vector<8x256xf32>
    %c3_89 = arith.constant 3 : index
    %c0_90 = arith.constant 0 : index
    %c0_91 = arith.constant 0 : index
    %136 = vector.load %arg9[%c3_89, %c0_90, %c0_91] : memref<9x8x8xf32, #tpu.memory_space<vmem>>, vector<1x8x8xf32>
    %137 = vector.shape_cast %136 : vector<1x8x8xf32> to vector<8x8xf32>
    %cst_92 = arith.constant dense<0.000000e+00> : vector<8x256xf32>
    %138 = tpu.matmul %137, %135, %cst_92 {dimension_numbers = #tpu.dot_dimension_numbers<[1], [0], [0], [1], [0, 0, 1, 1], [], []>} : vector<8x8xf32>, vector<8x256xf32>, vector<8x256xf32> -> vector<8x256xf32>
    %139 = arith.addf %131, %138 : vector<8x256xf32>
    %c4_93 = arith.constant 4 : index
    %c0_94 = arith.constant 0 : index
    %140 = vector.load %arg2[%c4_93, %c0_94] : memref<9x256xf32, #tpu.memory_space<vmem>>, vector<1x256xf32>
    %141 = vector.broadcast %140 : vector<1x256xf32> to vector<8x256xf32>
    %142 = arith.mulf %108, %141 : vector<8x256xf32>
    %c4_95 = arith.constant 4 : index
    %c0_96 = arith.constant 0 : index
    %c0_97 = arith.constant 0 : index
    %143 = vector.load %arg9[%c4_95, %c0_96, %c0_97] : memref<9x8x8xf32, #tpu.memory_space<vmem>>, vector<1x8x8xf32>
    %144 = vector.shape_cast %143 : vector<1x8x8xf32> to vector<8x8xf32>
    %cst_98 = arith.constant dense<0.000000e+00> : vector<8x256xf32>
    %145 = tpu.matmul %144, %142, %cst_98 {dimension_numbers = #tpu.dot_dimension_numbers<[1], [0], [0], [1], [0, 0, 1, 1], [], []>} : vector<8x8xf32>, vector<8x256xf32>, vector<8x256xf32> -> vector<8x256xf32>
    %146 = arith.addf %139, %145 : vector<8x256xf32>
    %c255_i32_99 = arith.constant 255 : i32
    %147 = tpu.dynamic_rotate %108 by %c255_i32_99 dim 1 : vector<8x256xf32>, i32 -> vector<8x256xf32>
    %c5_100 = arith.constant 5 : index
    %c0_101 = arith.constant 0 : index
    %148 = vector.load %arg2[%c5_100, %c0_101] : memref<9x256xf32, #tpu.memory_space<vmem>>, vector<1x256xf32>
    %149 = vector.broadcast %148 : vector<1x256xf32> to vector<8x256xf32>
    %150 = arith.mulf %147, %149 : vector<8x256xf32>
    %c5_102 = arith.constant 5 : index
    %c0_103 = arith.constant 0 : index
    %c0_104 = arith.constant 0 : index
    %151 = vector.load %arg9[%c5_102, %c0_103, %c0_104] : memref<9x8x8xf32, #tpu.memory_space<vmem>>, vector<1x8x8xf32>
    %152 = vector.shape_cast %151 : vector<1x8x8xf32> to vector<8x8xf32>
    %cst_105 = arith.constant dense<0.000000e+00> : vector<8x256xf32>
    %153 = tpu.matmul %152, %150, %cst_105 {dimension_numbers = #tpu.dot_dimension_numbers<[1], [0], [0], [1], [0, 0, 1, 1], [], []>} : vector<8x8xf32>, vector<8x256xf32>, vector<8x256xf32> -> vector<8x256xf32>
    %154 = arith.addf %146, %153 : vector<8x256xf32>
    %c241_i32_106 = arith.constant 241 : i32
    %155 = tpu.dynamic_rotate %108 by %c241_i32_106 dim 1 : vector<8x256xf32>, i32 -> vector<8x256xf32>
    %c6_107 = arith.constant 6 : index
    %c0_108 = arith.constant 0 : index
    %156 = vector.load %arg2[%c6_107, %c0_108] : memref<9x256xf32, #tpu.memory_space<vmem>>, vector<1x256xf32>
    %157 = vector.broadcast %156 : vector<1x256xf32> to vector<8x256xf32>
    %158 = arith.mulf %155, %157 : vector<8x256xf32>
    %c6_109 = arith.constant 6 : index
    %c0_110 = arith.constant 0 : index
    %c0_111 = arith.constant 0 : index
    %159 = vector.load %arg9[%c6_109, %c0_110, %c0_111] : memref<9x8x8xf32, #tpu.memory_space<vmem>>, vector<1x8x8xf32>
    %160 = vector.shape_cast %159 : vector<1x8x8xf32> to vector<8x8xf32>
    %cst_112 = arith.constant dense<0.000000e+00> : vector<8x256xf32>
    %161 = tpu.matmul %160, %158, %cst_112 {dimension_numbers = #tpu.dot_dimension_numbers<[1], [0], [0], [1], [0, 0, 1, 1], [], []>} : vector<8x8xf32>, vector<8x256xf32>, vector<8x256xf32> -> vector<8x256xf32>
    %162 = arith.addf %154, %161 : vector<8x256xf32>
    %c240_i32_113 = arith.constant 240 : i32
    %163 = tpu.dynamic_rotate %108 by %c240_i32_113 dim 1 : vector<8x256xf32>, i32 -> vector<8x256xf32>
    %c7_114 = arith.constant 7 : index
    %c0_115 = arith.constant 0 : index
    %164 = vector.load %arg2[%c7_114, %c0_115] : memref<9x256xf32, #tpu.memory_space<vmem>>, vector<1x256xf32>
    %165 = vector.broadcast %164 : vector<1x256xf32> to vector<8x256xf32>
    %166 = arith.mulf %163, %165 : vector<8x256xf32>
    %c7_116 = arith.constant 7 : index
    %c0_117 = arith.constant 0 : index
    %c0_118 = arith.constant 0 : index
    %167 = vector.load %arg9[%c7_116, %c0_117, %c0_118] : memref<9x8x8xf32, #tpu.memory_space<vmem>>, vector<1x8x8xf32>
    %168 = vector.shape_cast %167 : vector<1x8x8xf32> to vector<8x8xf32>
    %cst_119 = arith.constant dense<0.000000e+00> : vector<8x256xf32>
    %169 = tpu.matmul %168, %166, %cst_119 {dimension_numbers = #tpu.dot_dimension_numbers<[1], [0], [0], [1], [0, 0, 1, 1], [], []>} : vector<8x8xf32>, vector<8x256xf32>, vector<8x256xf32> -> vector<8x256xf32>
    %170 = arith.addf %162, %169 : vector<8x256xf32>
    %c239_i32_120 = arith.constant 239 : i32
    %171 = tpu.dynamic_rotate %108 by %c239_i32_120 dim 1 : vector<8x256xf32>, i32 -> vector<8x256xf32>
    %c8_121 = arith.constant 8 : index
    %c0_122 = arith.constant 0 : index
    %172 = vector.load %arg2[%c8_121, %c0_122] : memref<9x256xf32, #tpu.memory_space<vmem>>, vector<1x256xf32>
    %173 = vector.broadcast %172 : vector<1x256xf32> to vector<8x256xf32>
    %174 = arith.mulf %171, %173 : vector<8x256xf32>
    %c8_123 = arith.constant 8 : index
    %c0_124 = arith.constant 0 : index
    %c0_125 = arith.constant 0 : index
    %175 = vector.load %arg9[%c8_123, %c0_124, %c0_125] : memref<9x8x8xf32, #tpu.memory_space<vmem>>, vector<1x8x8xf32>
    %176 = vector.shape_cast %175 : vector<1x8x8xf32> to vector<8x8xf32>
    %cst_126 = arith.constant dense<0.000000e+00> : vector<8x256xf32>
    %177 = tpu.matmul %176, %174, %cst_126 {dimension_numbers = #tpu.dot_dimension_numbers<[1], [0], [0], [1], [0, 0, 1, 1], [], []>} : vector<8x8xf32>, vector<8x256xf32>, vector<8x256xf32> -> vector<8x256xf32>
    %178 = arith.addf %170, %177 : vector<8x256xf32>
    %c0_127 = arith.constant 0 : index
    %c0_128 = arith.constant 0 : index
    %179 = vector.load %arg10[%c0_127, %c0_128] : memref<8x1xf32, #tpu.memory_space<vmem>>, vector<8x1xf32>
    %180 = vector.broadcast %179 : vector<8x1xf32> to vector<8x256xf32>
    %181 = arith.addf %178, %180 : vector<8x256xf32>
    %c0_129 = arith.constant 0 : index
    %c0_130 = arith.constant 0 : index
    %c0_131 = arith.constant 0 : index
    %182 = vector.load %arg11[%c0_129, %c0_130, %c0_131] : memref<2x8x256xf32, #tpu.memory_space<vmem>>, vector<1x8x256xf32>
    %183 = vector.shape_cast %182 : vector<1x8x256xf32> to vector<8x256xf32>
    %184 = vector.shape_cast %181 : vector<8x256xf32> to vector<1x8x256xf32>
    tpu.vector_store %arg11[%c0_129, %c0_130, %c0_131], %184 {strides = array<i32>} : memref<2x8x256xf32, #tpu.memory_space<vmem>>, vector<1x8x256xf32>,
    %c1_132 = arith.constant 1 : index
    %c0_133 = arith.constant 0 : index
    %c0_134 = arith.constant 0 : index
    %185 = vector.load %arg1[%c1_132, %c0_133, %c0_134] : memref<2x4x256xf32, #tpu.memory_space<vmem>>, vector<1x4x256xf32>
    %186 = vector.shape_cast %185 : vector<1x4x256xf32> to vector<4x256xf32>
    %c1_135 = arith.constant 1 : index
    %c0_136 = arith.constant 0 : index
    %c0_137 = arith.constant 0 : index
    %187 = vector.load %arg3[%c1_135, %c0_136, %c0_137] : memref<2x4x1xf32, #tpu.memory_space<vmem>>, vector<1x4x1xf32>
    %188 = vector.shape_cast %187 : vector<1x4x1xf32> to vector<4x1xf32>
    %189 = arith.mulf %186, %186 : vector<4x256xf32>
    %cst_138 = arith.constant dense<0.000000e+00> : vector<4xf32>
    %190 = vector.multi_reduction <add>, %189, %cst_138 [1] : vector<4x256xf32> to vector<4xf32>
    %191 = vector.shape_cast %190 : vector<4xf32> to vector<4x1xf32>
    %cst_139 = arith.constant 2.560000e+02 : f32
    %192 = vector.broadcast %cst_139 : f32 to vector<4x1xf32>
    %193 = arith.divf %191, %192 : vector<4x1xf32>
    %cst_140 = arith.constant 9.99999974E-6 : f32
    %194 = vector.broadcast %cst_140 : f32 to vector<4x1xf32>
    %195 = arith.addf %193, %194 : vector<4x1xf32>
    %196 = math.rsqrt %195 : vector<4x1xf32>
    %197 = vector.broadcast %196 : vector<4x1xf32> to vector<4x256xf32>
    %198 = arith.mulf %186, %197 : vector<4x256xf32>
    %199 = vector.broadcast %188 : vector<4x1xf32> to vector<4x256xf32>
    %200 = arith.mulf %199, %198 : vector<4x256xf32>
    %c0_141 = arith.constant 0 : index
    %c0_142 = arith.constant 0 : index
    %201 = vector.load %arg4[%c0_141, %c0_142] : memref<4x1xf32, #tpu.memory_space<vmem>>, vector<4x1xf32>
    %202 = vector.broadcast %201 : vector<4x1xf32> to vector<4x256xf32>
    %203 = arith.maximumf %200, %202 : vector<4x256xf32>
    %c17_i32_143 = arith.constant 17 : i32
    %204 = tpu.dynamic_rotate %203 by %c17_i32_143 dim 1 : vector<4x256xf32>, i32 -> vector<4x256xf32>
    %c0_144 = arith.constant 0 : index
    %c0_145 = arith.constant 0 : index
    %205 = vector.load %arg2[%c0_144, %c0_145] : memref<9x256xf32, #tpu.memory_space<vmem>>, vector<1x256xf32>
    %206 = vector.broadcast %205 : vector<1x256xf32> to vector<4x256xf32>
    %207 = arith.mulf %204, %206 : vector<4x256xf32>
    %c0_146 = arith.constant 0 : index
    %c0_147 = arith.constant 0 : index
    %c0_148 = arith.constant 0 : index
    %208 = vector.load %arg5[%c0_146, %c0_147, %c0_148] : memref<9x8x4xf32, #tpu.memory_space<vmem>>, vector<1x8x4xf32>
    %209 = vector.shape_cast %208 : vector<1x8x4xf32> to vector<8x4xf32>
    %cst_149 = arith.constant dense<0.000000e+00> : vector<8x256xf32>
    %210 = tpu.matmul %209, %207, %cst_149 {dimension_numbers = #tpu.dot_dimension_numbers<[1], [0], [0], [1], [0, 0, 1, 1], [], []>} : vector<8x4xf32>, vector<4x256xf32>, vector<8x256xf32> -> vector<8x256xf32>
    %c16_i32_150 = arith.constant 16 : i32
    %211 = tpu.dynamic_rotate %203 by %c16_i32_150 dim 1 : vector<4x256xf32>, i32 -> vector<4x256xf32>
    %c1_151 = arith.constant 1 : index
    %c0_152 = arith.constant 0 : index
    %212 = vector.load %arg2[%c1_151, %c0_152] : memref<9x256xf32, #tpu.memory_space<vmem>>, vector<1x256xf32>
    %213 = vector.broadcast %212 : vector<1x256xf32> to vector<4x256xf32>
    %214 = arith.mulf %211, %213 : vector<4x256xf32>
    %c1_153 = arith.constant 1 : index
    %c0_154 = arith.constant 0 : index
    %c0_155 = arith.constant 0 : index
    %215 = vector.load %arg5[%c1_153, %c0_154, %c0_155] : memref<9x8x4xf32, #tpu.memory_space<vmem>>, vector<1x8x4xf32>
    %216 = vector.shape_cast %215 : vector<1x8x4xf32> to vector<8x4xf32>
    %cst_156 = arith.constant dense<0.000000e+00> : vector<8x256xf32>
    %217 = tpu.matmul %216, %214, %cst_156 {dimension_numbers = #tpu.dot_dimension_numbers<[1], [0], [0], [1], [0, 0, 1, 1], [], []>} : vector<8x4xf32>, vector<4x256xf32>, vector<8x256xf32> -> vector<8x256xf32>
    %218 = arith.addf %210, %217 : vector<8x256xf32>
    %c15_i32_157 = arith.constant 15 : i32
    %219 = tpu.dynamic_rotate %203 by %c15_i32_157 dim 1 : vector<4x256xf32>, i32 -> vector<4x256xf32>
    %c2_158 = arith.constant 2 : index
    %c0_159 = arith.constant 0 : index
    %220 = vector.load %arg2[%c2_158, %c0_159] : memref<9x256xf32, #tpu.memory_space<vmem>>, vector<1x256xf32>
    %221 = vector.broadcast %220 : vector<1x256xf32> to vector<4x256xf32>
    %222 = arith.mulf %219, %221 : vector<4x256xf32>
    %c2_160 = arith.constant 2 : index
    %c0_161 = arith.constant 0 : index
    %c0_162 = arith.constant 0 : index
    %223 = vector.load %arg5[%c2_160, %c0_161, %c0_162] : memref<9x8x4xf32, #tpu.memory_space<vmem>>, vector<1x8x4xf32>
    %224 = vector.shape_cast %223 : vector<1x8x4xf32> to vector<8x4xf32>
    %cst_163 = arith.constant dense<0.000000e+00> : vector<8x256xf32>
    %225 = tpu.matmul %224, %222, %cst_163 {dimension_numbers = #tpu.dot_dimension_numbers<[1], [0], [0], [1], [0, 0, 1, 1], [], []>} : vector<8x4xf32>, vector<4x256xf32>, vector<8x256xf32> -> vector<8x256xf32>
    %226 = arith.addf %218, %225 : vector<8x256xf32>
    %c1_i32_164 = arith.constant 1 : i32
    %227 = tpu.dynamic_rotate %203 by %c1_i32_164 dim 1 : vector<4x256xf32>, i32 -> vector<4x256xf32>
    %c3_165 = arith.constant 3 : index
    %c0_166 = arith.constant 0 : index
    %228 = vector.load %arg2[%c3_165, %c0_166] : memref<9x256xf32, #tpu.memory_space<vmem>>, vector<1x256xf32>
    %229 = vector.broadcast %228 : vector<1x256xf32> to vector<4x256xf32>
    %230 = arith.mulf %227, %229 : vector<4x256xf32>
    %c3_167 = arith.constant 3 : index
    %c0_168 = arith.constant 0 : index
    %c0_169 = arith.constant 0 : index
    %231 = vector.load %arg5[%c3_167, %c0_168, %c0_169] : memref<9x8x4xf32, #tpu.memory_space<vmem>>, vector<1x8x4xf32>
    %232 = vector.shape_cast %231 : vector<1x8x4xf32> to vector<8x4xf32>
    %cst_170 = arith.constant dense<0.000000e+00> : vector<8x256xf32>
    %233 = tpu.matmul %232, %230, %cst_170 {dimension_numbers = #tpu.dot_dimension_numbers<[1], [0], [0], [1], [0, 0, 1, 1], [], []>} : vector<8x4xf32>, vector<4x256xf32>, vector<8x256xf32> -> vector<8x256xf32>
    %234 = arith.addf %226, %233 : vector<8x256xf32>
    %c4_171 = arith.constant 4 : index
    %c0_172 = arith.constant 0 : index
    %235 = vector.load %arg2[%c4_171, %c0_172] : memref<9x256xf32, #tpu.memory_space<vmem>>, vector<1x256xf32>
    %236 = vector.broadcast %235 : vector<1x256xf32> to vector<4x256xf32>
    %237 = arith.mulf %203, %236 : vector<4x256xf32>
    %c4_173 = arith.constant 4 : index
    %c0_174 = arith.constant 0 : index
    %c0_175 = arith.constant 0 : index
    %238 = vector.load %arg5[%c4_173, %c0_174, %c0_175] : memref<9x8x4xf32, #tpu.memory_space<vmem>>, vector<1x8x4xf32>
    %239 = vector.shape_cast %238 : vector<1x8x4xf32> to vector<8x4xf32>
    %cst_176 = arith.constant dense<0.000000e+00> : vector<8x256xf32>
    %240 = tpu.matmul %239, %237, %cst_176 {dimension_numbers = #tpu.dot_dimension_numbers<[1], [0], [0], [1], [0, 0, 1, 1], [], []>} : vector<8x4xf32>, vector<4x256xf32>, vector<8x256xf32> -> vector<8x256xf32>
    %241 = arith.addf %234, %240 : vector<8x256xf32>
    %c255_i32_177 = arith.constant 255 : i32
    %242 = tpu.dynamic_rotate %203 by %c255_i32_177 dim 1 : vector<4x256xf32>, i32 -> vector<4x256xf32>
    %c5_178 = arith.constant 5 : index
    %c0_179 = arith.constant 0 : index
    %243 = vector.load %arg2[%c5_178, %c0_179] : memref<9x256xf32, #tpu.memory_space<vmem>>, vector<1x256xf32>
    %244 = vector.broadcast %243 : vector<1x256xf32> to vector<4x256xf32>
    %245 = arith.mulf %242, %244 : vector<4x256xf32>
    %c5_180 = arith.constant 5 : index
    %c0_181 = arith.constant 0 : index
    %c0_182 = arith.constant 0 : index
    %246 = vector.load %arg5[%c5_180, %c0_181, %c0_182] : memref<9x8x4xf32, #tpu.memory_space<vmem>>, vector<1x8x4xf32>
    %247 = vector.shape_cast %246 : vector<1x8x4xf32> to vector<8x4xf32>
    %cst_183 = arith.constant dense<0.000000e+00> : vector<8x256xf32>
    %248 = tpu.matmul %247, %245, %cst_183 {dimension_numbers = #tpu.dot_dimension_numbers<[1], [0], [0], [1], [0, 0, 1, 1], [], []>} : vector<8x4xf32>, vector<4x256xf32>, vector<8x256xf32> -> vector<8x256xf32>
    %249 = arith.addf %241, %248 : vector<8x256xf32>
    %c241_i32_184 = arith.constant 241 : i32
    %250 = tpu.dynamic_rotate %203 by %c241_i32_184 dim 1 : vector<4x256xf32>, i32 -> vector<4x256xf32>
    %c6_185 = arith.constant 6 : index
    %c0_186 = arith.constant 0 : index
    %251 = vector.load %arg2[%c6_185, %c0_186] : memref<9x256xf32, #tpu.memory_space<vmem>>, vector<1x256xf32>
    %252 = vector.broadcast %251 : vector<1x256xf32> to vector<4x256xf32>
    %253 = arith.mulf %250, %252 : vector<4x256xf32>
    %c6_187 = arith.constant 6 : index
    %c0_188 = arith.constant 0 : index
    %c0_189 = arith.constant 0 : index
    %254 = vector.load %arg5[%c6_187, %c0_188, %c0_189] : memref<9x8x4xf32, #tpu.memory_space<vmem>>, vector<1x8x4xf32>
    %255 = vector.shape_cast %254 : vector<1x8x4xf32> to vector<8x4xf32>
    %cst_190 = arith.constant dense<0.000000e+00> : vector<8x256xf32>
    %256 = tpu.matmul %255, %253, %cst_190 {dimension_numbers = #tpu.dot_dimension_numbers<[1], [0], [0], [1], [0, 0, 1, 1], [], []>} : vector<8x4xf32>, vector<4x256xf32>, vector<8x256xf32> -> vector<8x256xf32>
    %257 = arith.addf %249, %256 : vector<8x256xf32>
    %c240_i32_191 = arith.constant 240 : i32
    %258 = tpu.dynamic_rotate %203 by %c240_i32_191 dim 1 : vector<4x256xf32>, i32 -> vector<4x256xf32>
    %c7_192 = arith.constant 7 : index
    %c0_193 = arith.constant 0 : index
    %259 = vector.load %arg2[%c7_192, %c0_193] : memref<9x256xf32, #tpu.memory_space<vmem>>, vector<1x256xf32>
    %260 = vector.broadcast %259 : vector<1x256xf32> to vector<4x256xf32>
    %261 = arith.mulf %258, %260 : vector<4x256xf32>
    %c7_194 = arith.constant 7 : index
    %c0_195 = arith.constant 0 : index
    %c0_196 = arith.constant 0 : index
    %262 = vector.load %arg5[%c7_194, %c0_195, %c0_196] : memref<9x8x4xf32, #tpu.memory_space<vmem>>, vector<1x8x4xf32>
    %263 = vector.shape_cast %262 : vector<1x8x4xf32> to vector<8x4xf32>
    %cst_197 = arith.constant dense<0.000000e+00> : vector<8x256xf32>
    %264 = tpu.matmul %263, %261, %cst_197 {dimension_numbers = #tpu.dot_dimension_numbers<[1], [0], [0], [1], [0, 0, 1, 1], [], []>} : vector<8x4xf32>, vector<4x256xf32>, vector<8x256xf32> -> vector<8x256xf32>
    %265 = arith.addf %257, %264 : vector<8x256xf32>
    %c239_i32_198 = arith.constant 239 : i32
    %266 = tpu.dynamic_rotate %203 by %c239_i32_198 dim 1 : vector<4x256xf32>, i32 -> vector<4x256xf32>
    %c8_199 = arith.constant 8 : index
    %c0_200 = arith.constant 0 : index
    %267 = vector.load %arg2[%c8_199, %c0_200] : memref<9x256xf32, #tpu.memory_space<vmem>>, vector<1x256xf32>
    %268 = vector.broadcast %267 : vector<1x256xf32> to vector<4x256xf32>
    %269 = arith.mulf %266, %268 : vector<4x256xf32>
    %c8_201 = arith.constant 8 : index
    %c0_202 = arith.constant 0 : index
    %c0_203 = arith.constant 0 : index
    %270 = vector.load %arg5[%c8_201, %c0_202, %c0_203] : memref<9x8x4xf32, #tpu.memory_space<vmem>>, vector<1x8x4xf32>
    %271 = vector.shape_cast %270 : vector<1x8x4xf32> to vector<8x4xf32>
    %cst_204 = arith.constant dense<0.000000e+00> : vector<8x256xf32>
    %272 = tpu.matmul %271, %269, %cst_204 {dimension_numbers = #tpu.dot_dimension_numbers<[1], [0], [0], [1], [0, 0, 1, 1], [], []>} : vector<8x4xf32>, vector<4x256xf32>, vector<8x256xf32> -> vector<8x256xf32>
    %273 = arith.addf %265, %272 : vector<8x256xf32>
    %c0_205 = arith.constant 0 : index
    %c0_206 = arith.constant 0 : index
    %274 = vector.load %arg6[%c0_205, %c0_206] : memref<8x1xf32, #tpu.memory_space<vmem>>, vector<8x1xf32>
    %275 = vector.broadcast %274 : vector<8x1xf32> to vector<8x256xf32>
    %276 = arith.addf %273, %275 : vector<8x256xf32>
    %c1_207 = arith.constant 1 : index
    %c0_208 = arith.constant 0 : index
    %c0_209 = arith.constant 0 : index
    %277 = vector.load %arg7[%c1_207, %c0_208, %c0_209] : memref<2x8x1xf32, #tpu.memory_space<vmem>>, vector<1x8x1xf32>
    %278 = vector.shape_cast %277 : vector<1x8x1xf32> to vector<8x1xf32>
    %279 = arith.mulf %276, %276 : vector<8x256xf32>
    %cst_210 = arith.constant dense<0.000000e+00> : vector<8xf32>
    %280 = vector.multi_reduction <add>, %279, %cst_210 [1] : vector<8x256xf32> to vector<8xf32>
    %281 = vector.shape_cast %280 : vector<8xf32> to vector<8x1xf32>
    %cst_211 = arith.constant 2.560000e+02 : f32
    %282 = vector.broadcast %cst_211 : f32 to vector<8x1xf32>
    %283 = arith.divf %281, %282 : vector<8x1xf32>
    %cst_212 = arith.constant 9.99999974E-6 : f32
    %284 = vector.broadcast %cst_212 : f32 to vector<8x1xf32>
    %285 = arith.addf %283, %284 : vector<8x1xf32>
    %286 = math.rsqrt %285 : vector<8x1xf32>
    %287 = vector.broadcast %286 : vector<8x1xf32> to vector<8x256xf32>
    %288 = arith.mulf %276, %287 : vector<8x256xf32>
    %289 = vector.broadcast %278 : vector<8x1xf32> to vector<8x256xf32>
    %290 = arith.mulf %289, %288 : vector<8x256xf32>
    %c0_213 = arith.constant 0 : index
    %c0_214 = arith.constant 0 : index
    %291 = vector.load %arg8[%c0_213, %c0_214] : memref<8x1xf32, #tpu.memory_space<vmem>>, vector<8x1xf32>
    %292 = vector.broadcast %291 : vector<8x1xf32> to vector<8x256xf32>
    %293 = arith.maximumf %290, %292 : vector<8x256xf32>
    %c17_i32_215 = arith.constant 17 : i32
    %294 = tpu.dynamic_rotate %293 by %c17_i32_215 dim 1 : vector<8x256xf32>, i32 -> vector<8x256xf32>
    %c0_216 = arith.constant 0 : index
    %c0_217 = arith.constant 0 : index
    %295 = vector.load %arg2[%c0_216, %c0_217] : memref<9x256xf32, #tpu.memory_space<vmem>>, vector<1x256xf32>
    %296 = vector.broadcast %295 : vector<1x256xf32> to vector<8x256xf32>
    %297 = arith.mulf %294, %296 : vector<8x256xf32>
    %c0_218 = arith.constant 0 : index
    %c0_219 = arith.constant 0 : index
    %c0_220 = arith.constant 0 : index
    %298 = vector.load %arg9[%c0_218, %c0_219, %c0_220] : memref<9x8x8xf32, #tpu.memory_space<vmem>>, vector<1x8x8xf32>
    %299 = vector.shape_cast %298 : vector<1x8x8xf32> to vector<8x8xf32>
    %cst_221 = arith.constant dense<0.000000e+00> : vector<8x256xf32>
    %300 = tpu.matmul %299, %297, %cst_221 {dimension_numbers = #tpu.dot_dimension_numbers<[1], [0], [0], [1], [0, 0, 1, 1], [], []>} : vector<8x8xf32>, vector<8x256xf32>, vector<8x256xf32> -> vector<8x256xf32>
    %c16_i32_222 = arith.constant 16 : i32
    %301 = tpu.dynamic_rotate %293 by %c16_i32_222 dim 1 : vector<8x256xf32>, i32 -> vector<8x256xf32>
    %c1_223 = arith.constant 1 : index
    %c0_224 = arith.constant 0 : index
    %302 = vector.load %arg2[%c1_223, %c0_224] : memref<9x256xf32, #tpu.memory_space<vmem>>, vector<1x256xf32>
    %303 = vector.broadcast %302 : vector<1x256xf32> to vector<8x256xf32>
    %304 = arith.mulf %301, %303 : vector<8x256xf32>
    %c1_225 = arith.constant 1 : index
    %c0_226 = arith.constant 0 : index
    %c0_227 = arith.constant 0 : index
    %305 = vector.load %arg9[%c1_225, %c0_226, %c0_227] : memref<9x8x8xf32, #tpu.memory_space<vmem>>, vector<1x8x8xf32>
    %306 = vector.shape_cast %305 : vector<1x8x8xf32> to vector<8x8xf32>
    %cst_228 = arith.constant dense<0.000000e+00> : vector<8x256xf32>
    %307 = tpu.matmul %306, %304, %cst_228 {dimension_numbers = #tpu.dot_dimension_numbers<[1], [0], [0], [1], [0, 0, 1, 1], [], []>} : vector<8x8xf32>, vector<8x256xf32>, vector<8x256xf32> -> vector<8x256xf32>
    %308 = arith.addf %300, %307 : vector<8x256xf32>
    %c15_i32_229 = arith.constant 15 : i32
    %309 = tpu.dynamic_rotate %293 by %c15_i32_229 dim 1 : vector<8x256xf32>, i32 -> vector<8x256xf32>
    %c2_230 = arith.constant 2 : index
    %c0_231 = arith.constant 0 : index
    %310 = vector.load %arg2[%c2_230, %c0_231] : memref<9x256xf32, #tpu.memory_space<vmem>>, vector<1x256xf32>
    %311 = vector.broadcast %310 : vector<1x256xf32> to vector<8x256xf32>
    %312 = arith.mulf %309, %311 : vector<8x256xf32>
    %c2_232 = arith.constant 2 : index
    %c0_233 = arith.constant 0 : index
    %c0_234 = arith.constant 0 : index
    %313 = vector.load %arg9[%c2_232, %c0_233, %c0_234] : memref<9x8x8xf32, #tpu.memory_space<vmem>>, vector<1x8x8xf32>
    %314 = vector.shape_cast %313 : vector<1x8x8xf32> to vector<8x8xf32>
    %cst_235 = arith.constant dense<0.000000e+00> : vector<8x256xf32>
    %315 = tpu.matmul %314, %312, %cst_235 {dimension_numbers = #tpu.dot_dimension_numbers<[1], [0], [0], [1], [0, 0, 1, 1], [], []>} : vector<8x8xf32>, vector<8x256xf32>, vector<8x256xf32> -> vector<8x256xf32>
    %316 = arith.addf %308, %315 : vector<8x256xf32>
    %c1_i32_236 = arith.constant 1 : i32
    %317 = tpu.dynamic_rotate %293 by %c1_i32_236 dim 1 : vector<8x256xf32>, i32 -> vector<8x256xf32>
    %c3_237 = arith.constant 3 : index
    %c0_238 = arith.constant 0 : index
    %318 = vector.load %arg2[%c3_237, %c0_238] : memref<9x256xf32, #tpu.memory_space<vmem>>, vector<1x256xf32>
    %319 = vector.broadcast %318 : vector<1x256xf32> to vector<8x256xf32>
    %320 = arith.mulf %317, %319 : vector<8x256xf32>
    %c3_239 = arith.constant 3 : index
    %c0_240 = arith.constant 0 : index
    %c0_241 = arith.constant 0 : index
    %321 = vector.load %arg9[%c3_239, %c0_240, %c0_241] : memref<9x8x8xf32, #tpu.memory_space<vmem>>, vector<1x8x8xf32>
    %322 = vector.shape_cast %321 : vector<1x8x8xf32> to vector<8x8xf32>
    %cst_242 = arith.constant dense<0.000000e+00> : vector<8x256xf32>
    %323 = tpu.matmul %322, %320, %cst_242 {dimension_numbers = #tpu.dot_dimension_numbers<[1], [0], [0], [1], [0, 0, 1, 1], [], []>} : vector<8x8xf32>, vector<8x256xf32>, vector<8x256xf32> -> vector<8x256xf32>
    %324 = arith.addf %316, %323 : vector<8x256xf32>
    %c4_243 = arith.constant 4 : index
    %c0_244 = arith.constant 0 : index
    %325 = vector.load %arg2[%c4_243, %c0_244] : memref<9x256xf32, #tpu.memory_space<vmem>>, vector<1x256xf32>
    %326 = vector.broadcast %325 : vector<1x256xf32> to vector<8x256xf32>
    %327 = arith.mulf %293, %326 : vector<8x256xf32>
    %c4_245 = arith.constant 4 : index
    %c0_246 = arith.constant 0 : index
    %c0_247 = arith.constant 0 : index
    %328 = vector.load %arg9[%c4_245, %c0_246, %c0_247] : memref<9x8x8xf32, #tpu.memory_space<vmem>>, vector<1x8x8xf32>
    %329 = vector.shape_cast %328 : vector<1x8x8xf32> to vector<8x8xf32>
    %cst_248 = arith.constant dense<0.000000e+00> : vector<8x256xf32>
    %330 = tpu.matmul %329, %327, %cst_248 {dimension_numbers = #tpu.dot_dimension_numbers<[1], [0], [0], [1], [0, 0, 1, 1], [], []>} : vector<8x8xf32>, vector<8x256xf32>, vector<8x256xf32> -> vector<8x256xf32>
    %331 = arith.addf %324, %330 : vector<8x256xf32>
    %c255_i32_249 = arith.constant 255 : i32
    %332 = tpu.dynamic_rotate %293 by %c255_i32_249 dim 1 : vector<8x256xf32>, i32 -> vector<8x256xf32>
    %c5_250 = arith.constant 5 : index
    %c0_251 = arith.constant 0 : index
    %333 = vector.load %arg2[%c5_250, %c0_251] : memref<9x256xf32, #tpu.memory_space<vmem>>, vector<1x256xf32>
    %334 = vector.broadcast %333 : vector<1x256xf32> to vector<8x256xf32>
    %335 = arith.mulf %332, %334 : vector<8x256xf32>
    %c5_252 = arith.constant 5 : index
    %c0_253 = arith.constant 0 : index
    %c0_254 = arith.constant 0 : index
    %336 = vector.load %arg9[%c5_252, %c0_253, %c0_254] : memref<9x8x8xf32, #tpu.memory_space<vmem>>, vector<1x8x8xf32>
    %337 = vector.shape_cast %336 : vector<1x8x8xf32> to vector<8x8xf32>
    %cst_255 = arith.constant dense<0.000000e+00> : vector<8x256xf32>
    %338 = tpu.matmul %337, %335, %cst_255 {dimension_numbers = #tpu.dot_dimension_numbers<[1], [0], [0], [1], [0, 0, 1, 1], [], []>} : vector<8x8xf32>, vector<8x256xf32>, vector<8x256xf32> -> vector<8x256xf32>
    %339 = arith.addf %331, %338 : vector<8x256xf32>
    %c241_i32_256 = arith.constant 241 : i32
    %340 = tpu.dynamic_rotate %293 by %c241_i32_256 dim 1 : vector<8x256xf32>, i32 -> vector<8x256xf32>
    %c6_257 = arith.constant 6 : index
    %c0_258 = arith.constant 0 : index
    %341 = vector.load %arg2[%c6_257, %c0_258] : memref<9x256xf32, #tpu.memory_space<vmem>>, vector<1x256xf32>
    %342 = vector.broadcast %341 : vector<1x256xf32> to vector<8x256xf32>
    %343 = arith.mulf %340, %342 : vector<8x256xf32>
    %c6_259 = arith.constant 6 : index
    %c0_260 = arith.constant 0 : index
    %c0_261 = arith.constant 0 : index
    %344 = vector.load %arg9[%c6_259, %c0_260, %c0_261] : memref<9x8x8xf32, #tpu.memory_space<vmem>>, vector<1x8x8xf32>
    %345 = vector.shape_cast %344 : vector<1x8x8xf32> to vector<8x8xf32>
    %cst_262 = arith.constant dense<0.000000e+00> : vector<8x256xf32>
    %346 = tpu.matmul %345, %343, %cst_262 {dimension_numbers = #tpu.dot_dimension_numbers<[1], [0], [0], [1], [0, 0, 1, 1], [], []>} : vector<8x8xf32>, vector<8x256xf32>, vector<8x256xf32> -> vector<8x256xf32>
    %347 = arith.addf %339, %346 : vector<8x256xf32>
    %c240_i32_263 = arith.constant 240 : i32
    %348 = tpu.dynamic_rotate %293 by %c240_i32_263 dim 1 : vector<8x256xf32>, i32 -> vector<8x256xf32>
    %c7_264 = arith.constant 7 : index
    %c0_265 = arith.constant 0 : index
    %349 = vector.load %arg2[%c7_264, %c0_265] : memref<9x256xf32, #tpu.memory_space<vmem>>, vector<1x256xf32>
    %350 = vector.broadcast %349 : vector<1x256xf32> to vector<8x256xf32>
    %351 = arith.mulf %348, %350 : vector<8x256xf32>
    %c7_266 = arith.constant 7 : index
    %c0_267 = arith.constant 0 : index
    %c0_268 = arith.constant 0 : index
    %352 = vector.load %arg9[%c7_266, %c0_267, %c0_268] : memref<9x8x8xf32, #tpu.memory_space<vmem>>, vector<1x8x8xf32>
    %353 = vector.shape_cast %352 : vector<1x8x8xf32> to vector<8x8xf32>
    %cst_269 = arith.constant dense<0.000000e+00> : vector<8x256xf32>
    %354 = tpu.matmul %353, %351, %cst_269 {dimension_numbers = #tpu.dot_dimension_numbers<[1], [0], [0], [1], [0, 0, 1, 1], [], []>} : vector<8x8xf32>, vector<8x256xf32>, vector<8x256xf32> -> vector<8x256xf32>
    %355 = arith.addf %347, %354 : vector<8x256xf32>
    %c239_i32_270 = arith.constant 239 : i32
    %356 = tpu.dynamic_rotate %293 by %c239_i32_270 dim 1 : vector<8x256xf32>, i32 -> vector<8x256xf32>
    %c8_271 = arith.constant 8 : index
    %c0_272 = arith.constant 0 : index
    %357 = vector.load %arg2[%c8_271, %c0_272] : memref<9x256xf32, #tpu.memory_space<vmem>>, vector<1x256xf32>
    %358 = vector.broadcast %357 : vector<1x256xf32> to vector<8x256xf32>
    %359 = arith.mulf %356, %358 : vector<8x256xf32>
    %c8_273 = arith.constant 8 : index
    %c0_274 = arith.constant 0 : index
    %c0_275 = arith.constant 0 : index
    %360 = vector.load %arg9[%c8_273, %c0_274, %c0_275] : memref<9x8x8xf32, #tpu.memory_space<vmem>>, vector<1x8x8xf32>
    %361 = vector.shape_cast %360 : vector<1x8x8xf32> to vector<8x8xf32>
    %cst_276 = arith.constant dense<0.000000e+00> : vector<8x256xf32>
    %362 = tpu.matmul %361, %359, %cst_276 {dimension_numbers = #tpu.dot_dimension_numbers<[1], [0], [0], [1], [0, 0, 1, 1], [], []>} : vector<8x8xf32>, vector<8x256xf32>, vector<8x256xf32> -> vector<8x256xf32>
    %363 = arith.addf %355, %362 : vector<8x256xf32>
    %c0_277 = arith.constant 0 : index
    %c0_278 = arith.constant 0 : index
    %364 = vector.load %arg10[%c0_277, %c0_278] : memref<8x1xf32, #tpu.memory_space<vmem>>, vector<8x1xf32>
    %365 = vector.broadcast %364 : vector<8x1xf32> to vector<8x256xf32>
    %366 = arith.addf %363, %365 : vector<8x256xf32>
    %c1_279 = arith.constant 1 : index
    %c0_280 = arith.constant 0 : index
    %c0_281 = arith.constant 0 : index
    %367 = vector.load %arg11[%c1_279, %c0_280, %c0_281] : memref<2x8x256xf32, #tpu.memory_space<vmem>>, vector<1x8x256xf32>
    %368 = vector.shape_cast %367 : vector<1x8x256xf32> to vector<8x256xf32>
    %369 = vector.shape_cast %366 : vector<8x256xf32> to vector<1x8x256xf32>
    tpu.vector_store %arg11[%c1_279, %c0_280, %c0_281], %369 {strides = array<i32>} : memref<2x8x256xf32, #tpu.memory_space<vmem>>, vector<1x8x256xf32>,
    return
  }
  func.func @transform_0(%arg0: i32) -> (i32, i32, i32) {
    %c0_i32 = arith.constant 0 : i32
    %c0_i32_0 = arith.constant 0 : i32
    %c0_i32_1 = arith.constant 0 : i32
    return %arg0, %c0_i32, %c0_i32_0 : i32, i32, i32
  }
  func.func @transform_1(%arg0: i32) -> (i32, i32) {
    %c0_i32 = arith.constant 0 : i32
    %c0_i32_0 = arith.constant 0 : i32
    %c0_i32_1 = arith.constant 0 : i32
    return %c0_i32, %c0_i32_0 : i32, i32
  }
  func.func @transform_2(%arg0: i32) -> (i32, i32, i32) {
    %c0_i32 = arith.constant 0 : i32
    %c0_i32_0 = arith.constant 0 : i32
    %c0_i32_1 = arith.constant 0 : i32
    return %arg0, %c0_i32, %c0_i32_0 : i32, i32, i32
  }
  func.func @transform_3(%arg0: i32) -> (i32, i32) {
    %c0_i32 = arith.constant 0 : i32
    %c0_i32_0 = arith.constant 0 : i32
    %c0_i32_1 = arith.constant 0 : i32
    return %c0_i32, %c0_i32_0 : i32, i32
  }
  func.func @transform_4(%arg0: i32) -> (i32, i32, i32) {
    %c0_i32 = arith.constant 0 : i32
    %c0_i32_0 = arith.constant 0 : i32
    %c0_i32_1 = arith.constant 0 : i32
    %c0_i32_2 = arith.constant 0 : i32
    return %c0_i32, %c0_i32_0, %c0_i32_1 : i32, i32, i32
  }
  func.func @transform_5(%arg0: i32) -> (i32, i32) {
    %c0_i32 = arith.constant 0 : i32
    %c0_i32_0 = arith.constant 0 : i32
    %c0_i32_1 = arith.constant 0 : i32
    return %c0_i32, %c0_i32_0 : i32, i32
  }
  func.func @transform_6(%arg0: i32) -> (i32, i32, i32) {
    %c0_i32 = arith.constant 0 : i32
    %c0_i32_0 = arith.constant 0 : i32
    %c0_i32_1 = arith.constant 0 : i32
    return %arg0, %c0_i32, %c0_i32_0 : i32, i32, i32
  }
  func.func @transform_7(%arg0: i32) -> (i32, i32) {
    %c0_i32 = arith.constant 0 : i32
    %c0_i32_0 = arith.constant 0 : i32
    %c0_i32_1 = arith.constant 0 : i32
    return %c0_i32, %c0_i32_0 : i32, i32
  }
  func.func @transform_8(%arg0: i32) -> (i32, i32, i32) {
    %c0_i32 = arith.constant 0 : i32
    %c0_i32_0 = arith.constant 0 : i32
    %c0_i32_1 = arith.constant 0 : i32
    %c0_i32_2 = arith.constant 0 : i32
    return %c0_i32, %c0_i32_0, %c0_i32_1 : i32, i32, i32
  }
  func.func @transform_9(%arg0: i32) -> (i32, i32) {
    %c0_i32 = arith.constant 0 : i32
    %c0_i32_0 = arith.constant 0 : i32
    %c0_i32_1 = arith.constant 0 : i32
    return %c0_i32, %c0_i32_0 : i32, i32
  }
  func.func @transform_10(%arg0: i32) -> (i32, i32, i32) {
    %c0_i32 = arith.constant 0 : i32
    %c0_i32_0 = arith.constant 0 : i32
    %c0_i32_1 = arith.constant 0 : i32
    return %arg0, %c0_i32, %c0_i32_0 : i32, i32, i32
  }
}

</mosaic_0001>

<llo_original>
// kernel: tpu_custom_call.1
$region0: #{tpu_custom_call.1}
  #allocation0 [shape = 'u32[]', space=smem, size = 0x4, offset = 0x4, fixed_abs, tag = 'smem constant byte address 0x4 - core index']
  #allocation1 [shape = 'u32[144,128]{1,0:T(1,128)}', space=vmem, size = 0x12000, scoped, tag = 'internal scratch']
  %s0 = inlined_call_operand.vmem [shape: f32[2,4,256], index: 0, kind: input, shape index: {}]
  %s1 = inlined_call_operand.vmem [shape: f32[9,256], index: 1, kind: input, shape index: {}]
  %s2 = inlined_call_operand.vmem [shape: f32[2,4,1], index: 2, kind: input, shape index: {}]
  %s3 = inlined_call_operand.vmem [shape: f32[4,1], index: 3, kind: input, shape index: {}]
  %s4 = inlined_call_operand.vmem [shape: f32[9,8,4], index: 4, kind: input, shape index: {}]
  %s5 = inlined_call_operand.vmem [shape: f32[8,1], index: 5, kind: input, shape index: {}]
  %s6 = inlined_call_operand.vmem [shape: f32[2,8,1], index: 6, kind: input, shape index: {}]
  %s7 = inlined_call_operand.vmem [shape: f32[8,1], index: 7, kind: input, shape index: {}]
  %s8 = inlined_call_operand.vmem [shape: f32[9,8,8], index: 8, kind: input, shape index: {}]
  %s9 = inlined_call_operand.vmem [shape: f32[8,1], index: 9, kind: input, shape index: {}]
  %s10 = inlined_call_operand.hbm [shape: f32[2,8,256], index: 10, kind: output, shape index: {}]
  %s11 = sld [smem:[#allocation0]]
  $region50: #{tpu_custom_call.1} parent=0
    _
  %s13 = ssub.s32 1, %s11
  %s14 = scalar_select 0, %s13, %s11
  $region1: #{tpu_custom_call.1} parent=0
    #allocation2 [shape = 'u8[16384]{0}', space=vmem, size = 0x4000, scoped, tag = 'output window, operand 0, single buffered']
    #allocation3 [shape = 's32[1]{0}', space=sflag, size = 0x4, scoped, tag = 'scoped memory for tpu_custom_call.1']
    %15 = vsyncpa [#allocation3], 0
    // Predicated region
    $region2: #{tpu_custom_call.1} parent=1 // pred_check
      _
    $region3: #{tpu_custom_call.1} parent=1 // pred_check_branch
      %17 = sbr.rel (0) target = $region5
    $region4: #{tpu_custom_call.1} parent=1 // pred_region
      _
    $region5: #{tpu_custom_call.1} parent=1 // pred_fallthru
      _
    // Predicated region
    $region6: #{tpu_custom_call.1} parent=1 // pred_check
      _
    $region7: #{tpu_custom_call.1} parent=1 // pred_check_branch
      %19 = sbr.rel (0) target = $region9
    $region8: #{tpu_custom_call.1} parent=1 // pred_region
      _
    $region9: #{tpu_custom_call.1} parent=1 // pred_fallthru
      _
    // Predicated region
    $region10: #{tpu_custom_call.1} parent=1 // pred_check
      _
    $region11: #{tpu_custom_call.1} parent=1 // pred_check_branch
      %21 = sbr.rel (0) target = $region13
    $region12: #{tpu_custom_call.1} parent=1 // pred_region
      _
    $region13: #{tpu_custom_call.1} parent=1 // pred_fallthru
      _
    // Predicated region
    $region14: #{tpu_custom_call.1} parent=1 // pred_check
      _
    $region15: #{tpu_custom_call.1} parent=1 // pred_check_branch
      %23 = sbr.rel (0) target = $region17
    $region16: #{tpu_custom_call.1} parent=1 // pred_region
      _
    $region17: #{tpu_custom_call.1} parent=1 // pred_fallthru
      _
    // Predicated region
    $region18: #{tpu_custom_call.1} parent=1 // pred_check
      _
    $region19: #{tpu_custom_call.1} parent=1 // pred_check_branch
      %25 = sbr.rel (0) target = $region21
    $region20: #{tpu_custom_call.1} parent=1 // pred_region
      _
    $region21: #{tpu_custom_call.1} parent=1 // pred_fallthru
      _
    // Predicated region
    $region22: #{tpu_custom_call.1} parent=1 // pred_check
      _
    $region23: #{tpu_custom_call.1} parent=1 // pred_check_branch
      %27 = sbr.rel (0) target = $region25
    $region24: #{tpu_custom_call.1} parent=1 // pred_region
      _
    $region25: #{tpu_custom_call.1} parent=1 // pred_fallthru
      _
    // Predicated region
    $region26: #{tpu_custom_call.1} parent=1 // pred_check
      _
    $region27: #{tpu_custom_call.1} parent=1 // pred_check_branch
      %29 = sbr.rel (0) target = $region29
    $region28: #{tpu_custom_call.1} parent=1 // pred_region
      _
    $region29: #{tpu_custom_call.1} parent=1 // pred_fallthru
      _
    // Predicated region
    $region30: #{tpu_custom_call.1} parent=1 // pred_check
      _
    $region31: #{tpu_custom_call.1} parent=1 // pred_check_branch
      %31 = sbr.rel (0) target = $region33
    $region32: #{tpu_custom_call.1} parent=1 // pred_region
      _
    $region33: #{tpu_custom_call.1} parent=1 // pred_fallthru
      _
    // Predicated region
    $region34: #{tpu_custom_call.1} parent=1 // pred_check
      _
    $region35: #{tpu_custom_call.1} parent=1 // pred_check_branch
      %33 = sbr.rel (0) target = $region37
    $region36: #{tpu_custom_call.1} parent=1 // pred_region
      _
    $region37: #{tpu_custom_call.1} parent=1 // pred_fallthru
      _
    // Predicated region
    $region38: #{tpu_custom_call.1} parent=1 // pred_check
      _
    $region39: #{tpu_custom_call.1} parent=1 // pred_check_branch
      %35 = sbr.rel (0) target = $region41
    $region40: #{tpu_custom_call.1} parent=1 // pred_region
      _
    $region41: #{tpu_custom_call.1} parent=1 // pred_fallthru
      _
    %v36 = vld [vmem:[%s0] sm:$0xff]
    %v37 = vld [vmem:[%s2] sm:$0xf]
    %v38 = vmul.f32 %v36, %v36
    %v40 = vcombine.high %v38, %v38
    %vm42 = vcmask 1043456
    %v43 = vsel %vm42, %v38, 0.0
    %v44 = vsel %vm42, %v40, 0.0
    %v45 = vadd.f32 %v43, %v44
    %46 = vadd.xlane.f32.xlu0 %v45
    %v47 = vpop.xlane.xlu0 %46
    %v48 = vrcp.pop 256.0
    %v49 = vmul.f32 %v47, %v48
    %v50 = vadd.f32 %v49, 1e-05
    %v51 = vrsqrt.pop %v50
    %v54 = vunpack.c.l.s4 839922192
    %v55 = vunpack.c.0.s8 %v54
    %v56 = vlaneseq
    %v57 = vshrl.u32 %v56, 7
    %v58 = vsub.s32 %v55, %v57
    %v59 = vrot.slane %v51, %v58
    %v61 = vmul.f32 %v36, %v59
    %63 = vset.pattern.permute.xlu0 0
    %64 = vperm.xlu0 %63, %v37
    %v65 = vpop.permute.xlu0 %64
    %v68 = vcombine.high %v61, %v61
    %v70 = vmul.f32 %v65, %v61
    %v71 = vmul.f32 %v65, %v68
    %v72 = vld [vmem:[%s3] sm:$0xf]
    %74 = vset.pattern.permute.xlu0 0
    %75 = vperm.xlu0 %74, %v72
    %v76 = vpop.permute.xlu0 %75
    %v78 = vmax.f32 %v70, %v76
    %v79 = vmax.f32 %v71, %v76
    %80 = vrot.lane.b32.xlu0 %v78, 17
    %v81 = vpop.permute.xlu0 %80
    %82 = vrot.lane.b32.xlu0 %v79, 17
    %v83 = vpop.permute.xlu0 %82
    %v84 = vlaneseq
    %v85 = vand.u32 %v84, 127
    %vm86 = vcmp.lt.s32.totalorder %v85, 17
    %v87 = vsel %vm86, %v81, %v83
    %v88 = vsel %vm86, %v83, %v81
    %v89 = vld [vmem:[%s1] ss:$8 sm:$0x3]
    %v91 = vlaneseq
    %v92 = vshrl.u32 %v91, 7
    %v93 = vsub.s32 0, %v92
    %v94 = vrot.slane %v89, %v93
    %v95 = vlaneseq
    %v96 = vshrl.u32 %v95, 7
    %v97 = vsub.s32 1, %v96
    %v98 = vrot.slane %v89, %v97
    %v101 = vmul.f32 %v88, %v94
    %v102 = vmul.f32 %v87, %v98
    %v103 = vld [vmem:[%s4] sm:$0xff]
    %104 = vrot.lane.b32.xlu0 %v78, 16
    %v105 = vpop.permute.xlu0 %104
    %106 = vrot.lane.b32.xlu0 %v79, 16
    %v107 = vpop.permute.xlu0 %106
    %vm108 = vcmp.lt.s32.totalorder %v85, 16
    %v109 = vsel %vm108, %v105, %v107
    %v110 = vsel %vm108, %v107, %v105
    %s111 = scalar_lea.vmem %s1, 1
    %v112 = vld [vmem:[%s111] ss:$8 sm:$0x3]
    %v114 = vlaneseq
    %v115 = vshrl.u32 %v114, 7
    %v116 = vsub.s32 0, %v115
    %v117 = vrot.slane %v112, %v116
    %v118 = vlaneseq
    %v119 = vshrl.u32 %v118, 7
    %v120 = vsub.s32 1, %v119
    %v121 = vrot.slane %v112, %v120
    %v124 = vmul.f32 %v110, %v117
    %v125 = vmul.f32 %v109, %v121
    %s126 = scalar_lea.vmem %s4, 8
    %v127 = vld [vmem:[%s126] sm:$0xff]
    %vm128 = vcmask 31744
    %v130 = vsel %vm128, %v127, 0
    %v133 = vsel %vm42, %v124, 0
    %v136 = vsel %vm42, %v125, 0
    %138 = vmatprep.subr.mxu0 %v136
    %139 = vmatpush1.msra.mxu0 %v133
    %140 = vmatprep.subr.mxu0 0.0
    %141 = vmatpush1.msra.mxu0 0.0
    %142 = vmatprep.subr.mxu0 0.0
    %143 = vmatpush1.msra.mxu0 0.0
    %144 = vmatprep.subr.mxu0 0.0
    %145 = vmatpush1.msra.mxu0 0.0
    %146 = vmatprep.subr.mxu0 0.0
    %147 = vmatpush1.msra.mxu0 0.0
    %148 = vmatprep.subr.mxu0 0.0
    %149 = vmatpush1.msra.mxu0 0.0
    %150 = vmatprep.subr.mxu0 0.0
    %151 = vmatpush1.msra.mxu0 0.0
    %152 = vmatprep.subr.mxu0 0.0
    %153 = vmatpush1.msra.mxu0 0.0
    %154 = vmatprep.subr.mxu0 0.0
    %155 = vmatpush1.msra.mxu0 0.0
    %156 = vmatprep.subr.mxu0 0.0
    %157 = vmatpush1.msra.mxu0 0.0
    %158 = vmatprep.subr.mxu0 0.0
    %159 = vmatpush1.msra.mxu0 0.0
    %160 = vmatprep.subr.mxu0 0.0
    %161 = vmatpush1.msra.mxu0 0.0
    %162 = vmatprep.subr.mxu0 0.0
    %163 = vmatpush1.msra.mxu0 0.0
    %164 = vmatprep.subr.mxu0 0.0
    %165 = vmatpush1.msra.mxu0 0.0
    %166 = vmatprep.subr.mxu0 0.0
    %167 = vmatpush1.msra.mxu0 0.0
    %168 = vmatprep.subr.mxu0 0.0
    %169 = vmatpush1.msra.mxu0 0.0
    %170 = vmatprep.subr.mxu0 0.0
    %171 = vmatpush1.msra.mxu0 0.0
    %172 = vmatprep.subr.mxu0 0.0
    %173 = vmatpush1.msra.mxu0 0.0
    %174 = vmatprep.subr.mxu0 0.0
    %175 = vmatpush1.msra.mxu0 0.0
    %176 = vmatprep.subr.mxu0 0.0
    %177 = vmatpush1.msra.mxu0 0.0
    %178 = vmatprep.subr.mxu0 0.0
    %179 = vmatpush1.msra.mxu0 0.0
    %180 = vmatprep.subr.mxu0 0.0
    %181 = vmatpush1.msra.mxu0 0.0
    %182 = vmatprep.subr.mxu0 0.0
    %183 = vmatpush1.msra.mxu0 0.0
    %184 = vmatprep.subr.mxu0 0.0
    %185 = vmatpush1.msra.mxu0 0.0
    %186 = vmatprep.subr.mxu0 0.0
    %187 = vmatpush1.msra.mxu0 0.0
    %188 = vmatprep.subr.mxu0 0.0
    %189 = vmatpush1.msra.mxu0 0.0
    %190 = vmatprep.subr.mxu0 0.0
    %191 = vmatpush1.msra.mxu0 0.0
    %192 = vmatprep.subr.mxu0 0.0
    %193 = vmatpush1.msra.mxu0 0.0
    %194 = vmatprep.subr.mxu0 0.0
    %195 = vmatpush1.msra.mxu0 0.0
    %196 = vmatprep.subr.mxu0 0.0
    %197 = vmatpush1.msra.mxu0 0.0
    %198 = vmatprep.subr.mxu0 0.0
    %199 = vmatpush1.msra.mxu0 0.0
    %200 = vmatprep.subr.mxu0 0.0
    %201 = vmatpush1.msra.mxu0 0.0
    %202 = vmatprep.mubr.f32.mxu0 0.0
    %203 = vmatmul.mubr.f32.gmra.mrb[0].mxu0 %v130
    %v204 = vpop.f32.mrb[0].mxu0
    %v205 = vadd.f32 0.0, %v204
    %v206 = vpop.f32.mrb[0].mxu0
    %v207 = vadd.f32 0.0, %v206
    %208 = vdwg.mxu0
    %v210 = vsel %vm128, %v103, 0
    %v213 = vsel %vm42, %v101, 0
    %v216 = vsel %vm42, %v102, 0
    %218 = vmatprep.subr.mxu0 %v216
    %219 = vmatpush1.msra.mxu0 %v213
    %220 = vmatprep.subr.mxu0 0.0
    %221 = vmatpush1.msra.mxu0 0.0
    %222 = vmatprep.subr.mxu0 0.0
    %223 = vmatpush1.msra.mxu0 0.0
    %224 = vmatprep.subr.mxu0 0.0
    %225 = vmatpush1.msra.mxu0 0.0
    %226 = vmatprep.subr.mxu0 0.0
    %227 = vmatpush1.msra.mxu0 0.0
    %228 = vmatprep.subr.mxu0 0.0
    %229 = vmatpush1.msra.mxu0 0.0
    %230 = vmatprep.subr.mxu0 0.0
    %231 = vmatpush1.msra.mxu0 0.0
    %232 = vmatprep.subr.mxu0 0.0
    %233 = vmatpush1.msra.mxu0 0.0
    %234 = vmatprep.subr.mxu0 0.0
    %235 = vmatpush1.msra.mxu0 0.0
    %236 = vmatprep.subr.mxu0 0.0
    %237 = vmatpush1.msra.mxu0 0.0
    %238 = vmatprep.subr.mxu0 0.0
    %239 = vmatpush1.msra.mxu0 0.0
    %240 = vmatprep.subr.mxu0 0.0
    %241 = vmatpush1.msra.mxu0 0.0
    %242 = vmatprep.subr.mxu0 0.0
    %243 = vmatpush1.msra.mxu0 0.0
    %244 = vmatprep.subr.mxu0 0.0
    %245 = vmatpush1.msra.mxu0 0.0
    %246 = vmatprep.subr.mxu0 0.0
    %247 = vmatpush1.msra.mxu0 0.0
    %248 = vmatprep.subr.mxu0 0.0
    %249 = vmatpush1.msra.mxu0 0.0
    %250 = vmatprep.subr.mxu0 0.0
    %251 = vmatpush1.msra.mxu0 0.0
    %252 = vmatprep.subr.mxu0 0.0
    %253 = vmatpush1.msra.mxu0 0.0
    %254 = vmatprep.subr.mxu0 0.0
    %255 = vmatpush1.msra.mxu0 0.0
    %256 = vmatprep.subr.mxu0 0.0
    %257 = vmatpush1.msra.mxu0 0.0
    %258 = vmatprep.subr.mxu0 0.0
    %259 = vmatpush1.msra.mxu0 0.0
    %260 = vmatprep.subr.mxu0 0.0
    %261 = vmatpush1.msra.mxu0 0.0
    %262 = vmatprep.subr.mxu0 0.0
    %263 = vmatpush1.msra.mxu0 0.0
    %264 = vmatprep.subr.mxu0 0.0
    %265 = vmatpush1.msra.mxu0 0.0
    %266 = vmatprep.subr.mxu0 0.0
    %267 = vmatpush1.msra.mxu0 0.0
    %268 = vmatprep.subr.mxu0 0.0
    %269 = vmatpush1.msra.mxu0 0.0
    %270 = vmatprep.subr.mxu0 0.0
    %271 = vmatpush1.msra.mxu0 0.0
    %272 = vmatprep.subr.mxu0 0.0
    %273 = vmatpush1.msra.mxu0 0.0
    %274 = vmatprep.subr.mxu0 0.0
    %275 = vmatpush1.msra.mxu0 0.0
    %276 = vmatprep.subr.mxu0 0.0
    %277 = vmatpush1.msra.mxu0 0.0
    %278 = vmatprep.subr.mxu0 0.0
    %279 = vmatpush1.msra.mxu0 0.0
    %280 = vmatprep.subr.mxu0 0.0
    %281 = vmatpush1.msra.mxu0 0.0
    %282 = vmatprep.mubr.f32.mxu0 0.0
    %283 = vmatmul.mubr.f32.gmra.mrb[0].mxu0 %v210
    %v284 = vpop.f32.mrb[0].mxu0
    %v285 = vadd.f32 %v205, %v284
    %v286 = vpop.f32.mrb[0].mxu0
    %v287 = vadd.f32 %v207, %v286
    %288 = vdwg.mxu0
    %289 = vrot.lane.b32.xlu0 %v78, 15
    %v290 = vpop.permute.xlu0 %289
    %291 = vrot.lane.b32.xlu0 %v79, 15
    %v292 = vpop.permute.xlu0 %291
    %vm293 = vcmp.lt.s32.totalorder %v85, 15
    %v294 = vsel %vm293, %v290, %v292
    %v295 = vsel %vm293, %v292, %v290
    %s296 = scalar_lea.vmem %s1, 2
    %v297 = vld [vmem:[%s296] ss:$8 sm:$0x3]
    %v299 = vlaneseq
    %v300 = vshrl.u32 %v299, 7
    %v301 = vsub.s32 0, %v300
    %v302 = vrot.slane %v297, %v301
    %v303 = vlaneseq
    %v304 = vshrl.u32 %v303, 7
    %v305 = vsub.s32 1, %v304
    %v306 = vrot.slane %v297, %v305
    %v309 = vmul.f32 %v295, %v302
    %v310 = vmul.f32 %v294, %v306
    %s311 = scalar_lea.vmem %s4, 16
    %v312 = vld [vmem:[%s311] sm:$0xff]
    %v314 = vsel %vm128, %v312, 0
    %v317 = vsel %vm42, %v309, 0
    %v320 = vsel %vm42, %v310, 0
    %322 = vmatprep.subr.mxu0 %v320
    %323 = vmatpush1.msra.mxu0 %v317
    %324 = vmatprep.subr.mxu0 0.0
    %325 = vmatpush1.msra.mxu0 0.0
    %326 = vmatprep.subr.mxu0 0.0
    %327 = vmatpush1.msra.mxu0 0.0
    %328 = vmatprep.subr.mxu0 0.0
    %329 = vmatpush1.msra.mxu0 0.0
    %330 = vmatprep.subr.mxu0 0.0
    %331 = vmatpush1.msra.mxu0 0.0
    %332 = vmatprep.subr.mxu0 0.0
    %333 = vmatpush1.msra.mxu0 0.0
    %334 = vmatprep.subr.mxu0 0.0
    %335 = vmatpush1.msra.mxu0 0.0
    %336 = vmatprep.subr.mxu0 0.0
    %337 = vmatpush1.msra.mxu0 0.0
    %338 = vmatprep.subr.mxu0 0.0
    %339 = vmatpush1.msra.mxu0 0.0
    %340 = vmatprep.subr.mxu0 0.0
    %341 = vmatpush1.msra.mxu0 0.0
    %342 = vmatprep.subr.mxu0 0.0
    %343 = vmatpush1.msra.mxu0 0.0
    %344 = vmatprep.subr.mxu0 0.0
    %345 = vmatpush1.msra.mxu0 0.0
    %346 = vmatprep.subr.mxu0 0.0
    %347 = vmatpush1.msra.mxu0 0.0
    %348 = vmatprep.subr.mxu0 0.0
    %349 = vmatpush1.msra.mxu0 0.0
    %350 = vmatprep.subr.mxu0 0.0
    %351 = vmatpush1.msra.mxu0 0.0
    %352 = vmatprep.subr.mxu0 0.0
    %353 = vmatpush1.msra.mxu0 0.0
    %354 = vmatprep.subr.mxu0 0.0
    %355 = vmatpush1.msra.mxu0 0.0
    %356 = vmatprep.subr.mxu0 0.0
    %357 = vmatpush1.msra.mxu0 0.0
    %358 = vmatprep.subr.mxu0 0.0
    %359 = vmatpush1.msra.mxu0 0.0
    %360 = vmatprep.subr.mxu0 0.0
    %361 = vmatpush1.msra.mxu0 0.0
    %362 = vmatprep.subr.mxu0 0.0
    %363 = vmatpush1.msra.mxu0 0.0
    %364 = vmatprep.subr.mxu0 0.0
    %365 = vmatpush1.msra.mxu0 0.0
    %366 = vmatprep.subr.mxu0 0.0
    %367 = vmatpush1.msra.mxu0 0.0
    %368 = vmatprep.subr.mxu0 0.0
    %369 = vmatpush1.msra.mxu0 0.0
    %370 = vmatprep.subr.mxu0 0.0
    %371 = vmatpush1.msra.mxu0 0.0
    %372 = vmatprep.subr.mxu0 0.0
    %373 = vmatpush1.msra.mxu0 0.0
    %374 = vmatprep.subr.mxu0 0.0
    %375 = vmatpush1.msra.mxu0 0.0
    %376 = vmatprep.subr.mxu0 0.0
    %377 = vmatpush1.msra.mxu0 0.0
    %378 = vmatprep.subr.mxu0 0.0
    %379 = vmatpush1.msra.mxu0 0.0
    %380 = vmatprep.subr.mxu0 0.0
    %381 = vmatpush1.msra.mxu0 0.0
    %382 = vmatprep.subr.mxu0 0.0
    %383 = vmatpush1.msra.mxu0 0.0
    %384 = vmatprep.subr.mxu0 0.0
    %385 = vmatpush1.msra.mxu0 0.0
    %386 = vmatprep.mubr.f32.mxu0 0.0
    %387 = vmatmul.mubr.f32.gmra.mrb[0].mxu0 %v314
    %v388 = vpop.f32.mrb[0].mxu0
    %v389 = vadd.f32 0.0, %v388
    %v390 = vpop.f32.mrb[0].mxu0
    %v391 = vadd.f32 0.0, %v390
    %392 = vdwg.mxu0
    %v393 = vadd.f32 %v285, %v389
    %v394 = vadd.f32 %v287, %v391
    %395 = vrot.lane.b32.xlu0 %v78, 1
    %v396 = vpop.permute.xlu0 %395
    %397 = vrot.lane.b32.xlu0 %v79, 1
    %v398 = vpop.permute.xlu0 %397
    %vm399 = vcmp.lt.s32.totalorder %v85, 1
    %v400 = vsel %vm399, %v396, %v398
    %v401 = vsel %vm399, %v398, %v396
    %s402 = scalar_lea.vmem %s1, 3
    %v403 = vld [vmem:[%s402] ss:$8 sm:$0x3]
    %v405 = vlaneseq
    %v406 = vshrl.u32 %v405, 7
    %v407 = vsub.s32 0, %v406
    %v408 = vrot.slane %v403, %v407
    %v409 = vlaneseq
    %v410 = vshrl.u32 %v409, 7
    %v411 = vsub.s32 1, %v410
    %v412 = vrot.slane %v403, %v411
    %v415 = vmul.f32 %v401, %v408
    %v416 = vmul.f32 %v400, %v412
    %s417 = scalar_lea.vmem %s4, 24
    %v418 = vld [vmem:[%s417] sm:$0xff]
    %v420 = vsel %vm128, %v418, 0
    %v423 = vsel %vm42, %v415, 0
    %v426 = vsel %vm42, %v416, 0
    %428 = vmatprep.subr.mxu0 %v426
    %429 = vmatpush1.msra.mxu0 %v423
    %430 = vmatprep.subr.mxu0 0.0
    %431 = vmatpush1.msra.mxu0 0.0
    %432 = vmatprep.subr.mxu0 0.0
    %433 = vmatpush1.msra.mxu0 0.0
    %434 = vmatprep.subr.mxu0 0.0
    %435 = vmatpush1.msra.mxu0 0.0
    %436 = vmatprep.subr.mxu0 0.0
    %437 = vmatpush1.msra.mxu0 0.0
    %438 = vmatprep.subr.mxu0 0.0
    %439 = vmatpush1.msra.mxu0 0.0
    %440 = vmatprep.subr.mxu0 0.0
    %441 = vmatpush1.msra.mxu0 0.0
    %442 = vmatprep.subr.mxu0 0.0
    %443 = vmatpush1.msra.mxu0 0.0
    %444 = vmatprep.subr.mxu0 0.0
    %445 = vmatpush1.msra.mxu0 0.0
    %446 = vmatprep.subr.mxu0 0.0
    %447 = vmatpush1.msra.mxu0 0.0
    %448 = vmatprep.subr.mxu0 0.0
    %449 = vmatpush1.msra.mxu0 0.0
    %450 = vmatprep.subr.mxu0 0.0
    %451 = vmatpush1.msra.mxu0 0.0
    %452 = vmatprep.subr.mxu0 0.0
    %453 = vmatpush1.msra.mxu0 0.0
    %454 = vmatprep.subr.mxu0 0.0
    %455 = vmatpush1.msra.mxu0 0.0
    %456 = vmatprep.subr.mxu0 0.0
    %457 = vmatpush1.msra.mxu0 0.0
    %458 = vmatprep.subr.mxu0 0.0
    %459 = vmatpush1.msra.mxu0 0.0
    %460 = vmatprep.subr.mxu0 0.0
    %461 = vmatpush1.msra.mxu0 0.0
    %462 = vmatprep.subr.mxu0 0.0
    %463 = vmatpush1.msra.mxu0 0.0
    %464 = vmatprep.subr.mxu0 0.0
    %465 = vmatpush1.msra.mxu0 0.0
    %466 = vmatprep.subr.mxu0 0.0
    %467 = vmatpush1.msra.mxu0 0.0
    %468 = vmatprep.subr.mxu0 0.0
    %469 = vmatpush1.msra.mxu0 0.0
    %470 = vmatprep.subr.mxu0 0.0
    %471 = vmatpush1.msra.mxu0 0.0
    %472 = vmatprep.subr.mxu0 0.0
    %473 = vmatpush1.msra.mxu0 0.0
    %474 = vmatprep.subr.mxu0 0.0
    %475 = vmatpush1.msra.mxu0 0.0
    %476 = vmatprep.subr.mxu0 0.0
    %477 = vmatpush1.msra.mxu0 0.0
    %478 = vmatprep.subr.mxu0 0.0
    %479 = vmatpush1.msra.mxu0 0.0
    %480 = vmatprep.subr.mxu0 0.0
    %481 = vmatpush1.msra.mxu0 0.0
    %482 = vmatprep.subr.mxu0 0.0
    %483 = vmatpush1.msra.mxu0 0.0
    %484 = vmatprep.subr.mxu0 0.0
    %485 = vmatpush1.msra.mxu0 0.0
    %486 = vmatprep.subr.mxu0 0.0
    %487 = vmatpush1.msra.mxu0 0.0
    %488 = vmatprep.subr.mxu0 0.0
    %489 = vmatpush1.msra.mxu0 0.0
    %490 = vmatprep.subr.mxu0 0.0
    %491 = vmatpush1.msra.mxu0 0.0
    %492 = vmatprep.mubr.f32.mxu0 0.0
    %493 = vmatmul.mubr.f32.gmra.mrb[0].mxu0 %v420
    %v494 = vpop.f32.mrb[0].mxu0
    %v495 = vadd.f32 0.0, %v494
    %v496 = vpop.f32.mrb[0].mxu0
    %v497 = vadd.f32 0.0, %v496
    %498 = vdwg.mxu0
    %v499 = vadd.f32 %v393, %v495
    %v500 = vadd.f32 %v394, %v497
    %s501 = scalar_lea.vmem %s1, 4
    %v502 = vld [vmem:[%s501] ss:$8 sm:$0x3]
    %v504 = vlaneseq
    %v505 = vshrl.u32 %v504, 7
    %v506 = vsub.s32 0, %v505
    %v507 = vrot.slane %v502, %v506
    %v508 = vlaneseq
    %v509 = vshrl.u32 %v508, 7
    %v510 = vsub.s32 1, %v509
    %v511 = vrot.slane %v502, %v510
    %v514 = vmul.f32 %v78, %v507
    %v515 = vmul.f32 %v79, %v511
    %s516 = scalar_lea.vmem %s4, 32
    %v517 = vld [vmem:[%s516] sm:$0xff]
    %v519 = vsel %vm128, %v517, 0
    %v522 = vsel %vm42, %v514, 0
    %v525 = vsel %vm42, %v515, 0
    %527 = vmatprep.subr.mxu0 %v525
    %528 = vmatpush1.msra.mxu0 %v522
    %529 = vmatprep.subr.mxu0 0.0
    %530 = vmatpush1.msra.mxu0 0.0
    %531 = vmatprep.subr.mxu0 0.0
    %532 = vmatpush1.msra.mxu0 0.0
    %533 = vmatprep.subr.mxu0 0.0
    %534 = vmatpush1.msra.mxu0 0.0
    %535 = vmatprep.subr.mxu0 0.0
    %536 = vmatpush1.msra.mxu0 0.0
    %537 = vmatprep.subr.mxu0 0.0
    %538 = vmatpush1.msra.mxu0 0.0
    %539 = vmatprep.subr.mxu0 0.0
    %540 = vmatpush1.msra.mxu0 0.0
    %541 = vmatprep.subr.mxu0 0.0
    %542 = vmatpush1.msra.mxu0 0.0
    %543 = vmatprep.subr.mxu0 0.0
    %544 = vmatpush1.msra.mxu0 0.0
    %545 = vmatprep.subr.mxu0 0.0
    %546 = vmatpush1.msra.mxu0 0.0
    %547 = vmatprep.subr.mxu0 0.0
    %548 = vmatpush1.msra.mxu0 0.0
    %549 = vmatprep.subr.mxu0 0.0
    %550 = vmatpush1.msra.mxu0 0.0
    %551 = vmatprep.subr.mxu0 0.0
    %552 = vmatpush1.msra.mxu0 0.0
    %553 = vmatprep.subr.mxu0 0.0
    %554 = vmatpush1.msra.mxu0 0.0
    %555 = vmatprep.subr.mxu0 0.0
    %556 = vmatpush1.msra.mxu0 0.0
    %557 = vmatprep.subr.mxu0 0.0
    %558 = vmatpush1.msra.mxu0 0.0
    %559 = vmatprep.subr.mxu0 0.0
    %560 = vmatpush1.msra.mxu0 0.0
    %561 = vmatprep.subr.mxu0 0.0
    %562 = vmatpush1.msra.mxu0 0.0
    %563 = vmatprep.subr.mxu0 0.0
    %564 = vmatpush1.msra.mxu0 0.0
    %565 = vmatprep.subr.mxu0 0.0
    %566 = vmatpush1.msra.mxu0 0.0
    %567 = vmatprep.subr.mxu0 0.0
    %568 = vmatpush1.msra.mxu0 0.0
    %569 = vmatprep.subr.mxu0 0.0
    %570 = vmatpush1.msra.mxu0 0.0
    %571 = vmatprep.subr.mxu0 0.0
    %572 = vmatpush1.msra.mxu0 0.0
    %573 = vmatprep.subr.mxu0 0.0
    %574 = vmatpush1.msra.mxu0 0.0
    %575 = vmatprep.subr.mxu0 0.0
    %576 = vmatpush1.msra.mxu0 0.0
    %577 = vmatprep.subr.mxu0 0.0
    %578 = vmatpush1.msra.mxu0 0.0
    %579 = vmatprep.subr.mxu0 0.0
    %580 = vmatpush1.msra.mxu0 0.0
    %581 = vmatprep.subr.mxu0 0.0
    %582 = vmatpush1.msra.mxu0 0.0
    %583 = vmatprep.subr.mxu0 0.0
    %584 = vmatpush1.msra.mxu0 0.0
    %585 = vmatprep.subr.mxu0 0.0
    %586 = vmatpush1.msra.mxu0 0.0
    %587 = vmatprep.subr.mxu0 0.0
    %588 = vmatpush1.msra.mxu0 0.0
    %589 = vmatprep.subr.mxu0 0.0
    %590 = vmatpush1.msra.mxu0 0.0
    %591 = vmatprep.mubr.f32.mxu0 0.0
    %592 = vmatmul.mubr.f32.gmra.mrb[0].mxu0 %v519
    %v593 = vpop.f32.mrb[0].mxu0
    %v594 = vadd.f32 0.0, %v593
    %v595 = vpop.f32.mrb[0].mxu0
    %v596 = vadd.f32 0.0, %v595
    %597 = vdwg.mxu0
    %v598 = vadd.f32 %v499, %v594
    %v599 = vadd.f32 %v500, %v596
    %600 = vrot.lane.b32.xlu0 %v78, 127
    %v601 = vpop.permute.xlu0 %600
    %602 = vrot.lane.b32.xlu0 %v79, 127
    %v603 = vpop.permute.xlu0 %602
    %vm604 = vcmp.lt.s32.totalorder %v85, 127
    %v605 = vsel %vm604, %v601, %v603
    %v606 = vsel %vm604, %v603, %v601
    %s607 = scalar_lea.vmem %s1, 5
    %v608 = vld [vmem:[%s607] ss:$8 sm:$0x3]
    %v610 = vlaneseq
    %v611 = vshrl.u32 %v610, 7
    %v612 = vsub.s32 0, %v611
    %v613 = vrot.slane %v608, %v612
    %v614 = vlaneseq
    %v615 = vshrl.u32 %v614, 7
    %v616 = vsub.s32 1, %v615
    %v617 = vrot.slane %v608, %v616
    %v620 = vmul.f32 %v605, %v613
    %v621 = vmul.f32 %v606, %v617
    %s622 = scalar_lea.vmem %s4, 40
    %v623 = vld [vmem:[%s622] sm:$0xff]
    %v625 = vsel %vm128, %v623, 0
    %v628 = vsel %vm42, %v620, 0
    %v631 = vsel %vm42, %v621, 0
    %633 = vmatprep.subr.mxu0 %v631
    %634 = vmatpush1.msra.mxu0 %v628
    %635 = vmatprep.subr.mxu0 0.0
    %636 = vmatpush1.msra.mxu0 0.0
    %637 = vmatprep.subr.mxu0 0.0
    %638 = vmatpush1.msra.mxu0 0.0
    %639 = vmatprep.subr.mxu0 0.0
    %640 = vmatpush1.msra.mxu0 0.0
    %641 = vmatprep.subr.mxu0 0.0
    %642 = vmatpush1.msra.mxu0 0.0
    %643 = vmatprep.subr.mxu0 0.0
    %644 = vmatpush1.msra.mxu0 0.0
    %645 = vmatprep.subr.mxu0 0.0
    %646 = vmatpush1.msra.mxu0 0.0
    %647 = vmatprep.subr.mxu0 0.0
    %648 = vmatpush1.msra.mxu0 0.0
    %649 = vmatprep.subr.mxu0 0.0
    %650 = vmatpush1.msra.mxu0 0.0
    %651 = vmatprep.subr.mxu0 0.0
    %652 = vmatpush1.msra.mxu0 0.0
    %653 = vmatprep.subr.mxu0 0.0
    %654 = vmatpush1.msra.mxu0 0.0
    %655 = vmatprep.subr.mxu0 0.0
    %656 = vmatpush1.msra.mxu0 0.0
    %657 = vmatprep.subr.mxu0 0.0
    %658 = vmatpush1.msra.mxu0 0.0
    %659 = vmatprep.subr.mxu0 0.0
    %660 = vmatpush1.msra.mxu0 0.0
    %661 = vmatprep.subr.mxu0 0.0
    %662 = vmatpush1.msra.mxu0 0.0
    %663 = vmatprep.subr.mxu0 0.0
    %664 = vmatpush1.msra.mxu0 0.0
    %665 = vmatprep.subr.mxu0 0.0
    %666 = vmatpush1.msra.mxu0 0.0
    %667 = vmatprep.subr.mxu0 0.0
    %668 = vmatpush1.msra.mxu0 0.0
    %669 = vmatprep.subr.mxu0 0.0
    %670 = vmatpush1.msra.mxu0 0.0
    %671 = vmatprep.subr.mxu0 0.0
    %672 = vmatpush1.msra.mxu0 0.0
    %673 = vmatprep.subr.mxu0 0.0
    %674 = vmatpush1.msra.mxu0 0.0
    %675 = vmatprep.subr.mxu0 0.0
    %676 = vmatpush1.msra.mxu0 0.0
    %677 = vmatprep.subr.mxu0 0.0
    %678 = vmatpush1.msra.mxu0 0.0
    %679 = vmatprep.subr.mxu0 0.0
    %680 = vmatpush1.msra.mxu0 0.0
    %681 = vmatprep.subr.mxu0 0.0
    %682 = vmatpush1.msra.mxu0 0.0
    %683 = vmatprep.subr.mxu0 0.0
    %684 = vmatpush1.msra.mxu0 0.0
    %685 = vmatprep.subr.mxu0 0.0
    %686 = vmatpush1.msra.mxu0 0.0
    %687 = vmatprep.subr.mxu0 0.0
    %688 = vmatpush1.msra.mxu0 0.0
    %689 = vmatprep.subr.mxu0 0.0
    %690 = vmatpush1.msra.mxu0 0.0
    %691 = vmatprep.subr.mxu0 0.0
    %692 = vmatpush1.msra.mxu0 0.0
    %693 = vmatprep.subr.mxu0 0.0
    %694 = vmatpush1.msra.mxu0 0.0
    %695 = vmatprep.subr.mxu0 0.0
    %696 = vmatpush1.msra.mxu0 0.0
    %697 = vmatprep.mubr.f32.mxu0 0.0
    %698 = vmatmul.mubr.f32.gmra.mrb[0].mxu0 %v625
    %v699 = vpop.f32.mrb[0].mxu0
    %v700 = vadd.f32 0.0, %v699
    %v701 = vpop.f32.mrb[0].mxu0
    %v702 = vadd.f32 0.0, %v701
    %703 = vdwg.mxu0
    %v704 = vadd.f32 %v598, %v700
    %v705 = vadd.f32 %v599, %v702
    %706 = vrot.lane.b32.xlu0 %v78, 113
    %v707 = vpop.permute.xlu0 %706
    %708 = vrot.lane.b32.xlu0 %v79, 113
    %v709 = vpop.permute.xlu0 %708
    %vm710 = vcmp.lt.s32.totalorder %v85, 113
    %v711 = vsel %vm710, %v707, %v709
    %v712 = vsel %vm710, %v709, %v707
    %s713 = scalar_lea.vmem %s1, 6
    %v714 = vld [vmem:[%s713] ss:$8 sm:$0x3]
    %v716 = vlaneseq
    %v717 = vshrl.u32 %v716, 7
    %v718 = vsub.s32 0, %v717
    %v719 = vrot.slane %v714, %v718
    %v720 = vlaneseq
    %v721 = vshrl.u32 %v720, 7
    %v722 = vsub.s32 1, %v721
    %v723 = vrot.slane %v714, %v722
    %v726 = vmul.f32 %v711, %v719
    %v727 = vmul.f32 %v712, %v723
    %s728 = scalar_lea.vmem %s4, 48
    %v729 = vld [vmem:[%s728] sm:$0xff]
    %v731 = vsel %vm128, %v729, 0
    %v734 = vsel %vm42, %v726, 0
    %v737 = vsel %vm42, %v727, 0
    %739 = vmatprep.subr.mxu0 %v737
    %740 = vmatpush1.msra.mxu0 %v734
    %741 = vmatprep.subr.mxu0 0.0
    %742 = vmatpush1.msra.mxu0 0.0
    %743 = vmatprep.subr.mxu0 0.0
    %744 = vmatpush1.msra.mxu0 0.0
    %745 = vmatprep.subr.mxu0 0.0
    %746 = vmatpush1.msra.mxu0 0.0
    %747 = vmatprep.subr.mxu0 0.0
    %748 = vmatpush1.msra.mxu0 0.0
    %749 = vmatprep.subr.mxu0 0.0
    %750 = vmatpush1.msra.mxu0 0.0
    %751 = vmatprep.subr.mxu0 0.0
    %752 = vmatpush1.msra.mxu0 0.0
    %753 = vmatprep.subr.mxu0 0.0
    %754 = vmatpush1.msra.mxu0 0.0
    %755 = vmatprep.subr.mxu0 0.0
    %756 = vmatpush1.msra.mxu0 0.0
    %757 = vmatprep.subr.mxu0 0.0
    %758 = vmatpush1.msra.mxu0 0.0
    %759 = vmatprep.subr.mxu0 0.0
    %760 = vmatpush1.msra.mxu0 0.0
    %761 = vmatprep.subr.mxu0 0.0
    %762 = vmatpush1.msra.mxu0 0.0
    %763 = vmatprep.subr.mxu0 0.0
    %764 = vmatpush1.msra.mxu0 0.0
    %765 = vmatprep.subr.mxu0 0.0
    %766 = vmatpush1.msra.mxu0 0.0
    %767 = vmatprep.subr.mxu0 0.0
    %768 = vmatpush1.msra.mxu0 0.0
    %769 = vmatprep.subr.mxu0 0.0
    %770 = vmatpush1.msra.mxu0 0.0
    %771 = vmatprep.subr.mxu0 0.0
    %772 = vmatpush1.msra.mxu0 0.0
    %773 = vmatprep.subr.mxu0 0.0
    %774 = vmatpush1.msra.mxu0 0.0
    %775 = vmatprep.subr.mxu0 0.0
    %776 = vmatpush1.msra.mxu0 0.0
    %777 = vmatprep.subr.mxu0 0.0
    %778 = vmatpush1.msra.mxu0 0.0
    %779 = vmatprep.subr.mxu0 0.0
    %780 = vmatpush1.msra.mxu0 0.0
    %781 = vmatprep.subr.mxu0 0.0
    %782 = vmatpush1.msra.mxu0 0.0
    %783 = vmatprep.subr.mxu0 0.0
    %784 = vmatpush1.msra.mxu0 0.0
    %785 = vmatprep.subr.mxu0 0.0
    %786 = vmatpush1.msra.mxu0 0.0
    %787 = vmatprep.subr.mxu0 0.0
    %788 = vmatpush1.msra.mxu0 0.0
    %789 = vmatprep.subr.mxu0 0.0
    %790 = vmatpush1.msra.mxu0 0.0
    %791 = vmatprep.subr.mxu0 0.0
    %792 = vmatpush1.msra.mxu0 0.0
    %793 = vmatprep.subr.mxu0 0.0
    %794 = vmatpush1.msra.mxu0 0.0
    %795 = vmatprep.subr.mxu0 0.0
    %796 = vmatpush1.msra.mxu0 0.0
    %797 = vmatprep.subr.mxu0 0.0
    %798 = vmatpush1.msra.mxu0 0.0
    %799 = vmatprep.subr.mxu0 0.0
    %800 = vmatpush1.msra.mxu0 0.0
    %801 = vmatprep.subr.mxu0 0.0
    %802 = vmatpush1.msra.mxu0 0.0
    %803 = vmatprep.mubr.f32.mxu0 0.0
    %804 = vmatmul.mubr.f32.gmra.mrb[0].mxu0 %v731
    %v805 = vpop.f32.mrb[0].mxu0
    %v806 = vadd.f32 0.0, %v805
    %v807 = vpop.f32.mrb[0].mxu0
    %v808 = vadd.f32 0.0, %v807
    %809 = vdwg.mxu0
    %v810 = vadd.f32 %v704, %v806
    %v811 = vadd.f32 %v705, %v808
    %812 = vrot.lane.b32.xlu0 %v78, 112
    %v813 = vpop.permute.xlu0 %812
    %814 = vrot.lane.b32.xlu0 %v79, 112
    %v815 = vpop.permute.xlu0 %814
    %vm816 = vcmp.lt.s32.totalorder %v85, 112
    %v817 = vsel %vm816, %v813, %v815
    %v818 = vsel %vm816, %v815, %v813
    %s819 = scalar_lea.vmem %s1, 7
    %v820 = vld [vmem:[%s819] ss:$8 sm:$0x3]
    %v822 = vlaneseq
    %v823 = vshrl.u32 %v822, 7
    %v824 = vsub.s32 0, %v823
    %v825 = vrot.slane %v820, %v824
    %v826 = vlaneseq
    %v827 = vshrl.u32 %v826, 7
    %v828 = vsub.s32 1, %v827
    %v829 = vrot.slane %v820, %v828
    %v832 = vmul.f32 %v817, %v825
    %v833 = vmul.f32 %v818, %v829
    %s834 = scalar_lea.vmem %s4, 56
    %v835 = vld [vmem:[%s834] sm:$0xff]
    %v837 = vsel %vm128, %v835, 0
    %v840 = vsel %vm42, %v832, 0
    %v843 = vsel %vm42, %v833, 0
    %845 = vmatprep.subr.mxu0 %v843
    %846 = vmatpush1.msra.mxu0 %v840
    %847 = vmatprep.subr.mxu0 0.0
    %848 = vmatpush1.msra.mxu0 0.0
    %849 = vmatprep.subr.mxu0 0.0
    %850 = vmatpush1.msra.mxu0 0.0
    %851 = vmatprep.subr.mxu0 0.0
    %852 = vmatpush1.msra.mxu0 0.0
    %853 = vmatprep.subr.mxu0 0.0
    %854 = vmatpush1.msra.mxu0 0.0
    %855 = vmatprep.subr.mxu0 0.0
    %856 = vmatpush1.msra.mxu0 0.0
    %857 = vmatprep.subr.mxu0 0.0
    %858 = vmatpush1.msra.mxu0 0.0
    %859 = vmatprep.subr.mxu0 0.0
    %860 = vmatpush1.msra.mxu0 0.0
    %861 = vmatprep.subr.mxu0 0.0
    %862 = vmatpush1.msra.mxu0 0.0
    %863 = vmatprep.subr.mxu0 0.0
    %864 = vmatpush1.msra.mxu0 0.0
    %865 = vmatprep.subr.mxu0 0.0
    %866 = vmatpush1.msra.mxu0 0.0
    %867 = vmatprep.subr.mxu0 0.0
    %868 = vmatpush1.msra.mxu0 0.0
    %869 = vmatprep.subr.mxu0 0.0
    %870 = vmatpush1.msra.mxu0 0.0
    %871 = vmatprep.subr.mxu0 0.0
    %872 = vmatpush1.msra.mxu0 0.0
    %873 = vmatprep.subr.mxu0 0.0
    %874 = vmatpush1.msra.mxu0 0.0
    %875 = vmatprep.subr.mxu0 0.0
    %876 = vmatpush1.msra.mxu0 0.0
    %877 = vmatprep.subr.mxu0 0.0
    %878 = vmatpush1.msra.mxu0 0.0
    %879 = vmatprep.subr.mxu0 0.0
    %880 = vmatpush1.msra.mxu0 0.0
    %881 = vmatprep.subr.mxu0 0.0
    %882 = vmatpush1.msra.mxu0 0.0
    %883 = vmatprep.subr.mxu0 0.0
    %884 = vmatpush1.msra.mxu0 0.0
    %885 = vmatprep.subr.mxu0 0.0
    %886 = vmatpush1.msra.mxu0 0.0
    %887 = vmatprep.subr.mxu0 0.0
    %888 = vmatpush1.msra.mxu0 0.0
    %889 = vmatprep.subr.mxu0 0.0
    %890 = vmatpush1.msra.mxu0 0.0
    %891 = vmatprep.subr.mxu0 0.0
    %892 = vmatpush1.msra.mxu0 0.0
    %893 = vmatprep.subr.mxu0 0.0
    %894 = vmatpush1.msra.mxu0 0.0
    %895 = vmatprep.subr.mxu0 0.0
    %896 = vmatpush1.msra.mxu0 0.0
    %897 = vmatprep.subr.mxu0 0.0
    %898 = vmatpush1.msra.mxu0 0.0
    %899 = vmatprep.subr.mxu0 0.0
    %900 = vmatpush1.msra.mxu0 0.0
    %901 = vmatprep.subr.mxu0 0.0
    %902 = vmatpush1.msra.mxu0 0.0
    %903 = vmatprep.subr.mxu0 0.0
    %904 = vmatpush1.msra.mxu0 0.0
    %905 = vmatprep.subr.mxu0 0.0
    %906 = vmatpush1.msra.mxu0 0.0
    %907 = vmatprep.subr.mxu0 0.0
    %908 = vmatpush1.msra.mxu0 0.0
    %909 = vmatprep.mubr.f32.mxu0 0.0
    %910 = vmatmul.mubr.f32.gmra.mrb[0].mxu0 %v837
    %v911 = vpop.f32.mrb[0].mxu0
    %v912 = vadd.f32 0.0, %v911
    %v913 = vpop.f32.mrb[0].mxu0
    %v914 = vadd.f32 0.0, %v913
    %915 = vdwg.mxu0
    %v916 = vadd.f32 %v810, %v912
    %v917 = vadd.f32 %v811, %v914
    %918 = vrot.lane.b32.xlu0 %v78, 111
    %v919 = vpop.permute.xlu0 %918
    %920 = vrot.lane.b32.xlu0 %v79, 111
    %v921 = vpop.permute.xlu0 %920
    %vm922 = vcmp.lt.s32.totalorder %v85, 111
    %v923 = vsel %vm922, %v919, %v921
    %v924 = vsel %vm922, %v921, %v919
    %s925 = scalar_lea.vmem %s1, 16
    %v926 = vld [vmem:[%s925] ss:$8 sm:$0x3]
    %v928 = vlaneseq
    %v929 = vshrl.u32 %v928, 7
    %v930 = vsub.s32 0, %v929
    %v931 = vrot.slane %v926, %v930
    %v932 = vlaneseq
    %v933 = vshrl.u32 %v932, 7
    %v934 = vsub.s32 1, %v933
    %v935 = vrot.slane %v926, %v934
    %v938 = vmul.f32 %v923, %v931
    %v939 = vmul.f32 %v924, %v935
    %s940 = scalar_lea.vmem %s4, 64
    %v941 = vld [vmem:[%s940] sm:$0xff]
    %v943 = vsel %vm128, %v941, 0
    %v946 = vsel %vm42, %v938, 0
    %v949 = vsel %vm42, %v939, 0
    %951 = vmatprep.subr.mxu0 %v949
    %952 = vmatpush1.msra.mxu0 %v946
    %953 = vmatprep.subr.mxu0 0.0
    %954 = vmatpush1.msra.mxu0 0.0
    %955 = vmatprep.subr.mxu0 0.0
    %956 = vmatpush1.msra.mxu0 0.0
    %957 = vmatprep.subr.mxu0 0.0
    %958 = vmatpush1.msra.mxu0 0.0
    %959 = vmatprep.subr.mxu0 0.0
    %960 = vmatpush1.msra.mxu0 0.0
    %961 = vmatprep.subr.mxu0 0.0
    %962 = vmatpush1.msra.mxu0 0.0
    %963 = vmatprep.subr.mxu0 0.0
    %964 = vmatpush1.msra.mxu0 0.0
    %965 = vmatprep.subr.mxu0 0.0
    %966 = vmatpush1.msra.mxu0 0.0
    %967 = vmatprep.subr.mxu0 0.0
    %968 = vmatpush1.msra.mxu0 0.0
    %969 = vmatprep.subr.mxu0 0.0
    %970 = vmatpush1.msra.mxu0 0.0
    %971 = vmatprep.subr.mxu0 0.0
    %972 = vmatpush1.msra.mxu0 0.0
    %973 = vmatprep.subr.mxu0 0.0
    %974 = vmatpush1.msra.mxu0 0.0
    %975 = vmatprep.subr.mxu0 0.0
    %976 = vmatpush1.msra.mxu0 0.0
    %977 = vmatprep.subr.mxu0 0.0
    %978 = vmatpush1.msra.mxu0 0.0
    %979 = vmatprep.subr.mxu0 0.0
    %980 = vmatpush1.msra.mxu0 0.0
    %981 = vmatprep.subr.mxu0 0.0
    %982 = vmatpush1.msra.mxu0 0.0
    %983 = vmatprep.subr.mxu0 0.0
    %984 = vmatpush1.msra.mxu0 0.0
    %985 = vmatprep.subr.mxu0 0.0
    %986 = vmatpush1.msra.mxu0 0.0
    %987 = vmatprep.subr.mxu0 0.0
    %988 = vmatpush1.msra.mxu0 0.0
    %989 = vmatprep.subr.mxu0 0.0
    %990 = vmatpush1.msra.mxu0 0.0
    %991 = vmatprep.subr.mxu0 0.0
    %992 = vmatpush1.msra.mxu0 0.0
    %993 = vmatprep.subr.mxu0 0.0
    %994 = vmatpush1.msra.mxu0 0.0
    %995 = vmatprep.subr.mxu0 0.0
    %996 = vmatpush1.msra.mxu0 0.0
    %997 = vmatprep.subr.mxu0 0.0
    %998 = vmatpush1.msra.mxu0 0.0
    %999 = vmatprep.subr.mxu0 0.0
    %1000 = vmatpush1.msra.mxu0 0.0
    %1001 = vmatprep.subr.mxu0 0.0
    %1002 = vmatpush1.msra.mxu0 0.0
    %1003 = vmatprep.subr.mxu0 0.0
    %1004 = vmatpush1.msra.mxu0 0.0
    %1005 = vmatprep.subr.mxu0 0.0
    %1006 = vmatpush1.msra.mxu0 0.0
    %1007 = vmatprep.subr.mxu0 0.0
    %1008 = vmatpush1.msra.mxu0 0.0
    %1009 = vmatprep.subr.mxu0 0.0
    %1010 = vmatpush1.msra.mxu0 0.0
    %1011 = vmatprep.subr.mxu0 0.0
    %1012 = vmatpush1.msra.mxu0 0.0
    %1013 = vmatprep.subr.mxu0 0.0
    %1014 = vmatpush1.msra.mxu0 0.0
    %1015 = vmatprep.mubr.f32.mxu0 0.0
    %1016 = vmatmul.mubr.f32.gmra.mrb[0].mxu0 %v943
    %v1017 = vpop.f32.mrb[0].mxu0
    %v1018 = vadd.f32 0.0, %v1017
    %v1019 = vpop.f32.mrb[0].mxu0
    %v1020 = vadd.f32 0.0, %v1019
    %1021 = vdwg.mxu0
    %v1022 = vadd.f32 %v916, %v1018
    %v1023 = vadd.f32 %v917, %v1020
    %v1024 = vld [vmem:[%s5] sm:$0xff]
    %1026 = vset.pattern.permute.xlu0 0
    %1027 = vperm.xlu0 %1026, %v1024
    %v1028 = vpop.permute.xlu0 %1027
    %v1030 = vadd.f32 %v1022, %v1028
    %v1031 = vadd.f32 %v1023, %v1028
    %v1032 = vld [vmem:[%s6] sm:$0xff]
    %v1033 = vmul.f32 %v1030, %v1030
    %v1034 = vmul.f32 %v1031, %v1031
    %v1035 = vadd.f32 %v1033, %v1034
    %1036 = vadd.xlane.f32.xlu0 %v1035
    %v1037 = vpop.xlane.xlu0 %1036
    %v1038 = vmul.f32 %v1037, %v48
    %v1039 = vadd.f32 %v1038, 1e-05
    %v1040 = vrsqrt.pop %v1039
    %v1041 = vmul.f32 %v1030, %v1040
    %v1042 = vmul.f32 %v1031, %v1040
    %1044 = vset.pattern.permute.xlu0 0
    %1045 = vperm.xlu0 %1044, %v1032
    %v1046 = vpop.permute.xlu0 %1045
    %v1048 = vmul.f32 %v1046, %v1041
    %v1049 = vmul.f32 %v1046, %v1042
    %v1050 = vld [vmem:[%s7] sm:$0xff]
    %1052 = vset.pattern.permute.xlu0 0
    %1053 = vperm.xlu0 %1052, %v1050
    %v1054 = vpop.permute.xlu0 %1053
    %v1056 = vmax.f32 %v1048, %v1054
    %v1057 = vmax.f32 %v1049, %v1054
    %1058 = vrot.lane.b32.xlu0 %v1056, 17
    %v1059 = vpop.permute.xlu0 %1058
    %1060 = vrot.lane.b32.xlu0 %v1057, 17
    %v1061 = vpop.permute.xlu0 %1060
    %v1062 = vsel %vm86, %v1059, %v1061
    %v1063 = vsel %vm86, %v1061, %v1059
    %v1064 = vmul.f32 %v1063, %v94
    %v1065 = vmul.f32 %v1062, %v98
    %v1066 = vld [vmem:[%s8] sm:$0xff]
    %1067 = vrot.lane.b32.xlu0 %v1056, 16
    %v1068 = vpop.permute.xlu0 %1067
    %1069 = vrot.lane.b32.xlu0 %v1057, 16
    %v1070 = vpop.permute.xlu0 %1069
    %v1071 = vsel %vm108, %v1068, %v1070
    %v1072 = vsel %vm108, %v1070, %v1068
    %v1073 = vmul.f32 %v1072, %v117
    %v1074 = vmul.f32 %v1071, %v121
    %s1075 = scalar_lea.vmem %s8, 8
    %v1076 = vld [vmem:[%s1075] sm:$0xff]
    %vm1077 = vcmask 64512
    %v1079 = vsel %vm1077, %v1076, 0
    %1081 = vmatprep.subr.mxu0 %v1074
    %1082 = vmatpush1.msra.mxu0 %v1073
    %1083 = vmatprep.subr.mxu0 0.0
    %1084 = vmatpush1.msra.mxu0 0.0
    %1085 = vmatprep.subr.mxu0 0.0
    %1086 = vmatpush1.msra.mxu0 0.0
    %1087 = vmatprep.subr.mxu0 0.0
    %1088 = vmatpush1.msra.mxu0 0.0
    %1089 = vmatprep.subr.mxu0 0.0
    %1090 = vmatpush1.msra.mxu0 0.0
    %1091 = vmatprep.subr.mxu0 0.0
    %1092 = vmatpush1.msra.mxu0 0.0
    %1093 = vmatprep.subr.mxu0 0.0
    %1094 = vmatpush1.msra.mxu0 0.0
    %1095 = vmatprep.subr.mxu0 0.0
    %1096 = vmatpush1.msra.mxu0 0.0
    %1097 = vmatprep.subr.mxu0 0.0
    %1098 = vmatpush1.msra.mxu0 0.0
    %1099 = vmatprep.subr.mxu0 0.0
    %1100 = vmatpush1.msra.mxu0 0.0
    %1101 = vmatprep.subr.mxu0 0.0
    %1102 = vmatpush1.msra.mxu0 0.0
    %1103 = vmatprep.subr.mxu0 0.0
    %1104 = vmatpush1.msra.mxu0 0.0
    %1105 = vmatprep.subr.mxu0 0.0
    %1106 = vmatpush1.msra.mxu0 0.0
    %1107 = vmatprep.subr.mxu0 0.0
    %1108 = vmatpush1.msra.mxu0 0.0
    %1109 = vmatprep.subr.mxu0 0.0
    %1110 = vmatpush1.msra.mxu0 0.0
    %1111 = vmatprep.subr.mxu0 0.0
    %1112 = vmatpush1.msra.mxu0 0.0
    %1113 = vmatprep.subr.mxu0 0.0
    %1114 = vmatpush1.msra.mxu0 0.0
    %1115 = vmatprep.subr.mxu0 0.0
    %1116 = vmatpush1.msra.mxu0 0.0
    %1117 = vmatprep.subr.mxu0 0.0
    %1118 = vmatpush1.msra.mxu0 0.0
    %1119 = vmatprep.subr.mxu0 0.0
    %1120 = vmatpush1.msra.mxu0 0.0
    %1121 = vmatprep.subr.mxu0 0.0
    %1122 = vmatpush1.msra.mxu0 0.0
    %1123 = vmatprep.subr.mxu0 0.0
    %1124 = vmatpush1.msra.mxu0 0.0
    %1125 = vmatprep.subr.mxu0 0.0
    %1126 = vmatpush1.msra.mxu0 0.0
    %1127 = vmatprep.subr.mxu0 0.0
    %1128 = vmatpush1.msra.mxu0 0.0
    %1129 = vmatprep.subr.mxu0 0.0
    %1130 = vmatpush1.msra.mxu0 0.0
    %1131 = vmatprep.subr.mxu0 0.0
    %1132 = vmatpush1.msra.mxu0 0.0
    %1133 = vmatprep.subr.mxu0 0.0
    %1134 = vmatpush1.msra.mxu0 0.0
    %1135 = vmatprep.subr.mxu0 0.0
    %1136 = vmatpush1.msra.mxu0 0.0
    %1137 = vmatprep.subr.mxu0 0.0
    %1138 = vmatpush1.msra.mxu0 0.0
    %1139 = vmatprep.subr.mxu0 0.0
    %1140 = vmatpush1.msra.mxu0 0.0
    %1141 = vmatprep.subr.mxu0 0.0
    %1142 = vmatpush1.msra.mxu0 0.0
    %1143 = vmatprep.subr.mxu0 0.0
    %1144 = vmatpush1.msra.mxu0 0.0
    %1145 = vmatprep.mubr.f32.mxu0 0.0
    %1146 = vmatmul.mubr.f32.gmra.mrb[0].mxu0 %v1079
    %v1147 = vpop.f32.mrb[0].mxu0
    %v1148 = vadd.f32 0.0, %v1147
    %v1149 = vpop.f32.mrb[0].mxu0
    %v1150 = vadd.f32 0.0, %v1149
    %1151 = vdwg.mxu0
    %v1153 = vsel %vm1077, %v1066, 0
    %1155 = vmatprep.subr.mxu0 %v1065
    %1156 = vmatpush1.msra.mxu0 %v1064
    %1157 = vmatprep.subr.mxu0 0.0
    %1158 = vmatpush1.msra.mxu0 0.0
    %1159 = vmatprep.subr.mxu0 0.0
    %1160 = vmatpush1.msra.mxu0 0.0
    %1161 = vmatprep.subr.mxu0 0.0
    %1162 = vmatpush1.msra.mxu0 0.0
    %1163 = vmatprep.subr.mxu0 0.0
    %1164 = vmatpush1.msra.mxu0 0.0
    %1165 = vmatprep.subr.mxu0 0.0
    %1166 = vmatpush1.msra.mxu0 0.0
    %1167 = vmatprep.subr.mxu0 0.0
    %1168 = vmatpush1.msra.mxu0 0.0
    %1169 = vmatprep.subr.mxu0 0.0
    %1170 = vmatpush1.msra.mxu0 0.0
    %1171 = vmatprep.subr.mxu0 0.0
    %1172 = vmatpush1.msra.mxu0 0.0
    %1173 = vmatprep.subr.mxu0 0.0
    %1174 = vmatpush1.msra.mxu0 0.0
    %1175 = vmatprep.subr.mxu0 0.0
    %1176 = vmatpush1.msra.mxu0 0.0
    %1177 = vmatprep.subr.mxu0 0.0
    %1178 = vmatpush1.msra.mxu0 0.0
    %1179 = vmatprep.subr.mxu0 0.0
    %1180 = vmatpush1.msra.mxu0 0.0
    %1181 = vmatprep.subr.mxu0 0.0
    %1182 = vmatpush1.msra.mxu0 0.0
    %1183 = vmatprep.subr.mxu0 0.0
    %1184 = vmatpush1.msra.mxu0 0.0
    %1185 = vmatprep.subr.mxu0 0.0
    %1186 = vmatpush1.msra.mxu0 0.0
    %1187 = vmatprep.subr.mxu0 0.0
    %1188 = vmatpush1.msra.mxu0 0.0
    %1189 = vmatprep.subr.mxu0 0.0
    %1190 = vmatpush1.msra.mxu0 0.0
    %1191 = vmatprep.subr.mxu0 0.0
    %1192 = vmatpush1.msra.mxu0 0.0
    %1193 = vmatprep.subr.mxu0 0.0
    %1194 = vmatpush1.msra.mxu0 0.0
    %1195 = vmatprep.subr.mxu0 0.0
    %1196 = vmatpush1.msra.mxu0 0.0
    %1197 = vmatprep.subr.mxu0 0.0
    %1198 = vmatpush1.msra.mxu0 0.0
    %1199 = vmatprep.subr.mxu0 0.0
    %1200 = vmatpush1.msra.mxu0 0.0
    %1201 = vmatprep.subr.mxu0 0.0
    %1202 = vmatpush1.msra.mxu0 0.0
    %1203 = vmatprep.subr.mxu0 0.0
    %1204 = vmatpush1.msra.mxu0 0.0
    %1205 = vmatprep.subr.mxu0 0.0
    %1206 = vmatpush1.msra.mxu0 0.0
    %1207 = vmatprep.subr.mxu0 0.0
    %1208 = vmatpush1.msra.mxu0 0.0
    %1209 = vmatprep.subr.mxu0 0.0
    %1210 = vmatpush1.msra.mxu0 0.0
    %1211 = vmatprep.subr.mxu0 0.0
    %1212 = vmatpush1.msra.mxu0 0.0
    %1213 = vmatprep.subr.mxu0 0.0
    %1214 = vmatpush1.msra.mxu0 0.0
    %1215 = vmatprep.subr.mxu0 0.0
    %1216 = vmatpush1.msra.mxu0 0.0
    %1217 = vmatprep.subr.mxu0 0.0
    %1218 = vmatpush1.msra.mxu0 0.0
    %1219 = vmatprep.mubr.f32.mxu0 0.0
    %1220 = vmatmul.mubr.f32.gmra.mrb[0].mxu0 %v1153
    %v1221 = vpop.f32.mrb[0].mxu0
    %v1222 = vadd.f32 %v1148, %v1221
    %v1223 = vpop.f32.mrb[0].mxu0
    %v1224 = vadd.f32 %v1150, %v1223
    %1225 = vdwg.mxu0
    %1226 = vrot.lane.b32.xlu0 %v1056, 15
    %v1227 = vpop.permute.xlu0 %1226
    %1228 = vrot.lane.b32.xlu0 %v1057, 15
    %v1229 = vpop.permute.xlu0 %1228
    %v1230 = vsel %vm293, %v1227, %v1229
    %v1231 = vsel %vm293, %v1229, %v1227
    %v1232 = vmul.f32 %v1231, %v302
    %v1233 = vmul.f32 %v1230, %v306
    %s1234 = scalar_lea.vmem %s8, 16
    %v1235 = vld [vmem:[%s1234] sm:$0xff]
    %v1237 = vsel %vm1077, %v1235, 0
    %1239 = vmatprep.subr.mxu0 %v1233
    %1240 = vmatpush1.msra.mxu0 %v1232
    %1241 = vmatprep.subr.mxu0 0.0
    %1242 = vmatpush1.msra.mxu0 0.0
    %1243 = vmatprep.subr.mxu0 0.0
    %1244 = vmatpush1.msra.mxu0 0.0
    %1245 = vmatprep.subr.mxu0 0.0
    %1246 = vmatpush1.msra.mxu0 0.0
    %1247 = vmatprep.subr.mxu0 0.0
    %1248 = vmatpush1.msra.mxu0 0.0
    %1249 = vmatprep.subr.mxu0 0.0
    %1250 = vmatpush1.msra.mxu0 0.0
    %1251 = vmatprep.subr.mxu0 0.0
    %1252 = vmatpush1.msra.mxu0 0.0
    %1253 = vmatprep.subr.mxu0 0.0
    %1254 = vmatpush1.msra.mxu0 0.0
    %1255 = vmatprep.subr.mxu0 0.0
    %1256 = vmatpush1.msra.mxu0 0.0
    %1257 = vmatprep.subr.mxu0 0.0
    %1258 = vmatpush1.msra.mxu0 0.0
    %1259 = vmatprep.subr.mxu0 0.0
    %1260 = vmatpush1.msra.mxu0 0.0
    %1261 = vmatprep.subr.mxu0 0.0
    %1262 = vmatpush1.msra.mxu0 0.0
    %1263 = vmatprep.subr.mxu0 0.0
    %1264 = vmatpush1.msra.mxu0 0.0
    %1265 = vmatprep.subr.mxu0 0.0
    %1266 = vmatpush1.msra.mxu0 0.0
    %1267 = vmatprep.subr.mxu0 0.0
    %1268 = vmatpush1.msra.mxu0 0.0
    %1269 = vmatprep.subr.mxu0 0.0
    %1270 = vmatpush1.msra.mxu0 0.0
    %1271 = vmatprep.subr.mxu0 0.0
    %1272 = vmatpush1.msra.mxu0 0.0
    %1273 = vmatprep.subr.mxu0 0.0
    %1274 = vmatpush1.msra.mxu0 0.0
    %1275 = vmatprep.subr.mxu0 0.0
    %1276 = vmatpush1.msra.mxu0 0.0
    %1277 = vmatprep.subr.mxu0 0.0
    %1278 = vmatpush1.msra.mxu0 0.0
    %1279 = vmatprep.subr.mxu0 0.0
    %1280 = vmatpush1.msra.mxu0 0.0
    %1281 = vmatprep.subr.mxu0 0.0
    %1282 = vmatpush1.msra.mxu0 0.0
    %1283 = vmatprep.subr.mxu0 0.0
    %1284 = vmatpush1.msra.mxu0 0.0
    %1285 = vmatprep.subr.mxu0 0.0
    %1286 = vmatpush1.msra.mxu0 0.0
    %1287 = vmatprep.subr.mxu0 0.0
    %1288 = vmatpush1.msra.mxu0 0.0
    %1289 = vmatprep.subr.mxu0 0.0
    %1290 = vmatpush1.msra.mxu0 0.0
    %1291 = vmatprep.subr.mxu0 0.0
    %1292 = vmatpush1.msra.mxu0 0.0
    %1293 = vmatprep.subr.mxu0 0.0
    %1294 = vmatpush1.msra.mxu0 0.0
    %1295 = vmatprep.subr.mxu0 0.0
    %1296 = vmatpush1.msra.mxu0 0.0
    %1297 = vmatprep.subr.mxu0 0.0
    %1298 = vmatpush1.msra.mxu0 0.0
    %1299 = vmatprep.subr.mxu0 0.0
    %1300 = vmatpush1.msra.mxu0 0.0
    %1301 = vmatprep.subr.mxu0 0.0
    %1302 = vmatpush1.msra.mxu0 0.0
    %1303 = vmatprep.mubr.f32.mxu0 0.0
    %1304 = vmatmul.mubr.f32.gmra.mrb[0].mxu0 %v1237
    %v1305 = vpop.f32.mrb[0].mxu0
    %v1306 = vadd.f32 0.0, %v1305
    %v1307 = vpop.f32.mrb[0].mxu0
    %v1308 = vadd.f32 0.0, %v1307
    %1309 = vdwg.mxu0
    %v1310 = vadd.f32 %v1222, %v1306
    %v1311 = vadd.f32 %v1224, %v1308
    %1312 = vrot.lane.b32.xlu0 %v1056, 1
    %v1313 = vpop.permute.xlu0 %1312
    %1314 = vrot.lane.b32.xlu0 %v1057, 1
    %v1315 = vpop.permute.xlu0 %1314
    %v1316 = vsel %vm399, %v1313, %v1315
    %v1317 = vsel %vm399, %v1315, %v1313
    %v1318 = vmul.f32 %v1317, %v408
    %v1319 = vmul.f32 %v1316, %v412
    %s1320 = scalar_lea.vmem %s8, 24
    %v1321 = vld [vmem:[%s1320] sm:$0xff]
    %v1323 = vsel %vm1077, %v1321, 0
    %1325 = vmatprep.subr.mxu0 %v1319
    %1326 = vmatpush1.msra.mxu0 %v1318
    %1327 = vmatprep.subr.mxu0 0.0
    %1328 = vmatpush1.msra.mxu0 0.0
    %1329 = vmatprep.subr.mxu0 0.0
    %1330 = vmatpush1.msra.mxu0 0.0
    %1331 = vmatprep.subr.mxu0 0.0
    %1332 = vmatpush1.msra.mxu0 0.0
    %1333 = vmatprep.subr.mxu0 0.0
    %1334 = vmatpush1.msra.mxu0 0.0
    %1335 = vmatprep.subr.mxu0 0.0
    %1336 = vmatpush1.msra.mxu0 0.0
    %1337 = vmatprep.subr.mxu0 0.0
    %1338 = vmatpush1.msra.mxu0 0.0
    %1339 = vmatprep.subr.mxu0 0.0
    %1340 = vmatpush1.msra.mxu0 0.0
    %1341 = vmatprep.subr.mxu0 0.0
    %1342 = vmatpush1.msra.mxu0 0.0
    %1343 = vmatprep.subr.mxu0 0.0
    %1344 = vmatpush1.msra.mxu0 0.0
    %1345 = vmatprep.subr.mxu0 0.0
    %1346 = vmatpush1.msra.mxu0 0.0
    %1347 = vmatprep.subr.mxu0 0.0
    %1348 = vmatpush1.msra.mxu0 0.0
    %1349 = vmatprep.subr.mxu0 0.0
    %1350 = vmatpush1.msra.mxu0 0.0
    %1351 = vmatprep.subr.mxu0 0.0
    %1352 = vmatpush1.msra.mxu0 0.0
    %1353 = vmatprep.subr.mxu0 0.0
    %1354 = vmatpush1.msra.mxu0 0.0
    %1355 = vmatprep.subr.mxu0 0.0
    %1356 = vmatpush1.msra.mxu0 0.0
    %1357 = vmatprep.subr.mxu0 0.0
    %1358 = vmatpush1.msra.mxu0 0.0
    %1359 = vmatprep.subr.mxu0 0.0
    %1360 = vmatpush1.msra.mxu0 0.0
    %1361 = vmatprep.subr.mxu0 0.0
    %1362 = vmatpush1.msra.mxu0 0.0
    %1363 = vmatprep.subr.mxu0 0.0
    %1364 = vmatpush1.msra.mxu0 0.0
    %1365 = vmatprep.subr.mxu0 0.0
    %1366 = vmatpush1.msra.mxu0 0.0
    %1367 = vmatprep.subr.mxu0 0.0
    %1368 = vmatpush1.msra.mxu0 0.0
    %1369 = vmatprep.subr.mxu0 0.0
    %1370 = vmatpush1.msra.mxu0 0.0
    %1371 = vmatprep.subr.mxu0 0.0
    %1372 = vmatpush1.msra.mxu0 0.0
    %1373 = vmatprep.subr.mxu0 0.0
    %1374 = vmatpush1.msra.mxu0 0.0
    %1375 = vmatprep.subr.mxu0 0.0
    %1376 = vmatpush1.msra.mxu0 0.0
    %1377 = vmatprep.subr.mxu0 0.0
    %1378 = vmatpush1.msra.mxu0 0.0
    %1379 = vmatprep.subr.mxu0 0.0
    %1380 = vmatpush1.msra.mxu0 0.0
    %1381 = vmatprep.subr.mxu0 0.0
    %1382 = vmatpush1.msra.mxu0 0.0
    %1383 = vmatprep.subr.mxu0 0.0
    %1384 = vmatpush1.msra.mxu0 0.0
    %1385 = vmatprep.subr.mxu0 0.0
    %1386 = vmatpush1.msra.mxu0 0.0
    %1387 = vmatprep.subr.mxu0 0.0
    %1388 = vmatpush1.msra.mxu0 0.0
    %1389 = vmatprep.mubr.f32.mxu0 0.0
    %1390 = vmatmul.mubr.f32.gmra.mrb[0].mxu0 %v1323
    %v1391 = vpop.f32.mrb[0].mxu0
    %v1392 = vadd.f32 0.0, %v1391
    %v1393 = vpop.f32.mrb[0].mxu0
    %v1394 = vadd.f32 0.0, %v1393
    %1395 = vdwg.mxu0
    %v1396 = vadd.f32 %v1310, %v1392
    %v1397 = vadd.f32 %v1311, %v1394
    %v1398 = vmul.f32 %v1056, %v507
    %v1399 = vmul.f32 %v1057, %v511
    %s1400 = scalar_lea.vmem %s8, 32
    %v1401 = vld [vmem:[%s1400] sm:$0xff]
    %v1403 = vsel %vm1077, %v1401, 0
    %1405 = vmatprep.subr.mxu0 %v1399
    %1406 = vmatpush1.msra.mxu0 %v1398
    %1407 = vmatprep.subr.mxu0 0.0
    %1408 = vmatpush1.msra.mxu0 0.0
    %1409 = vmatprep.subr.mxu0 0.0
    %1410 = vmatpush1.msra.mxu0 0.0
    %1411 = vmatprep.subr.mxu0 0.0
    %1412 = vmatpush1.msra.mxu0 0.0
    %1413 = vmatprep.subr.mxu0 0.0
    %1414 = vmatpush1.msra.mxu0 0.0
    %1415 = vmatprep.subr.mxu0 0.0
    %1416 = vmatpush1.msra.mxu0 0.0
    %1417 = vmatprep.subr.mxu0 0.0
    %1418 = vmatpush1.msra.mxu0 0.0
    %1419 = vmatprep.subr.mxu0 0.0
    %1420 = vmatpush1.msra.mxu0 0.0
    %1421 = vmatprep.subr.mxu0 0.0
    %1422 = vmatpush1.msra.mxu0 0.0
    %1423 = vmatprep.subr.mxu0 0.0
    %1424 = vmatpush1.msra.mxu0 0.0
    %1425 = vmatprep.subr.mxu0 0.0
    %1426 = vmatpush1.msra.mxu0 0.0
    %1427 = vmatprep.subr.mxu0 0.0
    %1428 = vmatpush1.msra.mxu0 0.0
    %1429 = vmatprep.subr.mxu0 0.0
    %1430 = vmatpush1.msra.mxu0 0.0
    %1431 = vmatprep.subr.mxu0 0.0
    %1432 = vmatpush1.msra.mxu0 0.0
    %1433 = vmatprep.subr.mxu0 0.0
    %1434 = vmatpush1.msra.mxu0 0.0
    %1435 = vmatprep.subr.mxu0 0.0
    %1436 = vmatpush1.msra.mxu0 0.0
    %1437 = vmatprep.subr.mxu0 0.0
    %1438 = vmatpush1.msra.mxu0 0.0
    %1439 = vmatprep.subr.mxu0 0.0
    %1440 = vmatpush1.msra.mxu0 0.0
    %1441 = vmatprep.subr.mxu0 0.0
    %1442 = vmatpush1.msra.mxu0 0.0
    %1443 = vmatprep.subr.mxu0 0.0
    %1444 = vmatpush1.msra.mxu0 0.0
    %1445 = vmatprep.subr.mxu0 0.0
    %1446 = vmatpush1.msra.mxu0 0.0
    %1447 = vmatprep.subr.mxu0 0.0
    %1448 = vmatpush1.msra.mxu0 0.0
    %1449 = vmatprep.subr.mxu0 0.0
    %1450 = vmatpush1.msra.mxu0 0.0
    %1451 = vmatprep.subr.mxu0 0.0
    %1452 = vmatpush1.msra.mxu0 0.0
    %1453 = vmatprep.subr.mxu0 0.0
    %1454 = vmatpush1.msra.mxu0 0.0
    %1455 = vmatprep.subr.mxu0 0.0
    %1456 = vmatpush1.msra.mxu0 0.0
    %1457 = vmatprep.subr.mxu0 0.0
    %1458 = vmatpush1.msra.mxu0 0.0
    %1459 = vmatprep.subr.mxu0 0.0
    %1460 = vmatpush1.msra.mxu0 0.0
    %1461 = vmatprep.subr.mxu0 0.0
    %1462 = vmatpush1.msra.mxu0 0.0
    %1463 = vmatprep.subr.mxu0 0.0
    %1464 = vmatpush1.msra.mxu0 0.0
    %1465 = vmatprep.subr.mxu0 0.0
    %1466 = vmatpush1.msra.mxu0 0.0
    %1467 = vmatprep.subr.mxu0 0.0
    %1468 = vmatpush1.msra.mxu0 0.0
    %1469 = vmatprep.mubr.f32.mxu0 0.0
    %1470 = vmatmul.mubr.f32.gmra.mrb[0].mxu0 %v1403
    %v1471 = vpop.f32.mrb[0].mxu0
    %v1472 = vadd.f32 0.0, %v1471
    %v1473 = vpop.f32.mrb[0].mxu0
    %v1474 = vadd.f32 0.0, %v1473
    %1475 = vdwg.mxu0
    %v1476 = vadd.f32 %v1396, %v1472
    %v1477 = vadd.f32 %v1397, %v1474
    %1478 = vrot.lane.b32.xlu0 %v1056, 127
    %v1479 = vpop.permute.xlu0 %1478
    %1480 = vrot.lane.b32.xlu0 %v1057, 127
    %v1481 = vpop.permute.xlu0 %1480
    %v1482 = vsel %vm604, %v1479, %v1481
    %v1483 = vsel %vm604, %v1481, %v1479
    %v1484 = vmul.f32 %v1482, %v613
    %v1485 = vmul.f32 %v1483, %v617
    %s1486 = scalar_lea.vmem %s8, 40
    %v1487 = vld [vmem:[%s1486] sm:$0xff]
    %v1489 = vsel %vm1077, %v1487, 0
    %1491 = vmatprep.subr.mxu0 %v1485
    %1492 = vmatpush1.msra.mxu0 %v1484
    %1493 = vmatprep.subr.mxu0 0.0
    %1494 = vmatpush1.msra.mxu0 0.0
    %1495 = vmatprep.subr.mxu0 0.0
    %1496 = vmatpush1.msra.mxu0 0.0
    %1497 = vmatprep.subr.mxu0 0.0
    %1498 = vmatpush1.msra.mxu0 0.0
    %1499 = vmatprep.subr.mxu0 0.0
    %1500 = vmatpush1.msra.mxu0 0.0
    %1501 = vmatprep.subr.mxu0 0.0
    %1502 = vmatpush1.msra.mxu0 0.0
    %1503 = vmatprep.subr.mxu0 0.0
    %1504 = vmatpush1.msra.mxu0 0.0
    %1505 = vmatprep.subr.mxu0 0.0
    %1506 = vmatpush1.msra.mxu0 0.0
    %1507 = vmatprep.subr.mxu0 0.0
    %1508 = vmatpush1.msra.mxu0 0.0
    %1509 = vmatprep.subr.mxu0 0.0
    %1510 = vmatpush1.msra.mxu0 0.0
    %1511 = vmatprep.subr.mxu0 0.0
    %1512 = vmatpush1.msra.mxu0 0.0
    %1513 = vmatprep.subr.mxu0 0.0
    %1514 = vmatpush1.msra.mxu0 0.0
    %1515 = vmatprep.subr.mxu0 0.0
    %1516 = vmatpush1.msra.mxu0 0.0
    %1517 = vmatprep.subr.mxu0 0.0
    %1518 = vmatpush1.msra.mxu0 0.0
    %1519 = vmatprep.subr.mxu0 0.0
    %1520 = vmatpush1.msra.mxu0 0.0
    %1521 = vmatprep.subr.mxu0 0.0
    %1522 = vmatpush1.msra.mxu0 0.0
    %1523 = vmatprep.subr.mxu0 0.0
    %1524 = vmatpush1.msra.mxu0 0.0
    %1525 = vmatprep.subr.mxu0 0.0
    %1526 = vmatpush1.msra.mxu0 0.0
    %1527 = vmatprep.subr.mxu0 0.0
    %1528 = vmatpush1.msra.mxu0 0.0
    %1529 = vmatprep.subr.mxu0 0.0
    %1530 = vmatpush1.msra.mxu0 0.0
    %1531 = vmatprep.subr.mxu0 0.0
    %1532 = vmatpush1.msra.mxu0 0.0
    %1533 = vmatprep.subr.mxu0 0.0
    %1534 = vmatpush1.msra.mxu0 0.0
    %1535 = vmatprep.subr.mxu0 0.0
    %1536 = vmatpush1.msra.mxu0 0.0
    %1537 = vmatprep.subr.mxu0 0.0
    %1538 = vmatpush1.msra.mxu0 0.0
    %1539 = vmatprep.subr.mxu0 0.0
    %1540 = vmatpush1.msra.mxu0 0.0
    %1541 = vmatprep.subr.mxu0 0.0
    %1542 = vmatpush1.msra.mxu0 0.0
    %1543 = vmatprep.subr.mxu0 0.0
    %1544 = vmatpush1.msra.mxu0 0.0
    %1545 = vmatprep.subr.mxu0 0.0
    %1546 = vmatpush1.msra.mxu0 0.0
    %1547 = vmatprep.subr.mxu0 0.0
    %1548 = vmatpush1.msra.mxu0 0.0
    %1549 = vmatprep.subr.mxu0 0.0
    %1550 = vmatpush1.msra.mxu0 0.0
    %1551 = vmatprep.subr.mxu0 0.0
    %1552 = vmatpush1.msra.mxu0 0.0
    %1553 = vmatprep.subr.mxu0 0.0
    %1554 = vmatpush1.msra.mxu0 0.0
    %1555 = vmatprep.mubr.f32.mxu0 0.0
    %1556 = vmatmul.mubr.f32.gmra.mrb[0].mxu0 %v1489
    %v1557 = vpop.f32.mrb[0].mxu0
    %v1558 = vadd.f32 0.0, %v1557
    %v1559 = vpop.f32.mrb[0].mxu0
    %v1560 = vadd.f32 0.0, %v1559
    %1561 = vdwg.mxu0
    %v1562 = vadd.f32 %v1476, %v1558
    %v1563 = vadd.f32 %v1477, %v1560
    %1564 = vrot.lane.b32.xlu0 %v1056, 113
    %v1565 = vpop.permute.xlu0 %1564
    %1566 = vrot.lane.b32.xlu0 %v1057, 113
    %v1567 = vpop.permute.xlu0 %1566
    %v1568 = vsel %vm710, %v1565, %v1567
    %v1569 = vsel %vm710, %v1567, %v1565
    %v1570 = vmul.f32 %v1568, %v719
    %v1571 = vmul.f32 %v1569, %v723
    %s1572 = scalar_lea.vmem %s8, 48
    %v1573 = vld [vmem:[%s1572] sm:$0xff]
    %v1575 = vsel %vm1077, %v1573, 0
    %1577 = vmatprep.subr.mxu0 %v1571
    %1578 = vmatpush1.msra.mxu0 %v1570
    %1579 = vmatprep.subr.mxu0 0.0
    %1580 = vmatpush1.msra.mxu0 0.0
    %1581 = vmatprep.subr.mxu0 0.0
    %1582 = vmatpush1.msra.mxu0 0.0
    %1583 = vmatprep.subr.mxu0 0.0
    %1584 = vmatpush1.msra.mxu0 0.0
    %1585 = vmatprep.subr.mxu0 0.0
    %1586 = vmatpush1.msra.mxu0 0.0
    %1587 = vmatprep.subr.mxu0 0.0
    %1588 = vmatpush1.msra.mxu0 0.0
    %1589 = vmatprep.subr.mxu0 0.0
    %1590 = vmatpush1.msra.mxu0 0.0
    %1591 = vmatprep.subr.mxu0 0.0
    %1592 = vmatpush1.msra.mxu0 0.0
    %1593 = vmatprep.subr.mxu0 0.0
    %1594 = vmatpush1.msra.mxu0 0.0
    %1595 = vmatprep.subr.mxu0 0.0
    %1596 = vmatpush1.msra.mxu0 0.0
    %1597 = vmatprep.subr.mxu0 0.0
    %1598 = vmatpush1.msra.mxu0 0.0
    %1599 = vmatprep.subr.mxu0 0.0
    %1600 = vmatpush1.msra.mxu0 0.0
    %1601 = vmatprep.subr.mxu0 0.0
    %1602 = vmatpush1.msra.mxu0 0.0
    %1603 = vmatprep.subr.mxu0 0.0
    %1604 = vmatpush1.msra.mxu0 0.0
    %1605 = vmatprep.subr.mxu0 0.0
    %1606 = vmatpush1.msra.mxu0 0.0
    %1607 = vmatprep.subr.mxu0 0.0
    %1608 = vmatpush1.msra.mxu0 0.0
    %1609 = vmatprep.subr.mxu0 0.0
    %1610 = vmatpush1.msra.mxu0 0.0
    %1611 = vmatprep.subr.mxu0 0.0
    %1612 = vmatpush1.msra.mxu0 0.0
    %1613 = vmatprep.subr.mxu0 0.0
    %1614 = vmatpush1.msra.mxu0 0.0
    %1615 = vmatprep.subr.mxu0 0.0
    %1616 = vmatpush1.msra.mxu0 0.0
    %1617 = vmatprep.subr.mxu0 0.0
    %1618 = vmatpush1.msra.mxu0 0.0
    %1619 = vmatprep.subr.mxu0 0.0
    %1620 = vmatpush1.msra.mxu0 0.0
    %1621 = vmatprep.subr.mxu0 0.0
    %1622 = vmatpush1.msra.mxu0 0.0
    %1623 = vmatprep.subr.mxu0 0.0
    %1624 = vmatpush1.msra.mxu0 0.0
    %1625 = vmatprep.subr.mxu0 0.0
    %1626 = vmatpush1.msra.mxu0 0.0
    %1627 = vmatprep.subr.mxu0 0.0
    %1628 = vmatpush1.msra.mxu0 0.0
    %1629 = vmatprep.subr.mxu0 0.0
    %1630 = vmatpush1.msra.mxu0 0.0
    %1631 = vmatprep.subr.mxu0 0.0
    %1632 = vmatpush1.msra.mxu0 0.0
    %1633 = vmatprep.subr.mxu0 0.0
    %1634 = vmatpush1.msra.mxu0 0.0
    %1635 = vmatprep.subr.mxu0 0.0
    %1636 = vmatpush1.msra.mxu0 0.0
    %1637 = vmatprep.subr.mxu0 0.0
    %1638 = vmatpush1.msra.mxu0 0.0
    %1639 = vmatprep.subr.mxu0 0.0
    %1640 = vmatpush1.msra.mxu0 0.0
    %1641 = vmatprep.mubr.f32.mxu0 0.0
    %1642 = vmatmul.mubr.f32.gmra.mrb[0].mxu0 %v1575
    %v1643 = vpop.f32.mrb[0].mxu0
    %v1644 = vadd.f32 0.0, %v1643
    %v1645 = vpop.f32.mrb[0].mxu0
    %v1646 = vadd.f32 0.0, %v1645
    %1647 = vdwg.mxu0
    %v1648 = vadd.f32 %v1562, %v1644
    %v1649 = vadd.f32 %v1563, %v1646
    %1650 = vrot.lane.b32.xlu0 %v1056, 112
    %v1651 = vpop.permute.xlu0 %1650
    %1652 = vrot.lane.b32.xlu0 %v1057, 112
    %v1653 = vpop.permute.xlu0 %1652
    %v1654 = vsel %vm816, %v1651, %v1653
    %v1655 = vsel %vm816, %v1653, %v1651
    %v1656 = vmul.f32 %v1654, %v825
    %v1657 = vmul.f32 %v1655, %v829
    %s1658 = scalar_lea.vmem %s8, 56
    %v1659 = vld [vmem:[%s1658] sm:$0xff]
    %v1661 = vsel %vm1077, %v1659, 0
    %1663 = vmatprep.subr.mxu0 %v1657
    %1664 = vmatpush1.msra.mxu0 %v1656
    %1665 = vmatprep.subr.mxu0 0.0
    %1666 = vmatpush1.msra.mxu0 0.0
    %1667 = vmatprep.subr.mxu0 0.0
    %1668 = vmatpush1.msra.mxu0 0.0
    %1669 = vmatprep.subr.mxu0 0.0
    %1670 = vmatpush1.msra.mxu0 0.0
    %1671 = vmatprep.subr.mxu0 0.0
    %1672 = vmatpush1.msra.mxu0 0.0
    %1673 = vmatprep.subr.mxu0 0.0
    %1674 = vmatpush1.msra.mxu0 0.0
    %1675 = vmatprep.subr.mxu0 0.0
    %1676 = vmatpush1.msra.mxu0 0.0
    %1677 = vmatprep.subr.mxu0 0.0
    %1678 = vmatpush1.msra.mxu0 0.0
    %1679 = vmatprep.subr.mxu0 0.0
    %1680 = vmatpush1.msra.mxu0 0.0
    %1681 = vmatprep.subr.mxu0 0.0
    %1682 = vmatpush1.msra.mxu0 0.0
    %1683 = vmatprep.subr.mxu0 0.0
    %1684 = vmatpush1.msra.mxu0 0.0
    %1685 = vmatprep.subr.mxu0 0.0
    %1686 = vmatpush1.msra.mxu0 0.0
    %1687 = vmatprep.subr.mxu0 0.0
    %1688 = vmatpush1.msra.mxu0 0.0
    %1689 = vmatprep.subr.mxu0 0.0
    %1690 = vmatpush1.msra.mxu0 0.0
    %1691 = vmatprep.subr.mxu0 0.0
    %1692 = vmatpush1.msra.mxu0 0.0
    %1693 = vmatprep.subr.mxu0 0.0
    %1694 = vmatpush1.msra.mxu0 0.0
    %1695 = vmatprep.subr.mxu0 0.0
    %1696 = vmatpush1.msra.mxu0 0.0
    %1697 = vmatprep.subr.mxu0 0.0
    %1698 = vmatpush1.msra.mxu0 0.0
    %1699 = vmatprep.subr.mxu0 0.0
    %1700 = vmatpush1.msra.mxu0 0.0
    %1701 = vmatprep.subr.mxu0 0.0
    %1702 = vmatpush1.msra.mxu0 0.0
    %1703 = vmatprep.subr.mxu0 0.0
    %1704 = vmatpush1.msra.mxu0 0.0
    %1705 = vmatprep.subr.mxu0 0.0
    %1706 = vmatpush1.msra.mxu0 0.0
    %1707 = vmatprep.subr.mxu0 0.0
    %1708 = vmatpush1.msra.mxu0 0.0
    %1709 = vmatprep.subr.mxu0 0.0
    %1710 = vmatpush1.msra.mxu0 0.0
    %1711 = vmatprep.subr.mxu0 0.0
    %1712 = vmatpush1.msra.mxu0 0.0
    %1713 = vmatprep.subr.mxu0 0.0
    %1714 = vmatpush1.msra.mxu0 0.0
    %1715 = vmatprep.subr.mxu0 0.0
    %1716 = vmatpush1.msra.mxu0 0.0
    %1717 = vmatprep.subr.mxu0 0.0
    %1718 = vmatpush1.msra.mxu0 0.0
    %1719 = vmatprep.subr.mxu0 0.0
    %1720 = vmatpush1.msra.mxu0 0.0
    %1721 = vmatprep.subr.mxu0 0.0
    %1722 = vmatpush1.msra.mxu0 0.0
    %1723 = vmatprep.subr.mxu0 0.0
    %1724 = vmatpush1.msra.mxu0 0.0
    %1725 = vmatprep.subr.mxu0 0.0
    %1726 = vmatpush1.msra.mxu0 0.0
    %1727 = vmatprep.mubr.f32.mxu0 0.0
    %1728 = vmatmul.mubr.f32.gmra.mrb[0].mxu0 %v1661
    %v1729 = vpop.f32.mrb[0].mxu0
    %v1730 = vadd.f32 0.0, %v1729
    %v1731 = vpop.f32.mrb[0].mxu0
    %v1732 = vadd.f32 0.0, %v1731
    %1733 = vdwg.mxu0
    %v1734 = vadd.f32 %v1648, %v1730
    %v1735 = vadd.f32 %v1649, %v1732
    %1736 = vrot.lane.b32.xlu0 %v1056, 111
    %v1737 = vpop.permute.xlu0 %1736
    %1738 = vrot.lane.b32.xlu0 %v1057, 111
    %v1739 = vpop.permute.xlu0 %1738
    %v1740 = vsel %vm922, %v1737, %v1739
    %v1741 = vsel %vm922, %v1739, %v1737
    %v1742 = vmul.f32 %v1740, %v931
    %v1743 = vmul.f32 %v1741, %v935
    %s1744 = scalar_lea.vmem %s8, 64
    %v1745 = vld [vmem:[%s1744] sm:$0xff]
    %v1747 = vsel %vm1077, %v1745, 0
    %1749 = vmatprep.subr.mxu0 %v1743
    %1750 = vmatpush1.msra.mxu0 %v1742
    %1751 = vmatprep.subr.mxu0 0.0
    %1752 = vmatpush1.msra.mxu0 0.0
    %1753 = vmatprep.subr.mxu0 0.0
    %1754 = vmatpush1.msra.mxu0 0.0
    %1755 = vmatprep.subr.mxu0 0.0
    %1756 = vmatpush1.msra.mxu0 0.0
    %1757 = vmatprep.subr.mxu0 0.0
    %1758 = vmatpush1.msra.mxu0 0.0
    %1759 = vmatprep.subr.mxu0 0.0
    %1760 = vmatpush1.msra.mxu0 0.0
    %1761 = vmatprep.subr.mxu0 0.0
    %1762 = vmatpush1.msra.mxu0 0.0
    %1763 = vmatprep.subr.mxu0 0.0
    %1764 = vmatpush1.msra.mxu0 0.0
    %1765 = vmatprep.subr.mxu0 0.0
    %1766 = vmatpush1.msra.mxu0 0.0
    %1767 = vmatprep.subr.mxu0 0.0
    %1768 = vmatpush1.msra.mxu0 0.0
    %1769 = vmatprep.subr.mxu0 0.0
    %1770 = vmatpush1.msra.mxu0 0.0
    %1771 = vmatprep.subr.mxu0 0.0
    %1772 = vmatpush1.msra.mxu0 0.0
    %1773 = vmatprep.subr.mxu0 0.0
    %1774 = vmatpush1.msra.mxu0 0.0
    %1775 = vmatprep.subr.mxu0 0.0
    %1776 = vmatpush1.msra.mxu0 0.0
    %1777 = vmatprep.subr.mxu0 0.0
    %1778 = vmatpush1.msra.mxu0 0.0
    %1779 = vmatprep.subr.mxu0 0.0
    %1780 = vmatpush1.msra.mxu0 0.0
    %1781 = vmatprep.subr.mxu0 0.0
    %1782 = vmatpush1.msra.mxu0 0.0
    %1783 = vmatprep.subr.mxu0 0.0
    %1784 = vmatpush1.msra.mxu0 0.0
    %1785 = vmatprep.subr.mxu0 0.0
    %1786 = vmatpush1.msra.mxu0 0.0
    %1787 = vmatprep.subr.mxu0 0.0
    %1788 = vmatpush1.msra.mxu0 0.0
    %1789 = vmatprep.subr.mxu0 0.0
    %1790 = vmatpush1.msra.mxu0 0.0
    %1791 = vmatprep.subr.mxu0 0.0
    %1792 = vmatpush1.msra.mxu0 0.0
    %1793 = vmatprep.subr.mxu0 0.0
    %1794 = vmatpush1.msra.mxu0 0.0
    %1795 = vmatprep.subr.mxu0 0.0
    %1796 = vmatpush1.msra.mxu0 0.0
    %1797 = vmatprep.subr.mxu0 0.0
    %1798 = vmatpush1.msra.mxu0 0.0
    %1799 = vmatprep.subr.mxu0 0.0
    %1800 = vmatpush1.msra.mxu0 0.0
    %1801 = vmatprep.subr.mxu0 0.0
    %1802 = vmatpush1.msra.mxu0 0.0
    %1803 = vmatprep.subr.mxu0 0.0
    %1804 = vmatpush1.msra.mxu0 0.0
    %1805 = vmatprep.subr.mxu0 0.0
    %1806 = vmatpush1.msra.mxu0 0.0
    %1807 = vmatprep.subr.mxu0 0.0
    %1808 = vmatpush1.msra.mxu0 0.0
    %1809 = vmatprep.subr.mxu0 0.0
    %1810 = vmatpush1.msra.mxu0 0.0
    %1811 = vmatprep.subr.mxu0 0.0
    %1812 = vmatpush1.msra.mxu0 0.0
    %1813 = vmatprep.mubr.f32.mxu0 0.0
    %1814 = vmatmul.mubr.f32.gmra.mrb[0].mxu0 %v1747
    %v1815 = vpop.f32.mrb[0].mxu0
    %v1816 = vadd.f32 0.0, %v1815
    %v1817 = vpop.f32.mrb[0].mxu0
    %v1818 = vadd.f32 0.0, %v1817
    %1819 = vdwg.mxu0
    %v1820 = vadd.f32 %v1734, %v1816
    %v1821 = vadd.f32 %v1735, %v1818
    %v1822 = vld [vmem:[%s9] sm:$0xff]
    %1824 = vset.pattern.permute.xlu0 0
    %1825 = vperm.xlu0 %1824, %v1822
    %v1826 = vpop.permute.xlu0 %1825
    %v1828 = vadd.f32 %v1820, %v1826
    %v1829 = vadd.f32 %v1821, %v1826
    %1830 = vst [vmem:[#allocation2] sm:$0xff] %v1828
    %1831 = vst [vmem:[#allocation2 + $0x8] sm:$0xff] %v1829
    %s1832 = scalar_lea.vmem %s0, 8
    %v1833 = vld [vmem:[%s1832] sm:$0xff]
    %s1834 = scalar_lea.vmem %s2, 4
    %v1835 = vld [vmem:[%s1834] sm:$0xf]
    %v1836 = vmul.f32 %v1833, %v1833
    %v1838 = vcombine.high %v1836, %v1836
    %v1840 = vsel %vm42, %v1836, 0.0
    %v1841 = vsel %vm42, %v1838, 0.0
    %v1842 = vadd.f32 %v1840, %v1841
    %1843 = vadd.xlane.f32.xlu0 %v1842
    %v1844 = vpop.xlane.xlu0 %1843
    %v1845 = vmul.f32 %v1844, %v48
    %v1846 = vadd.f32 %v1845, 1e-05
    %v1847 = vrsqrt.pop %v1846
    %v1850 = vunpack.c.l.s4 839922192
    %v1851 = vunpack.c.0.s8 %v1850
    %v1852 = vlaneseq
    %v1853 = vshrl.u32 %v1852, 7
    %v1854 = vsub.s32 %v1851, %v1853
    %v1855 = vrot.slane %v1847, %v1854
    %v1857 = vmul.f32 %v1833, %v1855
    %1859 = vset.pattern.permute.xlu0 0
    %1860 = vperm.xlu0 %1859, %v1835
    %v1861 = vpop.permute.xlu0 %1860
    %v1864 = vcombine.high %v1857, %v1857
    %v1866 = vmul.f32 %v1861, %v1857
    %v1867 = vmul.f32 %v1861, %v1864
    %v1868 = vld [vmem:[%s3] sm:$0xf]
    %1870 = vset.pattern.permute.xlu0 0
    %1871 = vperm.xlu0 %1870, %v1868
    %v1872 = vpop.permute.xlu0 %1871
    %v1874 = vmax.f32 %v1866, %v1872
    %v1875 = vmax.f32 %v1867, %v1872
    %1876 = vrot.lane.b32.xlu0 %v1874, 17
    %v1877 = vpop.permute.xlu0 %1876
    %1878 = vrot.lane.b32.xlu0 %v1875, 17
    %v1879 = vpop.permute.xlu0 %1878
    %v1880 = vsel %vm86, %v1877, %v1879
    %v1881 = vsel %vm86, %v1879, %v1877
    %v1882 = vld [vmem:[%s1] ss:$8 sm:$0x3]
    %v1884 = vlaneseq
    %v1885 = vshrl.u32 %v1884, 7
    %v1886 = vsub.s32 0, %v1885
    %v1887 = vrot.slane %v1882, %v1886
    %v1888 = vlaneseq
    %v1889 = vshrl.u32 %v1888, 7
    %v1890 = vsub.s32 1, %v1889
    %v1891 = vrot.slane %v1882, %v1890
    %v1894 = vmul.f32 %v1881, %v1887
    %v1895 = vmul.f32 %v1880, %v1891
    %v1896 = vld [vmem:[%s4] sm:$0xff]
    %1897 = vrot.lane.b32.xlu0 %v1874, 16
    %v1898 = vpop.permute.xlu0 %1897
    %1899 = vrot.lane.b32.xlu0 %v1875, 16
    %v1900 = vpop.permute.xlu0 %1899
    %v1901 = vsel %vm108, %v1898, %v1900
    %v1902 = vsel %vm108, %v1900, %v1898
    %v1903 = vld [vmem:[%s111] ss:$8 sm:$0x3]
    %v1905 = vlaneseq
    %v1906 = vshrl.u32 %v1905, 7
    %v1907 = vsub.s32 0, %v1906
    %v1908 = vrot.slane %v1903, %v1907
    %v1909 = vlaneseq
    %v1910 = vshrl.u32 %v1909, 7
    %v1911 = vsub.s32 1, %v1910
    %v1912 = vrot.slane %v1903, %v1911
    %v1915 = vmul.f32 %v1902, %v1908
    %v1916 = vmul.f32 %v1901, %v1912
    %v1917 = vld [vmem:[%s126] sm:$0xff]
    %v1919 = vsel %vm128, %v1917, 0
    %v1922 = vsel %vm42, %v1915, 0
    %v1925 = vsel %vm42, %v1916, 0
    %1927 = vmatprep.subr.mxu0 %v1925
    %1928 = vmatpush1.msra.mxu0 %v1922
    %1929 = vmatprep.subr.mxu0 0.0
    %1930 = vmatpush1.msra.mxu0 0.0
    %1931 = vmatprep.subr.mxu0 0.0
    %1932 = vmatpush1.msra.mxu0 0.0
    %1933 = vmatprep.subr.mxu0 0.0
    %1934 = vmatpush1.msra.mxu0 0.0
    %1935 = vmatprep.subr.mxu0 0.0
    %1936 = vmatpush1.msra.mxu0 0.0
    %1937 = vmatprep.subr.mxu0 0.0
    %1938 = vmatpush1.msra.mxu0 0.0
    %1939 = vmatprep.subr.mxu0 0.0
    %1940 = vmatpush1.msra.mxu0 0.0
    %1941 = vmatprep.subr.mxu0 0.0
    %1942 = vmatpush1.msra.mxu0 0.0
    %1943 = vmatprep.subr.mxu0 0.0
    %1944 = vmatpush1.msra.mxu0 0.0
    %1945 = vmatprep.subr.mxu0 0.0
    %1946 = vmatpush1.msra.mxu0 0.0
    %1947 = vmatprep.subr.mxu0 0.0
    %1948 = vmatpush1.msra.mxu0 0.0
    %1949 = vmatprep.subr.mxu0 0.0
    %1950 = vmatpush1.msra.mxu0 0.0
    %1951 = vmatprep.subr.mxu0 0.0
    %1952 = vmatpush1.msra.mxu0 0.0
    %1953 = vmatprep.subr.mxu0 0.0
    %1954 = vmatpush1.msra.mxu0 0.0
    %1955 = vmatprep.subr.mxu0 0.0
    %1956 = vmatpush1.msra.mxu0 0.0
    %1957 = vmatprep.subr.mxu0 0.0
    %1958 = vmatpush1.msra.mxu0 0.0
    %1959 = vmatprep.subr.mxu0 0.0
    %1960 = vmatpush1.msra.mxu0 0.0
    %1961 = vmatprep.subr.mxu0 0.0
    %1962 = vmatpush1.msra.mxu0 0.0
    %1963 = vmatprep.subr.mxu0 0.0
    %1964 = vmatpush1.msra.mxu0 0.0
    %1965 = vmatprep.subr.mxu0 0.0
    %1966 = vmatpush1.msra.mxu0 0.0
    %1967 = vmatprep.subr.mxu0 0.0
    %1968 = vmatpush1.msra.mxu0 0.0
    %1969 = vmatprep.subr.mxu0 0.0
    %1970 = vmatpush1.msra.mxu0 0.0
    %1971 = vmatprep.subr.mxu0 0.0
    %1972 = vmatpush1.msra.mxu0 0.0
    %1973 = vmatprep.subr.mxu0 0.0
    %1974 = vmatpush1.msra.mxu0 0.0
    %1975 = vmatprep.subr.mxu0 0.0
    %1976 = vmatpush1.msra.mxu0 0.0
    %1977 = vmatprep.subr.mxu0 0.0
    %1978 = vmatpush1.msra.mxu0 0.0
    %1979 = vmatprep.subr.mxu0 0.0
    %1980 = vmatpush1.msra.mxu0 0.0
    %1981 = vmatprep.subr.mxu0 0.0
    %1982 = vmatpush1.msra.mxu0 0.0
    %1983 = vmatprep.subr.mxu0 0.0
    %1984 = vmatpush1.msra.mxu0 0.0
    %1985 = vmatprep.subr.mxu0 0.0
    %1986 = vmatpush1.msra.mxu0 0.0
    %1987 = vmatprep.subr.mxu0 0.0
    %1988 = vmatpush1.msra.mxu0 0.0
    %1989 = vmatprep.subr.mxu0 0.0
    %1990 = vmatpush1.msra.mxu0 0.0
    %1991 = vmatprep.mubr.f32.mxu0 0.0
    %1992 = vmatmul.mubr.f32.gmra.mrb[0].mxu0 %v1919
    %v1993 = vpop.f32.mrb[0].mxu0
    %v1994 = vadd.f32 0.0, %v1993
    %v1995 = vpop.f32.mrb[0].mxu0
    %v1996 = vadd.f32 0.0, %v1995
    %1997 = vdwg.mxu0
    %v1999 = vsel %vm128, %v1896, 0
    %v2002 = vsel %vm42, %v1894, 0
    %v2005 = vsel %vm42, %v1895, 0
    %2007 = vmatprep.subr.mxu0 %v2005
    %2008 = vmatpush1.msra.mxu0 %v2002
    %2009 = vmatprep.subr.mxu0 0.0
    %2010 = vmatpush1.msra.mxu0 0.0
    %2011 = vmatprep.subr.mxu0 0.0
    %2012 = vmatpush1.msra.mxu0 0.0
    %2013 = vmatprep.subr.mxu0 0.0
    %2014 = vmatpush1.msra.mxu0 0.0
    %2015 = vmatprep.subr.mxu0 0.0
    %2016 = vmatpush1.msra.mxu0 0.0
    %2017 = vmatprep.subr.mxu0 0.0
    %2018 = vmatpush1.msra.mxu0 0.0
    %2019 = vmatprep.subr.mxu0 0.0
    %2020 = vmatpush1.msra.mxu0 0.0
    %2021 = vmatprep.subr.mxu0 0.0
    %2022 = vmatpush1.msra.mxu0 0.0
    %2023 = vmatprep.subr.mxu0 0.0
    %2024 = vmatpush1.msra.mxu0 0.0
    %2025 = vmatprep.subr.mxu0 0.0
    %2026 = vmatpush1.msra.mxu0 0.0
    %2027 = vmatprep.subr.mxu0 0.0
    %2028 = vmatpush1.msra.mxu0 0.0
    %2029 = vmatprep.subr.mxu0 0.0
    %2030 = vmatpush1.msra.mxu0 0.0
    %2031 = vmatprep.subr.mxu0 0.0
    %2032 = vmatpush1.msra.mxu0 0.0
    %2033 = vmatprep.subr.mxu0 0.0
    %2034 = vmatpush1.msra.mxu0 0.0
    %2035 = vmatprep.subr.mxu0 0.0
    %2036 = vmatpush1.msra.mxu0 0.0
    %2037 = vmatprep.subr.mxu0 0.0
    %2038 = vmatpush1.msra.mxu0 0.0
    %2039 = vmatprep.subr.mxu0 0.0
    %2040 = vmatpush1.msra.mxu0 0.0
    %2041 = vmatprep.subr.mxu0 0.0
    %2042 = vmatpush1.msra.mxu0 0.0
    %2043 = vmatprep.subr.mxu0 0.0
    %2044 = vmatpush1.msra.mxu0 0.0
    %2045 = vmatprep.subr.mxu0 0.0
    %2046 = vmatpush1.msra.mxu0 0.0
    %2047 = vmatprep.subr.mxu0 0.0
    %2048 = vmatpush1.msra.mxu0 0.0
    %2049 = vmatprep.subr.mxu0 0.0
    %2050 = vmatpush1.msra.mxu0 0.0
    %2051 = vmatprep.subr.mxu0 0.0
    %2052 = vmatpush1.msra.mxu0 0.0
    %2053 = vmatprep.subr.mxu0 0.0
    %2054 = vmatpush1.msra.mxu0 0.0
    %2055 = vmatprep.subr.mxu0 0.0
    %2056 = vmatpush1.msra.mxu0 0.0
    %2057 = vmatprep.subr.mxu0 0.0
    %2058 = vmatpush1.msra.mxu0 0.0
    %2059 = vmatprep.subr.mxu0 0.0
    %2060 = vmatpush1.msra.mxu0 0.0
    %2061 = vmatprep.subr.mxu0 0.0
    %2062 = vmatpush1.msra.mxu0 0.0
    %2063 = vmatprep.subr.mxu0 0.0
    %2064 = vmatpush1.msra.mxu0 0.0
    %2065 = vmatprep.subr.mxu0 0.0
    %2066 = vmatpush1.msra.mxu0 0.0
    %2067 = vmatprep.subr.mxu0 0.0
    %2068 = vmatpush1.msra.mxu0 0.0
    %2069 = vmatprep.subr.mxu0 0.0
    %2070 = vmatpush1.msra.mxu0 0.0
    %2071 = vmatprep.mubr.f32.mxu0 0.0
    %2072 = vmatmul.mubr.f32.gmra.mrb[0].mxu0 %v1999
    %v2073 = vpop.f32.mrb[0].mxu0
    %v2074 = vadd.f32 %v1994, %v2073
    %v2075 = vpop.f32.mrb[0].mxu0
    %v2076 = vadd.f32 %v1996, %v2075
    %2077 = vdwg.mxu0
    %2078 = vrot.lane.b32.xlu0 %v1874, 15
    %v2079 = vpop.permute.xlu0 %2078
    %2080 = vrot.lane.b32.xlu0 %v1875, 15
    %v2081 = vpop.permute.xlu0 %2080
    %v2082 = vsel %vm293, %v2079, %v2081
    %v2083 = vsel %vm293, %v2081, %v2079
    %v2084 = vld [vmem:[%s296] ss:$8 sm:$0x3]
    %v2086 = vlaneseq
    %v2087 = vshrl.u32 %v2086, 7
    %v2088 = vsub.s32 0, %v2087
    %v2089 = vrot.slane %v2084, %v2088
    %v2090 = vlaneseq
    %v2091 = vshrl.u32 %v2090, 7
    %v2092 = vsub.s32 1, %v2091
    %v2093 = vrot.slane %v2084, %v2092
    %v2096 = vmul.f32 %v2083, %v2089
    %v2097 = vmul.f32 %v2082, %v2093
    %v2098 = vld [vmem:[%s311] sm:$0xff]
    %v2100 = vsel %vm128, %v2098, 0
    %v2103 = vsel %vm42, %v2096, 0
    %v2106 = vsel %vm42, %v2097, 0
    %2108 = vmatprep.subr.mxu0 %v2106
    %2109 = vmatpush1.msra.mxu0 %v2103
    %2110 = vmatprep.subr.mxu0 0.0
    %2111 = vmatpush1.msra.mxu0 0.0
    %2112 = vmatprep.subr.mxu0 0.0
    %2113 = vmatpush1.msra.mxu0 0.0
    %2114 = vmatprep.subr.mxu0 0.0
    %2115 = vmatpush1.msra.mxu0 0.0
    %2116 = vmatprep.subr.mxu0 0.0
    %2117 = vmatpush1.msra.mxu0 0.0
    %2118 = vmatprep.subr.mxu0 0.0
    %2119 = vmatpush1.msra.mxu0 0.0
    %2120 = vmatprep.subr.mxu0 0.0
    %2121 = vmatpush1.msra.mxu0 0.0
    %2122 = vmatprep.subr.mxu0 0.0
    %2123 = vmatpush1.msra.mxu0 0.0
    %2124 = vmatprep.subr.mxu0 0.0
    %2125 = vmatpush1.msra.mxu0 0.0
    %2126 = vmatprep.subr.mxu0 0.0
    %2127 = vmatpush1.msra.mxu0 0.0
    %2128 = vmatprep.subr.mxu0 0.0
    %2129 = vmatpush1.msra.mxu0 0.0
    %2130 = vmatprep.subr.mxu0 0.0
    %2131 = vmatpush1.msra.mxu0 0.0
    %2132 = vmatprep.subr.mxu0 0.0
    %2133 = vmatpush1.msra.mxu0 0.0
    %2134 = vmatprep.subr.mxu0 0.0
    %2135 = vmatpush1.msra.mxu0 0.0
    %2136 = vmatprep.subr.mxu0 0.0
    %2137 = vmatpush1.msra.mxu0 0.0
    %2138 = vmatprep.subr.mxu0 0.0
    %2139 = vmatpush1.msra.mxu0 0.0
    %2140 = vmatprep.subr.mxu0 0.0
    %2141 = vmatpush1.msra.mxu0 0.0
    %2142 = vmatprep.subr.mxu0 0.0
    %2143 = vmatpush1.msra.mxu0 0.0
    %2144 = vmatprep.subr.mxu0 0.0
    %2145 = vmatpush1.msra.mxu0 0.0
    %2146 = vmatprep.subr.mxu0 0.0
    %2147 = vmatpush1.msra.mxu0 0.0
    %2148 = vmatprep.subr.mxu0 0.0
    %2149 = vmatpush1.msra.mxu0 0.0
    %2150 = vmatprep.subr.mxu0 0.0
    %2151 = vmatpush1.msra.mxu0 0.0
    %2152 = vmatprep.subr.mxu0 0.0
    %2153 = vmatpush1.msra.mxu0 0.0
    %2154 = vmatprep.subr.mxu0 0.0
    %2155 = vmatpush1.msra.mxu0 0.0
    %2156 = vmatprep.subr.mxu0 0.0
    %2157 = vmatpush1.msra.mxu0 0.0
    %2158 = vmatprep.subr.mxu0 0.0
    %2159 = vmatpush1.msra.mxu0 0.0
    %2160 = vmatprep.subr.mxu0 0.0
    %2161 = vmatpush1.msra.mxu0 0.0
    %2162 = vmatprep.subr.mxu0 0.0
    %2163 = vmatpush1.msra.mxu0 0.0
    %2164 = vmatprep.subr.mxu0 0.0
    %2165 = vmatpush1.msra.mxu0 0.0
    %2166 = vmatprep.subr.mxu0 0.0
    %2167 = vmatpush1.msra.mxu0 0.0
    %2168 = vmatprep.subr.mxu0 0.0
    %2169 = vmatpush1.msra.mxu0 0.0
    %2170 = vmatprep.subr.mxu0 0.0
    %2171 = vmatpush1.msra.mxu0 0.0
    %2172 = vmatprep.mubr.f32.mxu0 0.0
    %2173 = vmatmul.mubr.f32.gmra.mrb[0].mxu0 %v2100
    %v2174 = vpop.f32.mrb[0].mxu0
    %v2175 = vadd.f32 0.0, %v2174
    %v2176 = vpop.f32.mrb[0].mxu0
    %v2177 = vadd.f32 0.0, %v2176
    %2178 = vdwg.mxu0
    %v2179 = vadd.f32 %v2074, %v2175
    %v2180 = vadd.f32 %v2076, %v2177
    %2181 = vrot.lane.b32.xlu0 %v1874, 1
    %v2182 = vpop.permute.xlu0 %2181
    %2183 = vrot.lane.b32.xlu0 %v1875, 1
    %v2184 = vpop.permute.xlu0 %2183
    %v2185 = vsel %vm399, %v2182, %v2184
    %v2186 = vsel %vm399, %v2184, %v2182
    %v2187 = vld [vmem:[%s402] ss:$8 sm:$0x3]
    %v2189 = vlaneseq
    %v2190 = vshrl.u32 %v2189, 7
    %v2191 = vsub.s32 0, %v2190
    %v2192 = vrot.slane %v2187, %v2191
    %v2193 = vlaneseq
    %v2194 = vshrl.u32 %v2193, 7
    %v2195 = vsub.s32 1, %v2194
    %v2196 = vrot.slane %v2187, %v2195
    %v2199 = vmul.f32 %v2186, %v2192
    %v2200 = vmul.f32 %v2185, %v2196
    %v2201 = vld [vmem:[%s417] sm:$0xff]
    %v2203 = vsel %vm128, %v2201, 0
    %v2206 = vsel %vm42, %v2199, 0
    %v2209 = vsel %vm42, %v2200, 0
    %2211 = vmatprep.subr.mxu0 %v2209
    %2212 = vmatpush1.msra.mxu0 %v2206
    %2213 = vmatprep.subr.mxu0 0.0
    %2214 = vmatpush1.msra.mxu0 0.0
    %2215 = vmatprep.subr.mxu0 0.0
    %2216 = vmatpush1.msra.mxu0 0.0
    %2217 = vmatprep.subr.mxu0 0.0
    %2218 = vmatpush1.msra.mxu0 0.0
    %2219 = vmatprep.subr.mxu0 0.0
    %2220 = vmatpush1.msra.mxu0 0.0
    %2221 = vmatprep.subr.mxu0 0.0
    %2222 = vmatpush1.msra.mxu0 0.0
    %2223 = vmatprep.subr.mxu0 0.0
    %2224 = vmatpush1.msra.mxu0 0.0
    %2225 = vmatprep.subr.mxu0 0.0
    %2226 = vmatpush1.msra.mxu0 0.0
    %2227 = vmatprep.subr.mxu0 0.0
    %2228 = vmatpush1.msra.mxu0 0.0
    %2229 = vmatprep.subr.mxu0 0.0
    %2230 = vmatpush1.msra.mxu0 0.0
    %2231 = vmatprep.subr.mxu0 0.0
    %2232 = vmatpush1.msra.mxu0 0.0
    %2233 = vmatprep.subr.mxu0 0.0
    %2234 = vmatpush1.msra.mxu0 0.0
    %2235 = vmatprep.subr.mxu0 0.0
    %2236 = vmatpush1.msra.mxu0 0.0
    %2237 = vmatprep.subr.mxu0 0.0
    %2238 = vmatpush1.msra.mxu0 0.0
    %2239 = vmatprep.subr.mxu0 0.0
    %2240 = vmatpush1.msra.mxu0 0.0
    %2241 = vmatprep.subr.mxu0 0.0
    %2242 = vmatpush1.msra.mxu0 0.0
    %2243 = vmatprep.subr.mxu0 0.0
    %2244 = vmatpush1.msra.mxu0 0.0
    %2245 = vmatprep.subr.mxu0 0.0
    %2246 = vmatpush1.msra.mxu0 0.0
    %2247 = vmatprep.subr.mxu0 0.0
    %2248 = vmatpush1.msra.mxu0 0.0
    %2249 = vmatprep.subr.mxu0 0.0
    %2250 = vmatpush1.msra.mxu0 0.0
    %2251 = vmatprep.subr.mxu0 0.0
    %2252 = vmatpush1.msra.mxu0 0.0
    %2253 = vmatprep.subr.mxu0 0.0
    %2254 = vmatpush1.msra.mxu0 0.0
    %2255 = vmatprep.subr.mxu0 0.0
    %2256 = vmatpush1.msra.mxu0 0.0
    %2257 = vmatprep.subr.mxu0 0.0
    %2258 = vmatpush1.msra.mxu0 0.0
    %2259 = vmatprep.subr.mxu0 0.0
    %2260 = vmatpush1.msra.mxu0 0.0
    %2261 = vmatprep.subr.mxu0 0.0
    %2262 = vmatpush1.msra.mxu0 0.0
    %2263 = vmatprep.subr.mxu0 0.0
    %2264 = vmatpush1.msra.mxu0 0.0
    %2265 = vmatprep.subr.mxu0 0.0
    %2266 = vmatpush1.msra.mxu0 0.0
    %2267 = vmatprep.subr.mxu0 0.0
    %2268 = vmatpush1.msra.mxu0 0.0
    %2269 = vmatprep.subr.mxu0 0.0
    %2270 = vmatpush1.msra.mxu0 0.0
    %2271 = vmatprep.subr.mxu0 0.0
    %2272 = vmatpush1.msra.mxu0 0.0
    %2273 = vmatprep.subr.mxu0 0.0
    %2274 = vmatpush1.msra.mxu0 0.0
    %2275 = vmatprep.mubr.f32.mxu0 0.0
    %2276 = vmatmul.mubr.f32.gmra.mrb[0].mxu0 %v2203
    %v2277 = vpop.f32.mrb[0].mxu0
    %v2278 = vadd.f32 0.0, %v2277
    %v2279 = vpop.f32.mrb[0].mxu0
    %v2280 = vadd.f32 0.0, %v2279
    %2281 = vdwg.mxu0
    %v2282 = vadd.f32 %v2179, %v2278
    %v2283 = vadd.f32 %v2180, %v2280
    %v2284 = vld [vmem:[%s501] ss:$8 sm:$0x3]
    %v2286 = vlaneseq
    %v2287 = vshrl.u32 %v2286, 7
    %v2288 = vsub.s32 0, %v2287
    %v2289 = vrot.slane %v2284, %v2288
    %v2290 = vlaneseq
    %v2291 = vshrl.u32 %v2290, 7
    %v2292 = vsub.s32 1, %v2291
    %v2293 = vrot.slane %v2284, %v2292
    %v2296 = vmul.f32 %v1874, %v2289
    %v2297 = vmul.f32 %v1875, %v2293
    %v2298 = vld [vmem:[%s516] sm:$0xff]
    %v2300 = vsel %vm128, %v2298, 0
    %v2303 = vsel %vm42, %v2296, 0
    %v2306 = vsel %vm42, %v2297, 0
    %2308 = vmatprep.subr.mxu0 %v2306
    %2309 = vmatpush1.msra.mxu0 %v2303
    %2310 = vmatprep.subr.mxu0 0.0
    %2311 = vmatpush1.msra.mxu0 0.0
    %2312 = vmatprep.subr.mxu0 0.0
    %2313 = vmatpush1.msra.mxu0 0.0
    %2314 = vmatprep.subr.mxu0 0.0
    %2315 = vmatpush1.msra.mxu0 0.0
    %2316 = vmatprep.subr.mxu0 0.0
    %2317 = vmatpush1.msra.mxu0 0.0
    %2318 = vmatprep.subr.mxu0 0.0
    %2319 = vmatpush1.msra.mxu0 0.0
    %2320 = vmatprep.subr.mxu0 0.0
    %2321 = vmatpush1.msra.mxu0 0.0
    %2322 = vmatprep.subr.mxu0 0.0
    %2323 = vmatpush1.msra.mxu0 0.0
    %2324 = vmatprep.subr.mxu0 0.0
    %2325 = vmatpush1.msra.mxu0 0.0
    %2326 = vmatprep.subr.mxu0 0.0
    %2327 = vmatpush1.msra.mxu0 0.0
    %2328 = vmatprep.subr.mxu0 0.0
    %2329 = vmatpush1.msra.mxu0 0.0
    %2330 = vmatprep.subr.mxu0 0.0
    %2331 = vmatpush1.msra.mxu0 0.0
    %2332 = vmatprep.subr.mxu0 0.0
    %2333 = vmatpush1.msra.mxu0 0.0
    %2334 = vmatprep.subr.mxu0 0.0
    %2335 = vmatpush1.msra.mxu0 0.0
    %2336 = vmatprep.subr.mxu0 0.0
    %2337 = vmatpush1.msra.mxu0 0.0
    %2338 = vmatprep.subr.mxu0 0.0
    %2339 = vmatpush1.msra.mxu0 0.0
    %2340 = vmatprep.subr.mxu0 0.0
    %2341 = vmatpush1.msra.mxu0 0.0
    %2342 = vmatprep.subr.mxu0 0.0
    %2343 = vmatpush1.msra.mxu0 0.0
    %2344 = vmatprep.subr.mxu0 0.0
    %2345 = vmatpush1.msra.mxu0 0.0
    %2346 = vmatprep.subr.mxu0 0.0
    %2347 = vmatpush1.msra.mxu0 0.0
    %2348 = vmatprep.subr.mxu0 0.0
    %2349 = vmatpush1.msra.mxu0 0.0
    %2350 = vmatprep.subr.mxu0 0.0
    %2351 = vmatpush1.msra.mxu0 0.0
    %2352 = vmatprep.subr.mxu0 0.0
    %2353 = vmatpush1.msra.mxu0 0.0
    %2354 = vmatprep.subr.mxu0 0.0
    %2355 = vmatpush1.msra.mxu0 0.0
    %2356 = vmatprep.subr.mxu0 0.0
    %2357 = vmatpush1.msra.mxu0 0.0
    %2358 = vmatprep.subr.mxu0 0.0
    %2359 = vmatpush1.msra.mxu0 0.0
    %2360 = vmatprep.subr.mxu0 0.0
    %2361 = vmatpush1.msra.mxu0 0.0
    %2362 = vmatprep.subr.mxu0 0.0
    %2363 = vmatpush1.msra.mxu0 0.0
    %2364 = vmatprep.subr.mxu0 0.0
    %2365 = vmatpush1.msra.mxu0 0.0
    %2366 = vmatprep.subr.mxu0 0.0
    %2367 = vmatpush1.msra.mxu0 0.0
    %2368 = vmatprep.subr.mxu0 0.0
    %2369 = vmatpush1.msra.mxu0 0.0
    %2370 = vmatprep.subr.mxu0 0.0
    %2371 = vmatpush1.msra.mxu0 0.0
    %2372 = vmatprep.mubr.f32.mxu0 0.0
    %2373 = vmatmul.mubr.f32.gmra.mrb[0].mxu0 %v2300
    %v2374 = vpop.f32.mrb[0].mxu0
    %v2375 = vadd.f32 0.0, %v2374
    %v2376 = vpop.f32.mrb[0].mxu0
    %v2377 = vadd.f32 0.0, %v2376
    %2378 = vdwg.mxu0
    %v2379 = vadd.f32 %v2282, %v2375
    %v2380 = vadd.f32 %v2283, %v2377
    %2381 = vrot.lane.b32.xlu0 %v1874, 127
    %v2382 = vpop.permute.xlu0 %2381
    %2383 = vrot.lane.b32.xlu0 %v1875, 127
    %v2384 = vpop.permute.xlu0 %2383
    %v2385 = vsel %vm604, %v2382, %v2384
    %v2386 = vsel %vm604, %v2384, %v2382
    %v2387 = vld [vmem:[%s607] ss:$8 sm:$0x3]
    %v2389 = vlaneseq
    %v2390 = vshrl.u32 %v2389, 7
    %v2391 = vsub.s32 0, %v2390
    %v2392 = vrot.slane %v2387, %v2391
    %v2393 = vlaneseq
    %v2394 = vshrl.u32 %v2393, 7
    %v2395 = vsub.s32 1, %v2394
    %v2396 = vrot.slane %v2387, %v2395
    %v2399 = vmul.f32 %v2385, %v2392
    %v2400 = vmul.f32 %v2386, %v2396
    %v2401 = vld [vmem:[%s622] sm:$0xff]
    %v2403 = vsel %vm128, %v2401, 0
    %v2406 = vsel %vm42, %v2399, 0
    %v2409 = vsel %vm42, %v2400, 0
    %2411 = vmatprep.subr.mxu0 %v2409
    %2412 = vmatpush1.msra.mxu0 %v2406
    %2413 = vmatprep.subr.mxu0 0.0
    %2414 = vmatpush1.msra.mxu0 0.0
    %2415 = vmatprep.subr.mxu0 0.0
    %2416 = vmatpush1.msra.mxu0 0.0
    %2417 = vmatprep.subr.mxu0 0.0
    %2418 = vmatpush1.msra.mxu0 0.0
    %2419 = vmatprep.subr.mxu0 0.0
    %2420 = vmatpush1.msra.mxu0 0.0
    %2421 = vmatprep.subr.mxu0 0.0
    %2422 = vmatpush1.msra.mxu0 0.0
    %2423 = vmatprep.subr.mxu0 0.0
    %2424 = vmatpush1.msra.mxu0 0.0
    %2425 = vmatprep.subr.mxu0 0.0
    %2426 = vmatpush1.msra.mxu0 0.0
    %2427 = vmatprep.subr.mxu0 0.0
    %2428 = vmatpush1.msra.mxu0 0.0
    %2429 = vmatprep.subr.mxu0 0.0
    %2430 = vmatpush1.msra.mxu0 0.0
    %2431 = vmatprep.subr.mxu0 0.0
    %2432 = vmatpush1.msra.mxu0 0.0
    %2433 = vmatprep.subr.mxu0 0.0
    %2434 = vmatpush1.msra.mxu0 0.0
    %2435 = vmatprep.subr.mxu0 0.0
    %2436 = vmatpush1.msra.mxu0 0.0
    %2437 = vmatprep.subr.mxu0 0.0
    %2438 = vmatpush1.msra.mxu0 0.0
    %2439 = vmatprep.subr.mxu0 0.0
    %2440 = vmatpush1.msra.mxu0 0.0
    %2441 = vmatprep.subr.mxu0 0.0
    %2442 = vmatpush1.msra.mxu0 0.0
    %2443 = vmatprep.subr.mxu0 0.0
    %2444 = vmatpush1.msra.mxu0 0.0
    %2445 = vmatprep.subr.mxu0 0.0
    %2446 = vmatpush1.msra.mxu0 0.0
    %2447 = vmatprep.subr.mxu0 0.0
    %2448 = vmatpush1.msra.mxu0 0.0
    %2449 = vmatprep.subr.mxu0 0.0
    %2450 = vmatpush1.msra.mxu0 0.0
    %2451 = vmatprep.subr.mxu0 0.0
    %2452 = vmatpush1.msra.mxu0 0.0
    %2453 = vmatprep.subr.mxu0 0.0
    %2454 = vmatpush1.msra.mxu0 0.0
    %2455 = vmatprep.subr.mxu0 0.0
    %2456 = vmatpush1.msra.mxu0 0.0
    %2457 = vmatprep.subr.mxu0 0.0
    %2458 = vmatpush1.msra.mxu0 0.0
    %2459 = vmatprep.subr.mxu0 0.0
    %2460 = vmatpush1.msra.mxu0 0.0
    %2461 = vmatprep.subr.mxu0 0.0
    %2462 = vmatpush1.msra.mxu0 0.0
    %2463 = vmatprep.subr.mxu0 0.0
    %2464 = vmatpush1.msra.mxu0 0.0
    %2465 = vmatprep.subr.mxu0 0.0
    %2466 = vmatpush1.msra.mxu0 0.0
    %2467 = vmatprep.subr.mxu0 0.0
    %2468 = vmatpush1.msra.mxu0 0.0
    %2469 = vmatprep.subr.mxu0 0.0
    %2470 = vmatpush1.msra.mxu0 0.0
    %2471 = vmatprep.subr.mxu0 0.0
    %2472 = vmatpush1.msra.mxu0 0.0
    %2473 = vmatprep.subr.mxu0 0.0
    %2474 = vmatpush1.msra.mxu0 0.0
    %2475 = vmatprep.mubr.f32.mxu0 0.0
    %2476 = vmatmul.mubr.f32.gmra.mrb[0].mxu0 %v2403
    %v2477 = vpop.f32.mrb[0].mxu0
    %v2478 = vadd.f32 0.0, %v2477
    %v2479 = vpop.f32.mrb[0].mxu0
    %v2480 = vadd.f32 0.0, %v2479
    %2481 = vdwg.mxu0
    %v2482 = vadd.f32 %v2379, %v2478
    %v2483 = vadd.f32 %v2380, %v2480
    %2484 = vrot.lane.b32.xlu0 %v1874, 113
    %v2485 = vpop.permute.xlu0 %2484
    %2486 = vrot.lane.b32.xlu0 %v1875, 113
    %v2487 = vpop.permute.xlu0 %2486
    %v2488 = vsel %vm710, %v2485, %v2487
    %v2489 = vsel %vm710, %v2487, %v2485
    %v2490 = vld [vmem:[%s713] ss:$8 sm:$0x3]
    %v2492 = vlaneseq
    %v2493 = vshrl.u32 %v2492, 7
    %v2494 = vsub.s32 0, %v2493
    %v2495 = vrot.slane %v2490, %v2494
    %v2496 = vlaneseq
    %v2497 = vshrl.u32 %v2496, 7
    %v2498 = vsub.s32 1, %v2497
    %v2499 = vrot.slane %v2490, %v2498
    %v2502 = vmul.f32 %v2488, %v2495
    %v2503 = vmul.f32 %v2489, %v2499
    %v2504 = vld [vmem:[%s728] sm:$0xff]
    %v2506 = vsel %vm128, %v2504, 0
    %v2509 = vsel %vm42, %v2502, 0
    %v2512 = vsel %vm42, %v2503, 0
    %2514 = vmatprep.subr.mxu0 %v2512
    %2515 = vmatpush1.msra.mxu0 %v2509
    %2516 = vmatprep.subr.mxu0 0.0
    %2517 = vmatpush1.msra.mxu0 0.0
    %2518 = vmatprep.subr.mxu0 0.0
    %2519 = vmatpush1.msra.mxu0 0.0
    %2520 = vmatprep.subr.mxu0 0.0
    %2521 = vmatpush1.msra.mxu0 0.0
    %2522 = vmatprep.subr.mxu0 0.0
    %2523 = vmatpush1.msra.mxu0 0.0
    %2524 = vmatprep.subr.mxu0 0.0
    %2525 = vmatpush1.msra.mxu0 0.0
    %2526 = vmatprep.subr.mxu0 0.0
    %2527 = vmatpush1.msra.mxu0 0.0
    %2528 = vmatprep.subr.mxu0 0.0
    %2529 = vmatpush1.msra.mxu0 0.0
    %2530 = vmatprep.subr.mxu0 0.0
    %2531 = vmatpush1.msra.mxu0 0.0
    %2532 = vmatprep.subr.mxu0 0.0
    %2533 = vmatpush1.msra.mxu0 0.0
    %2534 = vmatprep.subr.mxu0 0.0
    %2535 = vmatpush1.msra.mxu0 0.0
    %2536 = vmatprep.subr.mxu0 0.0
    %2537 = vmatpush1.msra.mxu0 0.0
    %2538 = vmatprep.subr.mxu0 0.0
    %2539 = vmatpush1.msra.mxu0 0.0
    %2540 = vmatprep.subr.mxu0 0.0
    %2541 = vmatpush1.msra.mxu0 0.0
    %2542 = vmatprep.subr.mxu0 0.0
    %2543 = vmatpush1.msra.mxu0 0.0
    %2544 = vmatprep.subr.mxu0 0.0
    %2545 = vmatpush1.msra.mxu0 0.0
    %2546 = vmatprep.subr.mxu0 0.0
    %2547 = vmatpush1.msra.mxu0 0.0
    %2548 = vmatprep.subr.mxu0 0.0
    %2549 = vmatpush1.msra.mxu0 0.0
    %2550 = vmatprep.subr.mxu0 0.0
    %2551 = vmatpush1.msra.mxu0 0.0
    %2552 = vmatprep.subr.mxu0 0.0
    %2553 = vmatpush1.msra.mxu0 0.0
    %2554 = vmatprep.subr.mxu0 0.0
    %2555 = vmatpush1.msra.mxu0 0.0
    %2556 = vmatprep.subr.mxu0 0.0
    %2557 = vmatpush1.msra.mxu0 0.0
    %2558 = vmatprep.subr.mxu0 0.0
    %2559 = vmatpush1.msra.mxu0 0.0
    %2560 = vmatprep.subr.mxu0 0.0
    %2561 = vmatpush1.msra.mxu0 0.0
    %2562 = vmatprep.subr.mxu0 0.0
    %2563 = vmatpush1.msra.mxu0 0.0
    %2564 = vmatprep.subr.mxu0 0.0
    %2565 = vmatpush1.msra.mxu0 0.0
    %2566 = vmatprep.subr.mxu0 0.0
    %2567 = vmatpush1.msra.mxu0 0.0
    %2568 = vmatprep.subr.mxu0 0.0
    %2569 = vmatpush1.msra.mxu0 0.0
    %2570 = vmatprep.subr.mxu0 0.0
    %2571 = vmatpush1.msra.mxu0 0.0
    %2572 = vmatprep.subr.mxu0 0.0
    %2573 = vmatpush1.msra.mxu0 0.0
    %2574 = vmatprep.subr.mxu0 0.0
    %2575 = vmatpush1.msra.mxu0 0.0
    %2576 = vmatprep.subr.mxu0 0.0
    %2577 = vmatpush1.msra.mxu0 0.0
    %2578 = vmatprep.mubr.f32.mxu0 0.0
    %2579 = vmatmul.mubr.f32.gmra.mrb[0].mxu0 %v2506
    %v2580 = vpop.f32.mrb[0].mxu0
    %v2581 = vadd.f32 0.0, %v2580
    %v2582 = vpop.f32.mrb[0].mxu0
    %v2583 = vadd.f32 0.0, %v2582
    %2584 = vdwg.mxu0
    %v2585 = vadd.f32 %v2482, %v2581
    %v2586 = vadd.f32 %v2483, %v2583
    %2587 = vrot.lane.b32.xlu0 %v1874, 112
    %v2588 = vpop.permute.xlu0 %2587
    %2589 = vrot.lane.b32.xlu0 %v1875, 112
    %v2590 = vpop.permute.xlu0 %2589
    %v2591 = vsel %vm816, %v2588, %v2590
    %v2592 = vsel %vm816, %v2590, %v2588
    %v2593 = vld [vmem:[%s819] ss:$8 sm:$0x3]
    %v2595 = vlaneseq
    %v2596 = vshrl.u32 %v2595, 7
    %v2597 = vsub.s32 0, %v2596
    %v2598 = vrot.slane %v2593, %v2597
    %v2599 = vlaneseq
    %v2600 = vshrl.u32 %v2599, 7
    %v2601 = vsub.s32 1, %v2600
    %v2602 = vrot.slane %v2593, %v2601
    %v2605 = vmul.f32 %v2591, %v2598
    %v2606 = vmul.f32 %v2592, %v2602
    %v2607 = vld [vmem:[%s834] sm:$0xff]
    %v2609 = vsel %vm128, %v2607, 0
    %v2612 = vsel %vm42, %v2605, 0
    %v2615 = vsel %vm42, %v2606, 0
    %2617 = vmatprep.subr.mxu0 %v2615
    %2618 = vmatpush1.msra.mxu0 %v2612
    %2619 = vmatprep.subr.mxu0 0.0
    %2620 = vmatpush1.msra.mxu0 0.0
    %2621 = vmatprep.subr.mxu0 0.0
    %2622 = vmatpush1.msra.mxu0 0.0
    %2623 = vmatprep.subr.mxu0 0.0
    %2624 = vmatpush1.msra.mxu0 0.0
    %2625 = vmatprep.subr.mxu0 0.0
    %2626 = vmatpush1.msra.mxu0 0.0
    %2627 = vmatprep.subr.mxu0 0.0
    %2628 = vmatpush1.msra.mxu0 0.0
    %2629 = vmatprep.subr.mxu0 0.0
    %2630 = vmatpush1.msra.mxu0 0.0
    %2631 = vmatprep.subr.mxu0 0.0
    %2632 = vmatpush1.msra.mxu0 0.0
    %2633 = vmatprep.subr.mxu0 0.0
    %2634 = vmatpush1.msra.mxu0 0.0
    %2635 = vmatprep.subr.mxu0 0.0
    %2636 = vmatpush1.msra.mxu0 0.0
    %2637 = vmatprep.subr.mxu0 0.0
    %2638 = vmatpush1.msra.mxu0 0.0
    %2639 = vmatprep.subr.mxu0 0.0
    %2640 = vmatpush1.msra.mxu0 0.0
    %2641 = vmatprep.subr.mxu0 0.0
    %2642 = vmatpush1.msra.mxu0 0.0
    %2643 = vmatprep.subr.mxu0 0.0
    %2644 = vmatpush1.msra.mxu0 0.0
    %2645 = vmatprep.subr.mxu0 0.0
    %2646 = vmatpush1.msra.mxu0 0.0
    %2647 = vmatprep.subr.mxu0 0.0
    %2648 = vmatpush1.msra.mxu0 0.0
    %2649 = vmatprep.subr.mxu0 0.0
    %2650 = vmatpush1.msra.mxu0 0.0
    %2651 = vmatprep.subr.mxu0 0.0
    %2652 = vmatpush1.msra.mxu0 0.0
    %2653 = vmatprep.subr.mxu0 0.0
    %2654 = vmatpush1.msra.mxu0 0.0
    %2655 = vmatprep.subr.mxu0 0.0
    %2656 = vmatpush1.msra.mxu0 0.0
    %2657 = vmatprep.subr.mxu0 0.0
    %2658 = vmatpush1.msra.mxu0 0.0
    %2659 = vmatprep.subr.mxu0 0.0
    %2660 = vmatpush1.msra.mxu0 0.0
    %2661 = vmatprep.subr.mxu0 0.0
    %2662 = vmatpush1.msra.mxu0 0.0
    %2663 = vmatprep.subr.mxu0 0.0
    %2664 = vmatpush1.msra.mxu0 0.0
    %2665 = vmatprep.subr.mxu0 0.0
    %2666 = vmatpush1.msra.mxu0 0.0
    %2667 = vmatprep.subr.mxu0 0.0
    %2668 = vmatpush1.msra.mxu0 0.0
    %2669 = vmatprep.subr.mxu0 0.0
    %2670 = vmatpush1.msra.mxu0 0.0
    %2671 = vmatprep.subr.mxu0 0.0
    %2672 = vmatpush1.msra.mxu0 0.0
    %2673 = vmatprep.subr.mxu0 0.0
    %2674 = vmatpush1.msra.mxu0 0.0
    %2675 = vmatprep.subr.mxu0 0.0
    %2676 = vmatpush1.msra.mxu0 0.0
    %2677 = vmatprep.subr.mxu0 0.0
    %2678 = vmatpush1.msra.mxu0 0.0
    %2679 = vmatprep.subr.mxu0 0.0
    %2680 = vmatpush1.msra.mxu0 0.0
    %2681 = vmatprep.mubr.f32.mxu0 0.0
    %2682 = vmatmul.mubr.f32.gmra.mrb[0].mxu0 %v2609
    %v2683 = vpop.f32.mrb[0].mxu0
    %v2684 = vadd.f32 0.0, %v2683
    %v2685 = vpop.f32.mrb[0].mxu0
    %v2686 = vadd.f32 0.0, %v2685
    %2687 = vdwg.mxu0
    %v2688 = vadd.f32 %v2585, %v2684
    %v2689 = vadd.f32 %v2586, %v2686
    %2690 = vrot.lane.b32.xlu0 %v1874, 111
    %v2691 = vpop.permute.xlu0 %2690
    %2692 = vrot.lane.b32.xlu0 %v1875, 111
    %v2693 = vpop.permute.xlu0 %2692
    %v2694 = vsel %vm922, %v2691, %v2693
    %v2695 = vsel %vm922, %v2693, %v2691
    %v2696 = vld [vmem:[%s925] ss:$8 sm:$0x3]
    %v2698 = vlaneseq
    %v2699 = vshrl.u32 %v2698, 7
    %v2700 = vsub.s32 0, %v2699
    %v2701 = vrot.slane %v2696, %v2700
    %v2702 = vlaneseq
    %v2703 = vshrl.u32 %v2702, 7
    %v2704 = vsub.s32 1, %v2703
    %v2705 = vrot.slane %v2696, %v2704
    %v2708 = vmul.f32 %v2694, %v2701
    %v2709 = vmul.f32 %v2695, %v2705
    %v2710 = vld [vmem:[%s940] sm:$0xff]
    %v2712 = vsel %vm128, %v2710, 0
    %v2715 = vsel %vm42, %v2708, 0
    %v2718 = vsel %vm42, %v2709, 0
    %2720 = vmatprep.subr.mxu0 %v2718
    %2721 = vmatpush1.msra.mxu0 %v2715
    %2722 = vmatprep.subr.mxu0 0.0
    %2723 = vmatpush1.msra.mxu0 0.0
    %2724 = vmatprep.subr.mxu0 0.0
    %2725 = vmatpush1.msra.mxu0 0.0
    %2726 = vmatprep.subr.mxu0 0.0
    %2727 = vmatpush1.msra.mxu0 0.0
    %2728 = vmatprep.subr.mxu0 0.0
    %2729 = vmatpush1.msra.mxu0 0.0
    %2730 = vmatprep.subr.mxu0 0.0
    %2731 = vmatpush1.msra.mxu0 0.0
    %2732 = vmatprep.subr.mxu0 0.0
    %2733 = vmatpush1.msra.mxu0 0.0
    %2734 = vmatprep.subr.mxu0 0.0
    %2735 = vmatpush1.msra.mxu0 0.0
    %2736 = vmatprep.subr.mxu0 0.0
    %2737 = vmatpush1.msra.mxu0 0.0
    %2738 = vmatprep.subr.mxu0 0.0
    %2739 = vmatpush1.msra.mxu0 0.0
    %2740 = vmatprep.subr.mxu0 0.0
    %2741 = vmatpush1.msra.mxu0 0.0
    %2742 = vmatprep.subr.mxu0 0.0
    %2743 = vmatpush1.msra.mxu0 0.0
    %2744 = vmatprep.subr.mxu0 0.0
    %2745 = vmatpush1.msra.mxu0 0.0
    %2746 = vmatprep.subr.mxu0 0.0
    %2747 = vmatpush1.msra.mxu0 0.0
    %2748 = vmatprep.subr.mxu0 0.0
    %2749 = vmatpush1.msra.mxu0 0.0
    %2750 = vmatprep.subr.mxu0 0.0
    %2751 = vmatpush1.msra.mxu0 0.0
    %2752 = vmatprep.subr.mxu0 0.0
    %2753 = vmatpush1.msra.mxu0 0.0
    %2754 = vmatprep.subr.mxu0 0.0
    %2755 = vmatpush1.msra.mxu0 0.0
    %2756 = vmatprep.subr.mxu0 0.0
    %2757 = vmatpush1.msra.mxu0 0.0
    %2758 = vmatprep.subr.mxu0 0.0
    %2759 = vmatpush1.msra.mxu0 0.0
    %2760 = vmatprep.subr.mxu0 0.0
    %2761 = vmatpush1.msra.mxu0 0.0
    %2762 = vmatprep.subr.mxu0 0.0
    %2763 = vmatpush1.msra.mxu0 0.0
    %2764 = vmatprep.subr.mxu0 0.0
    %2765 = vmatpush1.msra.mxu0 0.0
    %2766 = vmatprep.subr.mxu0 0.0
    %2767 = vmatpush1.msra.mxu0 0.0
    %2768 = vmatprep.subr.mxu0 0.0
    %2769 = vmatpush1.msra.mxu0 0.0
    %2770 = vmatprep.subr.mxu0 0.0
    %2771 = vmatpush1.msra.mxu0 0.0
    %2772 = vmatprep.subr.mxu0 0.0
    %2773 = vmatpush1.msra.mxu0 0.0
    %2774 = vmatprep.subr.mxu0 0.0
    %2775 = vmatpush1.msra.mxu0 0.0
    %2776 = vmatprep.subr.mxu0 0.0
    %2777 = vmatpush1.msra.mxu0 0.0
    %2778 = vmatprep.subr.mxu0 0.0
    %2779 = vmatpush1.msra.mxu0 0.0
    %2780 = vmatprep.subr.mxu0 0.0
    %2781 = vmatpush1.msra.mxu0 0.0
    %2782 = vmatprep.subr.mxu0 0.0
    %2783 = vmatpush1.msra.mxu0 0.0
    %2784 = vmatprep.mubr.f32.mxu0 0.0
    %2785 = vmatmul.mubr.f32.gmra.mrb[0].mxu0 %v2712
    %v2786 = vpop.f32.mrb[0].mxu0
    %v2787 = vadd.f32 0.0, %v2786
    %v2788 = vpop.f32.mrb[0].mxu0
    %v2789 = vadd.f32 0.0, %v2788
    %2790 = vdwg.mxu0
    %v2791 = vadd.f32 %v2688, %v2787
    %v2792 = vadd.f32 %v2689, %v2789
    %v2793 = vld [vmem:[%s5] sm:$0xff]
    %2795 = vset.pattern.permute.xlu0 0
    %2796 = vperm.xlu0 %2795, %v2793
    %v2797 = vpop.permute.xlu0 %2796
    %v2799 = vadd.f32 %v2791, %v2797
    %v2800 = vadd.f32 %v2792, %v2797
    %s2801 = scalar_lea.vmem %s6, 8
    %v2802 = vld [vmem:[%s2801] sm:$0xff]
    %v2803 = vmul.f32 %v2799, %v2799
    %v2804 = vmul.f32 %v2800, %v2800
    %v2805 = vadd.f32 %v2803, %v2804
    %2806 = vadd.xlane.f32.xlu0 %v2805
    %v2807 = vpop.xlane.xlu0 %2806
    %v2808 = vmul.f32 %v2807, %v48
    %v2809 = vadd.f32 %v2808, 1e-05
    %v2810 = vrsqrt.pop %v2809
    %v2811 = vmul.f32 %v2799, %v2810
    %v2812 = vmul.f32 %v2800, %v2810
    %2814 = vset.pattern.permute.xlu0 0
    %2815 = vperm.xlu0 %2814, %v2802
    %v2816 = vpop.permute.xlu0 %2815
    %v2818 = vmul.f32 %v2816, %v2811
    %v2819 = vmul.f32 %v2816, %v2812
    %v2820 = vld [vmem:[%s7] sm:$0xff]
    %2822 = vset.pattern.permute.xlu0 0
    %2823 = vperm.xlu0 %2822, %v2820
    %v2824 = vpop.permute.xlu0 %2823
    %v2826 = vmax.f32 %v2818, %v2824
    %v2827 = vmax.f32 %v2819, %v2824
    %2828 = vrot.lane.b32.xlu0 %v2826, 17
    %v2829 = vpop.permute.xlu0 %2828
    %2830 = vrot.lane.b32.xlu0 %v2827, 17
    %v2831 = vpop.permute.xlu0 %2830
    %v2832 = vsel %vm86, %v2829, %v2831
    %v2833 = vsel %vm86, %v2831, %v2829
    %v2834 = vmul.f32 %v2833, %v1887
    %v2835 = vmul.f32 %v2832, %v1891
    %v2836 = vld [vmem:[%s8] sm:$0xff]
    %2837 = vrot.lane.b32.xlu0 %v2826, 16
    %v2838 = vpop.permute.xlu0 %2837
    %2839 = vrot.lane.b32.xlu0 %v2827, 16
    %v2840 = vpop.permute.xlu0 %2839
    %v2841 = vsel %vm108, %v2838, %v2840
    %v2842 = vsel %vm108, %v2840, %v2838
    %v2843 = vmul.f32 %v2842, %v1908
    %v2844 = vmul.f32 %v2841, %v1912
    %v2845 = vld [vmem:[%s1075] sm:$0xff]
    %v2847 = vsel %vm1077, %v2845, 0
    %2849 = vmatprep.subr.mxu0 %v2844
    %2850 = vmatpush1.msra.mxu0 %v2843
    %2851 = vmatprep.subr.mxu0 0.0
    %2852 = vmatpush1.msra.mxu0 0.0
    %2853 = vmatprep.subr.mxu0 0.0
    %2854 = vmatpush1.msra.mxu0 0.0
    %2855 = vmatprep.subr.mxu0 0.0
    %2856 = vmatpush1.msra.mxu0 0.0
    %2857 = vmatprep.subr.mxu0 0.0
    %2858 = vmatpush1.msra.mxu0 0.0
    %2859 = vmatprep.subr.mxu0 0.0
    %2860 = vmatpush1.msra.mxu0 0.0
    %2861 = vmatprep.subr.mxu0 0.0
    %2862 = vmatpush1.msra.mxu0 0.0
    %2863 = vmatprep.subr.mxu0 0.0
    %2864 = vmatpush1.msra.mxu0 0.0
    %2865 = vmatprep.subr.mxu0 0.0
    %2866 = vmatpush1.msra.mxu0 0.0
    %2867 = vmatprep.subr.mxu0 0.0
    %2868 = vmatpush1.msra.mxu0 0.0
    %2869 = vmatprep.subr.mxu0 0.0
    %2870 = vmatpush1.msra.mxu0 0.0
    %2871 = vmatprep.subr.mxu0 0.0
    %2872 = vmatpush1.msra.mxu0 0.0
    %2873 = vmatprep.subr.mxu0 0.0
    %2874 = vmatpush1.msra.mxu0 0.0
    %2875 = vmatprep.subr.mxu0 0.0
    %2876 = vmatpush1.msra.mxu0 0.0
    %2877 = vmatprep.subr.mxu0 0.0
    %2878 = vmatpush1.msra.mxu0 0.0
    %2879 = vmatprep.subr.mxu0 0.0
    %2880 = vmatpush1.msra.mxu0 0.0
    %2881 = vmatprep.subr.mxu0 0.0
    %2882 = vmatpush1.msra.mxu0 0.0
    %2883 = vmatprep.subr.mxu0 0.0
    %2884 = vmatpush1.msra.mxu0 0.0
    %2885 = vmatprep.subr.mxu0 0.0
    %2886 = vmatpush1.msra.mxu0 0.0
    %2887 = vmatprep.subr.mxu0 0.0
    %2888 = vmatpush1.msra.mxu0 0.0
    %2889 = vmatprep.subr.mxu0 0.0
    %2890 = vmatpush1.msra.mxu0 0.0
    %2891 = vmatprep.subr.mxu0 0.0
    %2892 = vmatpush1.msra.mxu0 0.0
    %2893 = vmatprep.subr.mxu0 0.0
    %2894 = vmatpush1.msra.mxu0 0.0
    %2895 = vmatprep.subr.mxu0 0.0
    %2896 = vmatpush1.msra.mxu0 0.0
    %2897 = vmatprep.subr.mxu0 0.0
    %2898 = vmatpush1.msra.mxu0 0.0
    %2899 = vmatprep.subr.mxu0 0.0
    %2900 = vmatpush1.msra.mxu0 0.0
    %2901 = vmatprep.subr.mxu0 0.0
    %2902 = vmatpush1.msra.mxu0 0.0
    %2903 = vmatprep.subr.mxu0 0.0
    %2904 = vmatpush1.msra.mxu0 0.0
    %2905 = vmatprep.subr.mxu0 0.0
    %2906 = vmatpush1.msra.mxu0 0.0
    %2907 = vmatprep.subr.mxu0 0.0
    %2908 = vmatpush1.msra.mxu0 0.0
    %2909 = vmatprep.subr.mxu0 0.0
    %2910 = vmatpush1.msra.mxu0 0.0
    %2911 = vmatprep.subr.mxu0 0.0
    %2912 = vmatpush1.msra.mxu0 0.0
    %2913 = vmatprep.mubr.f32.mxu0 0.0
    %2914 = vmatmul.mubr.f32.gmra.mrb[0].mxu0 %v2847
    %v2915 = vpop.f32.mrb[0].mxu0
    %v2916 = vadd.f32 0.0, %v2915
    %v2917 = vpop.f32.mrb[0].mxu0
    %v2918 = vadd.f32 0.0, %v2917
    %2919 = vdwg.mxu0
    %v2921 = vsel %vm1077, %v2836, 0
    %2923 = vmatprep.subr.mxu0 %v2835
    %2924 = vmatpush1.msra.mxu0 %v2834
    %2925 = vmatprep.subr.mxu0 0.0
    %2926 = vmatpush1.msra.mxu0 0.0
    %2927 = vmatprep.subr.mxu0 0.0
    %2928 = vmatpush1.msra.mxu0 0.0
    %2929 = vmatprep.subr.mxu0 0.0
    %2930 = vmatpush1.msra.mxu0 0.0
    %2931 = vmatprep.subr.mxu0 0.0
    %2932 = vmatpush1.msra.mxu0 0.0
    %2933 = vmatprep.subr.mxu0 0.0
    %2934 = vmatpush1.msra.mxu0 0.0
    %2935 = vmatprep.subr.mxu0 0.0
    %2936 = vmatpush1.msra.mxu0 0.0
    %2937 = vmatprep.subr.mxu0 0.0
    %2938 = vmatpush1.msra.mxu0 0.0
    %2939 = vmatprep.subr.mxu0 0.0
    %2940 = vmatpush1.msra.mxu0 0.0
    %2941 = vmatprep.subr.mxu0 0.0
    %2942 = vmatpush1.msra.mxu0 0.0
    %2943 = vmatprep.subr.mxu0 0.0
    %2944 = vmatpush1.msra.mxu0 0.0
    %2945 = vmatprep.subr.mxu0 0.0
    %2946 = vmatpush1.msra.mxu0 0.0
    %2947 = vmatprep.subr.mxu0 0.0
    %2948 = vmatpush1.msra.mxu0 0.0
    %2949 = vmatprep.subr.mxu0 0.0
    %2950 = vmatpush1.msra.mxu0 0.0
    %2951 = vmatprep.subr.mxu0 0.0
    %2952 = vmatpush1.msra.mxu0 0.0
    %2953 = vmatprep.subr.mxu0 0.0
    %2954 = vmatpush1.msra.mxu0 0.0
    %2955 = vmatprep.subr.mxu0 0.0
    %2956 = vmatpush1.msra.mxu0 0.0
    %2957 = vmatprep.subr.mxu0 0.0
    %2958 = vmatpush1.msra.mxu0 0.0
    %2959 = vmatprep.subr.mxu0 0.0
    %2960 = vmatpush1.msra.mxu0 0.0
    %2961 = vmatprep.subr.mxu0 0.0
    %2962 = vmatpush1.msra.mxu0 0.0
    %2963 = vmatprep.subr.mxu0 0.0
    %2964 = vmatpush1.msra.mxu0 0.0
    %2965 = vmatprep.subr.mxu0 0.0
    %2966 = vmatpush1.msra.mxu0 0.0
    %2967 = vmatprep.subr.mxu0 0.0
    %2968 = vmatpush1.msra.mxu0 0.0
    %2969 = vmatprep.subr.mxu0 0.0
    %2970 = vmatpush1.msra.mxu0 0.0
    %2971 = vmatprep.subr.mxu0 0.0
    %2972 = vmatpush1.msra.mxu0 0.0
    %2973 = vmatprep.subr.mxu0 0.0
    %2974 = vmatpush1.msra.mxu0 0.0
    %2975 = vmatprep.subr.mxu0 0.0
    %2976 = vmatpush1.msra.mxu0 0.0
    %2977 = vmatprep.subr.mxu0 0.0
    %2978 = vmatpush1.msra.mxu0 0.0
    %2979 = vmatprep.subr.mxu0 0.0
    %2980 = vmatpush1.msra.mxu0 0.0
    %2981 = vmatprep.subr.mxu0 0.0
    %2982 = vmatpush1.msra.mxu0 0.0
    %2983 = vmatprep.subr.mxu0 0.0
    %2984 = vmatpush1.msra.mxu0 0.0
    %2985 = vmatprep.subr.mxu0 0.0
    %2986 = vmatpush1.msra.mxu0 0.0
    %2987 = vmatprep.mubr.f32.mxu0 0.0
    %2988 = vmatmul.mubr.f32.gmra.mrb[0].mxu0 %v2921
    %v2989 = vpop.f32.mrb[0].mxu0
    %v2990 = vadd.f32 %v2916, %v2989
    %v2991 = vpop.f32.mrb[0].mxu0
    %v2992 = vadd.f32 %v2918, %v2991
    %2993 = vdwg.mxu0
    %2994 = vrot.lane.b32.xlu0 %v2826, 15
    %v2995 = vpop.permute.xlu0 %2994
    %2996 = vrot.lane.b32.xlu0 %v2827, 15
    %v2997 = vpop.permute.xlu0 %2996
    %v2998 = vsel %vm293, %v2995, %v2997
    %v2999 = vsel %vm293, %v2997, %v2995
    %v3000 = vmul.f32 %v2999, %v2089
    %v3001 = vmul.f32 %v2998, %v2093
    %v3002 = vld [vmem:[%s1234] sm:$0xff]
    %v3004 = vsel %vm1077, %v3002, 0
    %3006 = vmatprep.subr.mxu0 %v3001
    %3007 = vmatpush1.msra.mxu0 %v3000
    %3008 = vmatprep.subr.mxu0 0.0
    %3009 = vmatpush1.msra.mxu0 0.0
    %3010 = vmatprep.subr.mxu0 0.0
    %3011 = vmatpush1.msra.mxu0 0.0
    %3012 = vmatprep.subr.mxu0 0.0
    %3013 = vmatpush1.msra.mxu0 0.0
    %3014 = vmatprep.subr.mxu0 0.0
    %3015 = vmatpush1.msra.mxu0 0.0
    %3016 = vmatprep.subr.mxu0 0.0
    %3017 = vmatpush1.msra.mxu0 0.0
    %3018 = vmatprep.subr.mxu0 0.0
    %3019 = vmatpush1.msra.mxu0 0.0
    %3020 = vmatprep.subr.mxu0 0.0
    %3021 = vmatpush1.msra.mxu0 0.0
    %3022 = vmatprep.subr.mxu0 0.0
    %3023 = vmatpush1.msra.mxu0 0.0
    %3024 = vmatprep.subr.mxu0 0.0
    %3025 = vmatpush1.msra.mxu0 0.0
    %3026 = vmatprep.subr.mxu0 0.0
    %3027 = vmatpush1.msra.mxu0 0.0
    %3028 = vmatprep.subr.mxu0 0.0
    %3029 = vmatpush1.msra.mxu0 0.0
    %3030 = vmatprep.subr.mxu0 0.0
    %3031 = vmatpush1.msra.mxu0 0.0
    %3032 = vmatprep.subr.mxu0 0.0
    %3033 = vmatpush1.msra.mxu0 0.0
    %3034 = vmatprep.subr.mxu0 0.0
    %3035 = vmatpush1.msra.mxu0 0.0
    %3036 = vmatprep.subr.mxu0 0.0
    %3037 = vmatpush1.msra.mxu0 0.0
    %3038 = vmatprep.subr.mxu0 0.0
    %3039 = vmatpush1.msra.mxu0 0.0
    %3040 = vmatprep.subr.mxu0 0.0
    %3041 = vmatpush1.msra.mxu0 0.0
    %3042 = vmatprep.subr.mxu0 0.0
    %3043 = vmatpush1.msra.mxu0 0.0
    %3044 = vmatprep.subr.mxu0 0.0
    %3045 = vmatpush1.msra.mxu0 0.0
    %3046 = vmatprep.subr.mxu0 0.0
    %3047 = vmatpush1.msra.mxu0 0.0
    %3048 = vmatprep.subr.mxu0 0.0
    %3049 = vmatpush1.msra.mxu0 0.0
    %3050 = vmatprep.subr.mxu0 0.0
    %3051 = vmatpush1.msra.mxu0 0.0
    %3052 = vmatprep.subr.mxu0 0.0
    %3053 = vmatpush1.msra.mxu0 0.0
    %3054 = vmatprep.subr.mxu0 0.0
    %3055 = vmatpush1.msra.mxu0 0.0
    %3056 = vmatprep.subr.mxu0 0.0
    %3057 = vmatpush1.msra.mxu0 0.0
    %3058 = vmatprep.subr.mxu0 0.0
    %3059 = vmatpush1.msra.mxu0 0.0
    %3060 = vmatprep.subr.mxu0 0.0
    %3061 = vmatpush1.msra.mxu0 0.0
    %3062 = vmatprep.subr.mxu0 0.0
    %3063 = vmatpush1.msra.mxu0 0.0
    %3064 = vmatprep.subr.mxu0 0.0
    %3065 = vmatpush1.msra.mxu0 0.0
    %3066 = vmatprep.subr.mxu0 0.0
    %3067 = vmatpush1.msra.mxu0 0.0
    %3068 = vmatprep.subr.mxu0 0.0
    %3069 = vmatpush1.msra.mxu0 0.0
    %3070 = vmatprep.mubr.f32.mxu0 0.0
    %3071 = vmatmul.mubr.f32.gmra.mrb[0].mxu0 %v3004
    %v3072 = vpop.f32.mrb[0].mxu0
    %v3073 = vadd.f32 0.0, %v3072
    %v3074 = vpop.f32.mrb[0].mxu0
    %v3075 = vadd.f32 0.0, %v3074
    %3076 = vdwg.mxu0
    %v3077 = vadd.f32 %v2990, %v3073
    %v3078 = vadd.f32 %v2992, %v3075
    %3079 = vrot.lane.b32.xlu0 %v2826, 1
    %v3080 = vpop.permute.xlu0 %3079
    %3081 = vrot.lane.b32.xlu0 %v2827, 1
    %v3082 = vpop.permute.xlu0 %3081
    %v3083 = vsel %vm399, %v3080, %v3082
    %v3084 = vsel %vm399, %v3082, %v3080
    %v3085 = vmul.f32 %v3084, %v2192
    %v3086 = vmul.f32 %v3083, %v2196
    %v3087 = vld [vmem:[%s1320] sm:$0xff]
    %v3089 = vsel %vm1077, %v3087, 0
    %3091 = vmatprep.subr.mxu0 %v3086
    %3092 = vmatpush1.msra.mxu0 %v3085
    %3093 = vmatprep.subr.mxu0 0.0
    %3094 = vmatpush1.msra.mxu0 0.0
    %3095 = vmatprep.subr.mxu0 0.0
    %3096 = vmatpush1.msra.mxu0 0.0
    %3097 = vmatprep.subr.mxu0 0.0
    %3098 = vmatpush1.msra.mxu0 0.0
    %3099 = vmatprep.subr.mxu0 0.0
    %3100 = vmatpush1.msra.mxu0 0.0
    %3101 = vmatprep.subr.mxu0 0.0
    %3102 = vmatpush1.msra.mxu0 0.0
    %3103 = vmatprep.subr.mxu0 0.0
    %3104 = vmatpush1.msra.mxu0 0.0
    %3105 = vmatprep.subr.mxu0 0.0
    %3106 = vmatpush1.msra.mxu0 0.0
    %3107 = vmatprep.subr.mxu0 0.0
    %3108 = vmatpush1.msra.mxu0 0.0
    %3109 = vmatprep.subr.mxu0 0.0
    %3110 = vmatpush1.msra.mxu0 0.0
    %3111 = vmatprep.subr.mxu0 0.0
    %3112 = vmatpush1.msra.mxu0 0.0
    %3113 = vmatprep.subr.mxu0 0.0
    %3114 = vmatpush1.msra.mxu0 0.0
    %3115 = vmatprep.subr.mxu0 0.0
    %3116 = vmatpush1.msra.mxu0 0.0
    %3117 = vmatprep.subr.mxu0 0.0
    %3118 = vmatpush1.msra.mxu0 0.0
    %3119 = vmatprep.subr.mxu0 0.0
    %3120 = vmatpush1.msra.mxu0 0.0
    %3121 = vmatprep.subr.mxu0 0.0
    %3122 = vmatpush1.msra.mxu0 0.0
    %3123 = vmatprep.subr.mxu0 0.0
    %3124 = vmatpush1.msra.mxu0 0.0
    %3125 = vmatprep.subr.mxu0 0.0
    %3126 = vmatpush1.msra.mxu0 0.0
    %3127 = vmatprep.subr.mxu0 0.0
    %3128 = vmatpush1.msra.mxu0 0.0
    %3129 = vmatprep.subr.mxu0 0.0
    %3130 = vmatpush1.msra.mxu0 0.0
    %3131 = vmatprep.subr.mxu0 0.0
    %3132 = vmatpush1.msra.mxu0 0.0
    %3133 = vmatprep.subr.mxu0 0.0
    %3134 = vmatpush1.msra.mxu0 0.0
    %3135 = vmatprep.subr.mxu0 0.0
    %3136 = vmatpush1.msra.mxu0 0.0
    %3137 = vmatprep.subr.mxu0 0.0
    %3138 = vmatpush1.msra.mxu0 0.0
    %3139 = vmatprep.subr.mxu0 0.0
    %3140 = vmatpush1.msra.mxu0 0.0
    %3141 = vmatprep.subr.mxu0 0.0
    %3142 = vmatpush1.msra.mxu0 0.0
    %3143 = vmatprep.subr.mxu0 0.0
    %3144 = vmatpush1.msra.mxu0 0.0
    %3145 = vmatprep.subr.mxu0 0.0
    %3146 = vmatpush1.msra.mxu0 0.0
    %3147 = vmatprep.subr.mxu0 0.0
    %3148 = vmatpush1.msra.mxu0 0.0
    %3149 = vmatprep.subr.mxu0 0.0
    %3150 = vmatpush1.msra.mxu0 0.0
    %3151 = vmatprep.subr.mxu0 0.0
    %3152 = vmatpush1.msra.mxu0 0.0
    %3153 = vmatprep.subr.mxu0 0.0
    %3154 = vmatpush1.msra.mxu0 0.0
    %3155 = vmatprep.mubr.f32.mxu0 0.0
    %3156 = vmatmul.mubr.f32.gmra.mrb[0].mxu0 %v3089
    %v3157 = vpop.f32.mrb[0].mxu0
    %v3158 = vadd.f32 0.0, %v3157
    %v3159 = vpop.f32.mrb[0].mxu0
    %v3160 = vadd.f32 0.0, %v3159
    %3161 = vdwg.mxu0
    %v3162 = vadd.f32 %v3077, %v3158
    %v3163 = vadd.f32 %v3078, %v3160
    %v3164 = vmul.f32 %v2826, %v2289
    %v3165 = vmul.f32 %v2827, %v2293
    %v3166 = vld [vmem:[%s1400] sm:$0xff]
    %v3168 = vsel %vm1077, %v3166, 0
    %3170 = vmatprep.subr.mxu0 %v3165
    %3171 = vmatpush1.msra.mxu0 %v3164
    %3172 = vmatprep.subr.mxu0 0.0
    %3173 = vmatpush1.msra.mxu0 0.0
    %3174 = vmatprep.subr.mxu0 0.0
    %3175 = vmatpush1.msra.mxu0 0.0
    %3176 = vmatprep.subr.mxu0 0.0
    %3177 = vmatpush1.msra.mxu0 0.0
    %3178 = vmatprep.subr.mxu0 0.0
    %3179 = vmatpush1.msra.mxu0 0.0
    %3180 = vmatprep.subr.mxu0 0.0
    %3181 = vmatpush1.msra.mxu0 0.0
    %3182 = vmatprep.subr.mxu0 0.0
    %3183 = vmatpush1.msra.mxu0 0.0
    %3184 = vmatprep.subr.mxu0 0.0
    %3185 = vmatpush1.msra.mxu0 0.0
    %3186 = vmatprep.subr.mxu0 0.0
    %3187 = vmatpush1.msra.mxu0 0.0
    %3188 = vmatprep.subr.mxu0 0.0
    %3189 = vmatpush1.msra.mxu0 0.0
    %3190 = vmatprep.subr.mxu0 0.0
    %3191 = vmatpush1.msra.mxu0 0.0
    %3192 = vmatprep.subr.mxu0 0.0
    %3193 = vmatpush1.msra.mxu0 0.0
    %3194 = vmatprep.subr.mxu0 0.0
    %3195 = vmatpush1.msra.mxu0 0.0
    %3196 = vmatprep.subr.mxu0 0.0
    %3197 = vmatpush1.msra.mxu0 0.0
    %3198 = vmatprep.subr.mxu0 0.0
    %3199 = vmatpush1.msra.mxu0 0.0
    %3200 = vmatprep.subr.mxu0 0.0
    %3201 = vmatpush1.msra.mxu0 0.0
    %3202 = vmatprep.subr.mxu0 0.0
    %3203 = vmatpush1.msra.mxu0 0.0
    %3204 = vmatprep.subr.mxu0 0.0
    %3205 = vmatpush1.msra.mxu0 0.0
    %3206 = vmatprep.subr.mxu0 0.0
    %3207 = vmatpush1.msra.mxu0 0.0
    %3208 = vmatprep.subr.mxu0 0.0
    %3209 = vmatpush1.msra.mxu0 0.0
    %3210 = vmatprep.subr.mxu0 0.0
    %3211 = vmatpush1.msra.mxu0 0.0
    %3212 = vmatprep.subr.mxu0 0.0
    %3213 = vmatpush1.msra.mxu0 0.0
    %3214 = vmatprep.subr.mxu0 0.0
    %3215 = vmatpush1.msra.mxu0 0.0
    %3216 = vmatprep.subr.mxu0 0.0
    %3217 = vmatpush1.msra.mxu0 0.0
    %3218 = vmatprep.subr.mxu0 0.0
    %3219 = vmatpush1.msra.mxu0 0.0
    %3220 = vmatprep.subr.mxu0 0.0
    %3221 = vmatpush1.msra.mxu0 0.0
    %3222 = vmatprep.subr.mxu0 0.0
    %3223 = vmatpush1.msra.mxu0 0.0
    %3224 = vmatprep.subr.mxu0 0.0
    %3225 = vmatpush1.msra.mxu0 0.0
    %3226 = vmatprep.subr.mxu0 0.0
    %3227 = vmatpush1.msra.mxu0 0.0
    %3228 = vmatprep.subr.mxu0 0.0
    %3229 = vmatpush1.msra.mxu0 0.0
    %3230 = vmatprep.subr.mxu0 0.0
    %3231 = vmatpush1.msra.mxu0 0.0
    %3232 = vmatprep.subr.mxu0 0.0
    %3233 = vmatpush1.msra.mxu0 0.0
    %3234 = vmatprep.mubr.f32.mxu0 0.0
    %3235 = vmatmul.mubr.f32.gmra.mrb[0].mxu0 %v3168
    %v3236 = vpop.f32.mrb[0].mxu0
    %v3237 = vadd.f32 0.0, %v3236
    %v3238 = vpop.f32.mrb[0].mxu0
    %v3239 = vadd.f32 0.0, %v3238
    %3240 = vdwg.mxu0
    %v3241 = vadd.f32 %v3162, %v3237
    %v3242 = vadd.f32 %v3163, %v3239
    %3243 = vrot.lane.b32.xlu0 %v2826, 127
    %v3244 = vpop.permute.xlu0 %3243
    %3245 = vrot.lane.b32.xlu0 %v2827, 127
    %v3246 = vpop.permute.xlu0 %3245
    %v3247 = vsel %vm604, %v3244, %v3246
    %v3248 = vsel %vm604, %v3246, %v3244
    %v3249 = vmul.f32 %v3247, %v2392
    %v3250 = vmul.f32 %v3248, %v2396
    %v3251 = vld [vmem:[%s1486] sm:$0xff]
    %v3253 = vsel %vm1077, %v3251, 0
    %3255 = vmatprep.subr.mxu0 %v3250
    %3256 = vmatpush1.msra.mxu0 %v3249
    %3257 = vmatprep.subr.mxu0 0.0
    %3258 = vmatpush1.msra.mxu0 0.0
    %3259 = vmatprep.subr.mxu0 0.0
    %3260 = vmatpush1.msra.mxu0 0.0
    %3261 = vmatprep.subr.mxu0 0.0
    %3262 = vmatpush1.msra.mxu0 0.0
    %3263 = vmatprep.subr.mxu0 0.0
    %3264 = vmatpush1.msra.mxu0 0.0
    %3265 = vmatprep.subr.mxu0 0.0
    %3266 = vmatpush1.msra.mxu0 0.0
    %3267 = vmatprep.subr.mxu0 0.0
    %3268 = vmatpush1.msra.mxu0 0.0
    %3269 = vmatprep.subr.mxu0 0.0
    %3270 = vmatpush1.msra.mxu0 0.0
    %3271 = vmatprep.subr.mxu0 0.0
    %3272 = vmatpush1.msra.mxu0 0.0
    %3273 = vmatprep.subr.mxu0 0.0
    %3274 = vmatpush1.msra.mxu0 0.0
    %3275 = vmatprep.subr.mxu0 0.0
    %3276 = vmatpush1.msra.mxu0 0.0
    %3277 = vmatprep.subr.mxu0 0.0
    %3278 = vmatpush1.msra.mxu0 0.0
    %3279 = vmatprep.subr.mxu0 0.0
    %3280 = vmatpush1.msra.mxu0 0.0
    %3281 = vmatprep.subr.mxu0 0.0
    %3282 = vmatpush1.msra.mxu0 0.0
    %3283 = vmatprep.subr.mxu0 0.0
    %3284 = vmatpush1.msra.mxu0 0.0
    %3285 = vmatprep.subr.mxu0 0.0
    %3286 = vmatpush1.msra.mxu0 0.0
    %3287 = vmatprep.subr.mxu0 0.0
    %3288 = vmatpush1.msra.mxu0 0.0
    %3289 = vmatprep.subr.mxu0 0.0
    %3290 = vmatpush1.msra.mxu0 0.0
    %3291 = vmatprep.subr.mxu0 0.0
    %3292 = vmatpush1.msra.mxu0 0.0
    %3293 = vmatprep.subr.mxu0 0.0
    %3294 = vmatpush1.msra.mxu0 0.0
    %3295 = vmatprep.subr.mxu0 0.0
    %3296 = vmatpush1.msra.mxu0 0.0
    %3297 = vmatprep.subr.mxu0 0.0
    %3298 = vmatpush1.msra.mxu0 0.0
    %3299 = vmatprep.subr.mxu0 0.0
    %3300 = vmatpush1.msra.mxu0 0.0
    %3301 = vmatprep.subr.mxu0 0.0
    %3302 = vmatpush1.msra.mxu0 0.0
    %3303 = vmatprep.subr.mxu0 0.0
    %3304 = vmatpush1.msra.mxu0 0.0
    %3305 = vmatprep.subr.mxu0 0.0
    %3306 = vmatpush1.msra.mxu0 0.0
    %3307 = vmatprep.subr.mxu0 0.0
    %3308 = vmatpush1.msra.mxu0 0.0
    %3309 = vmatprep.subr.mxu0 0.0
    %3310 = vmatpush1.msra.mxu0 0.0
    %3311 = vmatprep.subr.mxu0 0.0
    %3312 = vmatpush1.msra.mxu0 0.0
    %3313 = vmatprep.subr.mxu0 0.0
    %3314 = vmatpush1.msra.mxu0 0.0
    %3315 = vmatprep.subr.mxu0 0.0
    %3316 = vmatpush1.msra.mxu0 0.0
    %3317 = vmatprep.subr.mxu0 0.0
    %3318 = vmatpush1.msra.mxu0 0.0
    %3319 = vmatprep.mubr.f32.mxu0 0.0
    %3320 = vmatmul.mubr.f32.gmra.mrb[0].mxu0 %v3253
    %v3321 = vpop.f32.mrb[0].mxu0
    %v3322 = vadd.f32 0.0, %v3321
    %v3323 = vpop.f32.mrb[0].mxu0
    %v3324 = vadd.f32 0.0, %v3323
    %3325 = vdwg.mxu0
    %v3326 = vadd.f32 %v3241, %v3322
    %v3327 = vadd.f32 %v3242, %v3324
    %3328 = vrot.lane.b32.xlu0 %v2826, 113
    %v3329 = vpop.permute.xlu0 %3328
    %3330 = vrot.lane.b32.xlu0 %v2827, 113
    %v3331 = vpop.permute.xlu0 %3330
    %v3332 = vsel %vm710, %v3329, %v3331
    %v3333 = vsel %vm710, %v3331, %v3329
    %v3334 = vmul.f32 %v3332, %v2495
    %v3335 = vmul.f32 %v3333, %v2499
    %v3336 = vld [vmem:[%s1572] sm:$0xff]
    %v3338 = vsel %vm1077, %v3336, 0
    %3340 = vmatprep.subr.mxu0 %v3335
    %3341 = vmatpush1.msra.mxu0 %v3334
    %3342 = vmatprep.subr.mxu0 0.0
    %3343 = vmatpush1.msra.mxu0 0.0
    %3344 = vmatprep.subr.mxu0 0.0
    %3345 = vmatpush1.msra.mxu0 0.0
    %3346 = vmatprep.subr.mxu0 0.0
    %3347 = vmatpush1.msra.mxu0 0.0
    %3348 = vmatprep.subr.mxu0 0.0
    %3349 = vmatpush1.msra.mxu0 0.0
    %3350 = vmatprep.subr.mxu0 0.0
    %3351 = vmatpush1.msra.mxu0 0.0
    %3352 = vmatprep.subr.mxu0 0.0
    %3353 = vmatpush1.msra.mxu0 0.0
    %3354 = vmatprep.subr.mxu0 0.0
    %3355 = vmatpush1.msra.mxu0 0.0
    %3356 = vmatprep.subr.mxu0 0.0
    %3357 = vmatpush1.msra.mxu0 0.0
    %3358 = vmatprep.subr.mxu0 0.0
    %3359 = vmatpush1.msra.mxu0 0.0
    %3360 = vmatprep.subr.mxu0 0.0
    %3361 = vmatpush1.msra.mxu0 0.0
    %3362 = vmatprep.subr.mxu0 0.0
    %3363 = vmatpush1.msra.mxu0 0.0
    %3364 = vmatprep.subr.mxu0 0.0
    %3365 = vmatpush1.msra.mxu0 0.0
    %3366 = vmatprep.subr.mxu0 0.0
    %3367 = vmatpush1.msra.mxu0 0.0
    %3368 = vmatprep.subr.mxu0 0.0
    %3369 = vmatpush1.msra.mxu0 0.0
    %3370 = vmatprep.subr.mxu0 0.0
    %3371 = vmatpush1.msra.mxu0 0.0
    %3372 = vmatprep.subr.mxu0 0.0
    %3373 = vmatpush1.msra.mxu0 0.0
    %3374 = vmatprep.subr.mxu0 0.0
    %3375 = vmatpush1.msra.mxu0 0.0
    %3376 = vmatprep.subr.mxu0 0.0
    %3377 = vmatpush1.msra.mxu0 0.0
    %3378 = vmatprep.subr.mxu0 0.0
    %3379 = vmatpush1.msra.mxu0 0.0
    %3380 = vmatprep.subr.mxu0 0.0
    %3381 = vmatpush1.msra.mxu0 0.0
    %3382 = vmatprep.subr.mxu0 0.0
    %3383 = vmatpush1.msra.mxu0 0.0
    %3384 = vmatprep.subr.mxu0 0.0
    %3385 = vmatpush1.msra.mxu0 0.0
    %3386 = vmatprep.subr.mxu0 0.0
    %3387 = vmatpush1.msra.mxu0 0.0
    %3388 = vmatprep.subr.mxu0 0.0
    %3389 = vmatpush1.msra.mxu0 0.0
    %3390 = vmatprep.subr.mxu0 0.0
    %3391 = vmatpush1.msra.mxu0 0.0
    %3392 = vmatprep.subr.mxu0 0.0
    %3393 = vmatpush1.msra.mxu0 0.0
    %3394 = vmatprep.subr.mxu0 0.0
    %3395 = vmatpush1.msra.mxu0 0.0
    %3396 = vmatprep.subr.mxu0 0.0
    %3397 = vmatpush1.msra.mxu0 0.0
    %3398 = vmatprep.subr.mxu0 0.0
    %3399 = vmatpush1.msra.mxu0 0.0
    %3400 = vmatprep.subr.mxu0 0.0
    %3401 = vmatpush1.msra.mxu0 0.0
    %3402 = vmatprep.subr.mxu0 0.0
    %3403 = vmatpush1.msra.mxu0 0.0
    %3404 = vmatprep.mubr.f32.mxu0 0.0
    %3405 = vmatmul.mubr.f32.gmra.mrb[0].mxu0 %v3338
    %v3406 = vpop.f32.mrb[0].mxu0
    %v3407 = vadd.f32 0.0, %v3406
    %v3408 = vpop.f32.mrb[0].mxu0
    %v3409 = vadd.f32 0.0, %v3408
    %3410 = vdwg.mxu0
    %v3411 = vadd.f32 %v3326, %v3407
    %v3412 = vadd.f32 %v3327, %v3409
    %3413 = vrot.lane.b32.xlu0 %v2826, 112
    %v3414 = vpop.permute.xlu0 %3413
    %3415 = vrot.lane.b32.xlu0 %v2827, 112
    %v3416 = vpop.permute.xlu0 %3415
    %v3417 = vsel %vm816, %v3414, %v3416
    %v3418 = vsel %vm816, %v3416, %v3414
    %v3419 = vmul.f32 %v3417, %v2598
    %v3420 = vmul.f32 %v3418, %v2602
    %v3421 = vld [vmem:[%s1658] sm:$0xff]
    %v3423 = vsel %vm1077, %v3421, 0
    %3425 = vmatprep.subr.mxu0 %v3420
    %3426 = vmatpush1.msra.mxu0 %v3419
    %3427 = vmatprep.subr.mxu0 0.0
    %3428 = vmatpush1.msra.mxu0 0.0
    %3429 = vmatprep.subr.mxu0 0.0
    %3430 = vmatpush1.msra.mxu0 0.0
    %3431 = vmatprep.subr.mxu0 0.0
    %3432 = vmatpush1.msra.mxu0 0.0
    %3433 = vmatprep.subr.mxu0 0.0
    %3434 = vmatpush1.msra.mxu0 0.0
    %3435 = vmatprep.subr.mxu0 0.0
    %3436 = vmatpush1.msra.mxu0 0.0
    %3437 = vmatprep.subr.mxu0 0.0
    %3438 = vmatpush1.msra.mxu0 0.0
    %3439 = vmatprep.subr.mxu0 0.0
    %3440 = vmatpush1.msra.mxu0 0.0
    %3441 = vmatprep.subr.mxu0 0.0
    %3442 = vmatpush1.msra.mxu0 0.0
    %3443 = vmatprep.subr.mxu0 0.0
    %3444 = vmatpush1.msra.mxu0 0.0
    %3445 = vmatprep.subr.mxu0 0.0
    %3446 = vmatpush1.msra.mxu0 0.0
    %3447 = vmatprep.subr.mxu0 0.0
    %3448 = vmatpush1.msra.mxu0 0.0
    %3449 = vmatprep.subr.mxu0 0.0
    %3450 = vmatpush1.msra.mxu0 0.0
    %3451 = vmatprep.subr.mxu0 0.0
    %3452 = vmatpush1.msra.mxu0 0.0
    %3453 = vmatprep.subr.mxu0 0.0
    %3454 = vmatpush1.msra.mxu0 0.0
    %3455 = vmatprep.subr.mxu0 0.0
    %3456 = vmatpush1.msra.mxu0 0.0
    %3457 = vmatprep.subr.mxu0 0.0
    %3458 = vmatpush1.msra.mxu0 0.0
    %3459 = vmatprep.subr.mxu0 0.0
    %3460 = vmatpush1.msra.mxu0 0.0
    %3461 = vmatprep.subr.mxu0 0.0
    %3462 = vmatpush1.msra.mxu0 0.0
    %3463 = vmatprep.subr.mxu0 0.0
    %3464 = vmatpush1.msra.mxu0 0.0
    %3465 = vmatprep.subr.mxu0 0.0
    %3466 = vmatpush1.msra.mxu0 0.0
    %3467 = vmatprep.subr.mxu0 0.0
    %3468 = vmatpush1.msra.mxu0 0.0
    %3469 = vmatprep.subr.mxu0 0.0
    %3470 = vmatpush1.msra.mxu0 0.0
    %3471 = vmatprep.subr.mxu0 0.0
    %3472 = vmatpush1.msra.mxu0 0.0
    %3473 = vmatprep.subr.mxu0 0.0
    %3474 = vmatpush1.msra.mxu0 0.0
    %3475 = vmatprep.subr.mxu0 0.0
    %3476 = vmatpush1.msra.mxu0 0.0
    %3477 = vmatprep.subr.mxu0 0.0
    %3478 = vmatpush1.msra.mxu0 0.0
    %3479 = vmatprep.subr.mxu0 0.0
    %3480 = vmatpush1.msra.mxu0 0.0
    %3481 = vmatprep.subr.mxu0 0.0
    %3482 = vmatpush1.msra.mxu0 0.0
    %3483 = vmatprep.subr.mxu0 0.0
    %3484 = vmatpush1.msra.mxu0 0.0
    %3485 = vmatprep.subr.mxu0 0.0
    %3486 = vmatpush1.msra.mxu0 0.0
    %3487 = vmatprep.subr.mxu0 0.0
    %3488 = vmatpush1.msra.mxu0 0.0
    %3489 = vmatprep.mubr.f32.mxu0 0.0
    %3490 = vmatmul.mubr.f32.gmra.mrb[0].mxu0 %v3423
    %v3491 = vpop.f32.mrb[0].mxu0
    %v3492 = vadd.f32 0.0, %v3491
    %v3493 = vpop.f32.mrb[0].mxu0
    %v3494 = vadd.f32 0.0, %v3493
    %3495 = vdwg.mxu0
    %v3496 = vadd.f32 %v3411, %v3492
    %v3497 = vadd.f32 %v3412, %v3494
    %3498 = vrot.lane.b32.xlu0 %v2826, 111
    %v3499 = vpop.permute.xlu0 %3498
    %3500 = vrot.lane.b32.xlu0 %v2827, 111
    %v3501 = vpop.permute.xlu0 %3500
    %v3502 = vsel %vm922, %v3499, %v3501
    %v3503 = vsel %vm922, %v3501, %v3499
    %v3504 = vmul.f32 %v3502, %v2701
    %v3505 = vmul.f32 %v3503, %v2705
    %v3506 = vld [vmem:[%s1744] sm:$0xff]
    %v3508 = vsel %vm1077, %v3506, 0
    %3510 = vmatprep.subr.mxu0 %v3505
    %3511 = vmatpush1.msra.mxu0 %v3504
    %3512 = vmatprep.subr.mxu0 0.0
    %3513 = vmatpush1.msra.mxu0 0.0
    %3514 = vmatprep.subr.mxu0 0.0
    %3515 = vmatpush1.msra.mxu0 0.0
    %3516 = vmatprep.subr.mxu0 0.0
    %3517 = vmatpush1.msra.mxu0 0.0
    %3518 = vmatprep.subr.mxu0 0.0
    %3519 = vmatpush1.msra.mxu0 0.0
    %3520 = vmatprep.subr.mxu0 0.0
    %3521 = vmatpush1.msra.mxu0 0.0
    %3522 = vmatprep.subr.mxu0 0.0
    %3523 = vmatpush1.msra.mxu0 0.0
    %3524 = vmatprep.subr.mxu0 0.0
    %3525 = vmatpush1.msra.mxu0 0.0
    %3526 = vmatprep.subr.mxu0 0.0
    %3527 = vmatpush1.msra.mxu0 0.0
    %3528 = vmatprep.subr.mxu0 0.0
    %3529 = vmatpush1.msra.mxu0 0.0
    %3530 = vmatprep.subr.mxu0 0.0
    %3531 = vmatpush1.msra.mxu0 0.0
    %3532 = vmatprep.subr.mxu0 0.0
    %3533 = vmatpush1.msra.mxu0 0.0
    %3534 = vmatprep.subr.mxu0 0.0
    %3535 = vmatpush1.msra.mxu0 0.0
    %3536 = vmatprep.subr.mxu0 0.0
    %3537 = vmatpush1.msra.mxu0 0.0
    %3538 = vmatprep.subr.mxu0 0.0
    %3539 = vmatpush1.msra.mxu0 0.0
    %3540 = vmatprep.subr.mxu0 0.0
    %3541 = vmatpush1.msra.mxu0 0.0
    %3542 = vmatprep.subr.mxu0 0.0
    %3543 = vmatpush1.msra.mxu0 0.0
    %3544 = vmatprep.subr.mxu0 0.0
    %3545 = vmatpush1.msra.mxu0 0.0
    %3546 = vmatprep.subr.mxu0 0.0
    %3547 = vmatpush1.msra.mxu0 0.0
    %3548 = vmatprep.subr.mxu0 0.0
    %3549 = vmatpush1.msra.mxu0 0.0
    %3550 = vmatprep.subr.mxu0 0.0
    %3551 = vmatpush1.msra.mxu0 0.0
    %3552 = vmatprep.subr.mxu0 0.0
    %3553 = vmatpush1.msra.mxu0 0.0
    %3554 = vmatprep.subr.mxu0 0.0
    %3555 = vmatpush1.msra.mxu0 0.0
    %3556 = vmatprep.subr.mxu0 0.0
    %3557 = vmatpush1.msra.mxu0 0.0
    %3558 = vmatprep.subr.mxu0 0.0
    %3559 = vmatpush1.msra.mxu0 0.0
    %3560 = vmatprep.subr.mxu0 0.0
    %3561 = vmatpush1.msra.mxu0 0.0
    %3562 = vmatprep.subr.mxu0 0.0
    %3563 = vmatpush1.msra.mxu0 0.0
    %3564 = vmatprep.subr.mxu0 0.0
    %3565 = vmatpush1.msra.mxu0 0.0
    %3566 = vmatprep.subr.mxu0 0.0
    %3567 = vmatpush1.msra.mxu0 0.0
    %3568 = vmatprep.subr.mxu0 0.0
    %3569 = vmatpush1.msra.mxu0 0.0
    %3570 = vmatprep.subr.mxu0 0.0
    %3571 = vmatpush1.msra.mxu0 0.0
    %3572 = vmatprep.subr.mxu0 0.0
    %3573 = vmatpush1.msra.mxu0 0.0
    %3574 = vmatprep.mubr.f32.mxu0 0.0
    %3575 = vmatmul.mubr.f32.gmra.mrb[0].mxu0 %v3508
    %v3576 = vpop.f32.mrb[0].mxu0
    %v3577 = vadd.f32 0.0, %v3576
    %v3578 = vpop.f32.mrb[0].mxu0
    %v3579 = vadd.f32 0.0, %v3578
    %3580 = vdwg.mxu0
    %v3581 = vadd.f32 %v3496, %v3577
    %v3582 = vadd.f32 %v3497, %v3579
    %v3583 = vld [vmem:[%s9] sm:$0xff]
    %3585 = vset.pattern.permute.xlu0 0
    %3586 = vperm.xlu0 %3585, %v3583
    %v3587 = vpop.permute.xlu0 %3586
    %v3589 = vadd.f32 %v3581, %v3587
    %v3590 = vadd.f32 %v3582, %v3587
    %s3591 = scalar_lea.vmem [#allocation2], 16
    %3592 = vst [vmem:[%s3591] sm:$0xff] %v3589
    %3593 = vst [vmem:[%s3591 + $0x8] sm:$0xff] %v3590
    // Predicated region
    $region42: #{tpu_custom_call.1} parent=1 // pred_check
      _
    $region43: #{tpu_custom_call.1} parent=1 // pred_check_branch
      %3595 = sbr.rel (0) target = $region45
    $region44: #{tpu_custom_call.1} parent=1 // pred_region
      %s3597 = ssub.s32 512, 512
      %3598 = vsyncadd [#allocation3], %s3597
      %s3599 = sshll.u32 [#allocation2], 4
      %s3600 = int_to_ptr.vmem [resolvable:$true] %s3599
      %3605 = dma.vmem_to_hbm [thread:$0]  %s3600, 512, %s10, [#allocation3], 256, 256, 16
    $region45: #{tpu_custom_call.1} parent=1 // pred_fallthru
      _
    // Predicated region
    $region46: #{tpu_custom_call.1} parent=1 // pred_check
      _
    $region47: #{tpu_custom_call.1} parent=1 // pred_check_branch
      %3607 = sbr.rel (0) target = $region49
    $region48: #{tpu_custom_call.1} parent=1 // pred_region
      %3608 = dma.done [#allocation3], 512
    $region49: #{tpu_custom_call.1} parent=1 // pred_fallthru
      _
    %3609 = vsyncpa [#allocation3], 1

// kernel: tpu_custom_call.1
$region0: #{tpu_custom_call.1}
  #allocation0 [shape = 'u32[]', space=smem, size = 0x4, offset = 0x4, fixed_abs, tag = 'smem constant byte address 0x4 - core index']
  #allocation1 [shape = 'u32[144,128]{1,0:T(1,128)}', space=vmem, size = 0x12000, scoped, tag = 'internal scratch']
  %s0 = inlined_call_operand.vmem [shape: f32[2,4,256], index: 0, kind: input, shape index: {}]
  %s1 = inlined_call_operand.vmem [shape: f32[9,256], index: 1, kind: input, shape index: {}]
  %s2 = inlined_call_operand.vmem [shape: f32[2,4,1], index: 2, kind: input, shape index: {}]
  %s3 = inlined_call_operand.vmem [shape: f32[4,1], index: 3, kind: input, shape index: {}]
  %s4 = inlined_call_operand.vmem [shape: f32[9,8,4], index: 4, kind: input, shape index: {}]
  %s5 = inlined_call_operand.vmem [shape: f32[8,1], index: 5, kind: input, shape index: {}]
  %s6 = inlined_call_operand.vmem [shape: f32[2,8,1], index: 6, kind: input, shape index: {}]
  %s7 = inlined_call_operand.vmem [shape: f32[8,1], index: 7, kind: input, shape index: {}]
  %s8 = inlined_call_operand.vmem [shape: f32[9,8,8], index: 8, kind: input, shape index: {}]
  %s9 = inlined_call_operand.vmem [shape: f32[8,1], index: 9, kind: input, shape index: {}]
  %s10 = inlined_call_operand.hbm [shape: f32[2,8,256], index: 10, kind: output, shape index: {}]
  %s11 = sld [smem:[#allocation0]]
  $region50: #{tpu_custom_call.1} parent=0
    _
  %s13 = ssub.s32 1, %s11
  %s14 = scalar_select 0, %s13, %s11
  $region1: #{tpu_custom_call.1} parent=0
    #allocation2 [shape = 'u8[16384]{0}', space=vmem, size = 0x4000, scoped, tag = 'output window, operand 0, single buffered']
    #allocation3 [shape = 's32[1]{0}', space=sflag, size = 0x4, scoped, tag = 'scoped memory for tpu_custom_call.1']
    %15 = vsyncpa [#allocation3], 0
    // Predicated region
    $region2: #{tpu_custom_call.1} parent=1 // pred_check
      _
    $region3: #{tpu_custom_call.1} parent=1 // pred_check_branch
      %17 = sbr.rel (0) target = $region5
    $region4: #{tpu_custom_call.1} parent=1 // pred_region
      _
    $region5: #{tpu_custom_call.1} parent=1 // pred_fallthru
      _
    // Predicated region
    $region6: #{tpu_custom_call.1} parent=1 // pred_check
      _
    $region7: #{tpu_custom_call.1} parent=1 // pred_check_branch
      %19 = sbr.rel (0) target = $region9
    $region8: #{tpu_custom_call.1} parent=1 // pred_region
      _
    $region9: #{tpu_custom_call.1} parent=1 // pred_fallthru
      _
    // Predicated region
    $region10: #{tpu_custom_call.1} parent=1 // pred_check
      _
    $region11: #{tpu_custom_call.1} parent=1 // pred_check_branch
      %21 = sbr.rel (0) target = $region13
    $region12: #{tpu_custom_call.1} parent=1 // pred_region
      _
    $region13: #{tpu_custom_call.1} parent=1 // pred_fallthru
      _
    // Predicated region
    $region14: #{tpu_custom_call.1} parent=1 // pred_check
      _
    $region15: #{tpu_custom_call.1} parent=1 // pred_check_branch
      %23 = sbr.rel (0) target = $region17
    $region16: #{tpu_custom_call.1} parent=1 // pred_region
      _
    $region17: #{tpu_custom_call.1} parent=1 // pred_fallthru
      _
    // Predicated region
    $region18: #{tpu_custom_call.1} parent=1 // pred_check
      _
    $region19: #{tpu_custom_call.1} parent=1 // pred_check_branch
      %25 = sbr.rel (0) target = $region21
    $region20: #{tpu_custom_call.1} parent=1 // pred_region
      _
    $region21: #{tpu_custom_call.1} parent=1 // pred_fallthru
      _
    // Predicated region
    $region22: #{tpu_custom_call.1} parent=1 // pred_check
      _
    $region23: #{tpu_custom_call.1} parent=1 // pred_check_branch
      %27 = sbr.rel (0) target = $region25
    $region24: #{tpu_custom_call.1} parent=1 // pred_region
      _
    $region25: #{tpu_custom_call.1} parent=1 // pred_fallthru
      _
    // Predicated region
    $region26: #{tpu_custom_call.1} parent=1 // pred_check
      _
    $region27: #{tpu_custom_call.1} parent=1 // pred_check_branch
      %29 = sbr.rel (0) target = $region29
    $region28: #{tpu_custom_call.1} parent=1 // pred_region
      _
    $region29: #{tpu_custom_call.1} parent=1 // pred_fallthru
      _
    // Predicated region
    $region30: #{tpu_custom_call.1} parent=1 // pred_check
      _
    $region31: #{tpu_custom_call.1} parent=1 // pred_check_branch
      %31 = sbr.rel (0) target = $region33
    $region32: #{tpu_custom_call.1} parent=1 // pred_region
      _
    $region33: #{tpu_custom_call.1} parent=1 // pred_fallthru
      _
    // Predicated region
    $region34: #{tpu_custom_call.1} parent=1 // pred_check
      _
    $region35: #{tpu_custom_call.1} parent=1 // pred_check_branch
      %33 = sbr.rel (0) target = $region37
    $region36: #{tpu_custom_call.1} parent=1 // pred_region
      _
    $region37: #{tpu_custom_call.1} parent=1 // pred_fallthru
      _
    // Predicated region
    $region38: #{tpu_custom_call.1} parent=1 // pred_check
      _
    $region39: #{tpu_custom_call.1} parent=1 // pred_check_branch
      %35 = sbr.rel (0) target = $region41
    $region40: #{tpu_custom_call.1} parent=1 // pred_region
      _
    $region41: #{tpu_custom_call.1} parent=1 // pred_fallthru
      _
    %v36 = vld [vmem:[%s0] sm:$0xff]
    %v37 = vld [vmem:[%s2] sm:$0xf]
    %v38 = vmul.f32 %v36, %v36
    %v40 = vcombine.high %v38, %v38
    %vm42 = vcmask 1043456
    %v43 = vsel %vm42, %v38, 0.0
    %v44 = vsel %vm42, %v40, 0.0
    %v45 = vadd.f32 %v43, %v44
    %46 = vadd.xlane.f32.xlu0 %v45
    %v47 = vpop.xlane.xlu0 %46
    %v48 = vrcp.pop 256.0
    %v49 = vmul.f32 %v47, %v48
    %v50 = vadd.f32 %v49, 1e-05
    %v51 = vrsqrt.pop %v50
    %v54 = vunpack.c.l.s4 839922192
    %v55 = vunpack.c.0.s8 %v54
    %v56 = vlaneseq
    %v57 = vshrl.u32 %v56, 7
    %v58 = vsub.s32 %v55, %v57
    %v59 = vrot.slane %v51, %v58
    %v61 = vmul.f32 %v36, %v59
    %63 = vset.pattern.permute.xlu0 0
    %64 = vperm.xlu0 %63, %v37
    %v65 = vpop.permute.xlu0 %64
    %v68 = vcombine.high %v61, %v61
    %v70 = vmul.f32 %v65, %v61
    %v71 = vmul.f32 %v65, %v68
    %v72 = vld [vmem:[%s3] sm:$0xf]
    %74 = vset.pattern.permute.xlu0 0
    %75 = vperm.xlu0 %74, %v72
    %v76 = vpop.permute.xlu0 %75
    %v78 = vmax.f32 %v70, %v76
    %v79 = vmax.f32 %v71, %v76
    %80 = vrot.lane.b32.xlu0 %v78, 17
    %v81 = vpop.permute.xlu0 %80
    %82 = vrot.lane.b32.xlu0 %v79, 17
    %v83 = vpop.permute.xlu0 %82
    %v84 = vlaneseq
    %v85 = vand.u32 %v84, 127
    %vm86 = vcmp.lt.s32.totalorder %v85, 17
    %v87 = vsel %vm86, %v81, %v83
    %v88 = vsel %vm86, %v83, %v81
    %v89 = vld [vmem:[%s1] ss:$8 sm:$0x3]
    %v91 = vlaneseq
    %v92 = vshrl.u32 %v91, 7
    %v93 = vsub.s32 0, %v92
    %v94 = vrot.slane %v89, %v93
    %v95 = vlaneseq
    %v96 = vshrl.u32 %v95, 7
    %v97 = vsub.s32 1, %v96
    %v98 = vrot.slane %v89, %v97
    %v101 = vmul.f32 %v88, %v94
    %v102 = vmul.f32 %v87, %v98
    %v103 = vld [vmem:[%s4] sm:$0xff]
    %104 = vrot.lane.b32.xlu0 %v78, 16
    %v105 = vpop.permute.xlu0 %104
    %106 = vrot.lane.b32.xlu0 %v79, 16
    %v107 = vpop.permute.xlu0 %106
    %vm108 = vcmp.lt.s32.totalorder %v85, 16
    %v109 = vsel %vm108, %v105, %v107
    %v110 = vsel %vm108, %v107, %v105
    %s111 = scalar_lea.vmem %s1, 1
    %v112 = vld [vmem:[%s111] ss:$8 sm:$0x3]
    %v114 = vlaneseq
    %v115 = vshrl.u32 %v114, 7
    %v116 = vsub.s32 0, %v115
    %v117 = vrot.slane %v112, %v116
    %v118 = vlaneseq
    %v119 = vshrl.u32 %v118, 7
    %v120 = vsub.s32 1, %v119
    %v121 = vrot.slane %v112, %v120
    %v124 = vmul.f32 %v110, %v117
    %v125 = vmul.f32 %v109, %v121
    %s126 = scalar_lea.vmem %s4, 8
    %v127 = vld [vmem:[%s126] sm:$0xff]
    %vm128 = vcmask 31744
    %v130 = vsel %vm128, %v127, 0
    %v133 = vsel %vm42, %v124, 0
    %v136 = vsel %vm42, %v125, 0
    %138 = vmatprep.subr.mxu0 %v136
    %139 = vmatpush1.msra.mxu0 %v133
    %140 = vmatprep.subr.mxu0 0.0
    %141 = vmatpush1.msra.mxu0 0.0
    %142 = vmatprep.subr.mxu0 0.0
    %143 = vmatpush1.msra.mxu0 0.0
    %144 = vmatprep.subr.mxu0 0.0
    %145 = vmatpush1.msra.mxu0 0.0
    %146 = vmatprep.subr.mxu0 0.0
    %147 = vmatpush1.msra.mxu0 0.0
    %148 = vmatprep.subr.mxu0 0.0
    %149 = vmatpush1.msra.mxu0 0.0
    %150 = vmatprep.subr.mxu0 0.0
    %151 = vmatpush1.msra.mxu0 0.0
    %152 = vmatprep.subr.mxu0 0.0
    %153 = vmatpush1.msra.mxu0 0.0
    %154 = vmatprep.subr.mxu0 0.0
    %155 = vmatpush1.msra.mxu0 0.0
    %156 = vmatprep.subr.mxu0 0.0
    %157 = vmatpush1.msra.mxu0 0.0
    %158 = vmatprep.subr.mxu0 0.0
    %159 = vmatpush1.msra.mxu0 0.0
    %160 = vmatprep.subr.mxu0 0.0
    %161 = vmatpush1.msra.mxu0 0.0
    %162 = vmatprep.subr.mxu0 0.0
    %163 = vmatpush1.msra.mxu0 0.0
    %164 = vmatprep.subr.mxu0 0.0
    %165 = vmatpush1.msra.mxu0 0.0
    %166 = vmatprep.subr.mxu0 0.0
    %167 = vmatpush1.msra.mxu0 0.0
    %168 = vmatprep.subr.mxu0 0.0
    %169 = vmatpush1.msra.mxu0 0.0
    %170 = vmatprep.subr.mxu0 0.0
    %171 = vmatpush1.msra.mxu0 0.0
    %172 = vmatprep.subr.mxu0 0.0
    %173 = vmatpush1.msra.mxu0 0.0
    %174 = vmatprep.subr.mxu0 0.0
    %175 = vmatpush1.msra.mxu0 0.0
    %176 = vmatprep.subr.mxu0 0.0
    %177 = vmatpush1.msra.mxu0 0.0
    %178 = vmatprep.subr.mxu0 0.0
    %179 = vmatpush1.msra.mxu0 0.0
    %180 = vmatprep.subr.mxu0 0.0
    %181 = vmatpush1.msra.mxu0 0.0
    %182 = vmatprep.subr.mxu0 0.0
    %183 = vmatpush1.msra.mxu0 0.0
    %184 = vmatprep.subr.mxu0 0.0
    %185 = vmatpush1.msra.mxu0 0.0
    %186 = vmatprep.subr.mxu0 0.0
    %187 = vmatpush1.msra.mxu0 0.0
    %188 = vmatprep.subr.mxu0 0.0
    %189 = vmatpush1.msra.mxu0 0.0
    %190 = vmatprep.subr.mxu0 0.0
    %191 = vmatpush1.msra.mxu0 0.0
    %192 = vmatprep.subr.mxu0 0.0
    %193 = vmatpush1.msra.mxu0 0.0
    %194 = vmatprep.subr.mxu0 0.0
    %195 = vmatpush1.msra.mxu0 0.0
    %196 = vmatprep.subr.mxu0 0.0
    %197 = vmatpush1.msra.mxu0 0.0
    %198 = vmatprep.subr.mxu0 0.0
    %199 = vmatpush1.msra.mxu0 0.0
    %200 = vmatprep.subr.mxu0 0.0
    %201 = vmatpush1.msra.mxu0 0.0
    %202 = vmatprep.mubr.f32.mxu0 0.0
    %203 = vmatmul.mubr.f32.gmra.mrb[0].mxu0 %v130
    %v204 = vpop.f32.mrb[0].mxu0
    %v205 = vadd.f32 0.0, %v204
    %v206 = vpop.f32.mrb[0].mxu0
    %v207 = vadd.f32 0.0, %v206
    %208 = vdwg.mxu0
    %v210 = vsel %vm128, %v103, 0
    %v213 = vsel %vm42, %v101, 0
    %v216 = vsel %vm42, %v102, 0
    %218 = vmatprep.subr.mxu0 %v216
    %219 = vmatpush1.msra.mxu0 %v213
    %220 = vmatprep.subr.mxu0 0.0
    %221 = vmatpush1.msra.mxu0 0.0
    %222 = vmatprep.subr.mxu0 0.0
    %223 = vmatpush1.msra.mxu0 0.0
    %224 = vmatprep.subr.mxu0 0.0
    %225 = vmatpush1.msra.mxu0 0.0
    %226 = vmatprep.subr.mxu0 0.0
    %227 = vmatpush1.msra.mxu0 0.0
    %228 = vmatprep.subr.mxu0 0.0
    %229 = vmatpush1.msra.mxu0 0.0
    %230 = vmatprep.subr.mxu0 0.0
    %231 = vmatpush1.msra.mxu0 0.0
    %232 = vmatprep.subr.mxu0 0.0
    %233 = vmatpush1.msra.mxu0 0.0
    %234 = vmatprep.subr.mxu0 0.0
    %235 = vmatpush1.msra.mxu0 0.0
    %236 = vmatprep.subr.mxu0 0.0
    %237 = vmatpush1.msra.mxu0 0.0
    %238 = vmatprep.subr.mxu0 0.0
    %239 = vmatpush1.msra.mxu0 0.0
    %240 = vmatprep.subr.mxu0 0.0
    %241 = vmatpush1.msra.mxu0 0.0
    %242 = vmatprep.subr.mxu0 0.0
    %243 = vmatpush1.msra.mxu0 0.0
    %244 = vmatprep.subr.mxu0 0.0
    %245 = vmatpush1.msra.mxu0 0.0
    %246 = vmatprep.subr.mxu0 0.0
    %247 = vmatpush1.msra.mxu0 0.0
    %248 = vmatprep.subr.mxu0 0.0
    %249 = vmatpush1.msra.mxu0 0.0
    %250 = vmatprep.subr.mxu0 0.0
    %251 = vmatpush1.msra.mxu0 0.0
    %252 = vmatprep.subr.mxu0 0.0
    %253 = vmatpush1.msra.mxu0 0.0
    %254 = vmatprep.subr.mxu0 0.0
    %255 = vmatpush1.msra.mxu0 0.0
    %256 = vmatprep.subr.mxu0 0.0
    %257 = vmatpush1.msra.mxu0 0.0
    %258 = vmatprep.subr.mxu0 0.0
    %259 = vmatpush1.msra.mxu0 0.0
    %260 = vmatprep.subr.mxu0 0.0
    %261 = vmatpush1.msra.mxu0 0.0
    %262 = vmatprep.subr.mxu0 0.0
    %263 = vmatpush1.msra.mxu0 0.0
    %264 = vmatprep.subr.mxu0 0.0
    %265 = vmatpush1.msra.mxu0 0.0
    %266 = vmatprep.subr.mxu0 0.0
    %267 = vmatpush1.msra.mxu0 0.0
    %268 = vmatprep.subr.mxu0 0.0
    %269 = vmatpush1.msra.mxu0 0.0
    %270 = vmatprep.subr.mxu0 0.0
    %271 = vmatpush1.msra.mxu0 0.0
    %272 = vmatprep.subr.mxu0 0.0
    %273 = vmatpush1.msra.mxu0 0.0
    %274 = vmatprep.subr.mxu0 0.0
    %275 = vmatpush1.msra.mxu0 0.0
    %276 = vmatprep.subr.mxu0 0.0
    %277 = vmatpush1.msra.mxu0 0.0
    %278 = vmatprep.subr.mxu0 0.0
    %279 = vmatpush1.msra.mxu0 0.0
    %280 = vmatprep.subr.mxu0 0.0
    %281 = vmatpush1.msra.mxu0 0.0
    %282 = vmatprep.mubr.f32.mxu0 0.0
    %283 = vmatmul.mubr.f32.gmra.mrb[0].mxu0 %v210
    %v284 = vpop.f32.mrb[0].mxu0
    %v285 = vadd.f32 %v205, %v284
    %v286 = vpop.f32.mrb[0].mxu0
    %v287 = vadd.f32 %v207, %v286
    %288 = vdwg.mxu0
    %289 = vrot.lane.b32.xlu0 %v78, 15
    %v290 = vpop.permute.xlu0 %289
    %291 = vrot.lane.b32.xlu0 %v79, 15
    %v292 = vpop.permute.xlu0 %291
    %vm293 = vcmp.lt.s32.totalorder %v85, 15
    %v294 = vsel %vm293, %v290, %v292
    %v295 = vsel %vm293, %v292, %v290
    %s296 = scalar_lea.vmem %s1, 2
    %v297 = vld [vmem:[%s296] ss:$8 sm:$0x3]
    %v299 = vlaneseq
    %v300 = vshrl.u32 %v299, 7
    %v301 = vsub.s32 0, %v300
    %v302 = vrot.slane %v297, %v301
    %v303 = vlaneseq
    %v304 = vshrl.u32 %v303, 7
    %v305 = vsub.s32 1, %v304
    %v306 = vrot.slane %v297, %v305
    %v309 = vmul.f32 %v295, %v302
    %v310 = vmul.f32 %v294, %v306
    %s311 = scalar_lea.vmem %s4, 16
    %v312 = vld [vmem:[%s311] sm:$0xff]
    %v314 = vsel %vm128, %v312, 0
    %v317 = vsel %vm42, %v309, 0
    %v320 = vsel %vm42, %v310, 0
    %322 = vmatprep.subr.mxu0 %v320
    %323 = vmatpush1.msra.mxu0 %v317
    %324 = vmatprep.subr.mxu0 0.0
    %325 = vmatpush1.msra.mxu0 0.0
    %326 = vmatprep.subr.mxu0 0.0
    %327 = vmatpush1.msra.mxu0 0.0
    %328 = vmatprep.subr.mxu0 0.0
    %329 = vmatpush1.msra.mxu0 0.0
    %330 = vmatprep.subr.mxu0 0.0
    %331 = vmatpush1.msra.mxu0 0.0
    %332 = vmatprep.subr.mxu0 0.0
    %333 = vmatpush1.msra.mxu0 0.0
    %334 = vmatprep.subr.mxu0 0.0
    %335 = vmatpush1.msra.mxu0 0.0
    %336 = vmatprep.subr.mxu0 0.0
    %337 = vmatpush1.msra.mxu0 0.0
    %338 = vmatprep.subr.mxu0 0.0
    %339 = vmatpush1.msra.mxu0 0.0
    %340 = vmatprep.subr.mxu0 0.0
    %341 = vmatpush1.msra.mxu0 0.0
    %342 = vmatprep.subr.mxu0 0.0
    %343 = vmatpush1.msra.mxu0 0.0
    %344 = vmatprep.subr.mxu0 0.0
    %345 = vmatpush1.msra.mxu0 0.0
    %346 = vmatprep.subr.mxu0 0.0
    %347 = vmatpush1.msra.mxu0 0.0
    %348 = vmatprep.subr.mxu0 0.0
    %349 = vmatpush1.msra.mxu0 0.0
    %350 = vmatprep.subr.mxu0 0.0
    %351 = vmatpush1.msra.mxu0 0.0
    %352 = vmatprep.subr.mxu0 0.0
    %353 = vmatpush1.msra.mxu0 0.0
    %354 = vmatprep.subr.mxu0 0.0
    %355 = vmatpush1.msra.mxu0 0.0
    %356 = vmatprep.subr.mxu0 0.0
    %357 = vmatpush1.msra.mxu0 0.0
    %358 = vmatprep.subr.mxu0 0.0
    %359 = vmatpush1.msra.mxu0 0.0
    %360 = vmatprep.subr.mxu0 0.0
    %361 = vmatpush1.msra.mxu0 0.0
    %362 = vmatprep.subr.mxu0 0.0
    %363 = vmatpush1.msra.mxu0 0.0
    %364 = vmatprep.subr.mxu0 0.0
    %365 = vmatpush1.msra.mxu0 0.0
    %366 = vmatprep.subr.mxu0 0.0
    %367 = vmatpush1.msra.mxu0 0.0
    %368 = vmatprep.subr.mxu0 0.0
    %369 = vmatpush1.msra.mxu0 0.0
    %370 = vmatprep.subr.mxu0 0.0
    %371 = vmatpush1.msra.mxu0 0.0
    %372 = vmatprep.subr.mxu0 0.0
    %373 = vmatpush1.msra.mxu0 0.0
    %374 = vmatprep.subr.mxu0 0.0
    %375 = vmatpush1.msra.mxu0 0.0
    %376 = vmatprep.subr.mxu0 0.0
    %377 = vmatpush1.msra.mxu0 0.0
    %378 = vmatprep.subr.mxu0 0.0
    %379 = vmatpush1.msra.mxu0 0.0
    %380 = vmatprep.subr.mxu0 0.0
    %381 = vmatpush1.msra.mxu0 0.0
    %382 = vmatprep.subr.mxu0 0.0
    %383 = vmatpush1.msra.mxu0 0.0
    %384 = vmatprep.subr.mxu0 0.0
    %385 = vmatpush1.msra.mxu0 0.0
    %386 = vmatprep.mubr.f32.mxu0 0.0
    %387 = vmatmul.mubr.f32.gmra.mrb[0].mxu0 %v314
    %v388 = vpop.f32.mrb[0].mxu0
    %v389 = vadd.f32 0.0, %v388
    %v390 = vpop.f32.mrb[0].mxu0
    %v391 = vadd.f32 0.0, %v390
    %392 = vdwg.mxu0
    %v393 = vadd.f32 %v285, %v389
    %v394 = vadd.f32 %v287, %v391
    %395 = vrot.lane.b32.xlu0 %v78, 1
    %v396 = vpop.permute.xlu0 %395
    %397 = vrot.lane.b32.xlu0 %v79, 1
    %v398 = vpop.permute.xlu0 %397
    %vm399 = vcmp.lt.s32.totalorder %v85, 1
    %v400 = vsel %vm399, %v396, %v398
    %v401 = vsel %vm399, %v398, %v396
    %s402 = scalar_lea.vmem %s1, 3
    %v403 = vld [vmem:[%s402] ss:$8 sm:$0x3]
    %v405 = vlaneseq
    %v406 = vshrl.u32 %v405, 7
    %v407 = vsub.s32 0, %v406
    %v408 = vrot.slane %v403, %v407
    %v409 = vlaneseq
    %v410 = vshrl.u32 %v409, 7
    %v411 = vsub.s32 1, %v410
    %v412 = vrot.slane %v403, %v411
    %v415 = vmul.f32 %v401, %v408
    %v416 = vmul.f32 %v400, %v412
    %s417 = scalar_lea.vmem %s4, 24
    %v418 = vld [vmem:[%s417] sm:$0xff]
    %v420 = vsel %vm128, %v418, 0
    %v423 = vsel %vm42, %v415, 0
    %v426 = vsel %vm42, %v416, 0
    %428 = vmatprep.subr.mxu0 %v426
    %429 = vmatpush1.msra.mxu0 %v423
    %430 = vmatprep.subr.mxu0 0.0
    %431 = vmatpush1.msra.mxu0 0.0
    %432 = vmatprep.subr.mxu0 0.0
    %433 = vmatpush1.msra.mxu0 0.0
    %434 = vmatprep.subr.mxu0 0.0
    %435 = vmatpush1.msra.mxu0 0.0
    %436 = vmatprep.subr.mxu0 0.0
    %437 = vmatpush1.msra.mxu0 0.0
    %438 = vmatprep.subr.mxu0 0.0
    %439 = vmatpush1.msra.mxu0 0.0
    %440 = vmatprep.subr.mxu0 0.0
    %441 = vmatpush1.msra.mxu0 0.0
    %442 = vmatprep.subr.mxu0 0.0
    %443 = vmatpush1.msra.mxu0 0.0
    %444 = vmatprep.subr.mxu0 0.0
    %445 = vmatpush1.msra.mxu0 0.0
    %446 = vmatprep.subr.mxu0 0.0
    %447 = vmatpush1.msra.mxu0 0.0
    %448 = vmatprep.subr.mxu0 0.0
    %449 = vmatpush1.msra.mxu0 0.0
    %450 = vmatprep.subr.mxu0 0.0
    %451 = vmatpush1.msra.mxu0 0.0
    %452 = vmatprep.subr.mxu0 0.0
    %453 = vmatpush1.msra.mxu0 0.0
    %454 = vmatprep.subr.mxu0 0.0
    %455 = vmatpush1.msra.mxu0 0.0
    %456 = vmatprep.subr.mxu0 0.0
    %457 = vmatpush1.msra.mxu0 0.0
    %458 = vmatprep.subr.mxu0 0.0
    %459 = vmatpush1.msra.mxu0 0.0
    %460 = vmatprep.subr.mxu0 0.0
    %461 = vmatpush1.msra.mxu0 0.0
    %462 = vmatprep.subr.mxu0 0.0
    %463 = vmatpush1.msra.mxu0 0.0
    %464 = vmatprep.subr.mxu0 0.0
    %465 = vmatpush1.msra.mxu0 0.0
    %466 = vmatprep.subr.mxu0 0.0
    %467 = vmatpush1.msra.mxu0 0.0
    %468 = vmatprep.subr.mxu0 0.0
    %469 = vmatpush1.msra.mxu0 0.0
    %470 = vmatprep.subr.mxu0 0.0
    %471 = vmatpush1.msra.mxu0 0.0
    %472 = vmatprep.subr.mxu0 0.0
    %473 = vmatpush1.msra.mxu0 0.0
    %474 = vmatprep.subr.mxu0 0.0
    %475 = vmatpush1.msra.mxu0 0.0
    %476 = vmatprep.subr.mxu0 0.0
    %477 = vmatpush1.msra.mxu0 0.0
    %478 = vmatprep.subr.mxu0 0.0
    %479 = vmatpush1.msra.mxu0 0.0
    %480 = vmatprep.subr.mxu0 0.0
    %481 = vmatpush1.msra.mxu0 0.0
    %482 = vmatprep.subr.mxu0 0.0
    %483 = vmatpush1.msra.mxu0 0.0
    %484 = vmatprep.subr.mxu0 0.0
    %485 = vmatpush1.msra.mxu0 0.0
    %486 = vmatprep.subr.mxu0 0.0
    %487 = vmatpush1.msra.mxu0 0.0
    %488 = vmatprep.subr.mxu0 0.0
    %489 = vmatpush1.msra.mxu0 0.0
    %490 = vmatprep.subr.mxu0 0.0
    %491 = vmatpush1.msra.mxu0 0.0
    %492 = vmatprep.mubr.f32.mxu0 0.0
    %493 = vmatmul.mubr.f32.gmra.mrb[0].mxu0 %v420
    %v494 = vpop.f32.mrb[0].mxu0
    %v495 = vadd.f32 0.0, %v494
    %v496 = vpop.f32.mrb[0].mxu0
    %v497 = vadd.f32 0.0, %v496
    %498 = vdwg.mxu0
    %v499 = vadd.f32 %v393, %v495
    %v500 = vadd.f32 %v394, %v497
    %s501 = scalar_lea.vmem %s1, 4
    %v502 = vld [vmem:[%s501] ss:$8 sm:$0x3]
    %v504 = vlaneseq
    %v505 = vshrl.u32 %v504, 7
    %v506 = vsub.s32 0, %v505
    %v507 = vrot.slane %v502, %v506
    %v508 = vlaneseq
    %v509 = vshrl.u32 %v508, 7
    %v510 = vsub.s32 1, %v509
    %v511 = vrot.slane %v502, %v510
    %v514 = vmul.f32 %v78, %v507
    %v515 = vmul.f32 %v79, %v511
    %s516 = scalar_lea.vmem %s4, 32
    %v517 = vld [vmem:[%s516] sm:$0xff]
    %v519 = vsel %vm128, %v517, 0
    %v522 = vsel %vm42, %v514, 0
    %v525 = vsel %vm42, %v515, 0
    %527 = vmatprep.subr.mxu0 %v525
    %528 = vmatpush1.msra.mxu0 %v522
    %529 = vmatprep.subr.mxu0 0.0
    %530 = vmatpush1.msra.mxu0 0.0
    %531 = vmatprep.subr.mxu0 0.0
    %532 = vmatpush1.msra.mxu0 0.0
    %533 = vmatprep.subr.mxu0 0.0
    %534 = vmatpush1.msra.mxu0 0.0
    %535 = vmatprep.subr.mxu0 0.0
    %536 = vmatpush1.msra.mxu0 0.0
    %537 = vmatprep.subr.mxu0 0.0
    %538 = vmatpush1.msra.mxu0 0.0
    %539 = vmatprep.subr.mxu0 0.0
    %540 = vmatpush1.msra.mxu0 0.0
    %541 = vmatprep.subr.mxu0 0.0
    %542 = vmatpush1.msra.mxu0 0.0
    %543 = vmatprep.subr.mxu0 0.0
    %544 = vmatpush1.msra.mxu0 0.0
    %545 = vmatprep.subr.mxu0 0.0
    %546 = vmatpush1.msra.mxu0 0.0
    %547 = vmatprep.subr.mxu0 0.0
    %548 = vmatpush1.msra.mxu0 0.0
    %549 = vmatprep.subr.mxu0 0.0
    %550 = vmatpush1.msra.mxu0 0.0
    %551 = vmatprep.subr.mxu0 0.0
    %552 = vmatpush1.msra.mxu0 0.0
    %553 = vmatprep.subr.mxu0 0.0
    %554 = vmatpush1.msra.mxu0 0.0
    %555 = vmatprep.subr.mxu0 0.0
    %556 = vmatpush1.msra.mxu0 0.0
    %557 = vmatprep.subr.mxu0 0.0
    %558 = vmatpush1.msra.mxu0 0.0
    %559 = vmatprep.subr.mxu0 0.0
    %560 = vmatpush1.msra.mxu0 0.0
    %561 = vmatprep.subr.mxu0 0.0
    %562 = vmatpush1.msra.mxu0 0.0
    %563 = vmatprep.subr.mxu0 0.0
    %564 = vmatpush1.msra.mxu0 0.0
    %565 = vmatprep.subr.mxu0 0.0
    %566 = vmatpush1.msra.mxu0 0.0
    %567 = vmatprep.subr.mxu0 0.0
    %568 = vmatpush1.msra.mxu0 0.0
    %569 = vmatprep.subr.mxu0 0.0
    %570 = vmatpush1.msra.mxu0 0.0
    %571 = vmatprep.subr.mxu0 0.0
    %572 = vmatpush1.msra.mxu0 0.0
    %573 = vmatprep.subr.mxu0 0.0
    %574 = vmatpush1.msra.mxu0 0.0
    %575 = vmatprep.subr.mxu0 0.0
    %576 = vmatpush1.msra.mxu0 0.0
    %577 = vmatprep.subr.mxu0 0.0
    %578 = vmatpush1.msra.mxu0 0.0
    %579 = vmatprep.subr.mxu0 0.0
    %580 = vmatpush1.msra.mxu0 0.0
    %581 = vmatprep.subr.mxu0 0.0
    %582 = vmatpush1.msra.mxu0 0.0
    %583 = vmatprep.subr.mxu0 0.0
    %584 = vmatpush1.msra.mxu0 0.0
    %585 = vmatprep.subr.mxu0 0.0
    %586 = vmatpush1.msra.mxu0 0.0
    %587 = vmatprep.subr.mxu0 0.0
    %588 = vmatpush1.msra.mxu0 0.0
    %589 = vmatprep.subr.mxu0 0.0
    %590 = vmatpush1.msra.mxu0 0.0
    %591 = vmatprep.mubr.f32.mxu0 0.0
    %592 = vmatmul.mubr.f32.gmra.mrb[0].mxu0 %v519
    %v593 = vpop.f32.mrb[0].mxu0
    %v594 = vadd.f32 0.0, %v593
    %v595 = vpop.f32.mrb[0].mxu0
    %v596 = vadd.f32 0.0, %v595
    %597 = vdwg.mxu0
    %v598 = vadd.f32 %v499, %v594
    %v599 = vadd.f32 %v500, %v596
    %600 = vrot.lane.b32.xlu0 %v78, 127
    %v601 = vpop.permute.xlu0 %600
    %602 = vrot.lane.b32.xlu0 %v79, 127
    %v603 = vpop.permute.xlu0 %602
    %vm604 = vcmp.lt.s32.totalorder %v85, 127
    %v605 = vsel %vm604, %v601, %v603
    %v606 = vsel %vm604, %v603, %v601
    %s607 = scalar_lea.vmem %s1, 5
    %v608 = vld [vmem:[%s607] ss:$8 sm:$0x3]
    %v610 = vlaneseq
    %v611 = vshrl.u32 %v610, 7
    %v612 = vsub.s32 0, %v611
    %v613 = vrot.slane %v608, %v612
    %v614 = vlaneseq
    %v615 = vshrl.u32 %v614, 7
    %v616 = vsub.s32 1, %v615
    %v617 = vrot.slane %v608, %v616
    %v620 = vmul.f32 %v605, %v613
    %v621 = vmul.f32 %v606, %v617
    %s622 = scalar_lea.vmem %s4, 40
    %v623 = vld [vmem:[%s622] sm:$0xff]
    %v625 = vsel %vm128, %v623, 0
    %v628 = vsel %vm42, %v620, 0
    %v631 = vsel %vm42, %v621, 0
    %633 = vmatprep.subr.mxu0 %v631
    %634 = vmatpush1.msra.mxu0 %v628
    %635 = vmatprep.subr.mxu0 0.0
    %636 = vmatpush1.msra.mxu0 0.0
    %637 = vmatprep.subr.mxu0 0.0
    %638 = vmatpush1.msra.mxu0 0.0
    %639 = vmatprep.subr.mxu0 0.0
    %640 = vmatpush1.msra.mxu0 0.0
    %641 = vmatprep.subr.mxu0 0.0
    %642 = vmatpush1.msra.mxu0 0.0
    %643 = vmatprep.subr.mxu0 0.0
    %644 = vmatpush1.msra.mxu0 0.0
    %645 = vmatprep.subr.mxu0 0.0
    %646 = vmatpush1.msra.mxu0 0.0
    %647 = vmatprep.subr.mxu0 0.0
    %648 = vmatpush1.msra.mxu0 0.0
    %649 = vmatprep.subr.mxu0 0.0
    %650 = vmatpush1.msra.mxu0 0.0
    %651 = vmatprep.subr.mxu0 0.0
    %652 = vmatpush1.msra.mxu0 0.0
    %653 = vmatprep.subr.mxu0 0.0
    %654 = vmatpush1.msra.mxu0 0.0
    %655 = vmatprep.subr.mxu0 0.0
    %656 = vmatpush1.msra.mxu0 0.0
    %657 = vmatprep.subr.mxu0 0.0
    %658 = vmatpush1.msra.mxu0 0.0
    %659 = vmatprep.subr.mxu0 0.0
    %660 = vmatpush1.msra.mxu0 0.0
    %661 = vmatprep.subr.mxu0 0.0
    %662 = vmatpush1.msra.mxu0 0.0
    %663 = vmatprep.subr.mxu0 0.0
    %664 = vmatpush1.msra.mxu0 0.0
    %665 = vmatprep.subr.mxu0 0.0
    %666 = vmatpush1.msra.mxu0 0.0
    %667 = vmatprep.subr.mxu0 0.0
    %668 = vmatpush1.msra.mxu0 0.0
    %669 = vmatprep.subr.mxu0 0.0
    %670 = vmatpush1.msra.mxu0 0.0
    %671 = vmatprep.subr.mxu0 0.0
    %672 = vmatpush1.msra.mxu0 0.0
    %673 = vmatprep.subr.mxu0 0.0
    %674 = vmatpush1.msra.mxu0 0.0
    %675 = vmatprep.subr.mxu0 0.0
    %676 = vmatpush1.msra.mxu0 0.0
    %677 = vmatprep.subr.mxu0 0.0
    %678 = vmatpush1.msra.mxu0 0.0
    %679 = vmatprep.subr.mxu0 0.0
    %680 = vmatpush1.msra.mxu0 0.0
    %681 = vmatprep.subr.mxu0 0.0
    %682 = vmatpush1.msra.mxu0 0.0
    %683 = vmatprep.subr.mxu0 0.0
    %684 = vmatpush1.msra.mxu0 0.0
    %685 = vmatprep.subr.mxu0 0.0
    %686 = vmatpush1.msra.mxu0 0.0
    %687 = vmatprep.subr.mxu0 0.0
    %688 = vmatpush1.msra.mxu0 0.0
    %689 = vmatprep.subr.mxu0 0.0
    %690 = vmatpush1.msra.mxu0 0.0
    %691 = vmatprep.subr.mxu0 0.0
    %692 = vmatpush1.msra.mxu0 0.0
    %693 = vmatprep.subr.mxu0 0.0
    %694 = vmatpush1.msra.mxu0 0.0
    %695 = vmatprep.subr.mxu0 0.0
    %696 = vmatpush1.msra.mxu0 0.0
    %697 = vmatprep.mubr.f32.mxu0 0.0
    %698 = vmatmul.mubr.f32.gmra.mrb[0].mxu0 %v625
    %v699 = vpop.f32.mrb[0].mxu0
    %v700 = vadd.f32 0.0, %v699
    %v701 = vpop.f32.mrb[0].mxu0
    %v702 = vadd.f32 0.0, %v701
    %703 = vdwg.mxu0
    %v704 = vadd.f32 %v598, %v700
    %v705 = vadd.f32 %v599, %v702
    %706 = vrot.lane.b32.xlu0 %v78, 113
    %v707 = vpop.permute.xlu0 %706
    %708 = vrot.lane.b32.xlu0 %v79, 113
    %v709 = vpop.permute.xlu0 %708
    %vm710 = vcmp.lt.s32.totalorder %v85, 113
    %v711 = vsel %vm710, %v707, %v709
    %v712 = vsel %vm710, %v709, %v707
    %s713 = scalar_lea.vmem %s1, 6
    %v714 = vld [vmem:[%s713] ss:$8 sm:$0x3]
    %v716 = vlaneseq
    %v717 = vshrl.u32 %v716, 7
    %v718 = vsub.s32 0, %v717
    %v719 = vrot.slane %v714, %v718
    %v720 = vlaneseq
    %v721 = vshrl.u32 %v720, 7
    %v722 = vsub.s32 1, %v721
    %v723 = vrot.slane %v714, %v722
    %v726 = vmul.f32 %v711, %v719
    %v727 = vmul.f32 %v712, %v723
    %s728 = scalar_lea.vmem %s4, 48
    %v729 = vld [vmem:[%s728] sm:$0xff]
    %v731 = vsel %vm128, %v729, 0
    %v734 = vsel %vm42, %v726, 0
    %v737 = vsel %vm42, %v727, 0
    %739 = vmatprep.subr.mxu0 %v737
    %740 = vmatpush1.msra.mxu0 %v734
    %741 = vmatprep.subr.mxu0 0.0
    %742 = vmatpush1.msra.mxu0 0.0
    %743 = vmatprep.subr.mxu0 0.0
    %744 = vmatpush1.msra.mxu0 0.0
    %745 = vmatprep.subr.mxu0 0.0
    %746 = vmatpush1.msra.mxu0 0.0
    %747 = vmatprep.subr.mxu0 0.0
    %748 = vmatpush1.msra.mxu0 0.0
    %749 = vmatprep.subr.mxu0 0.0
    %750 = vmatpush1.msra.mxu0 0.0
    %751 = vmatprep.subr.mxu0 0.0
    %752 = vmatpush1.msra.mxu0 0.0
    %753 = vmatprep.subr.mxu0 0.0
    %754 = vmatpush1.msra.mxu0 0.0
    %755 = vmatprep.subr.mxu0 0.0
    %756 = vmatpush1.msra.mxu0 0.0
    %757 = vmatprep.subr.mxu0 0.0
    %758 = vmatpush1.msra.mxu0 0.0
    %759 = vmatprep.subr.mxu0 0.0
    %760 = vmatpush1.msra.mxu0 0.0
    %761 = vmatprep.subr.mxu0 0.0
    %762 = vmatpush1.msra.mxu0 0.0
    %763 = vmatprep.subr.mxu0 0.0
    %764 = vmatpush1.msra.mxu0 0.0
    %765 = vmatprep.subr.mxu0 0.0
    %766 = vmatpush1.msra.mxu0 0.0
    %767 = vmatprep.subr.mxu0 0.0
    %768 = vmatpush1.msra.mxu0 0.0
    %769 = vmatprep.subr.mxu0 0.0
    %770 = vmatpush1.msra.mxu0 0.0
    %771 = vmatprep.subr.mxu0 0.0
    %772 = vmatpush1.msra.mxu0 0.0
    %773 = vmatprep.subr.mxu0 0.0
    %774 = vmatpush1.msra.mxu0 0.0
    %775 = vmatprep.subr.mxu0 0.0
    %776 = vmatpush1.msra.mxu0 0.0
    %777 = vmatprep.subr.mxu0 0.0
    %778 = vmatpush1.msra.mxu0 0.0
    %779 = vmatprep.subr.mxu0 0.0
    %780 = vmatpush1.msra.mxu0 0.0
    %781 = vmatprep.subr.mxu0 0.0
    %782 = vmatpush1.msra.mxu0 0.0
    %783 = vmatprep.subr.mxu0 0.0
    %784 = vmatpush1.msra.mxu0 0.0
    %785 = vmatprep.subr.mxu0 0.0
    %786 = vmatpush1.msra.mxu0 0.0
    %787 = vmatprep.subr.mxu0 0.0
    %788 = vmatpush1.msra.mxu0 0.0
    %789 = vmatprep.subr.mxu0 0.0
    %790 = vmatpush1.msra.mxu0 0.0
    %791 = vmatprep.subr.mxu0 0.0
    %792 = vmatpush1.msra.mxu0 0.0
    %793 = vmatprep.subr.mxu0 0.0
    %794 = vmatpush1.msra.mxu0 0.0
    %795 = vmatprep.subr.mxu0 0.0
    %796 = vmatpush1.msra.mxu0 0.0
    %797 = vmatprep.subr.mxu0 0.0
    %798 = vmatpush1.msra.mxu0 0.0
    %799 = vmatprep.subr.mxu0 0.0
    %800 = vmatpush1.msra.mxu0 0.0
    %801 = vmatprep.subr.mxu0 0.0
    %802 = vmatpush1.msra.mxu0 0.0
    %803 = vmatprep.mubr.f32.mxu0 0.0
    %804 = vmatmul.mubr.f32.gmra.mrb[0].mxu0 %v731
    %v805 = vpop.f32.mrb[0].mxu0
    %v806 = vadd.f32 0.0, %v805
    %v807 = vpop.f32.mrb[0].mxu0
    %v808 = vadd.f32 0.0, %v807
    %809 = vdwg.mxu0
    %v810 = vadd.f32 %v704, %v806
    %v811 = vadd.f32 %v705, %v808
    %812 = vrot.lane.b32.xlu0 %v78, 112
    %v813 = vpop.permute.xlu0 %812
    %814 = vrot.lane.b32.xlu0 %v79, 112
    %v815 = vpop.permute.xlu0 %814
    %vm816 = vcmp.lt.s32.totalorder %v85, 112
    %v817 = vsel %vm816, %v813, %v815
    %v818 = vsel %vm816, %v815, %v813
    %s819 = scalar_lea.vmem %s1, 7
    %v820 = vld [vmem:[%s819] ss:$8 sm:$0x3]
    %v822 = vlaneseq
    %v823 = vshrl.u32 %v822, 7
    %v824 = vsub.s32 0, %v823
    %v825 = vrot.slane %v820, %v824
    %v826 = vlaneseq
    %v827 = vshrl.u32 %v826, 7
    %v828 = vsub.s32 1, %v827
    %v829 = vrot.slane %v820, %v828
    %v832 = vmul.f32 %v817, %v825
    %v833 = vmul.f32 %v818, %v829
    %s834 = scalar_lea.vmem %s4, 56
    %v835 = vld [vmem:[%s834] sm:$0xff]
    %v837 = vsel %vm128, %v835, 0
    %v840 = vsel %vm42, %v832, 0
    %v843 = vsel %vm42, %v833, 0
    %845 = vmatprep.subr.mxu0 %v843
    %846 = vmatpush1.msra.mxu0 %v840
    %847 = vmatprep.subr.mxu0 0.0
    %848 = vmatpush1.msra.mxu0 0.0
    %849 = vmatprep.subr.mxu0 0.0
    %850 = vmatpush1.msra.mxu0 0.0
    %851 = vmatprep.subr.mxu0 0.0
    %852 = vmatpush1.msra.mxu0 0.0
    %853 = vmatprep.subr.mxu0 0.0
    %854 = vmatpush1.msra.mxu0 0.0
    %855 = vmatprep.subr.mxu0 0.0
    %856 = vmatpush1.msra.mxu0 0.0
    %857 = vmatprep.subr.mxu0 0.0
    %858 = vmatpush1.msra.mxu0 0.0
    %859 = vmatprep.subr.mxu0 0.0
    %860 = vmatpush1.msra.mxu0 0.0
    %861 = vmatprep.subr.mxu0 0.0
    %862 = vmatpush1.msra.mxu0 0.0
    %863 = vmatprep.subr.mxu0 0.0
    %864 = vmatpush1.msra.mxu0 0.0
    %865 = vmatprep.subr.mxu0 0.0
    %866 = vmatpush1.msra.mxu0 0.0
    %867 = vmatprep.subr.mxu0 0.0
    %868 = vmatpush1.msra.mxu0 0.0
    %869 = vmatprep.subr.mxu0 0.0
    %870 = vmatpush1.msra.mxu0 0.0
    %871 = vmatprep.subr.mxu0 0.0
    %872 = vmatpush1.msra.mxu0 0.0
    %873 = vmatprep.subr.mxu0 0.0
    %874 = vmatpush1.msra.mxu0 0.0
    %875 = vmatprep.subr.mxu0 0.0
    %876 = vmatpush1.msra.mxu0 0.0
    %877 = vmatprep.subr.mxu0 0.0
    %878 = vmatpush1.msra.mxu0 0.0
    %879 = vmatprep.subr.mxu0 0.0
    %880 = vmatpush1.msra.mxu0 0.0
    %881 = vmatprep.subr.mxu0 0.0
    %882 = vmatpush1.msra.mxu0 0.0
    %883 = vmatprep.subr.mxu0 0.0
    %884 = vmatpush1.msra.mxu0 0.0
    %885 = vmatprep.subr.mxu0 0.0
    %886 = vmatpush1.msra.mxu0 0.0
    %887 = vmatprep.subr.mxu0 0.0
    %888 = vmatpush1.msra.mxu0 0.0
    %889 = vmatprep.subr.mxu0 0.0
    %890 = vmatpush1.msra.mxu0 0.0
    %891 = vmatprep.subr.mxu0 0.0
    %892 = vmatpush1.msra.mxu0 0.0
    %893 = vmatprep.subr.mxu0 0.0
    %894 = vmatpush1.msra.mxu0 0.0
    %895 = vmatprep.subr.mxu0 0.0
    %896 = vmatpush1.msra.mxu0 0.0
    %897 = vmatprep.subr.mxu0 0.0
    %898 = vmatpush1.msra.mxu0 0.0
    %899 = vmatprep.subr.mxu0 0.0
    %900 = vmatpush1.msra.mxu0 0.0
    %901 = vmatprep.subr.mxu0 0.0
    %902 = vmatpush1.msra.mxu0 0.0
    %903 = vmatprep.subr.mxu0 0.0
    %904 = vmatpush1.msra.mxu0 0.0
    %905 = vmatprep.subr.mxu0 0.0
    %906 = vmatpush1.msra.mxu0 0.0
    %907 = vmatprep.subr.mxu0 0.0
    %908 = vmatpush1.msra.mxu0 0.0
    %909 = vmatprep.mubr.f32.mxu0 0.0
    %910 = vmatmul.mubr.f32.gmra.mrb[0].mxu0 %v837
    %v911 = vpop.f32.mrb[0].mxu0
    %v912 = vadd.f32 0.0, %v911
    %v913 = vpop.f32.mrb[0].mxu0
    %v914 = vadd.f32 0.0, %v913
    %915 = vdwg.mxu0
    %v916 = vadd.f32 %v810, %v912
    %v917 = vadd.f32 %v811, %v914
    %918 = vrot.lane.b32.xlu0 %v78, 111
    %v919 = vpop.permute.xlu0 %918
    %920 = vrot.lane.b32.xlu0 %v79, 111
    %v921 = vpop.permute.xlu0 %920
    %vm922 = vcmp.lt.s32.totalorder %v85, 111
    %v923 = vsel %vm922, %v919, %v921
    %v924 = vsel %vm922, %v921, %v919
    %s925 = scalar_lea.vmem %s1, 16
    %v926 = vld [vmem:[%s925] ss:$8 sm:$0x3]
    %v928 = vlaneseq
    %v929 = vshrl.u32 %v928, 7
    %v930 = vsub.s32 0, %v929
    %v931 = vrot.slane %v926, %v930
    %v932 = vlaneseq
    %v933 = vshrl.u32 %v932, 7
    %v934 = vsub.s32 1, %v933
    %v935 = vrot.slane %v926, %v934
    %v938 = vmul.f32 %v923, %v931
    %v939 = vmul.f32 %v924, %v935
    %s940 = scalar_lea.vmem %s4, 64
    %v941 = vld [vmem:[%s940] sm:$0xff]
    %v943 = vsel %vm128, %v941, 0
    %v946 = vsel %vm42, %v938, 0
    %v949 = vsel %vm42, %v939, 0
    %951 = vmatprep.subr.mxu0 %v949
    %952 = vmatpush1.msra.mxu0 %v946
    %953 = vmatprep.subr.mxu0 0.0
    %954 = vmatpush1.msra.mxu0 0.0
    %955 = vmatprep.subr.mxu0 0.0
    %956 = vmatpush1.msra.mxu0 0.0
    %957 = vmatprep.subr.mxu0 0.0
    %958 = vmatpush1.msra.mxu0 0.0
    %959 = vmatprep.subr.mxu0 0.0
    %960 = vmatpush1.msra.mxu0 0.0
    %961 = vmatprep.subr.mxu0 0.0
    %962 = vmatpush1.msra.mxu0 0.0
    %963 = vmatprep.subr.mxu0 0.0
    %964 = vmatpush1.msra.mxu0 0.0
    %965 = vmatprep.subr.mxu0 0.0
    %966 = vmatpush1.msra.mxu0 0.0
    %967 = vmatprep.subr.mxu0 0.0
    %968 = vmatpush1.msra.mxu0 0.0
    %969 = vmatprep.subr.mxu0 0.0
    %970 = vmatpush1.msra.mxu0 0.0
    %971 = vmatprep.subr.mxu0 0.0
    %972 = vmatpush1.msra.mxu0 0.0
    %973 = vmatprep.subr.mxu0 0.0
    %974 = vmatpush1.msra.mxu0 0.0
    %975 = vmatprep.subr.mxu0 0.0
    %976 = vmatpush1.msra.mxu0 0.0
    %977 = vmatprep.subr.mxu0 0.0
    %978 = vmatpush1.msra.mxu0 0.0
    %979 = vmatprep.subr.mxu0 0.0
    %980 = vmatpush1.msra.mxu0 0.0
    %981 = vmatprep.subr.mxu0 0.0
    %982 = vmatpush1.msra.mxu0 0.0
    %983 = vmatprep.subr.mxu0 0.0
    %984 = vmatpush1.msra.mxu0 0.0
    %985 = vmatprep.subr.mxu0 0.0
    %986 = vmatpush1.msra.mxu0 0.0
    %987 = vmatprep.subr.mxu0 0.0
    %988 = vmatpush1.msra.mxu0 0.0
    %989 = vmatprep.subr.mxu0 0.0
    %990 = vmatpush1.msra.mxu0 0.0
    %991 = vmatprep.subr.mxu0 0.0
    %992 = vmatpush1.msra.mxu0 0.0
    %993 = vmatprep.subr.mxu0 0.0
    %994 = vmatpush1.msra.mxu0 0.0
    %995 = vmatprep.subr.mxu0 0.0
    %996 = vmatpush1.msra.mxu0 0.0
    %997 = vmatprep.subr.mxu0 0.0
    %998 = vmatpush1.msra.mxu0 0.0
    %999 = vmatprep.subr.mxu0 0.0
    %1000 = vmatpush1.msra.mxu0 0.0
    %1001 = vmatprep.subr.mxu0 0.0
    %1002 = vmatpush1.msra.mxu0 0.0
    %1003 = vmatprep.subr.mxu0 0.0
    %1004 = vmatpush1.msra.mxu0 0.0
    %1005 = vmatprep.subr.mxu0 0.0
    %1006 = vmatpush1.msra.mxu0 0.0
    %1007 = vmatprep.subr.mxu0 0.0
    %1008 = vmatpush1.msra.mxu0 0.0
    %1009 = vmatprep.subr.mxu0 0.0
    %1010 = vmatpush1.msra.mxu0 0.0
    %1011 = vmatprep.subr.mxu0 0.0
    %1012 = vmatpush1.msra.mxu0 0.0
    %1013 = vmatprep.subr.mxu0 0.0
    %1014 = vmatpush1.msra.mxu0 0.0
    %1015 = vmatprep.mubr.f32.mxu0 0.0
    %1016 = vmatmul.mubr.f32.gmra.mrb[0].mxu0 %v943
    %v1017 = vpop.f32.mrb[0].mxu0
    %v1018 = vadd.f32 0.0, %v1017
    %v1019 = vpop.f32.mrb[0].mxu0
    %v1020 = vadd.f32 0.0, %v1019
    %1021 = vdwg.mxu0
    %v1022 = vadd.f32 %v916, %v1018
    %v1023 = vadd.f32 %v917, %v1020
    %v1024 = vld [vmem:[%s5] sm:$0xff]
    %1026 = vset.pattern.permute.xlu0 0
    %1027 = vperm.xlu0 %1026, %v1024
    %v1028 = vpop.permute.xlu0 %1027
    %v1030 = vadd.f32 %v1022, %v1028
    %v1031 = vadd.f32 %v1023, %v1028
    %v1032 = vld [vmem:[%s6] sm:$0xff]
    %v1033 = vmul.f32 %v1030, %v1030
    %v1034 = vmul.f32 %v1031, %v1031
    %v1035 = vadd.f32 %v1033, %v1034
    %1036 = vadd.xlane.f32.xlu0 %v1035
    %v1037 = vpop.xlane.xlu0 %1036
    %v1038 = vmul.f32 %v1037, %v48
    %v1039 = vadd.f32 %v1038, 1e-05
    %v1040 = vrsqrt.pop %v1039
    %v1041 = vmul.f32 %v1030, %v1040
    %v1042 = vmul.f32 %v1031, %v1040
    %1044 = vset.pattern.permute.xlu0 0
    %1045 = vperm.xlu0 %1044, %v1032
    %v1046 = vpop.permute.xlu0 %1045
    %v1048 = vmul.f32 %v1046, %v1041
    %v1049 = vmul.f32 %v1046, %v1042
    %v1050 = vld [vmem:[%s7] sm:$0xff]
    %1052 = vset.pattern.permute.xlu0 0
    %1053 = vperm.xlu0 %1052, %v1050
    %v1054 = vpop.permute.xlu0 %1053
    %v1056 = vmax.f32 %v1048, %v1054
    %v1057 = vmax.f32 %v1049, %v1054
    %1058 = vrot.lane.b32.xlu0 %v1056, 17
    %v1059 = vpop.permute.xlu0 %1058
    %1060 = vrot.lane.b32.xlu0 %v1057, 17
    %v1061 = vpop.permute.xlu0 %1060
    %v1062 = vsel %vm86, %v1059, %v1061
    %v1063 = vsel %vm86, %v1061, %v1059
    %v1064 = vmul.f32 %v1063, %v94
    %v1065 = vmul.f32 %v1062, %v98
    %v1066 = vld [vmem:[%s8] sm:$0xff]
    %1067 = vrot.lane.b32.xlu0 %v1056, 16
    %v1068 = vpop.permute.xlu0 %1067
    %1069 = vrot.lane.b32.xlu0 %v1057, 16
    %v1070 = vpop.permute.xlu0 %1069
    %v1071 = vsel %vm108, %v1068, %v1070
    %v1072 = vsel %vm108, %v1070, %v1068
    %v1073 = vmul.f32 %v1072, %v117
    %v1074 = vmul.f32 %v1071, %v121
    %s1075 = scalar_lea.vmem %s8, 8
    %v1076 = vld [vmem:[%s1075] sm:$0xff]
    %vm1077 = vcmask 64512
    %v1079 = vsel %vm1077, %v1076, 0
    %1081 = vmatprep.subr.mxu0 %v1074
    %1082 = vmatpush1.msra.mxu0 %v1073
    %1083 = vmatprep.subr.mxu0 0.0
    %1084 = vmatpush1.msra.mxu0 0.0
    %1085 = vmatprep.subr.mxu0 0.0
    %1086 = vmatpush1.msra.mxu0 0.0
    %1087 = vmatprep.subr.mxu0 0.0
    %1088 = vmatpush1.msra.mxu0 0.0
    %1089 = vmatprep.subr.mxu0 0.0
    %1090 = vmatpush1.msra.mxu0 0.0
    %1091 = vmatprep.subr.mxu0 0.0
    %1092 = vmatpush1.msra.mxu0 0.0
    %1093 = vmatprep.subr.mxu0 0.0
    %1094 = vmatpush1.msra.mxu0 0.0
    %1095 = vmatprep.subr.mxu0 0.0
    %1096 = vmatpush1.msra.mxu0 0.0
    %1097 = vmatprep.subr.mxu0 0.0
    %1098 = vmatpush1.msra.mxu0 0.0
    %1099 = vmatprep.subr.mxu0 0.0
    %1100 = vmatpush1.msra.mxu0 0.0
    %1101 = vmatprep.subr.mxu0 0.0
    %1102 = vmatpush1.msra.mxu0 0.0
    %1103 = vmatprep.subr.mxu0 0.0
    %1104 = vmatpush1.msra.mxu0 0.0
    %1105 = vmatprep.subr.mxu0 0.0
    %1106 = vmatpush1.msra.mxu0 0.0
    %1107 = vmatprep.subr.mxu0 0.0
    %1108 = vmatpush1.msra.mxu0 0.0
    %1109 = vmatprep.subr.mxu0 0.0
    %1110 = vmatpush1.msra.mxu0 0.0
    %1111 = vmatprep.subr.mxu0 0.0
    %1112 = vmatpush1.msra.mxu0 0.0
    %1113 = vmatprep.subr.mxu0 0.0
    %1114 = vmatpush1.msra.mxu0 0.0
    %1115 = vmatprep.subr.mxu0 0.0
    %1116 = vmatpush1.msra.mxu0 0.0
    %1117 = vmatprep.subr.mxu0 0.0
    %1118 = vmatpush1.msra.mxu0 0.0
    %1119 = vmatprep.subr.mxu0 0.0
    %1120 = vmatpush1.msra.mxu0 0.0
    %1121 = vmatprep.subr.mxu0 0.0
    %1122 = vmatpush1.msra.mxu0 0.0
    %1123 = vmatprep.subr.mxu0 0.0
    %1124 = vmatpush1.msra.mxu0 0.0
    %1125 = vmatprep.subr.mxu0 0.0
    %1126 = vmatpush1.msra.mxu0 0.0
    %1127 = vmatprep.subr.mxu0 0.0
    %1128 = vmatpush1.msra.mxu0 0.0
    %1129 = vmatprep.subr.mxu0 0.0
    %1130 = vmatpush1.msra.mxu0 0.0
    %1131 = vmatprep.subr.mxu0 0.0
    %1132 = vmatpush1.msra.mxu0 0.0
    %1133 = vmatprep.subr.mxu0 0.0
    %1134 = vmatpush1.msra.mxu0 0.0
    %1135 = vmatprep.subr.mxu0 0.0
    %1136 = vmatpush1.msra.mxu0 0.0
    %1137 = vmatprep.subr.mxu0 0.0
    %1138 = vmatpush1.msra.mxu0 0.0
    %1139 = vmatprep.subr.mxu0 0.0
    %1140 = vmatpush1.msra.mxu0 0.0
    %1141 = vmatprep.subr.mxu0 0.0
    %1142 = vmatpush1.msra.mxu0 0.0
    %1143 = vmatprep.subr.mxu0 0.0
    %1144 = vmatpush1.msra.mxu0 0.0
    %1145 = vmatprep.mubr.f32.mxu0 0.0
    %1146 = vmatmul.mubr.f32.gmra.mrb[0].mxu0 %v1079
    %v1147 = vpop.f32.mrb[0].mxu0
    %v1148 = vadd.f32 0.0, %v1147
    %v1149 = vpop.f32.mrb[0].mxu0
    %v1150 = vadd.f32 0.0, %v1149
    %1151 = vdwg.mxu0
    %v1153 = vsel %vm1077, %v1066, 0
    %1155 = vmatprep.subr.mxu0 %v1065
    %1156 = vmatpush1.msra.mxu0 %v1064
    %1157 = vmatprep.subr.mxu0 0.0
    %1158 = vmatpush1.msra.mxu0 0.0
    %1159 = vmatprep.subr.mxu0 0.0
    %1160 = vmatpush1.msra.mxu0 0.0
    %1161 = vmatprep.subr.mxu0 0.0
    %1162 = vmatpush1.msra.mxu0 0.0
    %1163 = vmatprep.subr.mxu0 0.0
    %1164 = vmatpush1.msra.mxu0 0.0
    %1165 = vmatprep.subr.mxu0 0.0
    %1166 = vmatpush1.msra.mxu0 0.0
    %1167 = vmatprep.subr.mxu0 0.0
    %1168 = vmatpush1.msra.mxu0 0.0
    %1169 = vmatprep.subr.mxu0 0.0
    %1170 = vmatpush1.msra.mxu0 0.0
    %1171 = vmatprep.subr.mxu0 0.0
    %1172 = vmatpush1.msra.mxu0 0.0
    %1173 = vmatprep.subr.mxu0 0.0
    %1174 = vmatpush1.msra.mxu0 0.0
    %1175 = vmatprep.subr.mxu0 0.0
    %1176 = vmatpush1.msra.mxu0 0.0
    %1177 = vmatprep.subr.mxu0 0.0
    %1178 = vmatpush1.msra.mxu0 0.0
    %1179 = vmatprep.subr.mxu0 0.0
    %1180 = vmatpush1.msra.mxu0 0.0
    %1181 = vmatprep.subr.mxu0 0.0
    %1182 = vmatpush1.msra.mxu0 0.0
    %1183 = vmatprep.subr.mxu0 0.0
    %1184 = vmatpush1.msra.mxu0 0.0
    %1185 = vmatprep.subr.mxu0 0.0
    %1186 = vmatpush1.msra.mxu0 0.0
    %1187 = vmatprep.subr.mxu0 0.0
    %1188 = vmatpush1.msra.mxu0 0.0
    %1189 = vmatprep.subr.mxu0 0.0
    %1190 = vmatpush1.msra.mxu0 0.0
    %1191 = vmatprep.subr.mxu0 0.0
    %1192 = vmatpush1.msra.mxu0 0.0
    %1193 = vmatprep.subr.mxu0 0.0
    %1194 = vmatpush1.msra.mxu0 0.0
    %1195 = vmatprep.subr.mxu0 0.0
    %1196 = vmatpush1.msra.mxu0 0.0
    %1197 = vmatprep.subr.mxu0 0.0
    %1198 = vmatpush1.msra.mxu0 0.0
    %1199 = vmatprep.subr.mxu0 0.0
    %1200 = vmatpush1.msra.mxu0 0.0
    %1201 = vmatprep.subr.mxu0 0.0
    %1202 = vmatpush1.msra.mxu0 0.0
    %1203 = vmatprep.subr.mxu0 0.0
    %1204 = vmatpush1.msra.mxu0 0.0
    %1205 = vmatprep.subr.mxu0 0.0
    %1206 = vmatpush1.msra.mxu0 0.0
    %1207 = vmatprep.subr.mxu0 0.0
    %1208 = vmatpush1.msra.mxu0 0.0
    %1209 = vmatprep.subr.mxu0 0.0
    %1210 = vmatpush1.msra.mxu0 0.0
    %1211 = vmatprep.subr.mxu0 0.0
    %1212 = vmatpush1.msra.mxu0 0.0
    %1213 = vmatprep.subr.mxu0 0.0
    %1214 = vmatpush1.msra.mxu0 0.0
    %1215 = vmatprep.subr.mxu0 0.0
    %1216 = vmatpush1.msra.mxu0 0.0
    %1217 = vmatprep.subr.mxu0 0.0
    %1218 = vmatpush1.msra.mxu0 0.0
    %1219 = vmatprep.mubr.f32.mxu0 0.0
    %1220 = vmatmul.mubr.f32.gmra.mrb[0].mxu0 %v1153
    %v1221 = vpop.f32.mrb[0].mxu0
    %v1222 = vadd.f32 %v1148, %v1221
    %v1223 = vpop.f32.mrb[0].mxu0
    %v1224 = vadd.f32 %v1150, %v1223
    %1225 = vdwg.mxu0
    %1226 = vrot.lane.b32.xlu0 %v1056, 15
    %v1227 = vpop.permute.xlu0 %1226
    %1228 = vrot.lane.b32.xlu0 %v1057, 15
    %v1229 = vpop.permute.xlu0 %1228
    %v1230 = vsel %vm293, %v1227, %v1229
    %v1231 = vsel %vm293, %v1229, %v1227
    %v1232 = vmul.f32 %v1231, %v302
    %v1233 = vmul.f32 %v1230, %v306
    %s1234 = scalar_lea.vmem %s8, 16
    %v1235 = vld [vmem:[%s1234] sm:$0xff]
    %v1237 = vsel %vm1077, %v1235, 0
    %1239 = vmatprep.subr.mxu0 %v1233
    %1240 = vmatpush1.msra.mxu0 %v1232
    %1241 = vmatprep.subr.mxu0 0.0
    %1242 = vmatpush1.msra.mxu0 0.0
    %1243 = vmatprep.subr.mxu0 0.0
    %1244 = vmatpush1.msra.mxu0 0.0
    %1245 = vmatprep.subr.mxu0 0.0
    %1246 = vmatpush1.msra.mxu0 0.0
    %1247 = vmatprep.subr.mxu0 0.0
    %1248 = vmatpush1.msra.mxu0 0.0
    %1249 = vmatprep.subr.mxu0 0.0
    %1250 = vmatpush1.msra.mxu0 0.0
    %1251 = vmatprep.subr.mxu0 0.0
    %1252 = vmatpush1.msra.mxu0 0.0
    %1253 = vmatprep.subr.mxu0 0.0
    %1254 = vmatpush1.msra.mxu0 0.0
    %1255 = vmatprep.subr.mxu0 0.0
    %1256 = vmatpush1.msra.mxu0 0.0
    %1257 = vmatprep.subr.mxu0 0.0
    %1258 = vmatpush1.msra.mxu0 0.0
    %1259 = vmatprep.subr.mxu0 0.0
    %1260 = vmatpush1.msra.mxu0 0.0
    %1261 = vmatprep.subr.mxu0 0.0
    %1262 = vmatpush1.msra.mxu0 0.0
    %1263 = vmatprep.subr.mxu0 0.0
    %1264 = vmatpush1.msra.mxu0 0.0
    %1265 = vmatprep.subr.mxu0 0.0
    %1266 = vmatpush1.msra.mxu0 0.0
    %1267 = vmatprep.subr.mxu0 0.0
    %1268 = vmatpush1.msra.mxu0 0.0
    %1269 = vmatprep.subr.mxu0 0.0
    %1270 = vmatpush1.msra.mxu0 0.0
    %1271 = vmatprep.subr.mxu0 0.0
    %1272 = vmatpush1.msra.mxu0 0.0
    %1273 = vmatprep.subr.mxu0 0.0
    %1274 = vmatpush1.msra.mxu0 0.0
    %1275 = vmatprep.subr.mxu0 0.0
    %1276 = vmatpush1.msra.mxu0 0.0
    %1277 = vmatprep.subr.mxu0 0.0
    %1278 = vmatpush1.msra.mxu0 0.0
    %1279 = vmatprep.subr.mxu0 0.0
    %1280 = vmatpush1.msra.mxu0 0.0
    %1281 = vmatprep.subr.mxu0 0.0
    %1282 = vmatpush1.msra.mxu0 0.0
    %1283 = vmatprep.subr.mxu0 0.0
    %1284 = vmatpush1.msra.mxu0 0.0
    %1285 = vmatprep.subr.mxu0 0.0
    %1286 = vmatpush1.msra.mxu0 0.0
    %1287 = vmatprep.subr.mxu0 0.0
    %1288 = vmatpush1.msra.mxu0 0.0
    %1289 = vmatprep.subr.mxu0 0.0
    %1290 = vmatpush1.msra.mxu0 0.0
    %1291 = vmatprep.subr.mxu0 0.0
    %1292 = vmatpush1.msra.mxu0 0.0
    %1293 = vmatprep.subr.mxu0 0.0
    %1294 = vmatpush1.msra.mxu0 0.0
    %1295 = vmatprep.subr.mxu0 0.0
    %1296 = vmatpush1.msra.mxu0 0.0
    %1297 = vmatprep.subr.mxu0 0.0
    %1298 = vmatpush1.msra.mxu0 0.0
    %1299 = vmatprep.subr.mxu0 0.0
    %1300 = vmatpush1.msra.mxu0 0.0
    %1301 = vmatprep.subr.mxu0 0.0
    %1302 = vmatpush1.msra.mxu0 0.0
    %1303 = vmatprep.mubr.f32.mxu0 0.0
    %1304 = vmatmul.mubr.f32.gmra.mrb[0].mxu0 %v1237
    %v1305 = vpop.f32.mrb[0].mxu0
    %v1306 = vadd.f32 0.0, %v1305
    %v1307 = vpop.f32.mrb[0].mxu0
    %v1308 = vadd.f32 0.0, %v1307
    %1309 = vdwg.mxu0
    %v1310 = vadd.f32 %v1222, %v1306
    %v1311 = vadd.f32 %v1224, %v1308
    %1312 = vrot.lane.b32.xlu0 %v1056, 1
    %v1313 = vpop.permute.xlu0 %1312
    %1314 = vrot.lane.b32.xlu0 %v1057, 1
    %v1315 = vpop.permute.xlu0 %1314
    %v1316 = vsel %vm399, %v1313, %v1315
    %v1317 = vsel %vm399, %v1315, %v1313
    %v1318 = vmul.f32 %v1317, %v408
    %v1319 = vmul.f32 %v1316, %v412
    %s1320 = scalar_lea.vmem %s8, 24
    %v1321 = vld [vmem:[%s1320] sm:$0xff]
    %v1323 = vsel %vm1077, %v1321, 0
    %1325 = vmatprep.subr.mxu0 %v1319
    %1326 = vmatpush1.msra.mxu0 %v1318
    %1327 = vmatprep.subr.mxu0 0.0
    %1328 = vmatpush1.msra.mxu0 0.0
    %1329 = vmatprep.subr.mxu0 0.0
    %1330 = vmatpush1.msra.mxu0 0.0
    %1331 = vmatprep.subr.mxu0 0.0
    %1332 = vmatpush1.msra.mxu0 0.0
    %1333 = vmatprep.subr.mxu0 0.0
    %1334 = vmatpush1.msra.mxu0 0.0
    %1335 = vmatprep.subr.mxu0 0.0
    %1336 = vmatpush1.msra.mxu0 0.0
    %1337 = vmatprep.subr.mxu0 0.0
    %1338 = vmatpush1.msra.mxu0 0.0
    %1339 = vmatprep.subr.mxu0 0.0
    %1340 = vmatpush1.msra.mxu0 0.0
    %1341 = vmatprep.subr.mxu0 0.0
    %1342 = vmatpush1.msra.mxu0 0.0
    %1343 = vmatprep.subr.mxu0 0.0
    %1344 = vmatpush1.msra.mxu0 0.0
    %1345 = vmatprep.subr.mxu0 0.0
    %1346 = vmatpush1.msra.mxu0 0.0
    %1347 = vmatprep.subr.mxu0 0.0
    %1348 = vmatpush1.msra.mxu0 0.0
    %1349 = vmatprep.subr.mxu0 0.0
    %1350 = vmatpush1.msra.mxu0 0.0
    %1351 = vmatprep.subr.mxu0 0.0
    %1352 = vmatpush1.msra.mxu0 0.0
    %1353 = vmatprep.subr.mxu0 0.0
    %1354 = vmatpush1.msra.mxu0 0.0
    %1355 = vmatprep.subr.mxu0 0.0
    %1356 = vmatpush1.msra.mxu0 0.0
    %1357 = vmatprep.subr.mxu0 0.0
    %1358 = vmatpush1.msra.mxu0 0.0
    %1359 = vmatprep.subr.mxu0 0.0
    %1360 = vmatpush1.msra.mxu0 0.0
    %1361 = vmatprep.subr.mxu0 0.0
    %1362 = vmatpush1.msra.mxu0 0.0
    %1363 = vmatprep.subr.mxu0 0.0
    %1364 = vmatpush1.msra.mxu0 0.0
    %1365 = vmatprep.subr.mxu0 0.0
    %1366 = vmatpush1.msra.mxu0 0.0
    %1367 = vmatprep.subr.mxu0 0.0
    %1368 = vmatpush1.msra.mxu0 0.0
    %1369 = vmatprep.subr.mxu0 0.0
    %1370 = vmatpush1.msra.mxu0 0.0
    %1371 = vmatprep.subr.mxu0 0.0
    %1372 = vmatpush1.msra.mxu0 0.0
    %1373 = vmatprep.subr.mxu0 0.0
    %1374 = vmatpush1.msra.mxu0 0.0
    %1375 = vmatprep.subr.mxu0 0.0
    %1376 = vmatpush1.msra.mxu0 0.0
    %1377 = vmatprep.subr.mxu0 0.0
    %1378 = vmatpush1.msra.mxu0 0.0
    %1379 = vmatprep.subr.mxu0 0.0
    %1380 = vmatpush1.msra.mxu0 0.0
    %1381 = vmatprep.subr.mxu0 0.0
    %1382 = vmatpush1.msra.mxu0 0.0
    %1383 = vmatprep.subr.mxu0 0.0
    %1384 = vmatpush1.msra.mxu0 0.0
    %1385 = vmatprep.subr.mxu0 0.0
    %1386 = vmatpush1.msra.mxu0 0.0
    %1387 = vmatprep.subr.mxu0 0.0
    %1388 = vmatpush1.msra.mxu0 0.0
    %1389 = vmatprep.mubr.f32.mxu0 0.0
    %1390 = vmatmul.mubr.f32.gmra.mrb[0].mxu0 %v1323
    %v1391 = vpop.f32.mrb[0].mxu0
    %v1392 = vadd.f32 0.0, %v1391
    %v1393 = vpop.f32.mrb[0].mxu0
    %v1394 = vadd.f32 0.0, %v1393
    %1395 = vdwg.mxu0
    %v1396 = vadd.f32 %v1310, %v1392
    %v1397 = vadd.f32 %v1311, %v1394
    %v1398 = vmul.f32 %v1056, %v507
    %v1399 = vmul.f32 %v1057, %v511
    %s1400 = scalar_lea.vmem %s8, 32
    %v1401 = vld [vmem:[%s1400] sm:$0xff]
    %v1403 = vsel %vm1077, %v1401, 0
    %1405 = vmatprep.subr.mxu0 %v1399
    %1406 = vmatpush1.msra.mxu0 %v1398
    %1407 = vmatprep.subr.mxu0 0.0
    %1408 = vmatpush1.msra.mxu0 0.0
    %1409 = vmatprep.subr.mxu0 0.0
    %1410 = vmatpush1.msra.mxu0 0.0
    %1411 = vmatprep.subr.mxu0 0.0
    %1412 = vmatpush1.msra.mxu0 0.0
    %1413 = vmatprep.subr.mxu0 0.0
    %1414 = vmatpush1.msra.mxu0 0.0
    %1415 = vmatprep.subr.mxu0 0.0
    %1416 = vmatpush1.msra.mxu0 0.0
    %1417 = vmatprep.subr.mxu0 0.0
    %1418 = vmatpush1.msra.mxu0 0.0
    %1419 = vmatprep.subr.mxu0 0.0
    %1420 = vmatpush1.msra.mxu0 0.0
    %1421 = vmatprep.subr.mxu0 0.0
    %1422 = vmatpush1.msra.mxu0 0.0
    %1423 = vmatprep.subr.mxu0 0.0
    %1424 = vmatpush1.msra.mxu0 0.0
    %1425 = vmatprep.subr.mxu0 0.0
    %1426 = vmatpush1.msra.mxu0 0.0
    %1427 = vmatprep.subr.mxu0 0.0
    %1428 = vmatpush1.msra.mxu0 0.0
    %1429 = vmatprep.subr.mxu0 0.0
    %1430 = vmatpush1.msra.mxu0 0.0
    %1431 = vmatprep.subr.mxu0 0.0
    %1432 = vmatpush1.msra.mxu0 0.0
    %1433 = vmatprep.subr.mxu0 0.0
    %1434 = vmatpush1.msra.mxu0 0.0
    %1435 = vmatprep.subr.mxu0 0.0
    %1436 = vmatpush1.msra.mxu0 0.0
    %1437 = vmatprep.subr.mxu0 0.0
    %1438 = vmatpush1.msra.mxu0 0.0
    %1439 = vmatprep.subr.mxu0 0.0
    %1440 = vmatpush1.msra.mxu0 0.0
    %1441 = vmatprep.subr.mxu0 0.0
    %1442 = vmatpush1.msra.mxu0 0.0
    %1443 = vmatprep.subr.mxu0 0.0
    %1444 = vmatpush1.msra.mxu0 0.0
    %1445 = vmatprep.subr.mxu0 0.0
    %1446 = vmatpush1.msra.mxu0 0.0
    %1447 = vmatprep.subr.mxu0 0.0
    %1448 = vmatpush1.msra.mxu0 0.0
    %1449 = vmatprep.subr.mxu0 0.0
    %1450 = vmatpush1.msra.mxu0 0.0
    %1451 = vmatprep.subr.mxu0 0.0
    %1452 = vmatpush1.msra.mxu0 0.0
    %1453 = vmatprep.subr.mxu0 0.0
    %1454 = vmatpush1.msra.mxu0 0.0
    %1455 = vmatprep.subr.mxu0 0.0
    %1456 = vmatpush1.msra.mxu0 0.0
    %1457 = vmatprep.subr.mxu0 0.0
    %1458 = vmatpush1.msra.mxu0 0.0
    %1459 = vmatprep.subr.mxu0 0.0
    %1460 = vmatpush1.msra.mxu0 0.0
    %1461 = vmatprep.subr.mxu0 0.0
    %1462 = vmatpush1.msra.mxu0 0.0
    %1463 = vmatprep.subr.mxu0 0.0
    %1464 = vmatpush1.msra.mxu0 0.0
    %1465 = vmatprep.subr.mxu0 0.0
    %1466 = vmatpush1.msra.mxu0 0.0
    %1467 = vmatprep.subr.mxu0 0.0
    %1468 = vmatpush1.msra.mxu0 0.0
    %1469 = vmatprep.mubr.f32.mxu0 0.0
    %1470 = vmatmul.mubr.f32.gmra.mrb[0].mxu0 %v1403
    %v1471 = vpop.f32.mrb[0].mxu0
    %v1472 = vadd.f32 0.0, %v1471
    %v1473 = vpop.f32.mrb[0].mxu0
    %v1474 = vadd.f32 0.0, %v1473
    %1475 = vdwg.mxu0
    %v1476 = vadd.f32 %v1396, %v1472
    %v1477 = vadd.f32 %v1397, %v1474
    %1478 = vrot.lane.b32.xlu0 %v1056, 127
    %v1479 = vpop.permute.xlu0 %1478
    %1480 = vrot.lane.b32.xlu0 %v1057, 127
    %v1481 = vpop.permute.xlu0 %1480
    %v1482 = vsel %vm604, %v1479, %v1481
    %v1483 = vsel %vm604, %v1481, %v1479
    %v1484 = vmul.f32 %v1482, %v613
    %v1485 = vmul.f32 %v1483, %v617
    %s1486 = scalar_lea.vmem %s8, 40
    %v1487 = vld [vmem:[%s1486] sm:$0xff]
    %v1489 = vsel %vm1077, %v1487, 0
    %1491 = vmatprep.subr.mxu0 %v1485
    %1492 = vmatpush1.msra.mxu0 %v1484
    %1493 = vmatprep.subr.mxu0 0.0
    %1494 = vmatpush1.msra.mxu0 0.0
    %1495 = vmatprep.subr.mxu0 0.0
    %1496 = vmatpush1.msra.mxu0 0.0
    %1497 = vmatprep.subr.mxu0 0.0
    %1498 = vmatpush1.msra.mxu0 0.0
    %1499 = vmatprep.subr.mxu0 0.0
    %1500 = vmatpush1.msra.mxu0 0.0
    %1501 = vmatprep.subr.mxu0 0.0
    %1502 = vmatpush1.msra.mxu0 0.0
    %1503 = vmatprep.subr.mxu0 0.0
    %1504 = vmatpush1.msra.mxu0 0.0
    %1505 = vmatprep.subr.mxu0 0.0
    %1506 = vmatpush1.msra.mxu0 0.0
    %1507 = vmatprep.subr.mxu0 0.0
    %1508 = vmatpush1.msra.mxu0 0.0
    %1509 = vmatprep.subr.mxu0 0.0
    %1510 = vmatpush1.msra.mxu0 0.0
    %1511 = vmatprep.subr.mxu0 0.0
    %1512 = vmatpush1.msra.mxu0 0.0
    %1513 = vmatprep.subr.mxu0 0.0
    %1514 = vmatpush1.msra.mxu0 0.0
    %1515 = vmatprep.subr.mxu0 0.0
    %1516 = vmatpush1.msra.mxu0 0.0
    %1517 = vmatprep.subr.mxu0 0.0
    %1518 = vmatpush1.msra.mxu0 0.0
    %1519 = vmatprep.subr.mxu0 0.0
    %1520 = vmatpush1.msra.mxu0 0.0
    %1521 = vmatprep.subr.mxu0 0.0
    %1522 = vmatpush1.msra.mxu0 0.0
    %1523 = vmatprep.subr.mxu0 0.0
    %1524 = vmatpush1.msra.mxu0 0.0
    %1525 = vmatprep.subr.mxu0 0.0
    %1526 = vmatpush1.msra.mxu0 0.0
    %1527 = vmatprep.subr.mxu0 0.0
    %1528 = vmatpush1.msra.mxu0 0.0
    %1529 = vmatprep.subr.mxu0 0.0
    %1530 = vmatpush1.msra.mxu0 0.0
    %1531 = vmatprep.subr.mxu0 0.0
    %1532 = vmatpush1.msra.mxu0 0.0
    %1533 = vmatprep.subr.mxu0 0.0
    %1534 = vmatpush1.msra.mxu0 0.0
    %1535 = vmatprep.subr.mxu0 0.0
    %1536 = vmatpush1.msra.mxu0 0.0
    %1537 = vmatprep.subr.mxu0 0.0
    %1538 = vmatpush1.msra.mxu0 0.0
    %1539 = vmatprep.subr.mxu0 0.0
    %1540 = vmatpush1.msra.mxu0 0.0
    %1541 = vmatprep.subr.mxu0 0.0
    %1542 = vmatpush1.msra.mxu0 0.0
    %1543 = vmatprep.subr.mxu0 0.0
    %1544 = vmatpush1.msra.mxu0 0.0
    %1545 = vmatprep.subr.mxu0 0.0
    %1546 = vmatpush1.msra.mxu0 0.0
    %1547 = vmatprep.subr.mxu0 0.0
    %1548 = vmatpush1.msra.mxu0 0.0
    %1549 = vmatprep.subr.mxu0 0.0
    %1550 = vmatpush1.msra.mxu0 0.0
    %1551 = vmatprep.subr.mxu0 0.0
    %1552 = vmatpush1.msra.mxu0 0.0
    %1553 = vmatprep.subr.mxu0 0.0
    %1554 = vmatpush1.msra.mxu0 0.0
    %1555 = vmatprep.mubr.f32.mxu0 0.0
    %1556 = vmatmul.mubr.f32.gmra.mrb[0].mxu0 %v1489
    %v1557 = vpop.f32.mrb[0].mxu0
    %v1558 = vadd.f32 0.0, %v1557
    %v1559 = vpop.f32.mrb[0].mxu0
    %v1560 = vadd.f32 0.0, %v1559
    %1561 = vdwg.mxu0
    %v1562 = vadd.f32 %v1476, %v1558
    %v1563 = vadd.f32 %v1477, %v1560
    %1564 = vrot.lane.b32.xlu0 %v1056, 113
    %v1565 = vpop.permute.xlu0 %1564
    %1566 = vrot.lane.b32.xlu0 %v1057, 113
    %v1567 = vpop.permute.xlu0 %1566
    %v1568 = vsel %vm710, %v1565, %v1567
    %v1569 = vsel %vm710, %v1567, %v1565
    %v1570 = vmul.f32 %v1568, %v719
    %v1571 = vmul.f32 %v1569, %v723
    %s1572 = scalar_lea.vmem %s8, 48
    %v1573 = vld [vmem:[%s1572] sm:$0xff]
    %v1575 = vsel %vm1077, %v1573, 0
    %1577 = vmatprep.subr.mxu0 %v1571
    %1578 = vmatpush1.msra.mxu0 %v1570
    %1579 = vmatprep.subr.mxu0 0.0
    %1580 = vmatpush1.msra.mxu0 0.0
    %1581 = vmatprep.subr.mxu0 0.0
    %1582 = vmatpush1.msra.mxu0 0.0
    %1583 = vmatprep.subr.mxu0 0.0
    %1584 = vmatpush1.msra.mxu0 0.0
    %1585 = vmatprep.subr.mxu0 0.0
    %1586 = vmatpush1.msra.mxu0 0.0
    %1587 = vmatprep.subr.mxu0 0.0
    %1588 = vmatpush1.msra.mxu0 0.0
    %1589 = vmatprep.subr.mxu0 0.0
    %1590 = vmatpush1.msra.mxu0 0.0
    %1591 = vmatprep.subr.mxu0 0.0
    %1592 = vmatpush1.msra.mxu0 0.0
    %1593 = vmatprep.subr.mxu0 0.0
    %1594 = vmatpush1.msra.mxu0 0.0
    %1595 = vmatprep.subr.mxu0 0.0
    %1596 = vmatpush1.msra.mxu0 0.0
    %1597 = vmatprep.subr.mxu0 0.0
    %1598 = vmatpush1.msra.mxu0 0.0
    %1599 = vmatprep.subr.mxu0 0.0
    %1600 = vmatpush1.msra.mxu0 0.0
    %1601 = vmatprep.subr.mxu0 0.0
    %1602 = vmatpush1.msra.mxu0 0.0
    %1603 = vmatprep.subr.mxu0 0.0
    %1604 = vmatpush1.msra.mxu0 0.0
    %1605 = vmatprep.subr.mxu0 0.0
    %1606 = vmatpush1.msra.mxu0 0.0
    %1607 = vmatprep.subr.mxu0 0.0
    %1608 = vmatpush1.msra.mxu0 0.0
    %1609 = vmatprep.subr.mxu0 0.0
    %1610 = vmatpush1.msra.mxu0 0.0
    %1611 = vmatprep.subr.mxu0 0.0
    %1612 = vmatpush1.msra.mxu0 0.0
    %1613 = vmatprep.subr.mxu0 0.0
    %1614 = vmatpush1.msra.mxu0 0.0
    %1615 = vmatprep.subr.mxu0 0.0
    %1616 = vmatpush1.msra.mxu0 0.0
    %1617 = vmatprep.subr.mxu0 0.0
    %1618 = vmatpush1.msra.mxu0 0.0
    %1619 = vmatprep.subr.mxu0 0.0
    %1620 = vmatpush1.msra.mxu0 0.0
    %1621 = vmatprep.subr.mxu0 0.0
    %1622 = vmatpush1.msra.mxu0 0.0
    %1623 = vmatprep.subr.mxu0 0.0
    %1624 = vmatpush1.msra.mxu0 0.0
    %1625 = vmatprep.subr.mxu0 0.0
    %1626 = vmatpush1.msra.mxu0 0.0
    %1627 = vmatprep.subr.mxu0 0.0
    %1628 = vmatpush1.msra.mxu0 0.0
    %1629 = vmatprep.subr.mxu0 0.0
    %1630 = vmatpush1.msra.mxu0 0.0
    %1631 = vmatprep.subr.mxu0 0.0
    %1632 = vmatpush1.msra.mxu0 0.0
    %1633 = vmatprep.subr.mxu0 0.0
    %1634 = vmatpush1.msra.mxu0 0.0
    %1635 = vmatprep.subr.mxu0 0.0
    %1636 = vmatpush1.msra.mxu0 0.0
    %1637 = vmatprep.subr.mxu0 0.0
    %1638 = vmatpush1.msra.mxu0 0.0
    %1639 = vmatprep.subr.mxu0 0.0
    %1640 = vmatpush1.msra.mxu0 0.0
    %1641 = vmatprep.mubr.f32.mxu0 0.0
    %1642 = vmatmul.mubr.f32.gmra.mrb[0].mxu0 %v1575
    %v1643 = vpop.f32.mrb[0].mxu0
    %v1644 = vadd.f32 0.0, %v1643
    %v1645 = vpop.f32.mrb[0].mxu0
    %v1646 = vadd.f32 0.0, %v1645
    %1647 = vdwg.mxu0
    %v1648 = vadd.f32 %v1562, %v1644
    %v1649 = vadd.f32 %v1563, %v1646
    %1650 = vrot.lane.b32.xlu0 %v1056, 112
    %v1651 = vpop.permute.xlu0 %1650
    %1652 = vrot.lane.b32.xlu0 %v1057, 112
    %v1653 = vpop.permute.xlu0 %1652
    %v1654 = vsel %vm816, %v1651, %v1653
    %v1655 = vsel %vm816, %v1653, %v1651
    %v1656 = vmul.f32 %v1654, %v825
    %v1657 = vmul.f32 %v1655, %v829
    %s1658 = scalar_lea.vmem %s8, 56
    %v1659 = vld [vmem:[%s1658] sm:$0xff]
    %v1661 = vsel %vm1077, %v1659, 0
    %1663 = vmatprep.subr.mxu0 %v1657
    %1664 = vmatpush1.msra.mxu0 %v1656
    %1665 = vmatprep.subr.mxu0 0.0
    %1666 = vmatpush1.msra.mxu0 0.0
    %1667 = vmatprep.subr.mxu0 0.0
    %1668 = vmatpush1.msra.mxu0 0.0
    %1669 = vmatprep.subr.mxu0 0.0
    %1670 = vmatpush1.msra.mxu0 0.0
    %1671 = vmatprep.subr.mxu0 0.0
    %1672 = vmatpush1.msra.mxu0 0.0
    %1673 = vmatprep.subr.mxu0 0.0
    %1674 = vmatpush1.msra.mxu0 0.0
    %1675 = vmatprep.subr.mxu0 0.0
    %1676 = vmatpush1.msra.mxu0 0.0
    %1677 = vmatprep.subr.mxu0 0.0
    %1678 = vmatpush1.msra.mxu0 0.0
    %1679 = vmatprep.subr.mxu0 0.0
    %1680 = vmatpush1.msra.mxu0 0.0
    %1681 = vmatprep.subr.mxu0 0.0
    %1682 = vmatpush1.msra.mxu0 0.0
    %1683 = vmatprep.subr.mxu0 0.0
    %1684 = vmatpush1.msra.mxu0 0.0
    %1685 = vmatprep.subr.mxu0 0.0
    %1686 = vmatpush1.msra.mxu0 0.0
    %1687 = vmatprep.subr.mxu0 0.0
    %1688 = vmatpush1.msra.mxu0 0.0
    %1689 = vmatprep.subr.mxu0 0.0
    %1690 = vmatpush1.msra.mxu0 0.0
    %1691 = vmatprep.subr.mxu0 0.0
    %1692 = vmatpush1.msra.mxu0 0.0
    %1693 = vmatprep.subr.mxu0 0.0
    %1694 = vmatpush1.msra.mxu0 0.0
    %1695 = vmatprep.subr.mxu0 0.0
    %1696 = vmatpush1.msra.mxu0 0.0
    %1697 = vmatprep.subr.mxu0 0.0
    %1698 = vmatpush1.msra.mxu0 0.0
    %1699 = vmatprep.subr.mxu0 0.0
    %1700 = vmatpush1.msra.mxu0 0.0
    %1701 = vmatprep.subr.mxu0 0.0
    %1702 = vmatpush1.msra.mxu0 0.0
    %1703 = vmatprep.subr.mxu0 0.0
    %1704 = vmatpush1.msra.mxu0 0.0
    %1705 = vmatprep.subr.mxu0 0.0
    %1706 = vmatpush1.msra.mxu0 0.0
    %1707 = vmatprep.subr.mxu0 0.0
    %1708 = vmatpush1.msra.mxu0 0.0
    %1709 = vmatprep.subr.mxu0 0.0
    %1710 = vmatpush1.msra.mxu0 0.0
    %1711 = vmatprep.subr.mxu0 0.0
    %1712 = vmatpush1.msra.mxu0 0.0
    %1713 = vmatprep.subr.mxu0 0.0
    %1714 = vmatpush1.msra.mxu0 0.0
    %1715 = vmatprep.subr.mxu0 0.0
    %1716 = vmatpush1.msra.mxu0 0.0
    %1717 = vmatprep.subr.mxu0 0.0
    %1718 = vmatpush1.msra.mxu0 0.0
    %1719 = vmatprep.subr.mxu0 0.0
    %1720 = vmatpush1.msra.mxu0 0.0
    %1721 = vmatprep.subr.mxu0 0.0
    %1722 = vmatpush1.msra.mxu0 0.0
    %1723 = vmatprep.subr.mxu0 0.0
    %1724 = vmatpush1.msra.mxu0 0.0
    %1725 = vmatprep.subr.mxu0 0.0
    %1726 = vmatpush1.msra.mxu0 0.0
    %1727 = vmatprep.mubr.f32.mxu0 0.0
    %1728 = vmatmul.mubr.f32.gmra.mrb[0].mxu0 %v1661
    %v1729 = vpop.f32.mrb[0].mxu0
    %v1730 = vadd.f32 0.0, %v1729
    %v1731 = vpop.f32.mrb[0].mxu0
    %v1732 = vadd.f32 0.0, %v1731
    %1733 = vdwg.mxu0
    %v1734 = vadd.f32 %v1648, %v1730
    %v1735 = vadd.f32 %v1649, %v1732
    %1736 = vrot.lane.b32.xlu0 %v1056, 111
    %v1737 = vpop.permute.xlu0 %1736
    %1738 = vrot.lane.b32.xlu0 %v1057, 111
    %v1739 = vpop.permute.xlu0 %1738
    %v1740 = vsel %vm922, %v1737, %v1739
    %v1741 = vsel %vm922, %v1739, %v1737
    %v1742 = vmul.f32 %v1740, %v931
    %v1743 = vmul.f32 %v1741, %v935
    %s1744 = scalar_lea.vmem %s8, 64
    %v1745 = vld [vmem:[%s1744] sm:$0xff]
    %v1747 = vsel %vm1077, %v1745, 0
    %1749 = vmatprep.subr.mxu0 %v1743
    %1750 = vmatpush1.msra.mxu0 %v1742
    %1751 = vmatprep.subr.mxu0 0.0
    %1752 = vmatpush1.msra.mxu0 0.0
    %1753 = vmatprep.subr.mxu0 0.0
    %1754 = vmatpush1.msra.mxu0 0.0
    %1755 = vmatprep.subr.mxu0 0.0
    %1756 = vmatpush1.msra.mxu0 0.0
    %1757 = vmatprep.subr.mxu0 0.0
    %1758 = vmatpush1.msra.mxu0 0.0
    %1759 = vmatprep.subr.mxu0 0.0
    %1760 = vmatpush1.msra.mxu0 0.0
    %1761 = vmatprep.subr.mxu0 0.0
    %1762 = vmatpush1.msra.mxu0 0.0
    %1763 = vmatprep.subr.mxu0 0.0
    %1764 = vmatpush1.msra.mxu0 0.0
    %1765 = vmatprep.subr.mxu0 0.0
    %1766 = vmatpush1.msra.mxu0 0.0
    %1767 = vmatprep.subr.mxu0 0.0
    %1768 = vmatpush1.msra.mxu0 0.0
    %1769 = vmatprep.subr.mxu0 0.0
    %1770 = vmatpush1.msra.mxu0 0.0
    %1771 = vmatprep.subr.mxu0 0.0
    %1772 = vmatpush1.msra.mxu0 0.0
    %1773 = vmatprep.subr.mxu0 0.0
    %1774 = vmatpush1.msra.mxu0 0.0
    %1775 = vmatprep.subr.mxu0 0.0
    %1776 = vmatpush1.msra.mxu0 0.0
    %1777 = vmatprep.subr.mxu0 0.0
    %1778 = vmatpush1.msra.mxu0 0.0
    %1779 = vmatprep.subr.mxu0 0.0
    %1780 = vmatpush1.msra.mxu0 0.0
    %1781 = vmatprep.subr.mxu0 0.0
    %1782 = vmatpush1.msra.mxu0 0.0
    %1783 = vmatprep.subr.mxu0 0.0
    %1784 = vmatpush1.msra.mxu0 0.0
    %1785 = vmatprep.subr.mxu0 0.0
    %1786 = vmatpush1.msra.mxu0 0.0
    %1787 = vmatprep.subr.mxu0 0.0
    %1788 = vmatpush1.msra.mxu0 0.0
    %1789 = vmatprep.subr.mxu0 0.0
    %1790 = vmatpush1.msra.mxu0 0.0
    %1791 = vmatprep.subr.mxu0 0.0
    %1792 = vmatpush1.msra.mxu0 0.0
    %1793 = vmatprep.subr.mxu0 0.0
    %1794 = vmatpush1.msra.mxu0 0.0
    %1795 = vmatprep.subr.mxu0 0.0
    %1796 = vmatpush1.msra.mxu0 0.0
    %1797 = vmatprep.subr.mxu0 0.0
    %1798 = vmatpush1.msra.mxu0 0.0
    %1799 = vmatprep.subr.mxu0 0.0
    %1800 = vmatpush1.msra.mxu0 0.0
    %1801 = vmatprep.subr.mxu0 0.0
    %1802 = vmatpush1.msra.mxu0 0.0
    %1803 = vmatprep.subr.mxu0 0.0
    %1804 = vmatpush1.msra.mxu0 0.0
    %1805 = vmatprep.subr.mxu0 0.0
    %1806 = vmatpush1.msra.mxu0 0.0
    %1807 = vmatprep.subr.mxu0 0.0
    %1808 = vmatpush1.msra.mxu0 0.0
    %1809 = vmatprep.subr.mxu0 0.0
    %1810 = vmatpush1.msra.mxu0 0.0
    %1811 = vmatprep.subr.mxu0 0.0
    %1812 = vmatpush1.msra.mxu0 0.0
    %1813 = vmatprep.mubr.f32.mxu0 0.0
    %1814 = vmatmul.mubr.f32.gmra.mrb[0].mxu0 %v1747
    %v1815 = vpop.f32.mrb[0].mxu0
    %v1816 = vadd.f32 0.0, %v1815
    %v1817 = vpop.f32.mrb[0].mxu0
    %v1818 = vadd.f32 0.0, %v1817
    %1819 = vdwg.mxu0
    %v1820 = vadd.f32 %v1734, %v1816
    %v1821 = vadd.f32 %v1735, %v1818
    %v1822 = vld [vmem:[%s9] sm:$0xff]
    %1824 = vset.pattern.permute.xlu0 0
    %1825 = vperm.xlu0 %1824, %v1822
    %v1826 = vpop.permute.xlu0 %1825
    %v1828 = vadd.f32 %v1820, %v1826
    %v1829 = vadd.f32 %v1821, %v1826
    %1830 = vst [vmem:[#allocation2] sm:$0xff] %v1828
    %1831 = vst [vmem:[#allocation2 + $0x8] sm:$0xff] %v1829
    %s1832 = scalar_lea.vmem %s0, 8
    %v1833 = vld [vmem:[%s1832] sm:$0xff]
    %s1834 = scalar_lea.vmem %s2, 4
    %v1835 = vld [vmem:[%s1834] sm:$0xf]
    %v1836 = vmul.f32 %v1833, %v1833
    %v1838 = vcombine.high %v1836, %v1836
    %v1840 = vsel %vm42, %v1836, 0.0
    %v1841 = vsel %vm42, %v1838, 0.0
    %v1842 = vadd.f32 %v1840, %v1841
    %1843 = vadd.xlane.f32.xlu0 %v1842
    %v1844 = vpop.xlane.xlu0 %1843
    %v1845 = vmul.f32 %v1844, %v48
    %v1846 = vadd.f32 %v1845, 1e-05
    %v1847 = vrsqrt.pop %v1846
    %v1850 = vunpack.c.l.s4 839922192
    %v1851 = vunpack.c.0.s8 %v1850
    %v1852 = vlaneseq
    %v1853 = vshrl.u32 %v1852, 7
    %v1854 = vsub.s32 %v1851, %v1853
    %v1855 = vrot.slane %v1847, %v1854
    %v1857 = vmul.f32 %v1833, %v1855
    %1859 = vset.pattern.permute.xlu0 0
    %1860 = vperm.xlu0 %1859, %v1835
    %v1861 = vpop.permute.xlu0 %1860
    %v1864 = vcombine.high %v1857, %v1857
    %v1866 = vmul.f32 %v1861, %v1857
    %v1867 = vmul.f32 %v1861, %v1864
    %v1868 = vld [vmem:[%s3] sm:$0xf]
    %1870 = vset.pattern.permute.xlu0 0
    %1871 = vperm.xlu0 %1870, %v1868
    %v1872 = vpop.permute.xlu0 %1871
    %v1874 = vmax.f32 %v1866, %v1872
    %v1875 = vmax.f32 %v1867, %v1872
    %1876 = vrot.lane.b32.xlu0 %v1874, 17
    %v1877 = vpop.permute.xlu0 %1876
    %1878 = vrot.lane.b32.xlu0 %v1875, 17
    %v1879 = vpop.permute.xlu0 %1878
    %v1880 = vsel %vm86, %v1877, %v1879
    %v1881 = vsel %vm86, %v1879, %v1877
    %v1882 = vld [vmem:[%s1] ss:$8 sm:$0x3]
    %v1884 = vlaneseq
    %v1885 = vshrl.u32 %v1884, 7
    %v1886 = vsub.s32 0, %v1885
    %v1887 = vrot.slane %v1882, %v1886
    %v1888 = vlaneseq
    %v1889 = vshrl.u32 %v1888, 7
    %v1890 = vsub.s32 1, %v1889
    %v1891 = vrot.slane %v1882, %v1890
    %v1894 = vmul.f32 %v1881, %v1887
    %v1895 = vmul.f32 %v1880, %v1891
    %v1896 = vld [vmem:[%s4] sm:$0xff]
    %1897 = vrot.lane.b32.xlu0 %v1874, 16
    %v1898 = vpop.permute.xlu0 %1897
    %1899 = vrot.lane.b32.xlu0 %v1875, 16
    %v1900 = vpop.permute.xlu0 %1899
    %v1901 = vsel %vm108, %v1898, %v1900
    %v1902 = vsel %vm108, %v1900, %v1898
    %v1903 = vld [vmem:[%s111] ss:$8 sm:$0x3]
    %v1905 = vlaneseq
    %v1906 = vshrl.u32 %v1905, 7
    %v1907 = vsub.s32 0, %v1906
    %v1908 = vrot.slane %v1903, %v1907
    %v1909 = vlaneseq
    %v1910 = vshrl.u32 %v1909, 7
    %v1911 = vsub.s32 1, %v1910
    %v1912 = vrot.slane %v1903, %v1911
    %v1915 = vmul.f32 %v1902, %v1908
    %v1916 = vmul.f32 %v1901, %v1912
    %v1917 = vld [vmem:[%s126] sm:$0xff]
    %v1919 = vsel %vm128, %v1917, 0
    %v1922 = vsel %vm42, %v1915, 0
    %v1925 = vsel %vm42, %v1916, 0
    %1927 = vmatprep.subr.mxu0 %v1925
    %1928 = vmatpush1.msra.mxu0 %v1922
    %1929 = vmatprep.subr.mxu0 0.0
    %1930 = vmatpush1.msra.mxu0 0.0
    %1931 = vmatprep.subr.mxu0 0.0
    %1932 = vmatpush1.msra.mxu0 0.0
    %1933 = vmatprep.subr.mxu0 0.0
    %1934 = vmatpush1.msra.mxu0 0.0
    %1935 = vmatprep.subr.mxu0 0.0
    %1936 = vmatpush1.msra.mxu0 0.0
    %1937 = vmatprep.subr.mxu0 0.0
    %1938 = vmatpush1.msra.mxu0 0.0
    %1939 = vmatprep.subr.mxu0 0.0
    %1940 = vmatpush1.msra.mxu0 0.0
    %1941 = vmatprep.subr.mxu0 0.0
    %1942 = vmatpush1.msra.mxu0 0.0
    %1943 = vmatprep.subr.mxu0 0.0
    %1944 = vmatpush1.msra.mxu0 0.0
    %1945 = vmatprep.subr.mxu0 0.0
    %1946 = vmatpush1.msra.mxu0 0.0
    %1947 = vmatprep.subr.mxu0 0.0
    %1948 = vmatpush1.msra.mxu0 0.0
    %1949 = vmatprep.subr.mxu0 0.0
    %1950 = vmatpush1.msra.mxu0 0.0
    %1951 = vmatprep.subr.mxu0 0.0
    %1952 = vmatpush1.msra.mxu0 0.0
    %1953 = vmatprep.subr.mxu0 0.0
    %1954 = vmatpush1.msra.mxu0 0.0
    %1955 = vmatprep.subr.mxu0 0.0
    %1956 = vmatpush1.msra.mxu0 0.0
    %1957 = vmatprep.subr.mxu0 0.0
    %1958 = vmatpush1.msra.mxu0 0.0
    %1959 = vmatprep.subr.mxu0 0.0
    %1960 = vmatpush1.msra.mxu0 0.0
    %1961 = vmatprep.subr.mxu0 0.0
    %1962 = vmatpush1.msra.mxu0 0.0
    %1963 = vmatprep.subr.mxu0 0.0
    %1964 = vmatpush1.msra.mxu0 0.0
    %1965 = vmatprep.subr.mxu0 0.0
    %1966 = vmatpush1.msra.mxu0 0.0
    %1967 = vmatprep.subr.mxu0 0.0
    %1968 = vmatpush1.msra.mxu0 0.0
    %1969 = vmatprep.subr.mxu0 0.0
    %1970 = vmatpush1.msra.mxu0 0.0
    %1971 = vmatprep.subr.mxu0 0.0
    %1972 = vmatpush1.msra.mxu0 0.0
    %1973 = vmatprep.subr.mxu0 0.0
    %1974 = vmatpush1.msra.mxu0 0.0
    %1975 = vmatprep.subr.mxu0 0.0
    %1976 = vmatpush1.msra.mxu0 0.0
    %1977 = vmatprep.subr.mxu0 0.0
    %1978 = vmatpush1.msra.mxu0 0.0
    %1979 = vmatprep.subr.mxu0 0.0
    %1980 = vmatpush1.msra.mxu0 0.0
    %1981 = vmatprep.subr.mxu0 0.0
    %1982 = vmatpush1.msra.mxu0 0.0
    %1983 = vmatprep.subr.mxu0 0.0
    %1984 = vmatpush1.msra.mxu0 0.0
    %1985 = vmatprep.subr.mxu0 0.0
    %1986 = vmatpush1.msra.mxu0 0.0
    %1987 = vmatprep.subr.mxu0 0.0
    %1988 = vmatpush1.msra.mxu0 0.0
    %1989 = vmatprep.subr.mxu0 0.0
    %1990 = vmatpush1.msra.mxu0 0.0
    %1991 = vmatprep.mubr.f32.mxu0 0.0
    %1992 = vmatmul.mubr.f32.gmra.mrb[0].mxu0 %v1919
    %v1993 = vpop.f32.mrb[0].mxu0
    %v1994 = vadd.f32 0.0, %v1993
    %v1995 = vpop.f32.mrb[0].mxu0
    %v1996 = vadd.f32 0.0, %v1995
    %1997 = vdwg.mxu0
    %v1999 = vsel %vm128, %v1896, 0
    %v2002 = vsel %vm42, %v1894, 0
    %v2005 = vsel %vm42, %v1895, 0
    %2007 = vmatprep.subr.mxu0 %v2005
    %2008 = vmatpush1.msra.mxu0 %v2002
    %2009 = vmatprep.subr.mxu0 0.0
    %2010 = vmatpush1.msra.mxu0 0.0
    %2011 = vmatprep.subr.mxu0 0.0
    %2012 = vmatpush1.msra.mxu0 0.0
    %2013 = vmatprep.subr.mxu0 0.0
    %2014 = vmatpush1.msra.mxu0 0.0
    %2015 = vmatprep.subr.mxu0 0.0
    %2016 = vmatpush1.msra.mxu0 0.0
    %2017 = vmatprep.subr.mxu0 0.0
    %2018 = vmatpush1.msra.mxu0 0.0
    %2019 = vmatprep.subr.mxu0 0.0
    %2020 = vmatpush1.msra.mxu0 0.0
    %2021 = vmatprep.subr.mxu0 0.0
    %2022 = vmatpush1.msra.mxu0 0.0
    %2023 = vmatprep.subr.mxu0 0.0
    %2024 = vmatpush1.msra.mxu0 0.0
    %2025 = vmatprep.subr.mxu0 0.0
    %2026 = vmatpush1.msra.mxu0 0.0
    %2027 = vmatprep.subr.mxu0 0.0
    %2028 = vmatpush1.msra.mxu0 0.0
    %2029 = vmatprep.subr.mxu0 0.0
    %2030 = vmatpush1.msra.mxu0 0.0
    %2031 = vmatprep.subr.mxu0 0.0
    %2032 = vmatpush1.msra.mxu0 0.0
    %2033 = vmatprep.subr.mxu0 0.0
    %2034 = vmatpush1.msra.mxu0 0.0
    %2035 = vmatprep.subr.mxu0 0.0
    %2036 = vmatpush1.msra.mxu0 0.0
    %2037 = vmatprep.subr.mxu0 0.0
    %2038 = vmatpush1.msra.mxu0 0.0
    %2039 = vmatprep.subr.mxu0 0.0
    %2040 = vmatpush1.msra.mxu0 0.0
    %2041 = vmatprep.subr.mxu0 0.0
    %2042 = vmatpush1.msra.mxu0 0.0
    %2043 = vmatprep.subr.mxu0 0.0
    %2044 = vmatpush1.msra.mxu0 0.0
    %2045 = vmatprep.subr.mxu0 0.0
    %2046 = vmatpush1.msra.mxu0 0.0
    %2047 = vmatprep.subr.mxu0 0.0
    %2048 = vmatpush1.msra.mxu0 0.0
    %2049 = vmatprep.subr.mxu0 0.0
    %2050 = vmatpush1.msra.mxu0 0.0
    %2051 = vmatprep.subr.mxu0 0.0
    %2052 = vmatpush1.msra.mxu0 0.0
    %2053 = vmatprep.subr.mxu0 0.0
    %2054 = vmatpush1.msra.mxu0 0.0
    %2055 = vmatprep.subr.mxu0 0.0
    %2056 = vmatpush1.msra.mxu0 0.0
    %2057 = vmatprep.subr.mxu0 0.0
    %2058 = vmatpush1.msra.mxu0 0.0
    %2059 = vmatprep.subr.mxu0 0.0
    %2060 = vmatpush1.msra.mxu0 0.0
    %2061 = vmatprep.subr.mxu0 0.0
    %2062 = vmatpush1.msra.mxu0 0.0
    %2063 = vmatprep.subr.mxu0 0.0
    %2064 = vmatpush1.msra.mxu0 0.0
    %2065 = vmatprep.subr.mxu0 0.0
    %2066 = vmatpush1.msra.mxu0 0.0
    %2067 = vmatprep.subr.mxu0 0.0
    %2068 = vmatpush1.msra.mxu0 0.0
    %2069 = vmatprep.subr.mxu0 0.0
    %2070 = vmatpush1.msra.mxu0 0.0
    %2071 = vmatprep.mubr.f32.mxu0 0.0
    %2072 = vmatmul.mubr.f32.gmra.mrb[0].mxu0 %v1999
    %v2073 = vpop.f32.mrb[0].mxu0
    %v2074 = vadd.f32 %v1994, %v2073
    %v2075 = vpop.f32.mrb[0].mxu0
    %v2076 = vadd.f32 %v1996, %v2075
    %2077 = vdwg.mxu0
    %2078 = vrot.lane.b32.xlu0 %v1874, 15
    %v2079 = vpop.permute.xlu0 %2078
    %2080 = vrot.lane.b32.xlu0 %v1875, 15
    %v2081 = vpop.permute.xlu0 %2080
    %v2082 = vsel %vm293, %v2079, %v2081
    %v2083 = vsel %vm293, %v2081, %v2079
    %v2084 = vld [vmem:[%s296] ss:$8 sm:$0x3]
    %v2086 = vlaneseq
    %v2087 = vshrl.u32 %v2086, 7
    %v2088 = vsub.s32 0, %v2087
    %v2089 = vrot.slane %v2084, %v2088
    %v2090 = vlaneseq
    %v2091 = vshrl.u32 %v2090, 7
    %v2092 = vsub.s32 1, %v2091
    %v2093 = vrot.slane %v2084, %v2092
    %v2096 = vmul.f32 %v2083, %v2089
    %v2097 = vmul.f32 %v2082, %v2093
    %v2098 = vld [vmem:[%s311] sm:$0xff]
    %v2100 = vsel %vm128, %v2098, 0
    %v2103 = vsel %vm42, %v2096, 0
    %v2106 = vsel %vm42, %v2097, 0
    %2108 = vmatprep.subr.mxu0 %v2106
    %2109 = vmatpush1.msra.mxu0 %v2103
    %2110 = vmatprep.subr.mxu0 0.0
    %2111 = vmatpush1.msra.mxu0 0.0
    %2112 = vmatprep.subr.mxu0 0.0
    %2113 = vmatpush1.msra.mxu0 0.0
    %2114 = vmatprep.subr.mxu0 0.0
    %2115 = vmatpush1.msra.mxu0 0.0
    %2116 = vmatprep.subr.mxu0 0.0
    %2117 = vmatpush1.msra.mxu0 0.0
    %2118 = vmatprep.subr.mxu0 0.0
    %2119 = vmatpush1.msra.mxu0 0.0
    %2120 = vmatprep.subr.mxu0 0.0
    %2121 = vmatpush1.msra.mxu0 0.0
    %2122 = vmatprep.subr.mxu0 0.0
    %2123 = vmatpush1.msra.mxu0 0.0
    %2124 = vmatprep.subr.mxu0 0.0
    %2125 = vmatpush1.msra.mxu0 0.0
    %2126 = vmatprep.subr.mxu0 0.0
    %2127 = vmatpush1.msra.mxu0 0.0
    %2128 = vmatprep.subr.mxu0 0.0
    %2129 = vmatpush1.msra.mxu0 0.0
    %2130 = vmatprep.subr.mxu0 0.0
    %2131 = vmatpush1.msra.mxu0 0.0
    %2132 = vmatprep.subr.mxu0 0.0
    %2133 = vmatpush1.msra.mxu0 0.0
    %2134 = vmatprep.subr.mxu0 0.0
    %2135 = vmatpush1.msra.mxu0 0.0
    %2136 = vmatprep.subr.mxu0 0.0
    %2137 = vmatpush1.msra.mxu0 0.0
    %2138 = vmatprep.subr.mxu0 0.0
    %2139 = vmatpush1.msra.mxu0 0.0
    %2140 = vmatprep.subr.mxu0 0.0
    %2141 = vmatpush1.msra.mxu0 0.0
    %2142 = vmatprep.subr.mxu0 0.0
    %2143 = vmatpush1.msra.mxu0 0.0
    %2144 = vmatprep.subr.mxu0 0.0
    %2145 = vmatpush1.msra.mxu0 0.0
    %2146 = vmatprep.subr.mxu0 0.0
    %2147 = vmatpush1.msra.mxu0 0.0
    %2148 = vmatprep.subr.mxu0 0.0
    %2149 = vmatpush1.msra.mxu0 0.0
    %2150 = vmatprep.subr.mxu0 0.0
    %2151 = vmatpush1.msra.mxu0 0.0
    %2152 = vmatprep.subr.mxu0 0.0
    %2153 = vmatpush1.msra.mxu0 0.0
    %2154 = vmatprep.subr.mxu0 0.0
    %2155 = vmatpush1.msra.mxu0 0.0
    %2156 = vmatprep.subr.mxu0 0.0
    %2157 = vmatpush1.msra.mxu0 0.0
    %2158 = vmatprep.subr.mxu0 0.0
    %2159 = vmatpush1.msra.mxu0 0.0
    %2160 = vmatprep.subr.mxu0 0.0
    %2161 = vmatpush1.msra.mxu0 0.0
    %2162 = vmatprep.subr.mxu0 0.0
    %2163 = vmatpush1.msra.mxu0 0.0
    %2164 = vmatprep.subr.mxu0 0.0
    %2165 = vmatpush1.msra.mxu0 0.0
    %2166 = vmatprep.subr.mxu0 0.0
    %2167 = vmatpush1.msra.mxu0 0.0
    %2168 = vmatprep.subr.mxu0 0.0
    %2169 = vmatpush1.msra.mxu0 0.0
    %2170 = vmatprep.subr.mxu0 0.0
    %2171 = vmatpush1.msra.mxu0 0.0
    %2172 = vmatprep.mubr.f32.mxu0 0.0
    %2173 = vmatmul.mubr.f32.gmra.mrb[0].mxu0 %v2100
    %v2174 = vpop.f32.mrb[0].mxu0
    %v2175 = vadd.f32 0.0, %v2174
    %v2176 = vpop.f32.mrb[0].mxu0
    %v2177 = vadd.f32 0.0, %v2176
    %2178 = vdwg.mxu0
    %v2179 = vadd.f32 %v2074, %v2175
    %v2180 = vadd.f32 %v2076, %v2177
    %2181 = vrot.lane.b32.xlu0 %v1874, 1
    %v2182 = vpop.permute.xlu0 %2181
    %2183 = vrot.lane.b32.xlu0 %v1875, 1
    %v2184 = vpop.permute.xlu0 %2183
    %v2185 = vsel %vm399, %v2182, %v2184
    %v2186 = vsel %vm399, %v2184, %v2182
    %v2187 = vld [vmem:[%s402] ss:$8 sm:$0x3]
    %v2189 = vlaneseq
    %v2190 = vshrl.u32 %v2189, 7
    %v2191 = vsub.s32 0, %v2190
    %v2192 = vrot.slane %v2187, %v2191
    %v2193 = vlaneseq
    %v2194 = vshrl.u32 %v2193, 7
    %v2195 = vsub.s32 1, %v2194
    %v2196 = vrot.slane %v2187, %v2195
    %v2199 = vmul.f32 %v2186, %v2192
    %v2200 = vmul.f32 %v2185, %v2196
    %v2201 = vld [vmem:[%s417] sm:$0xff]
    %v2203 = vsel %vm128, %v2201, 0
    %v2206 = vsel %vm42, %v2199, 0
    %v2209 = vsel %vm42, %v2200, 0
    %2211 = vmatprep.subr.mxu0 %v2209
    %2212 = vmatpush1.msra.mxu0 %v2206
    %2213 = vmatprep.subr.mxu0 0.0
    %2214 = vmatpush1.msra.mxu0 0.0
    %2215 = vmatprep.subr.mxu0 0.0
    %2216 = vmatpush1.msra.mxu0 0.0
    %2217 = vmatprep.subr.mxu0 0.0
    %2218 = vmatpush1.msra.mxu0 0.0
    %2219 = vmatprep.subr.mxu0 0.0
    %2220 = vmatpush1.msra.mxu0 0.0
    %2221 = vmatprep.subr.mxu0 0.0
    %2222 = vmatpush1.msra.mxu0 0.0
    %2223 = vmatprep.subr.mxu0 0.0
    %2224 = vmatpush1.msra.mxu0 0.0
    %2225 = vmatprep.subr.mxu0 0.0
    %2226 = vmatpush1.msra.mxu0 0.0
    %2227 = vmatprep.subr.mxu0 0.0
    %2228 = vmatpush1.msra.mxu0 0.0
    %2229 = vmatprep.subr.mxu0 0.0
    %2230 = vmatpush1.msra.mxu0 0.0
    %2231 = vmatprep.subr.mxu0 0.0
    %2232 = vmatpush1.msra.mxu0 0.0
    %2233 = vmatprep.subr.mxu0 0.0
    %2234 = vmatpush1.msra.mxu0 0.0
    %2235 = vmatprep.subr.mxu0 0.0
    %2236 = vmatpush1.msra.mxu0 0.0
    %2237 = vmatprep.subr.mxu0 0.0
    %2238 = vmatpush1.msra.mxu0 0.0
    %2239 = vmatprep.subr.mxu0 0.0
    %2240 = vmatpush1.msra.mxu0 0.0
    %2241 = vmatprep.subr.mxu0 0.0
    %2242 = vmatpush1.msra.mxu0 0.0
    %2243 = vmatprep.subr.mxu0 0.0
    %2244 = vmatpush1.msra.mxu0 0.0
    %2245 = vmatprep.subr.mxu0 0.0
    %2246 = vmatpush1.msra.mxu0 0.0
    %2247 = vmatprep.subr.mxu0 0.0
    %2248 = vmatpush1.msra.mxu0 0.0
    %2249 = vmatprep.subr.mxu0 0.0
    %2250 = vmatpush1.msra.mxu0 0.0
    %2251 = vmatprep.subr.mxu0 0.0
    %2252 = vmatpush1.msra.mxu0 0.0
    %2253 = vmatprep.subr.mxu0 0.0
    %2254 = vmatpush1.msra.mxu0 0.0
    %2255 = vmatprep.subr.mxu0 0.0
    %2256 = vmatpush1.msra.mxu0 0.0
    %2257 = vmatprep.subr.mxu0 0.0
    %2258 = vmatpush1.msra.mxu0 0.0
    %2259 = vmatprep.subr.mxu0 0.0
    %2260 = vmatpush1.msra.mxu0 0.0
    %2261 = vmatprep.subr.mxu0 0.0
    %2262 = vmatpush1.msra.mxu0 0.0
    %2263 = vmatprep.subr.mxu0 0.0
    %2264 = vmatpush1.msra.mxu0 0.0
    %2265 = vmatprep.subr.mxu0 0.0
    %2266 = vmatpush1.msra.mxu0 0.0
    %2267 = vmatprep.subr.mxu0 0.0
    %2268 = vmatpush1.msra.mxu0 0.0
    %2269 = vmatprep.subr.mxu0 0.0
    %2270 = vmatpush1.msra.mxu0 0.0
    %2271 = vmatprep.subr.mxu0 0.0
    %2272 = vmatpush1.msra.mxu0 0.0
    %2273 = vmatprep.subr.mxu0 0.0
    %2274 = vmatpush1.msra.mxu0 0.0
    %2275 = vmatprep.mubr.f32.mxu0 0.0
    %2276 = vmatmul.mubr.f32.gmra.mrb[0].mxu0 %v2203
    %v2277 = vpop.f32.mrb[0].mxu0
    %v2278 = vadd.f32 0.0, %v2277
    %v2279 = vpop.f32.mrb[0].mxu0
    %v2280 = vadd.f32 0.0, %v2279
    %2281 = vdwg.mxu0
    %v2282 = vadd.f32 %v2179, %v2278
    %v2283 = vadd.f32 %v2180, %v2280
    %v2284 = vld [vmem:[%s501] ss:$8 sm:$0x3]
    %v2286 = vlaneseq
    %v2287 = vshrl.u32 %v2286, 7
    %v2288 = vsub.s32 0, %v2287
    %v2289 = vrot.slane %v2284, %v2288
    %v2290 = vlaneseq
    %v2291 = vshrl.u32 %v2290, 7
    %v2292 = vsub.s32 1, %v2291
    %v2293 = vrot.slane %v2284, %v2292
    %v2296 = vmul.f32 %v1874, %v2289
    %v2297 = vmul.f32 %v1875, %v2293
    %v2298 = vld [vmem:[%s516] sm:$0xff]
    %v2300 = vsel %vm128, %v2298, 0
    %v2303 = vsel %vm42, %v2296, 0
    %v2306 = vsel %vm42, %v2297, 0
    %2308 = vmatprep.subr.mxu0 %v2306
    %2309 = vmatpush1.msra.mxu0 %v2303
    %2310 = vmatprep.subr.mxu0 0.0
    %2311 = vmatpush1.msra.mxu0 0.0
    %2312 = vmatprep.subr.mxu0 0.0
    %2313 = vmatpush1.msra.mxu0 0.0
    %2314 = vmatprep.subr.mxu0 0.0
    %2315 = vmatpush1.msra.mxu0 0.0
    %2316 = vmatprep.subr.mxu0 0.0
    %2317 = vmatpush1.msra.mxu0 0.0
    %2318 = vmatprep.subr.mxu0 0.0
    %2319 = vmatpush1.msra.mxu0 0.0
    %2320 = vmatprep.subr.mxu0 0.0
    %2321 = vmatpush1.msra.mxu0 0.0
    %2322 = vmatprep.subr.mxu0 0.0
    %2323 = vmatpush1.msra.mxu0 0.0
    %2324 = vmatprep.subr.mxu0 0.0
    %2325 = vmatpush1.msra.mxu0 0.0
    %2326 = vmatprep.subr.mxu0 0.0
    %2327 = vmatpush1.msra.mxu0 0.0
    %2328 = vmatprep.subr.mxu0 0.0
    %2329 = vmatpush1.msra.mxu0 0.0
    %2330 = vmatprep.subr.mxu0 0.0
    %2331 = vmatpush1.msra.mxu0 0.0
    %2332 = vmatprep.subr.mxu0 0.0
    %2333 = vmatpush1.msra.mxu0 0.0
    %2334 = vmatprep.subr.mxu0 0.0
    %2335 = vmatpush1.msra.mxu0 0.0
    %2336 = vmatprep.subr.mxu0 0.0
    %2337 = vmatpush1.msra.mxu0 0.0
    %2338 = vmatprep.subr.mxu0 0.0
    %2339 = vmatpush1.msra.mxu0 0.0
    %2340 = vmatprep.subr.mxu0 0.0
    %2341 = vmatpush1.msra.mxu0 0.0
    %2342 = vmatprep.subr.mxu0 0.0
    %2343 = vmatpush1.msra.mxu0 0.0
    %2344 = vmatprep.subr.mxu0 0.0
    %2345 = vmatpush1.msra.mxu0 0.0
    %2346 = vmatprep.subr.mxu0 0.0
    %2347 = vmatpush1.msra.mxu0 0.0
    %2348 = vmatprep.subr.mxu0 0.0
    %2349 = vmatpush1.msra.mxu0 0.0
    %2350 = vmatprep.subr.mxu0 0.0
    %2351 = vmatpush1.msra.mxu0 0.0
    %2352 = vmatprep.subr.mxu0 0.0
    %2353 = vmatpush1.msra.mxu0 0.0
    %2354 = vmatprep.subr.mxu0 0.0
    %2355 = vmatpush1.msra.mxu0 0.0
    %2356 = vmatprep.subr.mxu0 0.0
    %2357 = vmatpush1.msra.mxu0 0.0
    %2358 = vmatprep.subr.mxu0 0.0
    %2359 = vmatpush1.msra.mxu0 0.0
    %2360 = vmatprep.subr.mxu0 0.0
    %2361 = vmatpush1.msra.mxu0 0.0
    %2362 = vmatprep.subr.mxu0 0.0
    %2363 = vmatpush1.msra.mxu0 0.0
    %2364 = vmatprep.subr.mxu0 0.0
    %2365 = vmatpush1.msra.mxu0 0.0
    %2366 = vmatprep.subr.mxu0 0.0
    %2367 = vmatpush1.msra.mxu0 0.0
    %2368 = vmatprep.subr.mxu0 0.0
    %2369 = vmatpush1.msra.mxu0 0.0
    %2370 = vmatprep.subr.mxu0 0.0
    %2371 = vmatpush1.msra.mxu0 0.0
    %2372 = vmatprep.mubr.f32.mxu0 0.0
    %2373 = vmatmul.mubr.f32.gmra.mrb[0].mxu0 %v2300
    %v2374 = vpop.f32.mrb[0].mxu0
    %v2375 = vadd.f32 0.0, %v2374
    %v2376 = vpop.f32.mrb[0].mxu0
    %v2377 = vadd.f32 0.0, %v2376
    %2378 = vdwg.mxu0
    %v2379 = vadd.f32 %v2282, %v2375
    %v2380 = vadd.f32 %v2283, %v2377
    %2381 = vrot.lane.b32.xlu0 %v1874, 127
    %v2382 = vpop.permute.xlu0 %2381
    %2383 = vrot.lane.b32.xlu0 %v1875, 127
    %v2384 = vpop.permute.xlu0 %2383
    %v2385 = vsel %vm604, %v2382, %v2384
    %v2386 = vsel %vm604, %v2384, %v2382
    %v2387 = vld [vmem:[%s607] ss:$8 sm:$0x3]
    %v2389 = vlaneseq
    %v2390 = vshrl.u32 %v2389, 7
    %v2391 = vsub.s32 0, %v2390
    %v2392 = vrot.slane %v2387, %v2391
    %v2393 = vlaneseq
    %v2394 = vshrl.u32 %v2393, 7
    %v2395 = vsub.s32 1, %v2394
    %v2396 = vrot.slane %v2387, %v2395
    %v2399 = vmul.f32 %v2385, %v2392
    %v2400 = vmul.f32 %v2386, %v2396
    %v2401 = vld [vmem:[%s622] sm:$0xff]
    %v2403 = vsel %vm128, %v2401, 0
    %v2406 = vsel %vm42, %v2399, 0
    %v2409 = vsel %vm42, %v2400, 0
    %2411 = vmatprep.subr.mxu0 %v2409
    %2412 = vmatpush1.msra.mxu0 %v2406
    %2413 = vmatprep.subr.mxu0 0.0
    %2414 = vmatpush1.msra.mxu0 0.0
    %2415 = vmatprep.subr.mxu0 0.0
    %2416 = vmatpush1.msra.mxu0 0.0
    %2417 = vmatprep.subr.mxu0 0.0
    %2418 = vmatpush1.msra.mxu0 0.0
    %2419 = vmatprep.subr.mxu0 0.0
    %2420 = vmatpush1.msra.mxu0 0.0
    %2421 = vmatprep.subr.mxu0 0.0
    %2422 = vmatpush1.msra.mxu0 0.0
    %2423 = vmatprep.subr.mxu0 0.0
    %2424 = vmatpush1.msra.mxu0 0.0
    %2425 = vmatprep.subr.mxu0 0.0
    %2426 = vmatpush1.msra.mxu0 0.0
    %2427 = vmatprep.subr.mxu0 0.0
    %2428 = vmatpush1.msra.mxu0 0.0
    %2429 = vmatprep.subr.mxu0 0.0
    %2430 = vmatpush1.msra.mxu0 0.0
    %2431 = vmatprep.subr.mxu0 0.0
    %2432 = vmatpush1.msra.mxu0 0.0
    %2433 = vmatprep.subr.mxu0 0.0
    %2434 = vmatpush1.msra.mxu0 0.0
    %2435 = vmatprep.subr.mxu0 0.0
    %2436 = vmatpush1.msra.mxu0 0.0
    %2437 = vmatprep.subr.mxu0 0.0
    %2438 = vmatpush1.msra.mxu0 0.0
    %2439 = vmatprep.subr.mxu0 0.0
    %2440 = vmatpush1.msra.mxu0 0.0
    %2441 = vmatprep.subr.mxu0 0.0
    %2442 = vmatpush1.msra.mxu0 0.0
    %2443 = vmatprep.subr.mxu0 0.0
    %2444 = vmatpush1.msra.mxu0 0.0
    %2445 = vmatprep.subr.mxu0 0.0
    %2446 = vmatpush1.msra.mxu0 0.0
    %2447 = vmatprep.subr.mxu0 0.0
    %2448 = vmatpush1.msra.mxu0 0.0
    %2449 = vmatprep.subr.mxu0 0.0
    %2450 = vmatpush1.msra.mxu0 0.0
    %2451 = vmatprep.subr.mxu0 0.0
    %2452 = vmatpush1.msra.mxu0 0.0
    %2453 = vmatprep.subr.mxu0 0.0
    %2454 = vmatpush1.msra.mxu0 0.0
    %2455 = vmatprep.subr.mxu0 0.0
    %2456 = vmatpush1.msra.mxu0 0.0
    %2457 = vmatprep.subr.mxu0 0.0
    %2458 = vmatpush1.msra.mxu0 0.0
    %2459 = vmatprep.subr.mxu0 0.0
    %2460 = vmatpush1.msra.mxu0 0.0
    %2461 = vmatprep.subr.mxu0 0.0
    %2462 = vmatpush1.msra.mxu0 0.0
    %2463 = vmatprep.subr.mxu0 0.0
    %2464 = vmatpush1.msra.mxu0 0.0
    %2465 = vmatprep.subr.mxu0 0.0
    %2466 = vmatpush1.msra.mxu0 0.0
    %2467 = vmatprep.subr.mxu0 0.0
    %2468 = vmatpush1.msra.mxu0 0.0
    %2469 = vmatprep.subr.mxu0 0.0
    %2470 = vmatpush1.msra.mxu0 0.0
    %2471 = vmatprep.subr.mxu0 0.0
    %2472 = vmatpush1.msra.mxu0 0.0
    %2473 = vmatprep.subr.mxu0 0.0
    %2474 = vmatpush1.msra.mxu0 0.0
    %2475 = vmatprep.mubr.f32.mxu0 0.0
    %2476 = vmatmul.mubr.f32.gmra.mrb[0].mxu0 %v2403
    %v2477 = vpop.f32.mrb[0].mxu0
    %v2478 = vadd.f32 0.0, %v2477
    %v2479 = vpop.f32.mrb[0].mxu0
    %v2480 = vadd.f32 0.0, %v2479
    %2481 = vdwg.mxu0
    %v2482 = vadd.f32 %v2379, %v2478
    %v2483 = vadd.f32 %v2380, %v2480
    %2484 = vrot.lane.b32.xlu0 %v1874, 113
    %v2485 = vpop.permute.xlu0 %2484
    %2486 = vrot.lane.b32.xlu0 %v1875, 113
    %v2487 = vpop.permute.xlu0 %2486
    %v2488 = vsel %vm710, %v2485, %v2487
    %v2489 = vsel %vm710, %v2487, %v2485
    %v2490 = vld [vmem:[%s713] ss:$8 sm:$0x3]
    %v2492 = vlaneseq
    %v2493 = vshrl.u32 %v2492, 7
    %v2494 = vsub.s32 0, %v2493
    %v2495 = vrot.slane %v2490, %v2494
    %v2496 = vlaneseq
    %v2497 = vshrl.u32 %v2496, 7
    %v2498 = vsub.s32 1, %v2497
    %v2499 = vrot.slane %v2490, %v2498
    %v2502 = vmul.f32 %v2488, %v2495
    %v2503 = vmul.f32 %v2489, %v2499
    %v2504 = vld [vmem:[%s728] sm:$0xff]
    %v2506 = vsel %vm128, %v2504, 0
    %v2509 = vsel %vm42, %v2502, 0
    %v2512 = vsel %vm42, %v2503, 0
    %2514 = vmatprep.subr.mxu0 %v2512
    %2515 = vmatpush1.msra.mxu0 %v2509
    %2516 = vmatprep.subr.mxu0 0.0
    %2517 = vmatpush1.msra.mxu0 0.0
    %2518 = vmatprep.subr.mxu0 0.0
    %2519 = vmatpush1.msra.mxu0 0.0
    %2520 = vmatprep.subr.mxu0 0.0
    %2521 = vmatpush1.msra.mxu0 0.0
    %2522 = vmatprep.subr.mxu0 0.0
    %2523 = vmatpush1.msra.mxu0 0.0
    %2524 = vmatprep.subr.mxu0 0.0
    %2525 = vmatpush1.msra.mxu0 0.0
    %2526 = vmatprep.subr.mxu0 0.0
    %2527 = vmatpush1.msra.mxu0 0.0
    %2528 = vmatprep.subr.mxu0 0.0
    %2529 = vmatpush1.msra.mxu0 0.0
    %2530 = vmatprep.subr.mxu0 0.0
    %2531 = vmatpush1.msra.mxu0 0.0
    %2532 = vmatprep.subr.mxu0 0.0
    %2533 = vmatpush1.msra.mxu0 0.0
    %2534 = vmatprep.subr.mxu0 0.0
    %2535 = vmatpush1.msra.mxu0 0.0
    %2536 = vmatprep.subr.mxu0 0.0
    %2537 = vmatpush1.msra.mxu0 0.0
    %2538 = vmatprep.subr.mxu0 0.0
    %2539 = vmatpush1.msra.mxu0 0.0
    %2540 = vmatprep.subr.mxu0 0.0
    %2541 = vmatpush1.msra.mxu0 0.0
    %2542 = vmatprep.subr.mxu0 0.0
    %2543 = vmatpush1.msra.mxu0 0.0
    %2544 = vmatprep.subr.mxu0 0.0
    %2545 = vmatpush1.msra.mxu0 0.0
    %2546 = vmatprep.subr.mxu0 0.0
    %2547 = vmatpush1.msra.mxu0 0.0
    %2548 = vmatprep.subr.mxu0 0.0
    %2549 = vmatpush1.msra.mxu0 0.0
    %2550 = vmatprep.subr.mxu0 0.0
    %2551 = vmatpush1.msra.mxu0 0.0
    %2552 = vmatprep.subr.mxu0 0.0
    %2553 = vmatpush1.msra.mxu0 0.0
    %2554 = vmatprep.subr.mxu0 0.0
    %2555 = vmatpush1.msra.mxu0 0.0
    %2556 = vmatprep.subr.mxu0 0.0
    %2557 = vmatpush1.msra.mxu0 0.0
    %2558 = vmatprep.subr.mxu0 0.0
    %2559 = vmatpush1.msra.mxu0 0.0
    %2560 = vmatprep.subr.mxu0 0.0
    %2561 = vmatpush1.msra.mxu0 0.0
    %2562 = vmatprep.subr.mxu0 0.0
    %2563 = vmatpush1.msra.mxu0 0.0
    %2564 = vmatprep.subr.mxu0 0.0
    %2565 = vmatpush1.msra.mxu0 0.0
    %2566 = vmatprep.subr.mxu0 0.0
    %2567 = vmatpush1.msra.mxu0 0.0
    %2568 = vmatprep.subr.mxu0 0.0
    %2569 = vmatpush1.msra.mxu0 0.0
    %2570 = vmatprep.subr.mxu0 0.0
    %2571 = vmatpush1.msra.mxu0 0.0
    %2572 = vmatprep.subr.mxu0 0.0
    %2573 = vmatpush1.msra.mxu0 0.0
    %2574 = vmatprep.subr.mxu0 0.0
    %2575 = vmatpush1.msra.mxu0 0.0
    %2576 = vmatprep.subr.mxu0 0.0
    %2577 = vmatpush1.msra.mxu0 0.0
    %2578 = vmatprep.mubr.f32.mxu0 0.0
    %2579 = vmatmul.mubr.f32.gmra.mrb[0].mxu0 %v2506
    %v2580 = vpop.f32.mrb[0].mxu0
    %v2581 = vadd.f32 0.0, %v2580
    %v2582 = vpop.f32.mrb[0].mxu0
    %v2583 = vadd.f32 0.0, %v2582
    %2584 = vdwg.mxu0
    %v2585 = vadd.f32 %v2482, %v2581
    %v2586 = vadd.f32 %v2483, %v2583
    %2587 = vrot.lane.b32.xlu0 %v1874, 112
    %v2588 = vpop.permute.xlu0 %2587
    %2589 = vrot.lane.b32.xlu0 %v1875, 112
    %v2590 = vpop.permute.xlu0 %2589
    %v2591 = vsel %vm816, %v2588, %v2590
    %v2592 = vsel %vm816, %v2590, %v2588
    %v2593 = vld [vmem:[%s819] ss:$8 sm:$0x3]
    %v2595 = vlaneseq
    %v2596 = vshrl.u32 %v2595, 7
    %v2597 = vsub.s32 0, %v2596
    %v2598 = vrot.slane %v2593, %v2597
    %v2599 = vlaneseq
    %v2600 = vshrl.u32 %v2599, 7
    %v2601 = vsub.s32 1, %v2600
    %v2602 = vrot.slane %v2593, %v2601
    %v2605 = vmul.f32 %v2591, %v2598
    %v2606 = vmul.f32 %v2592, %v2602
    %v2607 = vld [vmem:[%s834] sm:$0xff]
    %v2609 = vsel %vm128, %v2607, 0
    %v2612 = vsel %vm42, %v2605, 0
    %v2615 = vsel %vm42, %v2606, 0
    %2617 = vmatprep.subr.mxu0 %v2615
    %2618 = vmatpush1.msra.mxu0 %v2612
    %2619 = vmatprep.subr.mxu0 0.0
    %2620 = vmatpush1.msra.mxu0 0.0
    %2621 = vmatprep.subr.mxu0 0.0
    %2622 = vmatpush1.msra.mxu0 0.0
    %2623 = vmatprep.subr.mxu0 0.0
    %2624 = vmatpush1.msra.mxu0 0.0
    %2625 = vmatprep.subr.mxu0 0.0
    %2626 = vmatpush1.msra.mxu0 0.0
    %2627 = vmatprep.subr.mxu0 0.0
    %2628 = vmatpush1.msra.mxu0 0.0
    %2629 = vmatprep.subr.mxu0 0.0
    %2630 = vmatpush1.msra.mxu0 0.0
    %2631 = vmatprep.subr.mxu0 0.0
    %2632 = vmatpush1.msra.mxu0 0.0
    %2633 = vmatprep.subr.mxu0 0.0
    %2634 = vmatpush1.msra.mxu0 0.0
    %2635 = vmatprep.subr.mxu0 0.0
    %2636 = vmatpush1.msra.mxu0 0.0
    %2637 = vmatprep.subr.mxu0 0.0
    %2638 = vmatpush1.msra.mxu0 0.0
    %2639 = vmatprep.subr.mxu0 0.0
    %2640 = vmatpush1.msra.mxu0 0.0
    %2641 = vmatprep.subr.mxu0 0.0
    %2642 = vmatpush1.msra.mxu0 0.0
    %2643 = vmatprep.subr.mxu0 0.0
    %2644 = vmatpush1.msra.mxu0 0.0
    %2645 = vmatprep.subr.mxu0 0.0
    %2646 = vmatpush1.msra.mxu0 0.0
    %2647 = vmatprep.subr.mxu0 0.0
    %2648 = vmatpush1.msra.mxu0 0.0
    %2649 = vmatprep.subr.mxu0 0.0
    %2650 = vmatpush1.msra.mxu0 0.0
    %2651 = vmatprep.subr.mxu0 0.0
    %2652 = vmatpush1.msra.mxu0 0.0
    %2653 = vmatprep.subr.mxu0 0.0
    %2654 = vmatpush1.msra.mxu0 0.0
    %2655 = vmatprep.subr.mxu0 0.0
    %2656 = vmatpush1.msra.mxu0 0.0
    %2657 = vmatprep.subr.mxu0 0.0
    %2658 = vmatpush1.msra.mxu0 0.0
    %2659 = vmatprep.subr.mxu0 0.0
    %2660 = vmatpush1.msra.mxu0 0.0
    %2661 = vmatprep.subr.mxu0 0.0
    %2662 = vmatpush1.msra.mxu0 0.0
    %2663 = vmatprep.subr.mxu0 0.0
    %2664 = vmatpush1.msra.mxu0 0.0
    %2665 = vmatprep.subr.mxu0 0.0
    %2666 = vmatpush1.msra.mxu0 0.0
    %2667 = vmatprep.subr.mxu0 0.0
    %2668 = vmatpush1.msra.mxu0 0.0
    %2669 = vmatprep.subr.mxu0 0.0
    %2670 = vmatpush1.msra.mxu0 0.0
    %2671 = vmatprep.subr.mxu0 0.0
    %2672 = vmatpush1.msra.mxu0 0.0
    %2673 = vmatprep.subr.mxu0 0.0
    %2674 = vmatpush1.msra.mxu0 0.0
    %2675 = vmatprep.subr.mxu0 0.0
    %2676 = vmatpush1.msra.mxu0 0.0
    %2677 = vmatprep.subr.mxu0 0.0
    %2678 = vmatpush1.msra.mxu0 0.0
    %2679 = vmatprep.subr.mxu0 0.0
    %2680 = vmatpush1.msra.mxu0 0.0
    %2681 = vmatprep.mubr.f32.mxu0 0.0
    %2682 = vmatmul.mubr.f32.gmra.mrb[0].mxu0 %v2609
    %v2683 = vpop.f32.mrb[0].mxu0
    %v2684 = vadd.f32 0.0, %v2683
    %v2685 = vpop.f32.mrb[0].mxu0
    %v2686 = vadd.f32 0.0, %v2685
    %2687 = vdwg.mxu0
    %v2688 = vadd.f32 %v2585, %v2684
    %v2689 = vadd.f32 %v2586, %v2686
    %2690 = vrot.lane.b32.xlu0 %v1874, 111
    %v2691 = vpop.permute.xlu0 %2690
    %2692 = vrot.lane.b32.xlu0 %v1875, 111
    %v2693 = vpop.permute.xlu0 %2692
    %v2694 = vsel %vm922, %v2691, %v2693
    %v2695 = vsel %vm922, %v2693, %v2691
    %v2696 = vld [vmem:[%s925] ss:$8 sm:$0x3]
    %v2698 = vlaneseq
    %v2699 = vshrl.u32 %v2698, 7
    %v2700 = vsub.s32 0, %v2699
    %v2701 = vrot.slane %v2696, %v2700
    %v2702 = vlaneseq
    %v2703 = vshrl.u32 %v2702, 7
    %v2704 = vsub.s32 1, %v2703
    %v2705 = vrot.slane %v2696, %v2704
    %v2708 = vmul.f32 %v2694, %v2701
    %v2709 = vmul.f32 %v2695, %v2705
    %v2710 = vld [vmem:[%s940] sm:$0xff]
    %v2712 = vsel %vm128, %v2710, 0
    %v2715 = vsel %vm42, %v2708, 0
    %v2718 = vsel %vm42, %v2709, 0
    %2720 = vmatprep.subr.mxu0 %v2718
    %2721 = vmatpush1.msra.mxu0 %v2715
    %2722 = vmatprep.subr.mxu0 0.0
    %2723 = vmatpush1.msra.mxu0 0.0
    %2724 = vmatprep.subr.mxu0 0.0
    %2725 = vmatpush1.msra.mxu0 0.0
    %2726 = vmatprep.subr.mxu0 0.0
    %2727 = vmatpush1.msra.mxu0 0.0
    %2728 = vmatprep.subr.mxu0 0.0
    %2729 = vmatpush1.msra.mxu0 0.0
    %2730 = vmatprep.subr.mxu0 0.0
    %2731 = vmatpush1.msra.mxu0 0.0
    %2732 = vmatprep.subr.mxu0 0.0
    %2733 = vmatpush1.msra.mxu0 0.0
    %2734 = vmatprep.subr.mxu0 0.0
    %2735 = vmatpush1.msra.mxu0 0.0
    %2736 = vmatprep.subr.mxu0 0.0
    %2737 = vmatpush1.msra.mxu0 0.0
    %2738 = vmatprep.subr.mxu0 0.0
    %2739 = vmatpush1.msra.mxu0 0.0
    %2740 = vmatprep.subr.mxu0 0.0
    %2741 = vmatpush1.msra.mxu0 0.0
    %2742 = vmatprep.subr.mxu0 0.0
    %2743 = vmatpush1.msra.mxu0 0.0
    %2744 = vmatprep.subr.mxu0 0.0
    %2745 = vmatpush1.msra.mxu0 0.0
    %2746 = vmatprep.subr.mxu0 0.0
    %2747 = vmatpush1.msra.mxu0 0.0
    %2748 = vmatprep.subr.mxu0 0.0
    %2749 = vmatpush1.msra.mxu0 0.0
    %2750 = vmatprep.subr.mxu0 0.0
    %2751 = vmatpush1.msra.mxu0 0.0
    %2752 = vmatprep.subr.mxu0 0.0
    %2753 = vmatpush1.msra.mxu0 0.0
    %2754 = vmatprep.subr.mxu0 0.0
    %2755 = vmatpush1.msra.mxu0 0.0
    %2756 = vmatprep.subr.mxu0 0.0
    %2757 = vmatpush1.msra.mxu0 0.0
    %2758 = vmatprep.subr.mxu0 0.0
    %2759 = vmatpush1.msra.mxu0 0.0
    %2760 = vmatprep.subr.mxu0 0.0
    %2761 = vmatpush1.msra.mxu0 0.0
    %2762 = vmatprep.subr.mxu0 0.0
    %2763 = vmatpush1.msra.mxu0 0.0
    %2764 = vmatprep.subr.mxu0 0.0
    %2765 = vmatpush1.msra.mxu0 0.0
    %2766 = vmatprep.subr.mxu0 0.0
    %2767 = vmatpush1.msra.mxu0 0.0
    %2768 = vmatprep.subr.mxu0 0.0
    %2769 = vmatpush1.msra.mxu0 0.0
    %2770 = vmatprep.subr.mxu0 0.0
    %2771 = vmatpush1.msra.mxu0 0.0
    %2772 = vmatprep.subr.mxu0 0.0
    %2773 = vmatpush1.msra.mxu0 0.0
    %2774 = vmatprep.subr.mxu0 0.0
    %2775 = vmatpush1.msra.mxu0 0.0
    %2776 = vmatprep.subr.mxu0 0.0
    %2777 = vmatpush1.msra.mxu0 0.0
    %2778 = vmatprep.subr.mxu0 0.0
    %2779 = vmatpush1.msra.mxu0 0.0
    %2780 = vmatprep.subr.mxu0 0.0
    %2781 = vmatpush1.msra.mxu0 0.0
    %2782 = vmatprep.subr.mxu0 0.0
    %2783 = vmatpush1.msra.mxu0 0.0
    %2784 = vmatprep.mubr.f32.mxu0 0.0
    %2785 = vmatmul.mubr.f32.gmra.mrb[0].mxu0 %v2712
    %v2786 = vpop.f32.mrb[0].mxu0
    %v2787 = vadd.f32 0.0, %v2786
    %v2788 = vpop.f32.mrb[0].mxu0
    %v2789 = vadd.f32 0.0, %v2788
    %2790 = vdwg.mxu0
    %v2791 = vadd.f32 %v2688, %v2787
    %v2792 = vadd.f32 %v2689, %v2789
    %v2793 = vld [vmem:[%s5] sm:$0xff]
    %2795 = vset.pattern.permute.xlu0 0
    %2796 = vperm.xlu0 %2795, %v2793
    %v2797 = vpop.permute.xlu0 %2796
    %v2799 = vadd.f32 %v2791, %v2797
    %v2800 = vadd.f32 %v2792, %v2797
    %s2801 = scalar_lea.vmem %s6, 8
    %v2802 = vld [vmem:[%s2801] sm:$0xff]
    %v2803 = vmul.f32 %v2799, %v2799
    %v2804 = vmul.f32 %v2800, %v2800
    %v2805 = vadd.f32 %v2803, %v2804
    %2806 = vadd.xlane.f32.xlu0 %v2805
    %v2807 = vpop.xlane.xlu0 %2806
    %v2808 = vmul.f32 %v2807, %v48
    %v2809 = vadd.f32 %v2808, 1e-05
    %v2810 = vrsqrt.pop %v2809
    %v2811 = vmul.f32 %v2799, %v2810
    %v2812 = vmul.f32 %v2800, %v2810
    %2814 = vset.pattern.permute.xlu0 0
    %2815 = vperm.xlu0 %2814, %v2802
    %v2816 = vpop.permute.xlu0 %2815
    %v2818 = vmul.f32 %v2816, %v2811
    %v2819 = vmul.f32 %v2816, %v2812
    %v2820 = vld [vmem:[%s7] sm:$0xff]
    %2822 = vset.pattern.permute.xlu0 0
    %2823 = vperm.xlu0 %2822, %v2820
    %v2824 = vpop.permute.xlu0 %2823
    %v2826 = vmax.f32 %v2818, %v2824
    %v2827 = vmax.f32 %v2819, %v2824
    %2828 = vrot.lane.b32.xlu0 %v2826, 17
    %v2829 = vpop.permute.xlu0 %2828
    %2830 = vrot.lane.b32.xlu0 %v2827, 17
    %v2831 = vpop.permute.xlu0 %2830
    %v2832 = vsel %vm86, %v2829, %v2831
    %v2833 = vsel %vm86, %v2831, %v2829
    %v2834 = vmul.f32 %v2833, %v1887
    %v2835 = vmul.f32 %v2832, %v1891
    %v2836 = vld [vmem:[%s8] sm:$0xff]
    %2837 = vrot.lane.b32.xlu0 %v2826, 16
    %v2838 = vpop.permute.xlu0 %2837
    %2839 = vrot.lane.b32.xlu0 %v2827, 16
    %v2840 = vpop.permute.xlu0 %2839
    %v2841 = vsel %vm108, %v2838, %v2840
    %v2842 = vsel %vm108, %v2840, %v2838
    %v2843 = vmul.f32 %v2842, %v1908
    %v2844 = vmul.f32 %v2841, %v1912
    %v2845 = vld [vmem:[%s1075] sm:$0xff]
    %v2847 = vsel %vm1077, %v2845, 0
    %2849 = vmatprep.subr.mxu0 %v2844
    %2850 = vmatpush1.msra.mxu0 %v2843
    %2851 = vmatprep.subr.mxu0 0.0
    %2852 = vmatpush1.msra.mxu0 0.0
    %2853 = vmatprep.subr.mxu0 0.0
    %2854 = vmatpush1.msra.mxu0 0.0
    %2855 = vmatprep.subr.mxu0 0.0
    %2856 = vmatpush1.msra.mxu0 0.0
    %2857 = vmatprep.subr.mxu0 0.0
    %2858 = vmatpush1.msra.mxu0 0.0
    %2859 = vmatprep.subr.mxu0 0.0
    %2860 = vmatpush1.msra.mxu0 0.0
    %2861 = vmatprep.subr.mxu0 0.0
    %2862 = vmatpush1.msra.mxu0 0.0
    %2863 = vmatprep.subr.mxu0 0.0
    %2864 = vmatpush1.msra.mxu0 0.0
    %2865 = vmatprep.subr.mxu0 0.0
    %2866 = vmatpush1.msra.mxu0 0.0
    %2867 = vmatprep.subr.mxu0 0.0
    %2868 = vmatpush1.msra.mxu0 0.0
    %2869 = vmatprep.subr.mxu0 0.0
    %2870 = vmatpush1.msra.mxu0 0.0
    %2871 = vmatprep.subr.mxu0 0.0
    %2872 = vmatpush1.msra.mxu0 0.0
    %2873 = vmatprep.subr.mxu0 0.0
    %2874 = vmatpush1.msra.mxu0 0.0
    %2875 = vmatprep.subr.mxu0 0.0
    %2876 = vmatpush1.msra.mxu0 0.0
    %2877 = vmatprep.subr.mxu0 0.0
    %2878 = vmatpush1.msra.mxu0 0.0
    %2879 = vmatprep.subr.mxu0 0.0
    %2880 = vmatpush1.msra.mxu0 0.0
    %2881 = vmatprep.subr.mxu0 0.0
    %2882 = vmatpush1.msra.mxu0 0.0
    %2883 = vmatprep.subr.mxu0 0.0
    %2884 = vmatpush1.msra.mxu0 0.0
    %2885 = vmatprep.subr.mxu0 0.0
    %2886 = vmatpush1.msra.mxu0 0.0
    %2887 = vmatprep.subr.mxu0 0.0
    %2888 = vmatpush1.msra.mxu0 0.0
    %2889 = vmatprep.subr.mxu0 0.0
    %2890 = vmatpush1.msra.mxu0 0.0
    %2891 = vmatprep.subr.mxu0 0.0
    %2892 = vmatpush1.msra.mxu0 0.0
    %2893 = vmatprep.subr.mxu0 0.0
    %2894 = vmatpush1.msra.mxu0 0.0
    %2895 = vmatprep.subr.mxu0 0.0
    %2896 = vmatpush1.msra.mxu0 0.0
    %2897 = vmatprep.subr.mxu0 0.0
    %2898 = vmatpush1.msra.mxu0 0.0
    %2899 = vmatprep.subr.mxu0 0.0
    %2900 = vmatpush1.msra.mxu0 0.0
    %2901 = vmatprep.subr.mxu0 0.0
    %2902 = vmatpush1.msra.mxu0 0.0
    %2903 = vmatprep.subr.mxu0 0.0
    %2904 = vmatpush1.msra.mxu0 0.0
    %2905 = vmatprep.subr.mxu0 0.0
    %2906 = vmatpush1.msra.mxu0 0.0
    %2907 = vmatprep.subr.mxu0 0.0
    %2908 = vmatpush1.msra.mxu0 0.0
    %2909 = vmatprep.subr.mxu0 0.0
    %2910 = vmatpush1.msra.mxu0 0.0
    %2911 = vmatprep.subr.mxu0 0.0
    %2912 = vmatpush1.msra.mxu0 0.0
    %2913 = vmatprep.mubr.f32.mxu0 0.0
    %2914 = vmatmul.mubr.f32.gmra.mrb[0].mxu0 %v2847
    %v2915 = vpop.f32.mrb[0].mxu0
    %v2916 = vadd.f32 0.0, %v2915
    %v2917 = vpop.f32.mrb[0].mxu0
    %v2918 = vadd.f32 0.0, %v2917
    %2919 = vdwg.mxu0
    %v2921 = vsel %vm1077, %v2836, 0
    %2923 = vmatprep.subr.mxu0 %v2835
    %2924 = vmatpush1.msra.mxu0 %v2834
    %2925 = vmatprep.subr.mxu0 0.0
    %2926 = vmatpush1.msra.mxu0 0.0
    %2927 = vmatprep.subr.mxu0 0.0
    %2928 = vmatpush1.msra.mxu0 0.0
    %2929 = vmatprep.subr.mxu0 0.0
    %2930 = vmatpush1.msra.mxu0 0.0
    %2931 = vmatprep.subr.mxu0 0.0
    %2932 = vmatpush1.msra.mxu0 0.0
    %2933 = vmatprep.subr.mxu0 0.0
    %2934 = vmatpush1.msra.mxu0 0.0
    %2935 = vmatprep.subr.mxu0 0.0
    %2936 = vmatpush1.msra.mxu0 0.0
    %2937 = vmatprep.subr.mxu0 0.0
    %2938 = vmatpush1.msra.mxu0 0.0
    %2939 = vmatprep.subr.mxu0 0.0
    %2940 = vmatpush1.msra.mxu0 0.0
    %2941 = vmatprep.subr.mxu0 0.0
    %2942 = vmatpush1.msra.mxu0 0.0
    %2943 = vmatprep.subr.mxu0 0.0
    %2944 = vmatpush1.msra.mxu0 0.0
    %2945 = vmatprep.subr.mxu0 0.0
    %2946 = vmatpush1.msra.mxu0 0.0
    %2947 = vmatprep.subr.mxu0 0.0
    %2948 = vmatpush1.msra.mxu0 0.0
    %2949 = vmatprep.subr.mxu0 0.0
    %2950 = vmatpush1.msra.mxu0 0.0
    %2951 = vmatprep.subr.mxu0 0.0
    %2952 = vmatpush1.msra.mxu0 0.0
    %2953 = vmatprep.subr.mxu0 0.0
    %2954 = vmatpush1.msra.mxu0 0.0
    %2955 = vmatprep.subr.mxu0 0.0
    %2956 = vmatpush1.msra.mxu0 0.0
    %2957 = vmatprep.subr.mxu0 0.0
    %2958 = vmatpush1.msra.mxu0 0.0
    %2959 = vmatprep.subr.mxu0 0.0
    %2960 = vmatpush1.msra.mxu0 0.0
    %2961 = vmatprep.subr.mxu0 0.0
    %2962 = vmatpush1.msra.mxu0 0.0
    %2963 = vmatprep.subr.mxu0 0.0
    %2964 = vmatpush1.msra.mxu0 0.0
    %2965 = vmatprep.subr.mxu0 0.0
    %2966 = vmatpush1.msra.mxu0 0.0
    %2967 = vmatprep.subr.mxu0 0.0
    %2968 = vmatpush1.msra.mxu0 0.0
    %2969 = vmatprep.subr.mxu0 0.0
    %2970 = vmatpush1.msra.mxu0 0.0
    %2971 = vmatprep.subr.mxu0 0.0
    %2972 = vmatpush1.msra.mxu0 0.0
    %2973 = vmatprep.subr.mxu0 0.0
    %2974 = vmatpush1.msra.mxu0 0.0
    %2975 = vmatprep.subr.mxu0 0.0
    %2976 = vmatpush1.msra.mxu0 0.0
    %2977 = vmatprep.subr.mxu0 0.0
    %2978 = vmatpush1.msra.mxu0 0.0
    %2979 = vmatprep.subr.mxu0 0.0
    %2980 = vmatpush1.msra.mxu0 0.0
    %2981 = vmatprep.subr.mxu0 0.0
    %2982 = vmatpush1.msra.mxu0 0.0
    %2983 = vmatprep.subr.mxu0 0.0
    %2984 = vmatpush1.msra.mxu0 0.0
    %2985 = vmatprep.subr.mxu0 0.0
    %2986 = vmatpush1.msra.mxu0 0.0
    %2987 = vmatprep.mubr.f32.mxu0 0.0
    %2988 = vmatmul.mubr.f32.gmra.mrb[0].mxu0 %v2921
    %v2989 = vpop.f32.mrb[0].mxu0
    %v2990 = vadd.f32 %v2916, %v2989
    %v2991 = vpop.f32.mrb[0].mxu0
    %v2992 = vadd.f32 %v2918, %v2991
    %2993 = vdwg.mxu0
    %2994 = vrot.lane.b32.xlu0 %v2826, 15
    %v2995 = vpop.permute.xlu0 %2994
    %2996 = vrot.lane.b32.xlu0 %v2827, 15
    %v2997 = vpop.permute.xlu0 %2996
    %v2998 = vsel %vm293, %v2995, %v2997
    %v2999 = vsel %vm293, %v2997, %v2995
    %v3000 = vmul.f32 %v2999, %v2089
    %v3001 = vmul.f32 %v2998, %v2093
    %v3002 = vld [vmem:[%s1234] sm:$0xff]
    %v3004 = vsel %vm1077, %v3002, 0
    %3006 = vmatprep.subr.mxu0 %v3001
    %3007 = vmatpush1.msra.mxu0 %v3000
    %3008 = vmatprep.subr.mxu0 0.0
    %3009 = vmatpush1.msra.mxu0 0.0
    %3010 = vmatprep.subr.mxu0 0.0
    %3011 = vmatpush1.msra.mxu0 0.0
    %3012 = vmatprep.subr.mxu0 0.0
    %3013 = vmatpush1.msra.mxu0 0.0
    %3014 = vmatprep.subr.mxu0 0.0
    %3015 = vmatpush1.msra.mxu0 0.0
    %3016 = vmatprep.subr.mxu0 0.0
    %3017 = vmatpush1.msra.mxu0 0.0
    %3018 = vmatprep.subr.mxu0 0.0
    %3019 = vmatpush1.msra.mxu0 0.0
    %3020 = vmatprep.subr.mxu0 0.0
    %3021 = vmatpush1.msra.mxu0 0.0
    %3022 = vmatprep.subr.mxu0 0.0
    %3023 = vmatpush1.msra.mxu0 0.0
    %3024 = vmatprep.subr.mxu0 0.0
    %3025 = vmatpush1.msra.mxu0 0.0
    %3026 = vmatprep.subr.mxu0 0.0
    %3027 = vmatpush1.msra.mxu0 0.0
    %3028 = vmatprep.subr.mxu0 0.0
    %3029 = vmatpush1.msra.mxu0 0.0
    %3030 = vmatprep.subr.mxu0 0.0
    %3031 = vmatpush1.msra.mxu0 0.0
    %3032 = vmatprep.subr.mxu0 0.0
    %3033 = vmatpush1.msra.mxu0 0.0
    %3034 = vmatprep.subr.mxu0 0.0
    %3035 = vmatpush1.msra.mxu0 0.0
    %3036 = vmatprep.subr.mxu0 0.0
    %3037 = vmatpush1.msra.mxu0 0.0
    %3038 = vmatprep.subr.mxu0 0.0
    %3039 = vmatpush1.msra.mxu0 0.0
    %3040 = vmatprep.subr.mxu0 0.0
    %3041 = vmatpush1.msra.mxu0 0.0
    %3042 = vmatprep.subr.mxu0 0.0
    %3043 = vmatpush1.msra.mxu0 0.0
    %3044 = vmatprep.subr.mxu0 0.0
    %3045 = vmatpush1.msra.mxu0 0.0
    %3046 = vmatprep.subr.mxu0 0.0
    %3047 = vmatpush1.msra.mxu0 0.0
    %3048 = vmatprep.subr.mxu0 0.0
    %3049 = vmatpush1.msra.mxu0 0.0
    %3050 = vmatprep.subr.mxu0 0.0
    %3051 = vmatpush1.msra.mxu0 0.0
    %3052 = vmatprep.subr.mxu0 0.0
    %3053 = vmatpush1.msra.mxu0 0.0
    %3054 = vmatprep.subr.mxu0 0.0
    %3055 = vmatpush1.msra.mxu0 0.0
    %3056 = vmatprep.subr.mxu0 0.0
    %3057 = vmatpush1.msra.mxu0 0.0
    %3058 = vmatprep.subr.mxu0 0.0
    %3059 = vmatpush1.msra.mxu0 0.0
    %3060 = vmatprep.subr.mxu0 0.0
    %3061 = vmatpush1.msra.mxu0 0.0
    %3062 = vmatprep.subr.mxu0 0.0
    %3063 = vmatpush1.msra.mxu0 0.0
    %3064 = vmatprep.subr.mxu0 0.0
    %3065 = vmatpush1.msra.mxu0 0.0
    %3066 = vmatprep.subr.mxu0 0.0
    %3067 = vmatpush1.msra.mxu0 0.0
    %3068 = vmatprep.subr.mxu0 0.0
    %3069 = vmatpush1.msra.mxu0 0.0
    %3070 = vmatprep.mubr.f32.mxu0 0.0
    %3071 = vmatmul.mubr.f32.gmra.mrb[0].mxu0 %v3004
    %v3072 = vpop.f32.mrb[0].mxu0
    %v3073 = vadd.f32 0.0, %v3072
    %v3074 = vpop.f32.mrb[0].mxu0
    %v3075 = vadd.f32 0.0, %v3074
    %3076 = vdwg.mxu0
    %v3077 = vadd.f32 %v2990, %v3073
    %v3078 = vadd.f32 %v2992, %v3075
    %3079 = vrot.lane.b32.xlu0 %v2826, 1
    %v3080 = vpop.permute.xlu0 %3079
    %3081 = vrot.lane.b32.xlu0 %v2827, 1
    %v3082 = vpop.permute.xlu0 %3081
    %v3083 = vsel %vm399, %v3080, %v3082
    %v3084 = vsel %vm399, %v3082, %v3080
    %v3085 = vmul.f32 %v3084, %v2192
    %v3086 = vmul.f32 %v3083, %v2196
    %v3087 = vld [vmem:[%s1320] sm:$0xff]
    %v3089 = vsel %vm1077, %v3087, 0
    %3091 = vmatprep.subr.mxu0 %v3086
    %3092 = vmatpush1.msra.mxu0 %v3085
    %3093 = vmatprep.subr.mxu0 0.0
    %3094 = vmatpush1.msra.mxu0 0.0
    %3095 = vmatprep.subr.mxu0 0.0
    %3096 = vmatpush1.msra.mxu0 0.0
    %3097 = vmatprep.subr.mxu0 0.0
    %3098 = vmatpush1.msra.mxu0 0.0
    %3099 = vmatprep.subr.mxu0 0.0
    %3100 = vmatpush1.msra.mxu0 0.0
    %3101 = vmatprep.subr.mxu0 0.0
    %3102 = vmatpush1.msra.mxu0 0.0
    %3103 = vmatprep.subr.mxu0 0.0
    %3104 = vmatpush1.msra.mxu0 0.0
    %3105 = vmatprep.subr.mxu0 0.0
    %3106 = vmatpush1.msra.mxu0 0.0
    %3107 = vmatprep.subr.mxu0 0.0
    %3108 = vmatpush1.msra.mxu0 0.0
    %3109 = vmatprep.subr.mxu0 0.0
    %3110 = vmatpush1.msra.mxu0 0.0
    %3111 = vmatprep.subr.mxu0 0.0
    %3112 = vmatpush1.msra.mxu0 0.0
    %3113 = vmatprep.subr.mxu0 0.0
    %3114 = vmatpush1.msra.mxu0 0.0
    %3115 = vmatprep.subr.mxu0 0.0
    %3116 = vmatpush1.msra.mxu0 0.0
    %3117 = vmatprep.subr.mxu0 0.0
    %3118 = vmatpush1.msra.mxu0 0.0
    %3119 = vmatprep.subr.mxu0 0.0
    %3120 = vmatpush1.msra.mxu0 0.0
    %3121 = vmatprep.subr.mxu0 0.0
    %3122 = vmatpush1.msra.mxu0 0.0
    %3123 = vmatprep.subr.mxu0 0.0
    %3124 = vmatpush1.msra.mxu0 0.0
    %3125 = vmatprep.subr.mxu0 0.0
    %3126 = vmatpush1.msra.mxu0 0.0
    %3127 = vmatprep.subr.mxu0 0.0
    %3128 = vmatpush1.msra.mxu0 0.0
    %3129 = vmatprep.subr.mxu0 0.0
    %3130 = vmatpush1.msra.mxu0 0.0
    %3131 = vmatprep.subr.mxu0 0.0
    %3132 = vmatpush1.msra.mxu0 0.0
    %3133 = vmatprep.subr.mxu0 0.0
    %3134 = vmatpush1.msra.mxu0 0.0
    %3135 = vmatprep.subr.mxu0 0.0
    %3136 = vmatpush1.msra.mxu0 0.0
    %3137 = vmatprep.subr.mxu0 0.0
    %3138 = vmatpush1.msra.mxu0 0.0
    %3139 = vmatprep.subr.mxu0 0.0
    %3140 = vmatpush1.msra.mxu0 0.0
    %3141 = vmatprep.subr.mxu0 0.0
    %3142 = vmatpush1.msra.mxu0 0.0
    %3143 = vmatprep.subr.mxu0 0.0
    %3144 = vmatpush1.msra.mxu0 0.0
    %3145 = vmatprep.subr.mxu0 0.0
    %3146 = vmatpush1.msra.mxu0 0.0
    %3147 = vmatprep.subr.mxu0 0.0
    %3148 = vmatpush1.msra.mxu0 0.0
    %3149 = vmatprep.subr.mxu0 0.0
    %3150 = vmatpush1.msra.mxu0 0.0
    %3151 = vmatprep.subr.mxu0 0.0
    %3152 = vmatpush1.msra.mxu0 0.0
    %3153 = vmatprep.subr.mxu0 0.0
    %3154 = vmatpush1.msra.mxu0 0.0
    %3155 = vmatprep.mubr.f32.mxu0 0.0
    %3156 = vmatmul.mubr.f32.gmra.mrb[0].mxu0 %v3089
    %v3157 = vpop.f32.mrb[0].mxu0
    %v3158 = vadd.f32 0.0, %v3157
    %v3159 = vpop.f32.mrb[0].mxu0
    %v3160 = vadd.f32 0.0, %v3159
    %3161 = vdwg.mxu0
    %v3162 = vadd.f32 %v3077, %v3158
    %v3163 = vadd.f32 %v3078, %v3160
    %v3164 = vmul.f32 %v2826, %v2289
    %v3165 = vmul.f32 %v2827, %v2293
    %v3166 = vld [vmem:[%s1400] sm:$0xff]
    %v3168 = vsel %vm1077, %v3166, 0
    %3170 = vmatprep.subr.mxu0 %v3165
    %3171 = vmatpush1.msra.mxu0 %v3164
    %3172 = vmatprep.subr.mxu0 0.0
    %3173 = vmatpush1.msra.mxu0 0.0
    %3174 = vmatprep.subr.mxu0 0.0
    %3175 = vmatpush1.msra.mxu0 0.0
    %3176 = vmatprep.subr.mxu0 0.0
    %3177 = vmatpush1.msra.mxu0 0.0
    %3178 = vmatprep.subr.mxu0 0.0
    %3179 = vmatpush1.msra.mxu0 0.0
    %3180 = vmatprep.subr.mxu0 0.0
    %3181 = vmatpush1.msra.mxu0 0.0
    %3182 = vmatprep.subr.mxu0 0.0
    %3183 = vmatpush1.msra.mxu0 0.0
    %3184 = vmatprep.subr.mxu0 0.0
    %3185 = vmatpush1.msra.mxu0 0.0
    %3186 = vmatprep.subr.mxu0 0.0
    %3187 = vmatpush1.msra.mxu0 0.0
    %3188 = vmatprep.subr.mxu0 0.0
    %3189 = vmatpush1.msra.mxu0 0.0
    %3190 = vmatprep.subr.mxu0 0.0
    %3191 = vmatpush1.msra.mxu0 0.0
    %3192 = vmatprep.subr.mxu0 0.0
    %3193 = vmatpush1.msra.mxu0 0.0
    %3194 = vmatprep.subr.mxu0 0.0
    %3195 = vmatpush1.msra.mxu0 0.0
    %3196 = vmatprep.subr.mxu0 0.0
    %3197 = vmatpush1.msra.mxu0 0.0
    %3198 = vmatprep.subr.mxu0 0.0
    %3199 = vmatpush1.msra.mxu0 0.0
    %3200 = vmatprep.subr.mxu0 0.0
    %3201 = vmatpush1.msra.mxu0 0.0
    %3202 = vmatprep.subr.mxu0 0.0
    %3203 = vmatpush1.msra.mxu0 0.0
    %3204 = vmatprep.subr.mxu0 0.0
    %3205 = vmatpush1.msra.mxu0 0.0
    %3206 = vmatprep.subr.mxu0 0.0
    %3207 = vmatpush1.msra.mxu0 0.0
    %3208 = vmatprep.subr.mxu0 0.0
    %3209 = vmatpush1.msra.mxu0 0.0
    %3210 = vmatprep.subr.mxu0 0.0
    %3211 = vmatpush1.msra.mxu0 0.0
    %3212 = vmatprep.subr.mxu0 0.0
    %3213 = vmatpush1.msra.mxu0 0.0
    %3214 = vmatprep.subr.mxu0 0.0
    %3215 = vmatpush1.msra.mxu0 0.0
    %3216 = vmatprep.subr.mxu0 0.0
    %3217 = vmatpush1.msra.mxu0 0.0
    %3218 = vmatprep.subr.mxu0 0.0
    %3219 = vmatpush1.msra.mxu0 0.0
    %3220 = vmatprep.subr.mxu0 0.0
    %3221 = vmatpush1.msra.mxu0 0.0
    %3222 = vmatprep.subr.mxu0 0.0
    %3223 = vmatpush1.msra.mxu0 0.0
    %3224 = vmatprep.subr.mxu0 0.0
    %3225 = vmatpush1.msra.mxu0 0.0
    %3226 = vmatprep.subr.mxu0 0.0
    %3227 = vmatpush1.msra.mxu0 0.0
    %3228 = vmatprep.subr.mxu0 0.0
    %3229 = vmatpush1.msra.mxu0 0.0
    %3230 = vmatprep.subr.mxu0 0.0
    %3231 = vmatpush1.msra.mxu0 0.0
    %3232 = vmatprep.subr.mxu0 0.0
    %3233 = vmatpush1.msra.mxu0 0.0
    %3234 = vmatprep.mubr.f32.mxu0 0.0
    %3235 = vmatmul.mubr.f32.gmra.mrb[0].mxu0 %v3168
    %v3236 = vpop.f32.mrb[0].mxu0
    %v3237 = vadd.f32 0.0, %v3236
    %v3238 = vpop.f32.mrb[0].mxu0
    %v3239 = vadd.f32 0.0, %v3238
    %3240 = vdwg.mxu0
    %v3241 = vadd.f32 %v3162, %v3237
    %v3242 = vadd.f32 %v3163, %v3239
    %3243 = vrot.lane.b32.xlu0 %v2826, 127
    %v3244 = vpop.permute.xlu0 %3243
    %3245 = vrot.lane.b32.xlu0 %v2827, 127
    %v3246 = vpop.permute.xlu0 %3245
    %v3247 = vsel %vm604, %v3244, %v3246
    %v3248 = vsel %vm604, %v3246, %v3244
    %v3249 = vmul.f32 %v3247, %v2392
    %v3250 = vmul.f32 %v3248, %v2396
    %v3251 = vld [vmem:[%s1486] sm:$0xff]
    %v3253 = vsel %vm1077, %v3251, 0
    %3255 = vmatprep.subr.mxu0 %v3250
    %3256 = vmatpush1.msra.mxu0 %v3249
    %3257 = vmatprep.subr.mxu0 0.0
    %3258 = vmatpush1.msra.mxu0 0.0
    %3259 = vmatprep.subr.mxu0 0.0
    %3260 = vmatpush1.msra.mxu0 0.0
    %3261 = vmatprep.subr.mxu0 0.0
    %3262 = vmatpush1.msra.mxu0 0.0
    %3263 = vmatprep.subr.mxu0 0.0
    %3264 = vmatpush1.msra.mxu0 0.0
    %3265 = vmatprep.subr.mxu0 0.0
    %3266 = vmatpush1.msra.mxu0 0.0
    %3267 = vmatprep.subr.mxu0 0.0
    %3268 = vmatpush1.msra.mxu0 0.0
    %3269 = vmatprep.subr.mxu0 0.0
    %3270 = vmatpush1.msra.mxu0 0.0
    %3271 = vmatprep.subr.mxu0 0.0
    %3272 = vmatpush1.msra.mxu0 0.0
    %3273 = vmatprep.subr.mxu0 0.0
    %3274 = vmatpush1.msra.mxu0 0.0
    %3275 = vmatprep.subr.mxu0 0.0
    %3276 = vmatpush1.msra.mxu0 0.0
    %3277 = vmatprep.subr.mxu0 0.0
    %3278 = vmatpush1.msra.mxu0 0.0
    %3279 = vmatprep.subr.mxu0 0.0
    %3280 = vmatpush1.msra.mxu0 0.0
    %3281 = vmatprep.subr.mxu0 0.0
    %3282 = vmatpush1.msra.mxu0 0.0
    %3283 = vmatprep.subr.mxu0 0.0
    %3284 = vmatpush1.msra.mxu0 0.0
    %3285 = vmatprep.subr.mxu0 0.0
    %3286 = vmatpush1.msra.mxu0 0.0
    %3287 = vmatprep.subr.mxu0 0.0
    %3288 = vmatpush1.msra.mxu0 0.0
    %3289 = vmatprep.subr.mxu0 0.0
    %3290 = vmatpush1.msra.mxu0 0.0
    %3291 = vmatprep.subr.mxu0 0.0
    %3292 = vmatpush1.msra.mxu0 0.0
    %3293 = vmatprep.subr.mxu0 0.0
    %3294 = vmatpush1.msra.mxu0 0.0
    %3295 = vmatprep.subr.mxu0 0.0
    %3296 = vmatpush1.msra.mxu0 0.0
    %3297 = vmatprep.subr.mxu0 0.0
    %3298 = vmatpush1.msra.mxu0 0.0
    %3299 = vmatprep.subr.mxu0 0.0
    %3300 = vmatpush1.msra.mxu0 0.0
    %3301 = vmatprep.subr.mxu0 0.0
    %3302 = vmatpush1.msra.mxu0 0.0
    %3303 = vmatprep.subr.mxu0 0.0
    %3304 = vmatpush1.msra.mxu0 0.0
    %3305 = vmatprep.subr.mxu0 0.0
    %3306 = vmatpush1.msra.mxu0 0.0
    %3307 = vmatprep.subr.mxu0 0.0
    %3308 = vmatpush1.msra.mxu0 0.0
    %3309 = vmatprep.subr.mxu0 0.0
    %3310 = vmatpush1.msra.mxu0 0.0
    %3311 = vmatprep.subr.mxu0 0.0
    %3312 = vmatpush1.msra.mxu0 0.0
    %3313 = vmatprep.subr.mxu0 0.0
    %3314 = vmatpush1.msra.mxu0 0.0
    %3315 = vmatprep.subr.mxu0 0.0
    %3316 = vmatpush1.msra.mxu0 0.0
    %3317 = vmatprep.subr.mxu0 0.0
    %3318 = vmatpush1.msra.mxu0 0.0
    %3319 = vmatprep.mubr.f32.mxu0 0.0
    %3320 = vmatmul.mubr.f32.gmra.mrb[0].mxu0 %v3253
    %v3321 = vpop.f32.mrb[0].mxu0
    %v3322 = vadd.f32 0.0, %v3321
    %v3323 = vpop.f32.mrb[0].mxu0
    %v3324 = vadd.f32 0.0, %v3323
    %3325 = vdwg.mxu0
    %v3326 = vadd.f32 %v3241, %v3322
    %v3327 = vadd.f32 %v3242, %v3324
    %3328 = vrot.lane.b32.xlu0 %v2826, 113
    %v3329 = vpop.permute.xlu0 %3328
    %3330 = vrot.lane.b32.xlu0 %v2827, 113
    %v3331 = vpop.permute.xlu0 %3330
    %v3332 = vsel %vm710, %v3329, %v3331
    %v3333 = vsel %vm710, %v3331, %v3329
    %v3334 = vmul.f32 %v3332, %v2495
    %v3335 = vmul.f32 %v3333, %v2499
    %v3336 = vld [vmem:[%s1572] sm:$0xff]
    %v3338 = vsel %vm1077, %v3336, 0
    %3340 = vmatprep.subr.mxu0 %v3335
    %3341 = vmatpush1.msra.mxu0 %v3334
    %3342 = vmatprep.subr.mxu0 0.0
    %3343 = vmatpush1.msra.mxu0 0.0
    %3344 = vmatprep.subr.mxu0 0.0
    %3345 = vmatpush1.msra.mxu0 0.0
    %3346 = vmatprep.subr.mxu0 0.0
    %3347 = vmatpush1.msra.mxu0 0.0
    %3348 = vmatprep.subr.mxu0 0.0
    %3349 = vmatpush1.msra.mxu0 0.0
    %3350 = vmatprep.subr.mxu0 0.0
    %3351 = vmatpush1.msra.mxu0 0.0
    %3352 = vmatprep.subr.mxu0 0.0
    %3353 = vmatpush1.msra.mxu0 0.0
    %3354 = vmatprep.subr.mxu0 0.0
    %3355 = vmatpush1.msra.mxu0 0.0
    %3356 = vmatprep.subr.mxu0 0.0
    %3357 = vmatpush1.msra.mxu0 0.0
    %3358 = vmatprep.subr.mxu0 0.0
    %3359 = vmatpush1.msra.mxu0 0.0
    %3360 = vmatprep.subr.mxu0 0.0
    %3361 = vmatpush1.msra.mxu0 0.0
    %3362 = vmatprep.subr.mxu0 0.0
    %3363 = vmatpush1.msra.mxu0 0.0
    %3364 = vmatprep.subr.mxu0 0.0
    %3365 = vmatpush1.msra.mxu0 0.0
    %3366 = vmatprep.subr.mxu0 0.0
    %3367 = vmatpush1.msra.mxu0 0.0
    %3368 = vmatprep.subr.mxu0 0.0
    %3369 = vmatpush1.msra.mxu0 0.0
    %3370 = vmatprep.subr.mxu0 0.0
    %3371 = vmatpush1.msra.mxu0 0.0
    %3372 = vmatprep.subr.mxu0 0.0
    %3373 = vmatpush1.msra.mxu0 0.0
    %3374 = vmatprep.subr.mxu0 0.0
    %3375 = vmatpush1.msra.mxu0 0.0
    %3376 = vmatprep.subr.mxu0 0.0
    %3377 = vmatpush1.msra.mxu0 0.0
    %3378 = vmatprep.subr.mxu0 0.0
    %3379 = vmatpush1.msra.mxu0 0.0
    %3380 = vmatprep.subr.mxu0 0.0
    %3381 = vmatpush1.msra.mxu0 0.0
    %3382 = vmatprep.subr.mxu0 0.0
    %3383 = vmatpush1.msra.mxu0 0.0
    %3384 = vmatprep.subr.mxu0 0.0
    %3385 = vmatpush1.msra.mxu0 0.0
    %3386 = vmatprep.subr.mxu0 0.0
    %3387 = vmatpush1.msra.mxu0 0.0
    %3388 = vmatprep.subr.mxu0 0.0
    %3389 = vmatpush1.msra.mxu0 0.0
    %3390 = vmatprep.subr.mxu0 0.0
    %3391 = vmatpush1.msra.mxu0 0.0
    %3392 = vmatprep.subr.mxu0 0.0
    %3393 = vmatpush1.msra.mxu0 0.0
    %3394 = vmatprep.subr.mxu0 0.0
    %3395 = vmatpush1.msra.mxu0 0.0
    %3396 = vmatprep.subr.mxu0 0.0
    %3397 = vmatpush1.msra.mxu0 0.0
    %3398 = vmatprep.subr.mxu0 0.0
    %3399 = vmatpush1.msra.mxu0 0.0
    %3400 = vmatprep.subr.mxu0 0.0
    %3401 = vmatpush1.msra.mxu0 0.0
    %3402 = vmatprep.subr.mxu0 0.0
    %3403 = vmatpush1.msra.mxu0 0.0
    %3404 = vmatprep.mubr.f32.mxu0 0.0
    %3405 = vmatmul.mubr.f32.gmra.mrb[0].mxu0 %v3338
    %v3406 = vpop.f32.mrb[0].mxu0
    %v3407 = vadd.f32 0.0, %v3406
    %v3408 = vpop.f32.mrb[0].mxu0
    %v3409 = vadd.f32 0.0, %v3408
    %3410 = vdwg.mxu0
    %v3411 = vadd.f32 %v3326, %v3407
    %v3412 = vadd.f32 %v3327, %v3409
    %3413 = vrot.lane.b32.xlu0 %v2826, 112
    %v3414 = vpop.permute.xlu0 %3413
    %3415 = vrot.lane.b32.xlu0 %v2827, 112
    %v3416 = vpop.permute.xlu0 %3415
    %v3417 = vsel %vm816, %v3414, %v3416
    %v3418 = vsel %vm816, %v3416, %v3414
    %v3419 = vmul.f32 %v3417, %v2598
    %v3420 = vmul.f32 %v3418, %v2602
    %v3421 = vld [vmem:[%s1658] sm:$0xff]
    %v3423 = vsel %vm1077, %v3421, 0
    %3425 = vmatprep.subr.mxu0 %v3420
    %3426 = vmatpush1.msra.mxu0 %v3419
    %3427 = vmatprep.subr.mxu0 0.0
    %3428 = vmatpush1.msra.mxu0 0.0
    %3429 = vmatprep.subr.mxu0 0.0
    %3430 = vmatpush1.msra.mxu0 0.0
    %3431 = vmatprep.subr.mxu0 0.0
    %3432 = vmatpush1.msra.mxu0 0.0
    %3433 = vmatprep.subr.mxu0 0.0
    %3434 = vmatpush1.msra.mxu0 0.0
    %3435 = vmatprep.subr.mxu0 0.0
    %3436 = vmatpush1.msra.mxu0 0.0
    %3437 = vmatprep.subr.mxu0 0.0
    %3438 = vmatpush1.msra.mxu0 0.0
    %3439 = vmatprep.subr.mxu0 0.0
    %3440 = vmatpush1.msra.mxu0 0.0
    %3441 = vmatprep.subr.mxu0 0.0
    %3442 = vmatpush1.msra.mxu0 0.0
    %3443 = vmatprep.subr.mxu0 0.0
    %3444 = vmatpush1.msra.mxu0 0.0
    %3445 = vmatprep.subr.mxu0 0.0
    %3446 = vmatpush1.msra.mxu0 0.0
    %3447 = vmatprep.subr.mxu0 0.0
    %3448 = vmatpush1.msra.mxu0 0.0
    %3449 = vmatprep.subr.mxu0 0.0
    %3450 = vmatpush1.msra.mxu0 0.0
    %3451 = vmatprep.subr.mxu0 0.0
    %3452 = vmatpush1.msra.mxu0 0.0
    %3453 = vmatprep.subr.mxu0 0.0
    %3454 = vmatpush1.msra.mxu0 0.0
    %3455 = vmatprep.subr.mxu0 0.0
    %3456 = vmatpush1.msra.mxu0 0.0
    %3457 = vmatprep.subr.mxu0 0.0
    %3458 = vmatpush1.msra.mxu0 0.0
    %3459 = vmatprep.subr.mxu0 0.0
    %3460 = vmatpush1.msra.mxu0 0.0
    %3461 = vmatprep.subr.mxu0 0.0
    %3462 = vmatpush1.msra.mxu0 0.0
    %3463 = vmatprep.subr.mxu0 0.0
    %3464 = vmatpush1.msra.mxu0 0.0
    %3465 = vmatprep.subr.mxu0 0.0
    %3466 = vmatpush1.msra.mxu0 0.0
    %3467 = vmatprep.subr.mxu0 0.0
    %3468 = vmatpush1.msra.mxu0 0.0
    %3469 = vmatprep.subr.mxu0 0.0
    %3470 = vmatpush1.msra.mxu0 0.0
    %3471 = vmatprep.subr.mxu0 0.0
    %3472 = vmatpush1.msra.mxu0 0.0
    %3473 = vmatprep.subr.mxu0 0.0
    %3474 = vmatpush1.msra.mxu0 0.0
    %3475 = vmatprep.subr.mxu0 0.0
    %3476 = vmatpush1.msra.mxu0 0.0
    %3477 = vmatprep.subr.mxu0 0.0
    %3478 = vmatpush1.msra.mxu0 0.0
    %3479 = vmatprep.subr.mxu0 0.0
    %3480 = vmatpush1.msra.mxu0 0.0
    %3481 = vmatprep.subr.mxu0 0.0
    %3482 = vmatpush1.msra.mxu0 0.0
    %3483 = vmatprep.subr.mxu0 0.0
    %3484 = vmatpush1.msra.mxu0 0.0
    %3485 = vmatprep.subr.mxu0 0.0
    %3486 = vmatpush1.msra.mxu0 0.0
    %3487 = vmatprep.subr.mxu0 0.0
    %3488 = vmatpush1.msra.mxu0 0.0
    %3489 = vmatprep.mubr.f32.mxu0 0.0
    %3490 = vmatmul.mubr.f32.gmra.mrb[0].mxu0 %v3423
    %v3491 = vpop.f32.mrb[0].mxu0
    %v3492 = vadd.f32 0.0, %v3491
    %v3493 = vpop.f32.mrb[0].mxu0
    %v3494 = vadd.f32 0.0, %v3493
    %3495 = vdwg.mxu0
    %v3496 = vadd.f32 %v3411, %v3492
    %v3497 = vadd.f32 %v3412, %v3494
    %3498 = vrot.lane.b32.xlu0 %v2826, 111
    %v3499 = vpop.permute.xlu0 %3498
    %3500 = vrot.lane.b32.xlu0 %v2827, 111
    %v3501 = vpop.permute.xlu0 %3500
    %v3502 = vsel %vm922, %v3499, %v3501
    %v3503 = vsel %vm922, %v3501, %v3499
    %v3504 = vmul.f32 %v3502, %v2701
    %v3505 = vmul.f32 %v3503, %v2705
    %v3506 = vld [vmem:[%s1744] sm:$0xff]
    %v3508 = vsel %vm1077, %v3506, 0
    %3510 = vmatprep.subr.mxu0 %v3505
    %3511 = vmatpush1.msra.mxu0 %v3504
    %3512 = vmatprep.subr.mxu0 0.0
    %3513 = vmatpush1.msra.mxu0 0.0
    %3514 = vmatprep.subr.mxu0 0.0
    %3515 = vmatpush1.msra.mxu0 0.0
    %3516 = vmatprep.subr.mxu0 0.0
    %3517 = vmatpush1.msra.mxu0 0.0
    %3518 = vmatprep.subr.mxu0 0.0
    %3519 = vmatpush1.msra.mxu0 0.0
    %3520 = vmatprep.subr.mxu0 0.0
    %3521 = vmatpush1.msra.mxu0 0.0
    %3522 = vmatprep.subr.mxu0 0.0
    %3523 = vmatpush1.msra.mxu0 0.0
    %3524 = vmatprep.subr.mxu0 0.0
    %3525 = vmatpush1.msra.mxu0 0.0
    %3526 = vmatprep.subr.mxu0 0.0
    %3527 = vmatpush1.msra.mxu0 0.0
    %3528 = vmatprep.subr.mxu0 0.0
    %3529 = vmatpush1.msra.mxu0 0.0
    %3530 = vmatprep.subr.mxu0 0.0
    %3531 = vmatpush1.msra.mxu0 0.0
    %3532 = vmatprep.subr.mxu0 0.0
    %3533 = vmatpush1.msra.mxu0 0.0
    %3534 = vmatprep.subr.mxu0 0.0
    %3535 = vmatpush1.msra.mxu0 0.0
    %3536 = vmatprep.subr.mxu0 0.0
    %3537 = vmatpush1.msra.mxu0 0.0
    %3538 = vmatprep.subr.mxu0 0.0
    %3539 = vmatpush1.msra.mxu0 0.0
    %3540 = vmatprep.subr.mxu0 0.0
    %3541 = vmatpush1.msra.mxu0 0.0
    %3542 = vmatprep.subr.mxu0 0.0
    %3543 = vmatpush1.msra.mxu0 0.0
    %3544 = vmatprep.subr.mxu0 0.0
    %3545 = vmatpush1.msra.mxu0 0.0
    %3546 = vmatprep.subr.mxu0 0.0
    %3547 = vmatpush1.msra.mxu0 0.0
    %3548 = vmatprep.subr.mxu0 0.0
    %3549 = vmatpush1.msra.mxu0 0.0
    %3550 = vmatprep.subr.mxu0 0.0
    %3551 = vmatpush1.msra.mxu0 0.0
    %3552 = vmatprep.subr.mxu0 0.0
    %3553 = vmatpush1.msra.mxu0 0.0
    %3554 = vmatprep.subr.mxu0 0.0
    %3555 = vmatpush1.msra.mxu0 0.0
    %3556 = vmatprep.subr.mxu0 0.0
    %3557 = vmatpush1.msra.mxu0 0.0
    %3558 = vmatprep.subr.mxu0 0.0
    %3559 = vmatpush1.msra.mxu0 0.0
    %3560 = vmatprep.subr.mxu0 0.0
    %3561 = vmatpush1.msra.mxu0 0.0
    %3562 = vmatprep.subr.mxu0 0.0
    %3563 = vmatpush1.msra.mxu0 0.0
    %3564 = vmatprep.subr.mxu0 0.0
    %3565 = vmatpush1.msra.mxu0 0.0
    %3566 = vmatprep.subr.mxu0 0.0
    %3567 = vmatpush1.msra.mxu0 0.0
    %3568 = vmatprep.subr.mxu0 0.0
    %3569 = vmatpush1.msra.mxu0 0.0
    %3570 = vmatprep.subr.mxu0 0.0
    %3571 = vmatpush1.msra.mxu0 0.0
    %3572 = vmatprep.subr.mxu0 0.0
    %3573 = vmatpush1.msra.mxu0 0.0
    %3574 = vmatprep.mubr.f32.mxu0 0.0
    %3575 = vmatmul.mubr.f32.gmra.mrb[0].mxu0 %v3508
    %v3576 = vpop.f32.mrb[0].mxu0
    %v3577 = vadd.f32 0.0, %v3576
    %v3578 = vpop.f32.mrb[0].mxu0
    %v3579 = vadd.f32 0.0, %v3578
    %3580 = vdwg.mxu0
    %v3581 = vadd.f32 %v3496, %v3577
    %v3582 = vadd.f32 %v3497, %v3579
    %v3583 = vld [vmem:[%s9] sm:$0xff]
    %3585 = vset.pattern.permute.xlu0 0
    %3586 = vperm.xlu0 %3585, %v3583
    %v3587 = vpop.permute.xlu0 %3586
    %v3589 = vadd.f32 %v3581, %v3587
    %v3590 = vadd.f32 %v3582, %v3587
    %s3591 = scalar_lea.vmem [#allocation2], 16
    %3592 = vst [vmem:[%s3591] sm:$0xff] %v3589
    %3593 = vst [vmem:[%s3591 + $0x8] sm:$0xff] %v3590
    // Predicated region
    $region42: #{tpu_custom_call.1} parent=1 // pred_check
      _
    $region43: #{tpu_custom_call.1} parent=1 // pred_check_branch
      %3595 = sbr.rel (0) target = $region45
    $region44: #{tpu_custom_call.1} parent=1 // pred_region
      %s3597 = ssub.s32 512, 512
      %3598 = vsyncadd [#allocation3], %s3597
      %s3599 = sshll.u32 [#allocation2], 4
      %s3600 = int_to_ptr.vmem [resolvable:$true] %s3599
      %3605 = dma.vmem_to_hbm [thread:$0]  %s3600, 512, %s10, [#allocation3], 256, 256, 16
    $region45: #{tpu_custom_call.1} parent=1 // pred_fallthru
      _
    // Predicated region
    $region46: #{tpu_custom_call.1} parent=1 // pred_check
      _
    $region47: #{tpu_custom_call.1} parent=1 // pred_check_branch
      %3607 = sbr.rel (0) target = $region49
    $region48: #{tpu_custom_call.1} parent=1 // pred_region
      %3608 = dma.done [#allocation3], 512
    $region49: #{tpu_custom_call.1} parent=1 // pred_fallthru
      _
    %3609 = vsyncpa [#allocation3], 1

</llo_original>
